<compile_context>
chip_gen: v7x
topology: tpu7x:2x2x1
jax: 0.10.0
libtpu: 0.0.40
codegen_flags: <defaults>
</compile_context>

<pallas_src>
import functools

import jax
import jax.numpy as jnp
import numpy as np
from jax.experimental import pallas as pl
from jax.experimental.pallas import tpu as pltpu


# ----------------------------------------------------------------------------
# Fused Pallas kernel: one grid step == one video, everything stays on-chip.
# ----------------------------------------------------------------------------
def _fused_kernel(*refs, T, H, n_conv, n_lstm):
    (feat_ref, img_w_ref, img_b_ref, conv_w_ref, conv_b_ref) = refs[:5]
    lstm_refs = refs[5:5 + 3 * n_lstm]
    fc_w_ref, fc_b_ref, agg_w_ref, agg_b_ref, o_ref = refs[5 + 3 * n_lstm:]
    f32 = jnp.float32

    # --- img_encoder.fc : Linear(512, H) + ReLU ------------------------------
    x = feat_ref[0]                                                    # (T, 512)
    h = jnp.dot(x, img_w_ref[...], preferred_element_type=f32) + img_b_ref[...]
    h = jnp.maximum(h, 0.0)                                            # (T, H)

    # --- Temporal1DConv : n_conv x (Conv1d(H, H, k=3, pad=1) + ReLU) ---------
    # Zero-padding is built in-register (no HBM pad buffer).
    zero_row = jnp.zeros((1, H), f32)
    for l in range(n_conv):
        x_m1 = jnp.concatenate([zero_row, h[:T - 1, :]], axis=0)       # x[t-1]
        x_p1 = jnp.concatenate([h[1:, :], zero_row], axis=0)           # x[t+1]
        acc = (jnp.dot(x_m1, conv_w_ref[3 * l + 0], preferred_element_type=f32)
               + jnp.dot(h, conv_w_ref[3 * l + 1], preferred_element_type=f32)
               + jnp.dot(x_p1, conv_w_ref[3 * l + 2], preferred_element_type=f32)
               + conv_b_ref[l])
        h = jnp.maximum(acc, 0.0)                                      # (T, H)

    # --- BiLSTM: gates packed [i, f, o, g]; fwd/bwd interleaved per step -----
    def cell(gates, c):
        ifo = jnp.tanh(gates[:, :3 * H] * 0.5) * 0.5 + 0.5  # sigmoid via one tanh range
        g = jnp.tanh(gates[:, 3 * H:])
        c = ifo[:, H:2 * H] * c + ifo[:, :H] * g
        return ifo[:, 2 * H:3 * H] * jnp.tanh(c), c

    for l in range(n_lstm):
        wih_ref, whh_ref, b_ref = lstm_refs[3 * l:3 * l + 3]
        # Precompute gate pre-activations for both directions (batched matmul).
        xp_f = jnp.dot(h, wih_ref[0], preferred_element_type=f32) + b_ref[0]   # (T, 4H)
        xp_b = jnp.dot(h, wih_ref[1], preferred_element_type=f32) + b_ref[1]   # (T, 4H)
        whh_f = whh_ref[0]
        whh_b = whh_ref[1]
        h_f = jnp.zeros((1, H), f32)
        c_f = jnp.zeros((1, H), f32)
        h_b = jnp.zeros((1, H), f32)
        c_b = jnp.zeros((1, H), f32)
        hf_rows = [None] * T
        hb_rows = [None] * T
        for s in range(T):   # static unroll (T=8); two independent chains per step
            tb = T - 1 - s   # backward direction reads reversed rows in-place
            g_f = xp_f[s:s + 1, :] + jnp.dot(h_f, whh_f, preferred_element_type=f32)
            g_b = xp_b[tb:tb + 1, :] + jnp.dot(h_b, whh_b, preferred_element_type=f32)
            h_f, c_f = cell(g_f, c_f)
            h_b, c_b = cell(g_b, c_b)
            hf_rows[s] = h_f
            hb_rows[tb] = h_b
        h = jnp.concatenate([jnp.concatenate(hf_rows, axis=0),
                             jnp.concatenate(hb_rows, axis=0)], axis=1)  # (T, 2H)

    # --- fc : Linear(2H, H) ---------------------------------------------------
    y = jnp.dot(h, fc_w_ref[...], preferred_element_type=f32) + fc_b_ref[...]   # (T, H)

    # --- AGG_ATTN : softmax over frames, weighted sum -------------------------
    logits = jnp.sum(y * agg_w_ref[...], axis=1, keepdims=True) + agg_b_ref[...]  # (T, 1)
    m = jnp.max(logits, axis=0, keepdims=True)
    e = jnp.exp(logits - m)
    w = e * pl.reciprocal(jnp.sum(e, axis=0, keepdims=True), approx=True)
    o_ref[0] = jnp.sum(w * y, axis=0, keepdims=True)                   # (1, H)


def _reorder_gates(p, H):
    """Permute packed gate columns from PyTorch [i, f, g, o] to [i, f, o, g]."""
    return jnp.concatenate(
        [p[..., :2 * H], p[..., 3 * H:4 * H], p[..., 2 * H:3 * H]], axis=-1)


@jax.jit
def clip_vid_encoder_forward(frame_feats, p):
    """frame_feats: (B, T, 512) per-frame CLIP image embeddings -> (B, 1, H)."""
    B, T, clip_dim = frame_feats.shape
    H = p["img_fc_w"].shape[1]
    n_conv = len(p["conv"])
    n_lstm = len(p["lstm"])

    # Pre-pack weights (pure layout work, done once under jit).
    conv_w = jnp.concatenate([w for (w, _) in p["conv"]], axis=0)      # (3*n_conv, H, H)
    conv_b = jnp.stack([b for (_, b) in p["conv"]], axis=0)            # (n_conv, 1, H)

    lstm_in, lstm_specs = [], []
    for layer in p["lstm"]:
        wih = jnp.stack([_reorder_gates(layer["wih_f"], H),
                         _reorder_gates(layer["wih_b"], H)], axis=0)   # (2, Din, 4H)
        whh = jnp.stack([_reorder_gates(layer["whh_f"], H),
                         _reorder_gates(layer["whh_b"], H)], axis=0)   # (2, H, 4H)
        bias = jnp.stack([_reorder_gates(layer["bias_f"], H),
                          _reorder_gates(layer["bias_b"], H)], axis=0)  # (2, 1, 4H)
        lstm_in += [wih, whh, bias]
        lstm_specs += [pl.BlockSpec(wih.shape, lambda b: (0, 0, 0)),
                       pl.BlockSpec(whh.shape, lambda b: (0, 0, 0)),
                       pl.BlockSpec(bias.shape, lambda b: (0, 0, 0))]

    in_specs = (
        [pl.BlockSpec((1, T, clip_dim), lambda b: (b, 0, 0)),
         pl.BlockSpec((clip_dim, H), lambda b: (0, 0)),
         pl.BlockSpec((1, H), lambda b: (0, 0)),
         pl.BlockSpec((3 * n_conv, H, H), lambda b: (0, 0, 0)),
         pl.BlockSpec((n_conv, 1, H), lambda b: (0, 0, 0))]
        + lstm_specs
        + [pl.BlockSpec((2 * H, H), lambda b: (0, 0)),
           pl.BlockSpec((1, H), lambda b: (0, 0)),
           pl.BlockSpec((1, H), lambda b: (0, 0)),
           pl.BlockSpec((1, 1), lambda b: (0, 0))])

    return pl.pallas_call(
        functools.partial(_fused_kernel, T=T, H=H, n_conv=n_conv, n_lstm=n_lstm),
        out_shape=jax.ShapeDtypeStruct((B, 1, H), jnp.float32),
        grid=(B,),
        in_specs=in_specs,
        out_specs=pl.BlockSpec((1, 1, H), lambda b: (b, 0, 0)),
        compiler_params=pltpu.CompilerParams(
            dimension_semantics=("parallel",)),        # v7x: 2 TCs, one video each
    )(frame_feats, p["img_fc_w"], p["img_fc_b"], conv_w, conv_b,
      *lstm_in, p["fc_w"], p["fc_b"], p["agg_w"], p["agg_b"])


# ----------------------------------------------------------------------------
# Parameters (deterministic, synthetic; PyTorch [i, f, g, o] gate packing)
# ----------------------------------------------------------------------------
def init_params(key, hidden=32, clip_dim=512, conv_layers=2, lstm_layers=2):
    H = hidden
    keys = list(jax.random.split(key, 64))
    kit = iter(keys)

    def nrm(shape, scale):
        return jax.random.normal(next(kit), shape, jnp.float32) * scale

    p = {}
    # CLIP_Img_Encoder.fc : Linear(512, H) + ReLU
    p["img_fc_w"] = nrm((clip_dim, H), 1.0 / np.sqrt(clip_dim))
    p["img_fc_b"] = nrm((1, H), 0.01)
    # Temporal1DConv : conv_layers x (Conv1d(H, H, k=3, pad=1) + ReLU)
    p["conv"] = [
        (nrm((3, H, H), 1.0 / np.sqrt(3 * H)), nrm((1, H), 0.01))
        for _ in range(conv_layers)
    ]
    # BiLSTMLayer : 2-layer bidirectional LSTM, hidden=H per direction
    lstm = []
    in_sz = H
    for _ in range(lstm_layers):
        layer = {}
        for d in ("f", "b"):
            layer[f"wih_{d}"] = nrm((in_sz, 4 * H), 1.0 / np.sqrt(in_sz))   # W_ih^T
            layer[f"whh_{d}"] = nrm((H, 4 * H), 1.0 / np.sqrt(H))           # W_hh^T
            layer[f"bias_{d}"] = nrm((1, 4 * H), 0.01)                      # b_ih + b_hh
        lstm.append(layer)
        in_sz = 2 * H
    p["lstm"] = lstm
    # CLIP_Vid_Encoder.fc : Linear(2H, H)
    p["fc_w"] = nrm((2 * H, H), 1.0 / np.sqrt(2 * H))
    p["fc_b"] = nrm((1, H), 0.01)
    # agg_net : Linear(H, 1)
    p["agg_w"] = nrm((1, H), 1.0 / np.sqrt(H))
    p["agg_b"] = jnp.zeros((1, 1), jnp.float32)
    return p


# ----------------------------------------------------------------------------
# Pure-JAX reference (PyTorch gate ordering [i, f, g, o]) for correctness check
# ----------------------------------------------------------------------------
def reference_forward(frame_feats, p):
    hp = jax.lax.Precision.HIGHEST

    def dot(a, b):
        return jnp.dot(a, b, precision=hp)

    def lstm_dir(x, wih, whh, bias):
        T = x.shape[0]
        H = whh.shape[0]
        xp = dot(x, wih) + bias
        h = jnp.zeros((1, H), jnp.float32)
        c = jnp.zeros((1, H), jnp.float32)
        hs = []
        for t in range(T):
            g = xp[t:t + 1] + dot(h, whh)
            i = jax.nn.sigmoid(g[:, 0 * H:1 * H])
            f = jax.nn.sigmoid(g[:, 1 * H:2 * H])
            gg = jnp.tanh(g[:, 2 * H:3 * H])
            o = jax.nn.sigmoid(g[:, 3 * H:4 * H])
            c = f * c + i * gg
            h = o * jnp.tanh(c)
            hs.append(h)
        return jnp.concatenate(hs, axis=0)

    B = frame_feats.shape[0]
    out = []
    for b in range(B):
        x = jnp.maximum(dot(frame_feats[b], p["img_fc_w"]) + p["img_fc_b"], 0.0)
        T = x.shape[0]
        for wc, bc in p["conv"]:
            xp = jnp.pad(x, ((1, 1), (0, 0)))
            acc = sum(dot(xp[k:k + T], wc[k]) for k in range(3))
            x = jnp.maximum(acc + bc, 0.0)
        for layer in p["lstm"]:
            hf = lstm_dir(x, layer["wih_f"], layer["whh_f"], layer["bias_f"])
            hb = lstm_dir(x[::-1], layer["wih_b"], layer["whh_b"], layer["bias_b"])[::-1]
            x = jnp.concatenate([hf, hb], axis=1)
        y = dot(x, p["fc_w"]) + p["fc_b"]
        logits = jnp.sum(y * p["agg_w"], axis=1, keepdims=True) + p["agg_b"]
        w = jax.nn.softmax(logits, axis=0)
        out.append(jnp.sum(w * y, axis=0, keepdims=True))
    return jnp.stack(out, axis=0)


# ----------------------------------------------------------------------------
if __name__ == "__main__":
    B, T, CLIP_DIM, HIDDEN = 2, 8, 512, 32

    key = jax.random.PRNGKey(0)
    k_feat, k_params = jax.random.split(key)
    params = init_params(k_params, hidden=HIDDEN, clip_dim=CLIP_DIM)
    # Per-frame CLIP embeddings (stand-in for encode_image(Image.open(path))).
    frame_feats = jax.random.normal(k_feat, (B, T, CLIP_DIM), jnp.float32)

    out = jax.block_until_ready(clip_vid_encoder_forward(frame_feats, params))
    ref = jax.block_until_ready(reference_forward(frame_feats, params))

    np.testing.assert_allclose(np.asarray(out), np.asarray(ref),
                               rtol=2e-2, atol=2e-3)
    assert out.shape == (B, 1, HIDDEN)
    print("KERNEL_OK")
</pallas_src>

<mosaic_0001>
module attributes {stable_mosaic.version = 11 : i64} {
  func.func @_fused_kernel(%arg0: i32, %arg1: memref<1x8x512xf32, #tpu.memory_space<vmem>>, %arg2: memref<512x32xf32, #tpu.memory_space<vmem>>, %arg3: memref<1x32xf32, #tpu.memory_space<vmem>>, %arg4: memref<6x32x32xf32, #tpu.memory_space<vmem>>, %arg5: memref<2x1x32xf32, #tpu.memory_space<vmem>>, %arg6: memref<2x32x128xf32, #tpu.memory_space<vmem>>, %arg7: memref<2x32x128xf32, #tpu.memory_space<vmem>>, %arg8: memref<2x1x128xf32, #tpu.memory_space<vmem>>, %arg9: memref<2x64x128xf32, #tpu.memory_space<vmem>>, %arg10: memref<2x32x128xf32, #tpu.memory_space<vmem>>, %arg11: memref<2x1x128xf32, #tpu.memory_space<vmem>>, %arg12: memref<64x32xf32, #tpu.memory_space<vmem>>, %arg13: memref<1x32xf32, #tpu.memory_space<vmem>>, %arg14: memref<1x32xf32, #tpu.memory_space<vmem>>, %arg15: memref<1x1xf32, #tpu.memory_space<vmem>>, %arg16: memref<1x1x32xf32, #tpu.memory_space<vmem>>) attributes {dimension_semantics = [#tpu.dimension_semantics<parallel>], iteration_bounds = array<i64: 2>, scalar_prefetch = 0 : i64, scratch_operands = 0 : i64, tpu.core_type = #tpu.core_type<tc>, window_params = [{transform_indices = @transform_0, window_bounds = array<i64: 1, 8, 512>}, {pipeline_mode = #tpu.pipeline_mode<synchronous>, transform_indices = @transform_1, window_bounds = array<i64: 512, 32>}, {pipeline_mode = #tpu.pipeline_mode<synchronous>, transform_indices = @transform_2, window_bounds = array<i64: 1, 32>}, {pipeline_mode = #tpu.pipeline_mode<synchronous>, transform_indices = @transform_3, window_bounds = array<i64: 6, 32, 32>}, {pipeline_mode = #tpu.pipeline_mode<synchronous>, transform_indices = @transform_4, window_bounds = array<i64: 2, 1, 32>}, {pipeline_mode = #tpu.pipeline_mode<synchronous>, transform_indices = @transform_5, window_bounds = array<i64: 2, 32, 128>}, {pipeline_mode = #tpu.pipeline_mode<synchronous>, transform_indices = @transform_6, window_bounds = array<i64: 2, 32, 128>}, {pipeline_mode = #tpu.pipeline_mode<synchronous>, transform_indices = @transform_7, window_bounds = array<i64: 2, 1, 128>}, {pipeline_mode = #tpu.pipeline_mode<synchronous>, transform_indices = @transform_8, window_bounds = array<i64: 2, 64, 128>}, {pipeline_mode = #tpu.pipeline_mode<synchronous>, transform_indices = @transform_9, window_bounds = array<i64: 2, 32, 128>}, {pipeline_mode = #tpu.pipeline_mode<synchronous>, transform_indices = @transform_10, window_bounds = array<i64: 2, 1, 128>}, {pipeline_mode = #tpu.pipeline_mode<synchronous>, transform_indices = @transform_11, window_bounds = array<i64: 64, 32>}, {pipeline_mode = #tpu.pipeline_mode<synchronous>, transform_indices = @transform_12, window_bounds = array<i64: 1, 32>}, {pipeline_mode = #tpu.pipeline_mode<synchronous>, transform_indices = @transform_13, window_bounds = array<i64: 1, 32>}, {pipeline_mode = #tpu.pipeline_mode<synchronous>, transform_indices = @transform_14, window_bounds = array<i64: 1, 1>}, {transform_indices = @transform_15, window_bounds = array<i64: 1, 1, 32>}]} {
    %c0 = arith.constant 0 : index
    %c0_0 = arith.constant 0 : index
    %c0_1 = arith.constant 0 : index
    %0 = vector.load %arg1[%c0, %c0_0, %c0_1] : memref<1x8x512xf32, #tpu.memory_space<vmem>>, vector<1x8x512xf32>
    %1 = vector.shape_cast %0 : vector<1x8x512xf32> to vector<8x512xf32>
    %c0_2 = arith.constant 0 : index
    %c0_3 = arith.constant 0 : index
    %2 = vector.load %arg2[%c0_2, %c0_3] : memref<512x32xf32, #tpu.memory_space<vmem>>, vector<512x32xf32>
    %cst = arith.constant dense<0.000000e+00> : vector<8x32xf32>
    %3 = tpu.matmul %1, %2, %cst {dimension_numbers = #tpu.dot_dimension_numbers<[1], [0], [0], [1], [0, 0, 1, 1], [], []>} : vector<8x512xf32>, vector<512x32xf32>, vector<8x32xf32> -> vector<8x32xf32>
    %c0_4 = arith.constant 0 : index
    %c0_5 = arith.constant 0 : index
    %4 = vector.load %arg3[%c0_4, %c0_5] : memref<1x32xf32, #tpu.memory_space<vmem>>, vector<1x32xf32>
    %5 = vector.broadcast %4 : vector<1x32xf32> to vector<8x32xf32>
    %6 = arith.addf %3, %5 : vector<8x32xf32>
    %cst_6 = arith.constant 0.000000e+00 : f32
    %7 = vector.broadcast %cst_6 : f32 to vector<8x32xf32>
    %8 = arith.maximumf %6, %7 : vector<8x32xf32>
    %cst_7 = arith.constant 0.000000e+00 : f32
    %9 = vector.broadcast %cst_7 : f32 to vector<1x32xf32>
    %10 = vector.extract_strided_slice %8 {offsets = [0, 0], sizes = [7, 32], strides = [1, 1]} : vector<8x32xf32> to vector<7x32xf32>
    %11 = tpu.concatenate %9, %10 in 0 : vector<1x32xf32>, vector<7x32xf32> -> vector<8x32xf32>
    %12 = vector.extract_strided_slice %8 {offsets = [1, 0], sizes = [7, 32], strides = [1, 1]} : vector<8x32xf32> to vector<7x32xf32>
    %13 = tpu.concatenate %12, %9 in 0 : vector<7x32xf32>, vector<1x32xf32> -> vector<8x32xf32>
    %c0_8 = arith.constant 0 : index
    %c0_9 = arith.constant 0 : index
    %c0_10 = arith.constant 0 : index
    %14 = vector.load %arg4[%c0_8, %c0_9, %c0_10] : memref<6x32x32xf32, #tpu.memory_space<vmem>>, vector<1x32x32xf32>
    %15 = vector.shape_cast %14 : vector<1x32x32xf32> to vector<32x32xf32>
    %cst_11 = arith.constant dense<0.000000e+00> : vector<8x32xf32>
    %16 = tpu.matmul %11, %15, %cst_11 {dimension_numbers = #tpu.dot_dimension_numbers<[1], [0], [0], [1], [0, 0, 1, 1], [], []>} : vector<8x32xf32>, vector<32x32xf32>, vector<8x32xf32> -> vector<8x32xf32>
    %c1 = arith.constant 1 : index
    %c0_12 = arith.constant 0 : index
    %c0_13 = arith.constant 0 : index
    %17 = vector.load %arg4[%c1, %c0_12, %c0_13] : memref<6x32x32xf32, #tpu.memory_space<vmem>>, vector<1x32x32xf32>
    %18 = vector.shape_cast %17 : vector<1x32x32xf32> to vector<32x32xf32>
    %cst_14 = arith.constant dense<0.000000e+00> : vector<8x32xf32>
    %19 = tpu.matmul %8, %18, %cst_14 {dimension_numbers = #tpu.dot_dimension_numbers<[1], [0], [0], [1], [0, 0, 1, 1], [], []>} : vector<8x32xf32>, vector<32x32xf32>, vector<8x32xf32> -> vector<8x32xf32>
    %20 = arith.addf %16, %19 : vector<8x32xf32>
    %c2 = arith.constant 2 : index
    %c0_15 = arith.constant 0 : index
    %c0_16 = arith.constant 0 : index
    %21 = vector.load %arg4[%c2, %c0_15, %c0_16] : memref<6x32x32xf32, #tpu.memory_space<vmem>>, vector<1x32x32xf32>
    %22 = vector.shape_cast %21 : vector<1x32x32xf32> to vector<32x32xf32>
    %cst_17 = arith.constant dense<0.000000e+00> : vector<8x32xf32>
    %23 = tpu.matmul %13, %22, %cst_17 {dimension_numbers = #tpu.dot_dimension_numbers<[1], [0], [0], [1], [0, 0, 1, 1], [], []>} : vector<8x32xf32>, vector<32x32xf32>, vector<8x32xf32> -> vector<8x32xf32>
    %24 = arith.addf %20, %23 : vector<8x32xf32>
    %c0_18 = arith.constant 0 : index
    %c0_19 = arith.constant 0 : index
    %c0_20 = arith.constant 0 : index
    %25 = vector.load %arg5[%c0_18, %c0_19, %c0_20] : memref<2x1x32xf32, #tpu.memory_space<vmem>>, vector<1x1x32xf32>
    %26 = vector.shape_cast %25 : vector<1x1x32xf32> to vector<1x32xf32>
    %27 = vector.broadcast %26 : vector<1x32xf32> to vector<8x32xf32>
    %28 = arith.addf %24, %27 : vector<8x32xf32>
    %cst_21 = arith.constant 0.000000e+00 : f32
    %29 = vector.broadcast %cst_21 : f32 to vector<8x32xf32>
    %30 = arith.maximumf %28, %29 : vector<8x32xf32>
    %31 = vector.extract_strided_slice %30 {offsets = [0, 0], sizes = [7, 32], strides = [1, 1]} : vector<8x32xf32> to vector<7x32xf32>
    %32 = tpu.concatenate %9, %31 in 0 : vector<1x32xf32>, vector<7x32xf32> -> vector<8x32xf32>
    %33 = vector.extract_strided_slice %30 {offsets = [1, 0], sizes = [7, 32], strides = [1, 1]} : vector<8x32xf32> to vector<7x32xf32>
    %34 = tpu.concatenate %33, %9 in 0 : vector<7x32xf32>, vector<1x32xf32> -> vector<8x32xf32>
    %c3 = arith.constant 3 : index
    %c0_22 = arith.constant 0 : index
    %c0_23 = arith.constant 0 : index
    %35 = vector.load %arg4[%c3, %c0_22, %c0_23] : memref<6x32x32xf32, #tpu.memory_space<vmem>>, vector<1x32x32xf32>
    %36 = vector.shape_cast %35 : vector<1x32x32xf32> to vector<32x32xf32>
    %cst_24 = arith.constant dense<0.000000e+00> : vector<8x32xf32>
    %37 = tpu.matmul %32, %36, %cst_24 {dimension_numbers = #tpu.dot_dimension_numbers<[1], [0], [0], [1], [0, 0, 1, 1], [], []>} : vector<8x32xf32>, vector<32x32xf32>, vector<8x32xf32> -> vector<8x32xf32>
    %c4 = arith.constant 4 : index
    %c0_25 = arith.constant 0 : index
    %c0_26 = arith.constant 0 : index
    %38 = vector.load %arg4[%c4, %c0_25, %c0_26] : memref<6x32x32xf32, #tpu.memory_space<vmem>>, vector<1x32x32xf32>
    %39 = vector.shape_cast %38 : vector<1x32x32xf32> to vector<32x32xf32>
    %cst_27 = arith.constant dense<0.000000e+00> : vector<8x32xf32>
    %40 = tpu.matmul %30, %39, %cst_27 {dimension_numbers = #tpu.dot_dimension_numbers<[1], [0], [0], [1], [0, 0, 1, 1], [], []>} : vector<8x32xf32>, vector<32x32xf32>, vector<8x32xf32> -> vector<8x32xf32>
    %41 = arith.addf %37, %40 : vector<8x32xf32>
    %c5 = arith.constant 5 : index
    %c0_28 = arith.constant 0 : index
    %c0_29 = arith.constant 0 : index
    %42 = vector.load %arg4[%c5, %c0_28, %c0_29] : memref<6x32x32xf32, #tpu.memory_space<vmem>>, vector<1x32x32xf32>
    %43 = vector.shape_cast %42 : vector<1x32x32xf32> to vector<32x32xf32>
    %cst_30 = arith.constant dense<0.000000e+00> : vector<8x32xf32>
    %44 = tpu.matmul %34, %43, %cst_30 {dimension_numbers = #tpu.dot_dimension_numbers<[1], [0], [0], [1], [0, 0, 1, 1], [], []>} : vector<8x32xf32>, vector<32x32xf32>, vector<8x32xf32> -> vector<8x32xf32>
    %45 = arith.addf %41, %44 : vector<8x32xf32>
    %c1_31 = arith.constant 1 : index
    %c0_32 = arith.constant 0 : index
    %c0_33 = arith.constant 0 : index
    %46 = vector.load %arg5[%c1_31, %c0_32, %c0_33] : memref<2x1x32xf32, #tpu.memory_space<vmem>>, vector<1x1x32xf32>
    %47 = vector.shape_cast %46 : vector<1x1x32xf32> to vector<1x32xf32>
    %48 = vector.broadcast %47 : vector<1x32xf32> to vector<8x32xf32>
    %49 = arith.addf %45, %48 : vector<8x32xf32>
    %cst_34 = arith.constant 0.000000e+00 : f32
    %50 = vector.broadcast %cst_34 : f32 to vector<8x32xf32>
    %51 = arith.maximumf %49, %50 : vector<8x32xf32>
    %c0_35 = arith.constant 0 : index
    %c0_36 = arith.constant 0 : index
    %c0_37 = arith.constant 0 : index
    %52 = vector.load %arg6[%c0_35, %c0_36, %c0_37] : memref<2x32x128xf32, #tpu.memory_space<vmem>>, vector<1x32x128xf32>
    %53 = vector.shape_cast %52 : vector<1x32x128xf32> to vector<32x128xf32>
    %cst_38 = arith.constant dense<0.000000e+00> : vector<8x128xf32>
    %54 = tpu.matmul %51, %53, %cst_38 {dimension_numbers = #tpu.dot_dimension_numbers<[1], [0], [0], [1], [0, 0, 1, 1], [], []>} : vector<8x32xf32>, vector<32x128xf32>, vector<8x128xf32> -> vector<8x128xf32>
    %c0_39 = arith.constant 0 : index
    %c0_40 = arith.constant 0 : index
    %c0_41 = arith.constant 0 : index
    %55 = vector.load %arg8[%c0_39, %c0_40, %c0_41] : memref<2x1x128xf32, #tpu.memory_space<vmem>>, vector<1x1x128xf32>
    %56 = vector.shape_cast %55 : vector<1x1x128xf32> to vector<1x128xf32>
    %57 = vector.broadcast %56 : vector<1x128xf32> to vector<8x128xf32>
    %58 = arith.addf %54, %57 : vector<8x128xf32>
    %c1_42 = arith.constant 1 : index
    %c0_43 = arith.constant 0 : index
    %c0_44 = arith.constant 0 : index
    %59 = vector.load %arg6[%c1_42, %c0_43, %c0_44] : memref<2x32x128xf32, #tpu.memory_space<vmem>>, vector<1x32x128xf32>
    %60 = vector.shape_cast %59 : vector<1x32x128xf32> to vector<32x128xf32>
    %cst_45 = arith.constant dense<0.000000e+00> : vector<8x128xf32>
    %61 = tpu.matmul %51, %60, %cst_45 {dimension_numbers = #tpu.dot_dimension_numbers<[1], [0], [0], [1], [0, 0, 1, 1], [], []>} : vector<8x32xf32>, vector<32x128xf32>, vector<8x128xf32> -> vector<8x128xf32>
    %c1_46 = arith.constant 1 : index
    %c0_47 = arith.constant 0 : index
    %c0_48 = arith.constant 0 : index
    %62 = vector.load %arg8[%c1_46, %c0_47, %c0_48] : memref<2x1x128xf32, #tpu.memory_space<vmem>>, vector<1x1x128xf32>
    %63 = vector.shape_cast %62 : vector<1x1x128xf32> to vector<1x128xf32>
    %64 = vector.broadcast %63 : vector<1x128xf32> to vector<8x128xf32>
    %65 = arith.addf %61, %64 : vector<8x128xf32>
    %c0_49 = arith.constant 0 : index
    %c0_50 = arith.constant 0 : index
    %c0_51 = arith.constant 0 : index
    %66 = vector.load %arg7[%c0_49, %c0_50, %c0_51] : memref<2x32x128xf32, #tpu.memory_space<vmem>>, vector<1x32x128xf32>
    %67 = vector.shape_cast %66 : vector<1x32x128xf32> to vector<32x128xf32>
    %c1_52 = arith.constant 1 : index
    %c0_53 = arith.constant 0 : index
    %c0_54 = arith.constant 0 : index
    %68 = vector.load %arg7[%c1_52, %c0_53, %c0_54] : memref<2x32x128xf32, #tpu.memory_space<vmem>>, vector<1x32x128xf32>
    %69 = vector.shape_cast %68 : vector<1x32x128xf32> to vector<32x128xf32>
    %cst_55 = arith.constant 0.000000e+00 : f32
    %70 = vector.broadcast %cst_55 : f32 to vector<1x32xf32>
    %cst_56 = arith.constant 0.000000e+00 : f32
    %71 = vector.broadcast %cst_56 : f32 to vector<1x32xf32>
    %cst_57 = arith.constant 0.000000e+00 : f32
    %72 = vector.broadcast %cst_57 : f32 to vector<1x32xf32>
    %cst_58 = arith.constant 0.000000e+00 : f32
    %73 = vector.broadcast %cst_58 : f32 to vector<1x32xf32>
    %74 = vector.extract_strided_slice %58 {offsets = [0, 0], sizes = [1, 128], strides = [1, 1]} : vector<8x128xf32> to vector<1x128xf32>
    %cst_59 = arith.constant dense<0.000000e+00> : vector<1x128xf32>
    %75 = tpu.matmul %70, %67, %cst_59 {dimension_numbers = #tpu.dot_dimension_numbers<[1], [0], [0], [1], [0, 0, 1, 1], [], []>} : vector<1x32xf32>, vector<32x128xf32>, vector<1x128xf32> -> vector<1x128xf32>
    %76 = arith.addf %74, %75 : vector<1x128xf32>
    %77 = vector.extract_strided_slice %65 {offsets = [7, 0], sizes = [1, 128], strides = [1, 1]} : vector<8x128xf32> to vector<1x128xf32>
    %cst_60 = arith.constant dense<0.000000e+00> : vector<1x128xf32>
    %78 = tpu.matmul %72, %69, %cst_60 {dimension_numbers = #tpu.dot_dimension_numbers<[1], [0], [0], [1], [0, 0, 1, 1], [], []>} : vector<1x32xf32>, vector<32x128xf32>, vector<1x128xf32> -> vector<1x128xf32>
    %79 = arith.addf %77, %78 : vector<1x128xf32>
    %80 = vector.extract_strided_slice %76 {offsets = [0, 0], sizes = [1, 96], strides = [1, 1]} : vector<1x128xf32> to vector<1x96xf32>
    %cst_61 = arith.constant 5.000000e-01 : f32
    %81 = vector.broadcast %cst_61 : f32 to vector<1x96xf32>
    %82 = arith.mulf %80, %81 : vector<1x96xf32>
    %83 = math.tanh %82 : vector<1x96xf32>
    %cst_62 = arith.constant 5.000000e-01 : f32
    %84 = vector.broadcast %cst_62 : f32 to vector<1x96xf32>
    %85 = arith.mulf %83, %84 : vector<1x96xf32>
    %cst_63 = arith.constant 5.000000e-01 : f32
    %86 = vector.broadcast %cst_63 : f32 to vector<1x96xf32>
    %87 = arith.addf %85, %86 : vector<1x96xf32>
    %88 = vector.extract_strided_slice %76 {offsets = [0, 96], sizes = [1, 32], strides = [1, 1]} : vector<1x128xf32> to vector<1x32xf32>
    %89 = math.tanh %88 : vector<1x32xf32>
    %90 = vector.extract_strided_slice %87 {offsets = [0, 32], sizes = [1, 32], strides = [1, 1]} : vector<1x96xf32> to vector<1x32xf32>
    %91 = arith.mulf %90, %71 : vector<1x32xf32>
    %92 = vector.extract_strided_slice %87 {offsets = [0, 0], sizes = [1, 32], strides = [1, 1]} : vector<1x96xf32> to vector<1x32xf32>
    %93 = arith.mulf %92, %89 : vector<1x32xf32>
    %94 = arith.addf %91, %93 : vector<1x32xf32>
    %95 = vector.extract_strided_slice %87 {offsets = [0, 64], sizes = [1, 32], strides = [1, 1]} : vector<1x96xf32> to vector<1x32xf32>
    %96 = math.tanh %94 : vector<1x32xf32>
    %97 = arith.mulf %95, %96 : vector<1x32xf32>
    %98 = vector.extract_strided_slice %79 {offsets = [0, 0], sizes = [1, 96], strides = [1, 1]} : vector<1x128xf32> to vector<1x96xf32>
    %cst_64 = arith.constant 5.000000e-01 : f32
    %99 = vector.broadcast %cst_64 : f32 to vector<1x96xf32>
    %100 = arith.mulf %98, %99 : vector<1x96xf32>
    %101 = math.tanh %100 : vector<1x96xf32>
    %cst_65 = arith.constant 5.000000e-01 : f32
    %102 = vector.broadcast %cst_65 : f32 to vector<1x96xf32>
    %103 = arith.mulf %101, %102 : vector<1x96xf32>
    %cst_66 = arith.constant 5.000000e-01 : f32
    %104 = vector.broadcast %cst_66 : f32 to vector<1x96xf32>
    %105 = arith.addf %103, %104 : vector<1x96xf32>
    %106 = vector.extract_strided_slice %79 {offsets = [0, 96], sizes = [1, 32], strides = [1, 1]} : vector<1x128xf32> to vector<1x32xf32>
    %107 = math.tanh %106 : vector<1x32xf32>
    %108 = vector.extract_strided_slice %105 {offsets = [0, 32], sizes = [1, 32], strides = [1, 1]} : vector<1x96xf32> to vector<1x32xf32>
    %109 = arith.mulf %108, %73 : vector<1x32xf32>
    %110 = vector.extract_strided_slice %105 {offsets = [0, 0], sizes = [1, 32], strides = [1, 1]} : vector<1x96xf32> to vector<1x32xf32>
    %111 = arith.mulf %110, %107 : vector<1x32xf32>
    %112 = arith.addf %109, %111 : vector<1x32xf32>
    %113 = vector.extract_strided_slice %105 {offsets = [0, 64], sizes = [1, 32], strides = [1, 1]} : vector<1x96xf32> to vector<1x32xf32>
    %114 = math.tanh %112 : vector<1x32xf32>
    %115 = arith.mulf %113, %114 : vector<1x32xf32>
    %116 = vector.extract_strided_slice %58 {offsets = [1, 0], sizes = [1, 128], strides = [1, 1]} : vector<8x128xf32> to vector<1x128xf32>
    %cst_67 = arith.constant dense<0.000000e+00> : vector<1x128xf32>
    %117 = tpu.matmul %97, %67, %cst_67 {dimension_numbers = #tpu.dot_dimension_numbers<[1], [0], [0], [1], [0, 0, 1, 1], [], []>} : vector<1x32xf32>, vector<32x128xf32>, vector<1x128xf32> -> vector<1x128xf32>
    %118 = arith.addf %116, %117 : vector<1x128xf32>
    %119 = vector.extract_strided_slice %65 {offsets = [6, 0], sizes = [1, 128], strides = [1, 1]} : vector<8x128xf32> to vector<1x128xf32>
    %cst_68 = arith.constant dense<0.000000e+00> : vector<1x128xf32>
    %120 = tpu.matmul %115, %69, %cst_68 {dimension_numbers = #tpu.dot_dimension_numbers<[1], [0], [0], [1], [0, 0, 1, 1], [], []>} : vector<1x32xf32>, vector<32x128xf32>, vector<1x128xf32> -> vector<1x128xf32>
    %121 = arith.addf %119, %120 : vector<1x128xf32>
    %122 = vector.extract_strided_slice %118 {offsets = [0, 0], sizes = [1, 96], strides = [1, 1]} : vector<1x128xf32> to vector<1x96xf32>
    %cst_69 = arith.constant 5.000000e-01 : f32
    %123 = vector.broadcast %cst_69 : f32 to vector<1x96xf32>
    %124 = arith.mulf %122, %123 : vector<1x96xf32>
    %125 = math.tanh %124 : vector<1x96xf32>
    %cst_70 = arith.constant 5.000000e-01 : f32
    %126 = vector.broadcast %cst_70 : f32 to vector<1x96xf32>
    %127 = arith.mulf %125, %126 : vector<1x96xf32>
    %cst_71 = arith.constant 5.000000e-01 : f32
    %128 = vector.broadcast %cst_71 : f32 to vector<1x96xf32>
    %129 = arith.addf %127, %128 : vector<1x96xf32>
    %130 = vector.extract_strided_slice %118 {offsets = [0, 96], sizes = [1, 32], strides = [1, 1]} : vector<1x128xf32> to vector<1x32xf32>
    %131 = math.tanh %130 : vector<1x32xf32>
    %132 = vector.extract_strided_slice %129 {offsets = [0, 32], sizes = [1, 32], strides = [1, 1]} : vector<1x96xf32> to vector<1x32xf32>
    %133 = arith.mulf %132, %94 : vector<1x32xf32>
    %134 = vector.extract_strided_slice %129 {offsets = [0, 0], sizes = [1, 32], strides = [1, 1]} : vector<1x96xf32> to vector<1x32xf32>
    %135 = arith.mulf %134, %131 : vector<1x32xf32>
    %136 = arith.addf %133, %135 : vector<1x32xf32>
    %137 = vector.extract_strided_slice %129 {offsets = [0, 64], sizes = [1, 32], strides = [1, 1]} : vector<1x96xf32> to vector<1x32xf32>
    %138 = math.tanh %136 : vector<1x32xf32>
    %139 = arith.mulf %137, %138 : vector<1x32xf32>
    %140 = vector.extract_strided_slice %121 {offsets = [0, 0], sizes = [1, 96], strides = [1, 1]} : vector<1x128xf32> to vector<1x96xf32>
    %cst_72 = arith.constant 5.000000e-01 : f32
    %141 = vector.broadcast %cst_72 : f32 to vector<1x96xf32>
    %142 = arith.mulf %140, %141 : vector<1x96xf32>
    %143 = math.tanh %142 : vector<1x96xf32>
    %cst_73 = arith.constant 5.000000e-01 : f32
    %144 = vector.broadcast %cst_73 : f32 to vector<1x96xf32>
    %145 = arith.mulf %143, %144 : vector<1x96xf32>
    %cst_74 = arith.constant 5.000000e-01 : f32
    %146 = vector.broadcast %cst_74 : f32 to vector<1x96xf32>
    %147 = arith.addf %145, %146 : vector<1x96xf32>
    %148 = vector.extract_strided_slice %121 {offsets = [0, 96], sizes = [1, 32], strides = [1, 1]} : vector<1x128xf32> to vector<1x32xf32>
    %149 = math.tanh %148 : vector<1x32xf32>
    %150 = vector.extract_strided_slice %147 {offsets = [0, 32], sizes = [1, 32], strides = [1, 1]} : vector<1x96xf32> to vector<1x32xf32>
    %151 = arith.mulf %150, %112 : vector<1x32xf32>
    %152 = vector.extract_strided_slice %147 {offsets = [0, 0], sizes = [1, 32], strides = [1, 1]} : vector<1x96xf32> to vector<1x32xf32>
    %153 = arith.mulf %152, %149 : vector<1x32xf32>
    %154 = arith.addf %151, %153 : vector<1x32xf32>
    %155 = vector.extract_strided_slice %147 {offsets = [0, 64], sizes = [1, 32], strides = [1, 1]} : vector<1x96xf32> to vector<1x32xf32>
    %156 = math.tanh %154 : vector<1x32xf32>
    %157 = arith.mulf %155, %156 : vector<1x32xf32>
    %158 = vector.extract_strided_slice %58 {offsets = [2, 0], sizes = [1, 128], strides = [1, 1]} : vector<8x128xf32> to vector<1x128xf32>
    %cst_75 = arith.constant dense<0.000000e+00> : vector<1x128xf32>
    %159 = tpu.matmul %139, %67, %cst_75 {dimension_numbers = #tpu.dot_dimension_numbers<[1], [0], [0], [1], [0, 0, 1, 1], [], []>} : vector<1x32xf32>, vector<32x128xf32>, vector<1x128xf32> -> vector<1x128xf32>
    %160 = arith.addf %158, %159 : vector<1x128xf32>
    %161 = vector.extract_strided_slice %65 {offsets = [5, 0], sizes = [1, 128], strides = [1, 1]} : vector<8x128xf32> to vector<1x128xf32>
    %cst_76 = arith.constant dense<0.000000e+00> : vector<1x128xf32>
    %162 = tpu.matmul %157, %69, %cst_76 {dimension_numbers = #tpu.dot_dimension_numbers<[1], [0], [0], [1], [0, 0, 1, 1], [], []>} : vector<1x32xf32>, vector<32x128xf32>, vector<1x128xf32> -> vector<1x128xf32>
    %163 = arith.addf %161, %162 : vector<1x128xf32>
    %164 = vector.extract_strided_slice %160 {offsets = [0, 0], sizes = [1, 96], strides = [1, 1]} : vector<1x128xf32> to vector<1x96xf32>
    %cst_77 = arith.constant 5.000000e-01 : f32
    %165 = vector.broadcast %cst_77 : f32 to vector<1x96xf32>
    %166 = arith.mulf %164, %165 : vector<1x96xf32>
    %167 = math.tanh %166 : vector<1x96xf32>
    %cst_78 = arith.constant 5.000000e-01 : f32
    %168 = vector.broadcast %cst_78 : f32 to vector<1x96xf32>
    %169 = arith.mulf %167, %168 : vector<1x96xf32>
    %cst_79 = arith.constant 5.000000e-01 : f32
    %170 = vector.broadcast %cst_79 : f32 to vector<1x96xf32>
    %171 = arith.addf %169, %170 : vector<1x96xf32>
    %172 = vector.extract_strided_slice %160 {offsets = [0, 96], sizes = [1, 32], strides = [1, 1]} : vector<1x128xf32> to vector<1x32xf32>
    %173 = math.tanh %172 : vector<1x32xf32>
    %174 = vector.extract_strided_slice %171 {offsets = [0, 32], sizes = [1, 32], strides = [1, 1]} : vector<1x96xf32> to vector<1x32xf32>
    %175 = arith.mulf %174, %136 : vector<1x32xf32>
    %176 = vector.extract_strided_slice %171 {offsets = [0, 0], sizes = [1, 32], strides = [1, 1]} : vector<1x96xf32> to vector<1x32xf32>
    %177 = arith.mulf %176, %173 : vector<1x32xf32>
    %178 = arith.addf %175, %177 : vector<1x32xf32>
    %179 = vector.extract_strided_slice %171 {offsets = [0, 64], sizes = [1, 32], strides = [1, 1]} : vector<1x96xf32> to vector<1x32xf32>
    %180 = math.tanh %178 : vector<1x32xf32>
    %181 = arith.mulf %179, %180 : vector<1x32xf32>
    %182 = vector.extract_strided_slice %163 {offsets = [0, 0], sizes = [1, 96], strides = [1, 1]} : vector<1x128xf32> to vector<1x96xf32>
    %cst_80 = arith.constant 5.000000e-01 : f32
    %183 = vector.broadcast %cst_80 : f32 to vector<1x96xf32>
    %184 = arith.mulf %182, %183 : vector<1x96xf32>
    %185 = math.tanh %184 : vector<1x96xf32>
    %cst_81 = arith.constant 5.000000e-01 : f32
    %186 = vector.broadcast %cst_81 : f32 to vector<1x96xf32>
    %187 = arith.mulf %185, %186 : vector<1x96xf32>
    %cst_82 = arith.constant 5.000000e-01 : f32
    %188 = vector.broadcast %cst_82 : f32 to vector<1x96xf32>
    %189 = arith.addf %187, %188 : vector<1x96xf32>
    %190 = vector.extract_strided_slice %163 {offsets = [0, 96], sizes = [1, 32], strides = [1, 1]} : vector<1x128xf32> to vector<1x32xf32>
    %191 = math.tanh %190 : vector<1x32xf32>
    %192 = vector.extract_strided_slice %189 {offsets = [0, 32], sizes = [1, 32], strides = [1, 1]} : vector<1x96xf32> to vector<1x32xf32>
    %193 = arith.mulf %192, %154 : vector<1x32xf32>
    %194 = vector.extract_strided_slice %189 {offsets = [0, 0], sizes = [1, 32], strides = [1, 1]} : vector<1x96xf32> to vector<1x32xf32>
    %195 = arith.mulf %194, %191 : vector<1x32xf32>
    %196 = arith.addf %193, %195 : vector<1x32xf32>
    %197 = vector.extract_strided_slice %189 {offsets = [0, 64], sizes = [1, 32], strides = [1, 1]} : vector<1x96xf32> to vector<1x32xf32>
    %198 = math.tanh %196 : vector<1x32xf32>
    %199 = arith.mulf %197, %198 : vector<1x32xf32>
    %200 = vector.extract_strided_slice %58 {offsets = [3, 0], sizes = [1, 128], strides = [1, 1]} : vector<8x128xf32> to vector<1x128xf32>
    %cst_83 = arith.constant dense<0.000000e+00> : vector<1x128xf32>
    %201 = tpu.matmul %181, %67, %cst_83 {dimension_numbers = #tpu.dot_dimension_numbers<[1], [0], [0], [1], [0, 0, 1, 1], [], []>} : vector<1x32xf32>, vector<32x128xf32>, vector<1x128xf32> -> vector<1x128xf32>
    %202 = arith.addf %200, %201 : vector<1x128xf32>
    %203 = vector.extract_strided_slice %65 {offsets = [4, 0], sizes = [1, 128], strides = [1, 1]} : vector<8x128xf32> to vector<1x128xf32>
    %cst_84 = arith.constant dense<0.000000e+00> : vector<1x128xf32>
    %204 = tpu.matmul %199, %69, %cst_84 {dimension_numbers = #tpu.dot_dimension_numbers<[1], [0], [0], [1], [0, 0, 1, 1], [], []>} : vector<1x32xf32>, vector<32x128xf32>, vector<1x128xf32> -> vector<1x128xf32>
    %205 = arith.addf %203, %204 : vector<1x128xf32>
    %206 = vector.extract_strided_slice %202 {offsets = [0, 0], sizes = [1, 96], strides = [1, 1]} : vector<1x128xf32> to vector<1x96xf32>
    %cst_85 = arith.constant 5.000000e-01 : f32
    %207 = vector.broadcast %cst_85 : f32 to vector<1x96xf32>
    %208 = arith.mulf %206, %207 : vector<1x96xf32>
    %209 = math.tanh %208 : vector<1x96xf32>
    %cst_86 = arith.constant 5.000000e-01 : f32
    %210 = vector.broadcast %cst_86 : f32 to vector<1x96xf32>
    %211 = arith.mulf %209, %210 : vector<1x96xf32>
    %cst_87 = arith.constant 5.000000e-01 : f32
    %212 = vector.broadcast %cst_87 : f32 to vector<1x96xf32>
    %213 = arith.addf %211, %212 : vector<1x96xf32>
    %214 = vector.extract_strided_slice %202 {offsets = [0, 96], sizes = [1, 32], strides = [1, 1]} : vector<1x128xf32> to vector<1x32xf32>
    %215 = math.tanh %214 : vector<1x32xf32>
    %216 = vector.extract_strided_slice %213 {offsets = [0, 32], sizes = [1, 32], strides = [1, 1]} : vector<1x96xf32> to vector<1x32xf32>
    %217 = arith.mulf %216, %178 : vector<1x32xf32>
    %218 = vector.extract_strided_slice %213 {offsets = [0, 0], sizes = [1, 32], strides = [1, 1]} : vector<1x96xf32> to vector<1x32xf32>
    %219 = arith.mulf %218, %215 : vector<1x32xf32>
    %220 = arith.addf %217, %219 : vector<1x32xf32>
    %221 = vector.extract_strided_slice %213 {offsets = [0, 64], sizes = [1, 32], strides = [1, 1]} : vector<1x96xf32> to vector<1x32xf32>
    %222 = math.tanh %220 : vector<1x32xf32>
    %223 = arith.mulf %221, %222 : vector<1x32xf32>
    %224 = vector.extract_strided_slice %205 {offsets = [0, 0], sizes = [1, 96], strides = [1, 1]} : vector<1x128xf32> to vector<1x96xf32>
    %cst_88 = arith.constant 5.000000e-01 : f32
    %225 = vector.broadcast %cst_88 : f32 to vector<1x96xf32>
    %226 = arith.mulf %224, %225 : vector<1x96xf32>
    %227 = math.tanh %226 : vector<1x96xf32>
    %cst_89 = arith.constant 5.000000e-01 : f32
    %228 = vector.broadcast %cst_89 : f32 to vector<1x96xf32>
    %229 = arith.mulf %227, %228 : vector<1x96xf32>
    %cst_90 = arith.constant 5.000000e-01 : f32
    %230 = vector.broadcast %cst_90 : f32 to vector<1x96xf32>
    %231 = arith.addf %229, %230 : vector<1x96xf32>
    %232 = vector.extract_strided_slice %205 {offsets = [0, 96], sizes = [1, 32], strides = [1, 1]} : vector<1x128xf32> to vector<1x32xf32>
    %233 = math.tanh %232 : vector<1x32xf32>
    %234 = vector.extract_strided_slice %231 {offsets = [0, 32], sizes = [1, 32], strides = [1, 1]} : vector<1x96xf32> to vector<1x32xf32>
    %235 = arith.mulf %234, %196 : vector<1x32xf32>
    %236 = vector.extract_strided_slice %231 {offsets = [0, 0], sizes = [1, 32], strides = [1, 1]} : vector<1x96xf32> to vector<1x32xf32>
    %237 = arith.mulf %236, %233 : vector<1x32xf32>
    %238 = arith.addf %235, %237 : vector<1x32xf32>
    %239 = vector.extract_strided_slice %231 {offsets = [0, 64], sizes = [1, 32], strides = [1, 1]} : vector<1x96xf32> to vector<1x32xf32>
    %240 = math.tanh %238 : vector<1x32xf32>
    %241 = arith.mulf %239, %240 : vector<1x32xf32>
    %242 = vector.extract_strided_slice %58 {offsets = [4, 0], sizes = [1, 128], strides = [1, 1]} : vector<8x128xf32> to vector<1x128xf32>
    %cst_91 = arith.constant dense<0.000000e+00> : vector<1x128xf32>
    %243 = tpu.matmul %223, %67, %cst_91 {dimension_numbers = #tpu.dot_dimension_numbers<[1], [0], [0], [1], [0, 0, 1, 1], [], []>} : vector<1x32xf32>, vector<32x128xf32>, vector<1x128xf32> -> vector<1x128xf32>
    %244 = arith.addf %242, %243 : vector<1x128xf32>
    %245 = vector.extract_strided_slice %65 {offsets = [3, 0], sizes = [1, 128], strides = [1, 1]} : vector<8x128xf32> to vector<1x128xf32>
    %cst_92 = arith.constant dense<0.000000e+00> : vector<1x128xf32>
    %246 = tpu.matmul %241, %69, %cst_92 {dimension_numbers = #tpu.dot_dimension_numbers<[1], [0], [0], [1], [0, 0, 1, 1], [], []>} : vector<1x32xf32>, vector<32x128xf32>, vector<1x128xf32> -> vector<1x128xf32>
    %247 = arith.addf %245, %246 : vector<1x128xf32>
    %248 = vector.extract_strided_slice %244 {offsets = [0, 0], sizes = [1, 96], strides = [1, 1]} : vector<1x128xf32> to vector<1x96xf32>
    %cst_93 = arith.constant 5.000000e-01 : f32
    %249 = vector.broadcast %cst_93 : f32 to vector<1x96xf32>
    %250 = arith.mulf %248, %249 : vector<1x96xf32>
    %251 = math.tanh %250 : vector<1x96xf32>
    %cst_94 = arith.constant 5.000000e-01 : f32
    %252 = vector.broadcast %cst_94 : f32 to vector<1x96xf32>
    %253 = arith.mulf %251, %252 : vector<1x96xf32>
    %cst_95 = arith.constant 5.000000e-01 : f32
    %254 = vector.broadcast %cst_95 : f32 to vector<1x96xf32>
    %255 = arith.addf %253, %254 : vector<1x96xf32>
    %256 = vector.extract_strided_slice %244 {offsets = [0, 96], sizes = [1, 32], strides = [1, 1]} : vector<1x128xf32> to vector<1x32xf32>
    %257 = math.tanh %256 : vector<1x32xf32>
    %258 = vector.extract_strided_slice %255 {offsets = [0, 32], sizes = [1, 32], strides = [1, 1]} : vector<1x96xf32> to vector<1x32xf32>
    %259 = arith.mulf %258, %220 : vector<1x32xf32>
    %260 = vector.extract_strided_slice %255 {offsets = [0, 0], sizes = [1, 32], strides = [1, 1]} : vector<1x96xf32> to vector<1x32xf32>
    %261 = arith.mulf %260, %257 : vector<1x32xf32>
    %262 = arith.addf %259, %261 : vector<1x32xf32>
    %263 = vector.extract_strided_slice %255 {offsets = [0, 64], sizes = [1, 32], strides = [1, 1]} : vector<1x96xf32> to vector<1x32xf32>
    %264 = math.tanh %262 : vector<1x32xf32>
    %265 = arith.mulf %263, %264 : vector<1x32xf32>
    %266 = vector.extract_strided_slice %247 {offsets = [0, 0], sizes = [1, 96], strides = [1, 1]} : vector<1x128xf32> to vector<1x96xf32>
    %cst_96 = arith.constant 5.000000e-01 : f32
    %267 = vector.broadcast %cst_96 : f32 to vector<1x96xf32>
    %268 = arith.mulf %266, %267 : vector<1x96xf32>
    %269 = math.tanh %268 : vector<1x96xf32>
    %cst_97 = arith.constant 5.000000e-01 : f32
    %270 = vector.broadcast %cst_97 : f32 to vector<1x96xf32>
    %271 = arith.mulf %269, %270 : vector<1x96xf32>
    %cst_98 = arith.constant 5.000000e-01 : f32
    %272 = vector.broadcast %cst_98 : f32 to vector<1x96xf32>
    %273 = arith.addf %271, %272 : vector<1x96xf32>
    %274 = vector.extract_strided_slice %247 {offsets = [0, 96], sizes = [1, 32], strides = [1, 1]} : vector<1x128xf32> to vector<1x32xf32>
    %275 = math.tanh %274 : vector<1x32xf32>
    %276 = vector.extract_strided_slice %273 {offsets = [0, 32], sizes = [1, 32], strides = [1, 1]} : vector<1x96xf32> to vector<1x32xf32>
    %277 = arith.mulf %276, %238 : vector<1x32xf32>
    %278 = vector.extract_strided_slice %273 {offsets = [0, 0], sizes = [1, 32], strides = [1, 1]} : vector<1x96xf32> to vector<1x32xf32>
    %279 = arith.mulf %278, %275 : vector<1x32xf32>
    %280 = arith.addf %277, %279 : vector<1x32xf32>
    %281 = vector.extract_strided_slice %273 {offsets = [0, 64], sizes = [1, 32], strides = [1, 1]} : vector<1x96xf32> to vector<1x32xf32>
    %282 = math.tanh %280 : vector<1x32xf32>
    %283 = arith.mulf %281, %282 : vector<1x32xf32>
    %284 = vector.extract_strided_slice %58 {offsets = [5, 0], sizes = [1, 128], strides = [1, 1]} : vector<8x128xf32> to vector<1x128xf32>
    %cst_99 = arith.constant dense<0.000000e+00> : vector<1x128xf32>
    %285 = tpu.matmul %265, %67, %cst_99 {dimension_numbers = #tpu.dot_dimension_numbers<[1], [0], [0], [1], [0, 0, 1, 1], [], []>} : vector<1x32xf32>, vector<32x128xf32>, vector<1x128xf32> -> vector<1x128xf32>
    %286 = arith.addf %284, %285 : vector<1x128xf32>
    %287 = vector.extract_strided_slice %65 {offsets = [2, 0], sizes = [1, 128], strides = [1, 1]} : vector<8x128xf32> to vector<1x128xf32>
    %cst_100 = arith.constant dense<0.000000e+00> : vector<1x128xf32>
    %288 = tpu.matmul %283, %69, %cst_100 {dimension_numbers = #tpu.dot_dimension_numbers<[1], [0], [0], [1], [0, 0, 1, 1], [], []>} : vector<1x32xf32>, vector<32x128xf32>, vector<1x128xf32> -> vector<1x128xf32>
    %289 = arith.addf %287, %288 : vector<1x128xf32>
    %290 = vector.extract_strided_slice %286 {offsets = [0, 0], sizes = [1, 96], strides = [1, 1]} : vector<1x128xf32> to vector<1x96xf32>
    %cst_101 = arith.constant 5.000000e-01 : f32
    %291 = vector.broadcast %cst_101 : f32 to vector<1x96xf32>
    %292 = arith.mulf %290, %291 : vector<1x96xf32>
    %293 = math.tanh %292 : vector<1x96xf32>
    %cst_102 = arith.constant 5.000000e-01 : f32
    %294 = vector.broadcast %cst_102 : f32 to vector<1x96xf32>
    %295 = arith.mulf %293, %294 : vector<1x96xf32>
    %cst_103 = arith.constant 5.000000e-01 : f32
    %296 = vector.broadcast %cst_103 : f32 to vector<1x96xf32>
    %297 = arith.addf %295, %296 : vector<1x96xf32>
    %298 = vector.extract_strided_slice %286 {offsets = [0, 96], sizes = [1, 32], strides = [1, 1]} : vector<1x128xf32> to vector<1x32xf32>
    %299 = math.tanh %298 : vector<1x32xf32>
    %300 = vector.extract_strided_slice %297 {offsets = [0, 32], sizes = [1, 32], strides = [1, 1]} : vector<1x96xf32> to vector<1x32xf32>
    %301 = arith.mulf %300, %262 : vector<1x32xf32>
    %302 = vector.extract_strided_slice %297 {offsets = [0, 0], sizes = [1, 32], strides = [1, 1]} : vector<1x96xf32> to vector<1x32xf32>
    %303 = arith.mulf %302, %299 : vector<1x32xf32>
    %304 = arith.addf %301, %303 : vector<1x32xf32>
    %305 = vector.extract_strided_slice %297 {offsets = [0, 64], sizes = [1, 32], strides = [1, 1]} : vector<1x96xf32> to vector<1x32xf32>
    %306 = math.tanh %304 : vector<1x32xf32>
    %307 = arith.mulf %305, %306 : vector<1x32xf32>
    %308 = vector.extract_strided_slice %289 {offsets = [0, 0], sizes = [1, 96], strides = [1, 1]} : vector<1x128xf32> to vector<1x96xf32>
    %cst_104 = arith.constant 5.000000e-01 : f32
    %309 = vector.broadcast %cst_104 : f32 to vector<1x96xf32>
    %310 = arith.mulf %308, %309 : vector<1x96xf32>
    %311 = math.tanh %310 : vector<1x96xf32>
    %cst_105 = arith.constant 5.000000e-01 : f32
    %312 = vector.broadcast %cst_105 : f32 to vector<1x96xf32>
    %313 = arith.mulf %311, %312 : vector<1x96xf32>
    %cst_106 = arith.constant 5.000000e-01 : f32
    %314 = vector.broadcast %cst_106 : f32 to vector<1x96xf32>
    %315 = arith.addf %313, %314 : vector<1x96xf32>
    %316 = vector.extract_strided_slice %289 {offsets = [0, 96], sizes = [1, 32], strides = [1, 1]} : vector<1x128xf32> to vector<1x32xf32>
    %317 = math.tanh %316 : vector<1x32xf32>
    %318 = vector.extract_strided_slice %315 {offsets = [0, 32], sizes = [1, 32], strides = [1, 1]} : vector<1x96xf32> to vector<1x32xf32>
    %319 = arith.mulf %318, %280 : vector<1x32xf32>
    %320 = vector.extract_strided_slice %315 {offsets = [0, 0], sizes = [1, 32], strides = [1, 1]} : vector<1x96xf32> to vector<1x32xf32>
    %321 = arith.mulf %320, %317 : vector<1x32xf32>
    %322 = arith.addf %319, %321 : vector<1x32xf32>
    %323 = vector.extract_strided_slice %315 {offsets = [0, 64], sizes = [1, 32], strides = [1, 1]} : vector<1x96xf32> to vector<1x32xf32>
    %324 = math.tanh %322 : vector<1x32xf32>
    %325 = arith.mulf %323, %324 : vector<1x32xf32>
    %326 = vector.extract_strided_slice %58 {offsets = [6, 0], sizes = [1, 128], strides = [1, 1]} : vector<8x128xf32> to vector<1x128xf32>
    %cst_107 = arith.constant dense<0.000000e+00> : vector<1x128xf32>
    %327 = tpu.matmul %307, %67, %cst_107 {dimension_numbers = #tpu.dot_dimension_numbers<[1], [0], [0], [1], [0, 0, 1, 1], [], []>} : vector<1x32xf32>, vector<32x128xf32>, vector<1x128xf32> -> vector<1x128xf32>
    %328 = arith.addf %326, %327 : vector<1x128xf32>
    %329 = vector.extract_strided_slice %65 {offsets = [1, 0], sizes = [1, 128], strides = [1, 1]} : vector<8x128xf32> to vector<1x128xf32>
    %cst_108 = arith.constant dense<0.000000e+00> : vector<1x128xf32>
    %330 = tpu.matmul %325, %69, %cst_108 {dimension_numbers = #tpu.dot_dimension_numbers<[1], [0], [0], [1], [0, 0, 1, 1], [], []>} : vector<1x32xf32>, vector<32x128xf32>, vector<1x128xf32> -> vector<1x128xf32>
    %331 = arith.addf %329, %330 : vector<1x128xf32>
    %332 = vector.extract_strided_slice %328 {offsets = [0, 0], sizes = [1, 96], strides = [1, 1]} : vector<1x128xf32> to vector<1x96xf32>
    %cst_109 = arith.constant 5.000000e-01 : f32
    %333 = vector.broadcast %cst_109 : f32 to vector<1x96xf32>
    %334 = arith.mulf %332, %333 : vector<1x96xf32>
    %335 = math.tanh %334 : vector<1x96xf32>
    %cst_110 = arith.constant 5.000000e-01 : f32
    %336 = vector.broadcast %cst_110 : f32 to vector<1x96xf32>
    %337 = arith.mulf %335, %336 : vector<1x96xf32>
    %cst_111 = arith.constant 5.000000e-01 : f32
    %338 = vector.broadcast %cst_111 : f32 to vector<1x96xf32>
    %339 = arith.addf %337, %338 : vector<1x96xf32>
    %340 = vector.extract_strided_slice %328 {offsets = [0, 96], sizes = [1, 32], strides = [1, 1]} : vector<1x128xf32> to vector<1x32xf32>
    %341 = math.tanh %340 : vector<1x32xf32>
    %342 = vector.extract_strided_slice %339 {offsets = [0, 32], sizes = [1, 32], strides = [1, 1]} : vector<1x96xf32> to vector<1x32xf32>
    %343 = arith.mulf %342, %304 : vector<1x32xf32>
    %344 = vector.extract_strided_slice %339 {offsets = [0, 0], sizes = [1, 32], strides = [1, 1]} : vector<1x96xf32> to vector<1x32xf32>
    %345 = arith.mulf %344, %341 : vector<1x32xf32>
    %346 = arith.addf %343, %345 : vector<1x32xf32>
    %347 = vector.extract_strided_slice %339 {offsets = [0, 64], sizes = [1, 32], strides = [1, 1]} : vector<1x96xf32> to vector<1x32xf32>
    %348 = math.tanh %346 : vector<1x32xf32>
    %349 = arith.mulf %347, %348 : vector<1x32xf32>
    %350 = vector.extract_strided_slice %331 {offsets = [0, 0], sizes = [1, 96], strides = [1, 1]} : vector<1x128xf32> to vector<1x96xf32>
    %cst_112 = arith.constant 5.000000e-01 : f32
    %351 = vector.broadcast %cst_112 : f32 to vector<1x96xf32>
    %352 = arith.mulf %350, %351 : vector<1x96xf32>
    %353 = math.tanh %352 : vector<1x96xf32>
    %cst_113 = arith.constant 5.000000e-01 : f32
    %354 = vector.broadcast %cst_113 : f32 to vector<1x96xf32>
    %355 = arith.mulf %353, %354 : vector<1x96xf32>
    %cst_114 = arith.constant 5.000000e-01 : f32
    %356 = vector.broadcast %cst_114 : f32 to vector<1x96xf32>
    %357 = arith.addf %355, %356 : vector<1x96xf32>
    %358 = vector.extract_strided_slice %331 {offsets = [0, 96], sizes = [1, 32], strides = [1, 1]} : vector<1x128xf32> to vector<1x32xf32>
    %359 = math.tanh %358 : vector<1x32xf32>
    %360 = vector.extract_strided_slice %357 {offsets = [0, 32], sizes = [1, 32], strides = [1, 1]} : vector<1x96xf32> to vector<1x32xf32>
    %361 = arith.mulf %360, %322 : vector<1x32xf32>
    %362 = vector.extract_strided_slice %357 {offsets = [0, 0], sizes = [1, 32], strides = [1, 1]} : vector<1x96xf32> to vector<1x32xf32>
    %363 = arith.mulf %362, %359 : vector<1x32xf32>
    %364 = arith.addf %361, %363 : vector<1x32xf32>
    %365 = vector.extract_strided_slice %357 {offsets = [0, 64], sizes = [1, 32], strides = [1, 1]} : vector<1x96xf32> to vector<1x32xf32>
    %366 = math.tanh %364 : vector<1x32xf32>
    %367 = arith.mulf %365, %366 : vector<1x32xf32>
    %368 = vector.extract_strided_slice %58 {offsets = [7, 0], sizes = [1, 128], strides = [1, 1]} : vector<8x128xf32> to vector<1x128xf32>
    %cst_115 = arith.constant dense<0.000000e+00> : vector<1x128xf32>
    %369 = tpu.matmul %349, %67, %cst_115 {dimension_numbers = #tpu.dot_dimension_numbers<[1], [0], [0], [1], [0, 0, 1, 1], [], []>} : vector<1x32xf32>, vector<32x128xf32>, vector<1x128xf32> -> vector<1x128xf32>
    %370 = arith.addf %368, %369 : vector<1x128xf32>
    %371 = vector.extract_strided_slice %65 {offsets = [0, 0], sizes = [1, 128], strides = [1, 1]} : vector<8x128xf32> to vector<1x128xf32>
    %cst_116 = arith.constant dense<0.000000e+00> : vector<1x128xf32>
    %372 = tpu.matmul %367, %69, %cst_116 {dimension_numbers = #tpu.dot_dimension_numbers<[1], [0], [0], [1], [0, 0, 1, 1], [], []>} : vector<1x32xf32>, vector<32x128xf32>, vector<1x128xf32> -> vector<1x128xf32>
    %373 = arith.addf %371, %372 : vector<1x128xf32>
    %374 = vector.extract_strided_slice %370 {offsets = [0, 0], sizes = [1, 96], strides = [1, 1]} : vector<1x128xf32> to vector<1x96xf32>
    %cst_117 = arith.constant 5.000000e-01 : f32
    %375 = vector.broadcast %cst_117 : f32 to vector<1x96xf32>
    %376 = arith.mulf %374, %375 : vector<1x96xf32>
    %377 = math.tanh %376 : vector<1x96xf32>
    %cst_118 = arith.constant 5.000000e-01 : f32
    %378 = vector.broadcast %cst_118 : f32 to vector<1x96xf32>
    %379 = arith.mulf %377, %378 : vector<1x96xf32>
    %cst_119 = arith.constant 5.000000e-01 : f32
    %380 = vector.broadcast %cst_119 : f32 to vector<1x96xf32>
    %381 = arith.addf %379, %380 : vector<1x96xf32>
    %382 = vector.extract_strided_slice %370 {offsets = [0, 96], sizes = [1, 32], strides = [1, 1]} : vector<1x128xf32> to vector<1x32xf32>
    %383 = math.tanh %382 : vector<1x32xf32>
    %384 = vector.extract_strided_slice %381 {offsets = [0, 32], sizes = [1, 32], strides = [1, 1]} : vector<1x96xf32> to vector<1x32xf32>
    %385 = arith.mulf %384, %346 : vector<1x32xf32>
    %386 = vector.extract_strided_slice %381 {offsets = [0, 0], sizes = [1, 32], strides = [1, 1]} : vector<1x96xf32> to vector<1x32xf32>
    %387 = arith.mulf %386, %383 : vector<1x32xf32>
    %388 = arith.addf %385, %387 : vector<1x32xf32>
    %389 = vector.extract_strided_slice %381 {offsets = [0, 64], sizes = [1, 32], strides = [1, 1]} : vector<1x96xf32> to vector<1x32xf32>
    %390 = math.tanh %388 : vector<1x32xf32>
    %391 = arith.mulf %389, %390 : vector<1x32xf32>
    %392 = vector.extract_strided_slice %373 {offsets = [0, 0], sizes = [1, 96], strides = [1, 1]} : vector<1x128xf32> to vector<1x96xf32>
    %cst_120 = arith.constant 5.000000e-01 : f32
    %393 = vector.broadcast %cst_120 : f32 to vector<1x96xf32>
    %394 = arith.mulf %392, %393 : vector<1x96xf32>
    %395 = math.tanh %394 : vector<1x96xf32>
    %cst_121 = arith.constant 5.000000e-01 : f32
    %396 = vector.broadcast %cst_121 : f32 to vector<1x96xf32>
    %397 = arith.mulf %395, %396 : vector<1x96xf32>
    %cst_122 = arith.constant 5.000000e-01 : f32
    %398 = vector.broadcast %cst_122 : f32 to vector<1x96xf32>
    %399 = arith.addf %397, %398 : vector<1x96xf32>
    %400 = vector.extract_strided_slice %373 {offsets = [0, 96], sizes = [1, 32], strides = [1, 1]} : vector<1x128xf32> to vector<1x32xf32>
    %401 = math.tanh %400 : vector<1x32xf32>
    %402 = vector.extract_strided_slice %399 {offsets = [0, 32], sizes = [1, 32], strides = [1, 1]} : vector<1x96xf32> to vector<1x32xf32>
    %403 = arith.mulf %402, %364 : vector<1x32xf32>
    %404 = vector.extract_strided_slice %399 {offsets = [0, 0], sizes = [1, 32], strides = [1, 1]} : vector<1x96xf32> to vector<1x32xf32>
    %405 = arith.mulf %404, %401 : vector<1x32xf32>
    %406 = arith.addf %403, %405 : vector<1x32xf32>
    %407 = vector.extract_strided_slice %399 {offsets = [0, 64], sizes = [1, 32], strides = [1, 1]} : vector<1x96xf32> to vector<1x32xf32>
    %408 = math.tanh %406 : vector<1x32xf32>
    %409 = arith.mulf %407, %408 : vector<1x32xf32>
    %410 = tpu.concatenate %97, %139, %181, %223, %265, %307, %349, %391 in 0 : vector<1x32xf32>, vector<1x32xf32>, vector<1x32xf32>, vector<1x32xf32>, vector<1x32xf32>, vector<1x32xf32>, vector<1x32xf32>, vector<1x32xf32> -> vector<8x32xf32>
    %411 = tpu.concatenate %409, %367, %325, %283, %241, %199, %157, %115 in 0 : vector<1x32xf32>, vector<1x32xf32>, vector<1x32xf32>, vector<1x32xf32>, vector<1x32xf32>, vector<1x32xf32>, vector<1x32xf32>, vector<1x32xf32> -> vector<8x32xf32>
    %412 = tpu.concatenate %410, %411 in 1 : vector<8x32xf32>, vector<8x32xf32> -> vector<8x64xf32>
    %c0_123 = arith.constant 0 : index
    %c0_124 = arith.constant 0 : index
    %c0_125 = arith.constant 0 : index
    %413 = vector.load %arg9[%c0_123, %c0_124, %c0_125] : memref<2x64x128xf32, #tpu.memory_space<vmem>>, vector<1x64x128xf32>
    %414 = vector.shape_cast %413 : vector<1x64x128xf32> to vector<64x128xf32>
    %cst_126 = arith.constant dense<0.000000e+00> : vector<8x128xf32>
    %415 = tpu.matmul %412, %414, %cst_126 {dimension_numbers = #tpu.dot_dimension_numbers<[1], [0], [0], [1], [0, 0, 1, 1], [], []>} : vector<8x64xf32>, vector<64x128xf32>, vector<8x128xf32> -> vector<8x128xf32>
    %c0_127 = arith.constant 0 : index
    %c0_128 = arith.constant 0 : index
    %c0_129 = arith.constant 0 : index
    %416 = vector.load %arg11[%c0_127, %c0_128, %c0_129] : memref<2x1x128xf32, #tpu.memory_space<vmem>>, vector<1x1x128xf32>
    %417 = vector.shape_cast %416 : vector<1x1x128xf32> to vector<1x128xf32>
    %418 = vector.broadcast %417 : vector<1x128xf32> to vector<8x128xf32>
    %419 = arith.addf %415, %418 : vector<8x128xf32>
    %c1_130 = arith.constant 1 : index
    %c0_131 = arith.constant 0 : index
    %c0_132 = arith.constant 0 : index
    %420 = vector.load %arg9[%c1_130, %c0_131, %c0_132] : memref<2x64x128xf32, #tpu.memory_space<vmem>>, vector<1x64x128xf32>
    %421 = vector.shape_cast %420 : vector<1x64x128xf32> to vector<64x128xf32>
    %cst_133 = arith.constant dense<0.000000e+00> : vector<8x128xf32>
    %422 = tpu.matmul %412, %421, %cst_133 {dimension_numbers = #tpu.dot_dimension_numbers<[1], [0], [0], [1], [0, 0, 1, 1], [], []>} : vector<8x64xf32>, vector<64x128xf32>, vector<8x128xf32> -> vector<8x128xf32>
    %c1_134 = arith.constant 1 : index
    %c0_135 = arith.constant 0 : index
    %c0_136 = arith.constant 0 : index
    %423 = vector.load %arg11[%c1_134, %c0_135, %c0_136] : memref<2x1x128xf32, #tpu.memory_space<vmem>>, vector<1x1x128xf32>
    %424 = vector.shape_cast %423 : vector<1x1x128xf32> to vector<1x128xf32>
    %425 = vector.broadcast %424 : vector<1x128xf32> to vector<8x128xf32>
    %426 = arith.addf %422, %425 : vector<8x128xf32>
    %c0_137 = arith.constant 0 : index
    %c0_138 = arith.constant 0 : index
    %c0_139 = arith.constant 0 : index
    %427 = vector.load %arg10[%c0_137, %c0_138, %c0_139] : memref<2x32x128xf32, #tpu.memory_space<vmem>>, vector<1x32x128xf32>
    %428 = vector.shape_cast %427 : vector<1x32x128xf32> to vector<32x128xf32>
    %c1_140 = arith.constant 1 : index
    %c0_141 = arith.constant 0 : index
    %c0_142 = arith.constant 0 : index
    %429 = vector.load %arg10[%c1_140, %c0_141, %c0_142] : memref<2x32x128xf32, #tpu.memory_space<vmem>>, vector<1x32x128xf32>
    %430 = vector.shape_cast %429 : vector<1x32x128xf32> to vector<32x128xf32>
    %cst_143 = arith.constant 0.000000e+00 : f32
    %431 = vector.broadcast %cst_143 : f32 to vector<1x32xf32>
    %cst_144 = arith.constant 0.000000e+00 : f32
    %432 = vector.broadcast %cst_144 : f32 to vector<1x32xf32>
    %cst_145 = arith.constant 0.000000e+00 : f32
    %433 = vector.broadcast %cst_145 : f32 to vector<1x32xf32>
    %cst_146 = arith.constant 0.000000e+00 : f32
    %434 = vector.broadcast %cst_146 : f32 to vector<1x32xf32>
    %435 = vector.extract_strided_slice %419 {offsets = [0, 0], sizes = [1, 128], strides = [1, 1]} : vector<8x128xf32> to vector<1x128xf32>
    %cst_147 = arith.constant dense<0.000000e+00> : vector<1x128xf32>
    %436 = tpu.matmul %431, %428, %cst_147 {dimension_numbers = #tpu.dot_dimension_numbers<[1], [0], [0], [1], [0, 0, 1, 1], [], []>} : vector<1x32xf32>, vector<32x128xf32>, vector<1x128xf32> -> vector<1x128xf32>
    %437 = arith.addf %435, %436 : vector<1x128xf32>
    %438 = vector.extract_strided_slice %426 {offsets = [7, 0], sizes = [1, 128], strides = [1, 1]} : vector<8x128xf32> to vector<1x128xf32>
    %cst_148 = arith.constant dense<0.000000e+00> : vector<1x128xf32>
    %439 = tpu.matmul %433, %430, %cst_148 {dimension_numbers = #tpu.dot_dimension_numbers<[1], [0], [0], [1], [0, 0, 1, 1], [], []>} : vector<1x32xf32>, vector<32x128xf32>, vector<1x128xf32> -> vector<1x128xf32>
    %440 = arith.addf %438, %439 : vector<1x128xf32>
    %441 = vector.extract_strided_slice %437 {offsets = [0, 0], sizes = [1, 96], strides = [1, 1]} : vector<1x128xf32> to vector<1x96xf32>
    %cst_149 = arith.constant 5.000000e-01 : f32
    %442 = vector.broadcast %cst_149 : f32 to vector<1x96xf32>
    %443 = arith.mulf %441, %442 : vector<1x96xf32>
    %444 = math.tanh %443 : vector<1x96xf32>
    %cst_150 = arith.constant 5.000000e-01 : f32
    %445 = vector.broadcast %cst_150 : f32 to vector<1x96xf32>
    %446 = arith.mulf %444, %445 : vector<1x96xf32>
    %cst_151 = arith.constant 5.000000e-01 : f32
    %447 = vector.broadcast %cst_151 : f32 to vector<1x96xf32>
    %448 = arith.addf %446, %447 : vector<1x96xf32>
    %449 = vector.extract_strided_slice %437 {offsets = [0, 96], sizes = [1, 32], strides = [1, 1]} : vector<1x128xf32> to vector<1x32xf32>
    %450 = math.tanh %449 : vector<1x32xf32>
    %451 = vector.extract_strided_slice %448 {offsets = [0, 32], sizes = [1, 32], strides = [1, 1]} : vector<1x96xf32> to vector<1x32xf32>
    %452 = arith.mulf %451, %432 : vector<1x32xf32>
    %453 = vector.extract_strided_slice %448 {offsets = [0, 0], sizes = [1, 32], strides = [1, 1]} : vector<1x96xf32> to vector<1x32xf32>
    %454 = arith.mulf %453, %450 : vector<1x32xf32>
    %455 = arith.addf %452, %454 : vector<1x32xf32>
    %456 = vector.extract_strided_slice %448 {offsets = [0, 64], sizes = [1, 32], strides = [1, 1]} : vector<1x96xf32> to vector<1x32xf32>
    %457 = math.tanh %455 : vector<1x32xf32>
    %458 = arith.mulf %456, %457 : vector<1x32xf32>
    %459 = vector.extract_strided_slice %440 {offsets = [0, 0], sizes = [1, 96], strides = [1, 1]} : vector<1x128xf32> to vector<1x96xf32>
    %cst_152 = arith.constant 5.000000e-01 : f32
    %460 = vector.broadcast %cst_152 : f32 to vector<1x96xf32>
    %461 = arith.mulf %459, %460 : vector<1x96xf32>
    %462 = math.tanh %461 : vector<1x96xf32>
    %cst_153 = arith.constant 5.000000e-01 : f32
    %463 = vector.broadcast %cst_153 : f32 to vector<1x96xf32>
    %464 = arith.mulf %462, %463 : vector<1x96xf32>
    %cst_154 = arith.constant 5.000000e-01 : f32
    %465 = vector.broadcast %cst_154 : f32 to vector<1x96xf32>
    %466 = arith.addf %464, %465 : vector<1x96xf32>
    %467 = vector.extract_strided_slice %440 {offsets = [0, 96], sizes = [1, 32], strides = [1, 1]} : vector<1x128xf32> to vector<1x32xf32>
    %468 = math.tanh %467 : vector<1x32xf32>
    %469 = vector.extract_strided_slice %466 {offsets = [0, 32], sizes = [1, 32], strides = [1, 1]} : vector<1x96xf32> to vector<1x32xf32>
    %470 = arith.mulf %469, %434 : vector<1x32xf32>
    %471 = vector.extract_strided_slice %466 {offsets = [0, 0], sizes = [1, 32], strides = [1, 1]} : vector<1x96xf32> to vector<1x32xf32>
    %472 = arith.mulf %471, %468 : vector<1x32xf32>
    %473 = arith.addf %470, %472 : vector<1x32xf32>
    %474 = vector.extract_strided_slice %466 {offsets = [0, 64], sizes = [1, 32], strides = [1, 1]} : vector<1x96xf32> to vector<1x32xf32>
    %475 = math.tanh %473 : vector<1x32xf32>
    %476 = arith.mulf %474, %475 : vector<1x32xf32>
    %477 = vector.extract_strided_slice %419 {offsets = [1, 0], sizes = [1, 128], strides = [1, 1]} : vector<8x128xf32> to vector<1x128xf32>
    %cst_155 = arith.constant dense<0.000000e+00> : vector<1x128xf32>
    %478 = tpu.matmul %458, %428, %cst_155 {dimension_numbers = #tpu.dot_dimension_numbers<[1], [0], [0], [1], [0, 0, 1, 1], [], []>} : vector<1x32xf32>, vector<32x128xf32>, vector<1x128xf32> -> vector<1x128xf32>
    %479 = arith.addf %477, %478 : vector<1x128xf32>
    %480 = vector.extract_strided_slice %426 {offsets = [6, 0], sizes = [1, 128], strides = [1, 1]} : vector<8x128xf32> to vector<1x128xf32>
    %cst_156 = arith.constant dense<0.000000e+00> : vector<1x128xf32>
    %481 = tpu.matmul %476, %430, %cst_156 {dimension_numbers = #tpu.dot_dimension_numbers<[1], [0], [0], [1], [0, 0, 1, 1], [], []>} : vector<1x32xf32>, vector<32x128xf32>, vector<1x128xf32> -> vector<1x128xf32>
    %482 = arith.addf %480, %481 : vector<1x128xf32>
    %483 = vector.extract_strided_slice %479 {offsets = [0, 0], sizes = [1, 96], strides = [1, 1]} : vector<1x128xf32> to vector<1x96xf32>
    %cst_157 = arith.constant 5.000000e-01 : f32
    %484 = vector.broadcast %cst_157 : f32 to vector<1x96xf32>
    %485 = arith.mulf %483, %484 : vector<1x96xf32>
    %486 = math.tanh %485 : vector<1x96xf32>
    %cst_158 = arith.constant 5.000000e-01 : f32
    %487 = vector.broadcast %cst_158 : f32 to vector<1x96xf32>
    %488 = arith.mulf %486, %487 : vector<1x96xf32>
    %cst_159 = arith.constant 5.000000e-01 : f32
    %489 = vector.broadcast %cst_159 : f32 to vector<1x96xf32>
    %490 = arith.addf %488, %489 : vector<1x96xf32>
    %491 = vector.extract_strided_slice %479 {offsets = [0, 96], sizes = [1, 32], strides = [1, 1]} : vector<1x128xf32> to vector<1x32xf32>
    %492 = math.tanh %491 : vector<1x32xf32>
    %493 = vector.extract_strided_slice %490 {offsets = [0, 32], sizes = [1, 32], strides = [1, 1]} : vector<1x96xf32> to vector<1x32xf32>
    %494 = arith.mulf %493, %455 : vector<1x32xf32>
    %495 = vector.extract_strided_slice %490 {offsets = [0, 0], sizes = [1, 32], strides = [1, 1]} : vector<1x96xf32> to vector<1x32xf32>
    %496 = arith.mulf %495, %492 : vector<1x32xf32>
    %497 = arith.addf %494, %496 : vector<1x32xf32>
    %498 = vector.extract_strided_slice %490 {offsets = [0, 64], sizes = [1, 32], strides = [1, 1]} : vector<1x96xf32> to vector<1x32xf32>
    %499 = math.tanh %497 : vector<1x32xf32>
    %500 = arith.mulf %498, %499 : vector<1x32xf32>
    %501 = vector.extract_strided_slice %482 {offsets = [0, 0], sizes = [1, 96], strides = [1, 1]} : vector<1x128xf32> to vector<1x96xf32>
    %cst_160 = arith.constant 5.000000e-01 : f32
    %502 = vector.broadcast %cst_160 : f32 to vector<1x96xf32>
    %503 = arith.mulf %501, %502 : vector<1x96xf32>
    %504 = math.tanh %503 : vector<1x96xf32>
    %cst_161 = arith.constant 5.000000e-01 : f32
    %505 = vector.broadcast %cst_161 : f32 to vector<1x96xf32>
    %506 = arith.mulf %504, %505 : vector<1x96xf32>
    %cst_162 = arith.constant 5.000000e-01 : f32
    %507 = vector.broadcast %cst_162 : f32 to vector<1x96xf32>
    %508 = arith.addf %506, %507 : vector<1x96xf32>
    %509 = vector.extract_strided_slice %482 {offsets = [0, 96], sizes = [1, 32], strides = [1, 1]} : vector<1x128xf32> to vector<1x32xf32>
    %510 = math.tanh %509 : vector<1x32xf32>
    %511 = vector.extract_strided_slice %508 {offsets = [0, 32], sizes = [1, 32], strides = [1, 1]} : vector<1x96xf32> to vector<1x32xf32>
    %512 = arith.mulf %511, %473 : vector<1x32xf32>
    %513 = vector.extract_strided_slice %508 {offsets = [0, 0], sizes = [1, 32], strides = [1, 1]} : vector<1x96xf32> to vector<1x32xf32>
    %514 = arith.mulf %513, %510 : vector<1x32xf32>
    %515 = arith.addf %512, %514 : vector<1x32xf32>
    %516 = vector.extract_strided_slice %508 {offsets = [0, 64], sizes = [1, 32], strides = [1, 1]} : vector<1x96xf32> to vector<1x32xf32>
    %517 = math.tanh %515 : vector<1x32xf32>
    %518 = arith.mulf %516, %517 : vector<1x32xf32>
    %519 = vector.extract_strided_slice %419 {offsets = [2, 0], sizes = [1, 128], strides = [1, 1]} : vector<8x128xf32> to vector<1x128xf32>
    %cst_163 = arith.constant dense<0.000000e+00> : vector<1x128xf32>
    %520 = tpu.matmul %500, %428, %cst_163 {dimension_numbers = #tpu.dot_dimension_numbers<[1], [0], [0], [1], [0, 0, 1, 1], [], []>} : vector<1x32xf32>, vector<32x128xf32>, vector<1x128xf32> -> vector<1x128xf32>
    %521 = arith.addf %519, %520 : vector<1x128xf32>
    %522 = vector.extract_strided_slice %426 {offsets = [5, 0], sizes = [1, 128], strides = [1, 1]} : vector<8x128xf32> to vector<1x128xf32>
    %cst_164 = arith.constant dense<0.000000e+00> : vector<1x128xf32>
    %523 = tpu.matmul %518, %430, %cst_164 {dimension_numbers = #tpu.dot_dimension_numbers<[1], [0], [0], [1], [0, 0, 1, 1], [], []>} : vector<1x32xf32>, vector<32x128xf32>, vector<1x128xf32> -> vector<1x128xf32>
    %524 = arith.addf %522, %523 : vector<1x128xf32>
    %525 = vector.extract_strided_slice %521 {offsets = [0, 0], sizes = [1, 96], strides = [1, 1]} : vector<1x128xf32> to vector<1x96xf32>
    %cst_165 = arith.constant 5.000000e-01 : f32
    %526 = vector.broadcast %cst_165 : f32 to vector<1x96xf32>
    %527 = arith.mulf %525, %526 : vector<1x96xf32>
    %528 = math.tanh %527 : vector<1x96xf32>
    %cst_166 = arith.constant 5.000000e-01 : f32
    %529 = vector.broadcast %cst_166 : f32 to vector<1x96xf32>
    %530 = arith.mulf %528, %529 : vector<1x96xf32>
    %cst_167 = arith.constant 5.000000e-01 : f32
    %531 = vector.broadcast %cst_167 : f32 to vector<1x96xf32>
    %532 = arith.addf %530, %531 : vector<1x96xf32>
    %533 = vector.extract_strided_slice %521 {offsets = [0, 96], sizes = [1, 32], strides = [1, 1]} : vector<1x128xf32> to vector<1x32xf32>
    %534 = math.tanh %533 : vector<1x32xf32>
    %535 = vector.extract_strided_slice %532 {offsets = [0, 32], sizes = [1, 32], strides = [1, 1]} : vector<1x96xf32> to vector<1x32xf32>
    %536 = arith.mulf %535, %497 : vector<1x32xf32>
    %537 = vector.extract_strided_slice %532 {offsets = [0, 0], sizes = [1, 32], strides = [1, 1]} : vector<1x96xf32> to vector<1x32xf32>
    %538 = arith.mulf %537, %534 : vector<1x32xf32>
    %539 = arith.addf %536, %538 : vector<1x32xf32>
    %540 = vector.extract_strided_slice %532 {offsets = [0, 64], sizes = [1, 32], strides = [1, 1]} : vector<1x96xf32> to vector<1x32xf32>
    %541 = math.tanh %539 : vector<1x32xf32>
    %542 = arith.mulf %540, %541 : vector<1x32xf32>
    %543 = vector.extract_strided_slice %524 {offsets = [0, 0], sizes = [1, 96], strides = [1, 1]} : vector<1x128xf32> to vector<1x96xf32>
    %cst_168 = arith.constant 5.000000e-01 : f32
    %544 = vector.broadcast %cst_168 : f32 to vector<1x96xf32>
    %545 = arith.mulf %543, %544 : vector<1x96xf32>
    %546 = math.tanh %545 : vector<1x96xf32>
    %cst_169 = arith.constant 5.000000e-01 : f32
    %547 = vector.broadcast %cst_169 : f32 to vector<1x96xf32>
    %548 = arith.mulf %546, %547 : vector<1x96xf32>
    %cst_170 = arith.constant 5.000000e-01 : f32
    %549 = vector.broadcast %cst_170 : f32 to vector<1x96xf32>
    %550 = arith.addf %548, %549 : vector<1x96xf32>
    %551 = vector.extract_strided_slice %524 {offsets = [0, 96], sizes = [1, 32], strides = [1, 1]} : vector<1x128xf32> to vector<1x32xf32>
    %552 = math.tanh %551 : vector<1x32xf32>
    %553 = vector.extract_strided_slice %550 {offsets = [0, 32], sizes = [1, 32], strides = [1, 1]} : vector<1x96xf32> to vector<1x32xf32>
    %554 = arith.mulf %553, %515 : vector<1x32xf32>
    %555 = vector.extract_strided_slice %550 {offsets = [0, 0], sizes = [1, 32], strides = [1, 1]} : vector<1x96xf32> to vector<1x32xf32>
    %556 = arith.mulf %555, %552 : vector<1x32xf32>
    %557 = arith.addf %554, %556 : vector<1x32xf32>
    %558 = vector.extract_strided_slice %550 {offsets = [0, 64], sizes = [1, 32], strides = [1, 1]} : vector<1x96xf32> to vector<1x32xf32>
    %559 = math.tanh %557 : vector<1x32xf32>
    %560 = arith.mulf %558, %559 : vector<1x32xf32>
    %561 = vector.extract_strided_slice %419 {offsets = [3, 0], sizes = [1, 128], strides = [1, 1]} : vector<8x128xf32> to vector<1x128xf32>
    %cst_171 = arith.constant dense<0.000000e+00> : vector<1x128xf32>
    %562 = tpu.matmul %542, %428, %cst_171 {dimension_numbers = #tpu.dot_dimension_numbers<[1], [0], [0], [1], [0, 0, 1, 1], [], []>} : vector<1x32xf32>, vector<32x128xf32>, vector<1x128xf32> -> vector<1x128xf32>
    %563 = arith.addf %561, %562 : vector<1x128xf32>
    %564 = vector.extract_strided_slice %426 {offsets = [4, 0], sizes = [1, 128], strides = [1, 1]} : vector<8x128xf32> to vector<1x128xf32>
    %cst_172 = arith.constant dense<0.000000e+00> : vector<1x128xf32>
    %565 = tpu.matmul %560, %430, %cst_172 {dimension_numbers = #tpu.dot_dimension_numbers<[1], [0], [0], [1], [0, 0, 1, 1], [], []>} : vector<1x32xf32>, vector<32x128xf32>, vector<1x128xf32> -> vector<1x128xf32>
    %566 = arith.addf %564, %565 : vector<1x128xf32>
    %567 = vector.extract_strided_slice %563 {offsets = [0, 0], sizes = [1, 96], strides = [1, 1]} : vector<1x128xf32> to vector<1x96xf32>
    %cst_173 = arith.constant 5.000000e-01 : f32
    %568 = vector.broadcast %cst_173 : f32 to vector<1x96xf32>
    %569 = arith.mulf %567, %568 : vector<1x96xf32>
    %570 = math.tanh %569 : vector<1x96xf32>
    %cst_174 = arith.constant 5.000000e-01 : f32
    %571 = vector.broadcast %cst_174 : f32 to vector<1x96xf32>
    %572 = arith.mulf %570, %571 : vector<1x96xf32>
    %cst_175 = arith.constant 5.000000e-01 : f32
    %573 = vector.broadcast %cst_175 : f32 to vector<1x96xf32>
    %574 = arith.addf %572, %573 : vector<1x96xf32>
    %575 = vector.extract_strided_slice %563 {offsets = [0, 96], sizes = [1, 32], strides = [1, 1]} : vector<1x128xf32> to vector<1x32xf32>
    %576 = math.tanh %575 : vector<1x32xf32>
    %577 = vector.extract_strided_slice %574 {offsets = [0, 32], sizes = [1, 32], strides = [1, 1]} : vector<1x96xf32> to vector<1x32xf32>
    %578 = arith.mulf %577, %539 : vector<1x32xf32>
    %579 = vector.extract_strided_slice %574 {offsets = [0, 0], sizes = [1, 32], strides = [1, 1]} : vector<1x96xf32> to vector<1x32xf32>
    %580 = arith.mulf %579, %576 : vector<1x32xf32>
    %581 = arith.addf %578, %580 : vector<1x32xf32>
    %582 = vector.extract_strided_slice %574 {offsets = [0, 64], sizes = [1, 32], strides = [1, 1]} : vector<1x96xf32> to vector<1x32xf32>
    %583 = math.tanh %581 : vector<1x32xf32>
    %584 = arith.mulf %582, %583 : vector<1x32xf32>
    %585 = vector.extract_strided_slice %566 {offsets = [0, 0], sizes = [1, 96], strides = [1, 1]} : vector<1x128xf32> to vector<1x96xf32>
    %cst_176 = arith.constant 5.000000e-01 : f32
    %586 = vector.broadcast %cst_176 : f32 to vector<1x96xf32>
    %587 = arith.mulf %585, %586 : vector<1x96xf32>
    %588 = math.tanh %587 : vector<1x96xf32>
    %cst_177 = arith.constant 5.000000e-01 : f32
    %589 = vector.broadcast %cst_177 : f32 to vector<1x96xf32>
    %590 = arith.mulf %588, %589 : vector<1x96xf32>
    %cst_178 = arith.constant 5.000000e-01 : f32
    %591 = vector.broadcast %cst_178 : f32 to vector<1x96xf32>
    %592 = arith.addf %590, %591 : vector<1x96xf32>
    %593 = vector.extract_strided_slice %566 {offsets = [0, 96], sizes = [1, 32], strides = [1, 1]} : vector<1x128xf32> to vector<1x32xf32>
    %594 = math.tanh %593 : vector<1x32xf32>
    %595 = vector.extract_strided_slice %592 {offsets = [0, 32], sizes = [1, 32], strides = [1, 1]} : vector<1x96xf32> to vector<1x32xf32>
    %596 = arith.mulf %595, %557 : vector<1x32xf32>
    %597 = vector.extract_strided_slice %592 {offsets = [0, 0], sizes = [1, 32], strides = [1, 1]} : vector<1x96xf32> to vector<1x32xf32>
    %598 = arith.mulf %597, %594 : vector<1x32xf32>
    %599 = arith.addf %596, %598 : vector<1x32xf32>
    %600 = vector.extract_strided_slice %592 {offsets = [0, 64], sizes = [1, 32], strides = [1, 1]} : vector<1x96xf32> to vector<1x32xf32>
    %601 = math.tanh %599 : vector<1x32xf32>
    %602 = arith.mulf %600, %601 : vector<1x32xf32>
    %603 = vector.extract_strided_slice %419 {offsets = [4, 0], sizes = [1, 128], strides = [1, 1]} : vector<8x128xf32> to vector<1x128xf32>
    %cst_179 = arith.constant dense<0.000000e+00> : vector<1x128xf32>
    %604 = tpu.matmul %584, %428, %cst_179 {dimension_numbers = #tpu.dot_dimension_numbers<[1], [0], [0], [1], [0, 0, 1, 1], [], []>} : vector<1x32xf32>, vector<32x128xf32>, vector<1x128xf32> -> vector<1x128xf32>
    %605 = arith.addf %603, %604 : vector<1x128xf32>
    %606 = vector.extract_strided_slice %426 {offsets = [3, 0], sizes = [1, 128], strides = [1, 1]} : vector<8x128xf32> to vector<1x128xf32>
    %cst_180 = arith.constant dense<0.000000e+00> : vector<1x128xf32>
    %607 = tpu.matmul %602, %430, %cst_180 {dimension_numbers = #tpu.dot_dimension_numbers<[1], [0], [0], [1], [0, 0, 1, 1], [], []>} : vector<1x32xf32>, vector<32x128xf32>, vector<1x128xf32> -> vector<1x128xf32>
    %608 = arith.addf %606, %607 : vector<1x128xf32>
    %609 = vector.extract_strided_slice %605 {offsets = [0, 0], sizes = [1, 96], strides = [1, 1]} : vector<1x128xf32> to vector<1x96xf32>
    %cst_181 = arith.constant 5.000000e-01 : f32
    %610 = vector.broadcast %cst_181 : f32 to vector<1x96xf32>
    %611 = arith.mulf %609, %610 : vector<1x96xf32>
    %612 = math.tanh %611 : vector<1x96xf32>
    %cst_182 = arith.constant 5.000000e-01 : f32
    %613 = vector.broadcast %cst_182 : f32 to vector<1x96xf32>
    %614 = arith.mulf %612, %613 : vector<1x96xf32>
    %cst_183 = arith.constant 5.000000e-01 : f32
    %615 = vector.broadcast %cst_183 : f32 to vector<1x96xf32>
    %616 = arith.addf %614, %615 : vector<1x96xf32>
    %617 = vector.extract_strided_slice %605 {offsets = [0, 96], sizes = [1, 32], strides = [1, 1]} : vector<1x128xf32> to vector<1x32xf32>
    %618 = math.tanh %617 : vector<1x32xf32>
    %619 = vector.extract_strided_slice %616 {offsets = [0, 32], sizes = [1, 32], strides = [1, 1]} : vector<1x96xf32> to vector<1x32xf32>
    %620 = arith.mulf %619, %581 : vector<1x32xf32>
    %621 = vector.extract_strided_slice %616 {offsets = [0, 0], sizes = [1, 32], strides = [1, 1]} : vector<1x96xf32> to vector<1x32xf32>
    %622 = arith.mulf %621, %618 : vector<1x32xf32>
    %623 = arith.addf %620, %622 : vector<1x32xf32>
    %624 = vector.extract_strided_slice %616 {offsets = [0, 64], sizes = [1, 32], strides = [1, 1]} : vector<1x96xf32> to vector<1x32xf32>
    %625 = math.tanh %623 : vector<1x32xf32>
    %626 = arith.mulf %624, %625 : vector<1x32xf32>
    %627 = vector.extract_strided_slice %608 {offsets = [0, 0], sizes = [1, 96], strides = [1, 1]} : vector<1x128xf32> to vector<1x96xf32>
    %cst_184 = arith.constant 5.000000e-01 : f32
    %628 = vector.broadcast %cst_184 : f32 to vector<1x96xf32>
    %629 = arith.mulf %627, %628 : vector<1x96xf32>
    %630 = math.tanh %629 : vector<1x96xf32>
    %cst_185 = arith.constant 5.000000e-01 : f32
    %631 = vector.broadcast %cst_185 : f32 to vector<1x96xf32>
    %632 = arith.mulf %630, %631 : vector<1x96xf32>
    %cst_186 = arith.constant 5.000000e-01 : f32
    %633 = vector.broadcast %cst_186 : f32 to vector<1x96xf32>
    %634 = arith.addf %632, %633 : vector<1x96xf32>
    %635 = vector.extract_strided_slice %608 {offsets = [0, 96], sizes = [1, 32], strides = [1, 1]} : vector<1x128xf32> to vector<1x32xf32>
    %636 = math.tanh %635 : vector<1x32xf32>
    %637 = vector.extract_strided_slice %634 {offsets = [0, 32], sizes = [1, 32], strides = [1, 1]} : vector<1x96xf32> to vector<1x32xf32>
    %638 = arith.mulf %637, %599 : vector<1x32xf32>
    %639 = vector.extract_strided_slice %634 {offsets = [0, 0], sizes = [1, 32], strides = [1, 1]} : vector<1x96xf32> to vector<1x32xf32>
    %640 = arith.mulf %639, %636 : vector<1x32xf32>
    %641 = arith.addf %638, %640 : vector<1x32xf32>
    %642 = vector.extract_strided_slice %634 {offsets = [0, 64], sizes = [1, 32], strides = [1, 1]} : vector<1x96xf32> to vector<1x32xf32>
    %643 = math.tanh %641 : vector<1x32xf32>
    %644 = arith.mulf %642, %643 : vector<1x32xf32>
    %645 = vector.extract_strided_slice %419 {offsets = [5, 0], sizes = [1, 128], strides = [1, 1]} : vector<8x128xf32> to vector<1x128xf32>
    %cst_187 = arith.constant dense<0.000000e+00> : vector<1x128xf32>
    %646 = tpu.matmul %626, %428, %cst_187 {dimension_numbers = #tpu.dot_dimension_numbers<[1], [0], [0], [1], [0, 0, 1, 1], [], []>} : vector<1x32xf32>, vector<32x128xf32>, vector<1x128xf32> -> vector<1x128xf32>
    %647 = arith.addf %645, %646 : vector<1x128xf32>
    %648 = vector.extract_strided_slice %426 {offsets = [2, 0], sizes = [1, 128], strides = [1, 1]} : vector<8x128xf32> to vector<1x128xf32>
    %cst_188 = arith.constant dense<0.000000e+00> : vector<1x128xf32>
    %649 = tpu.matmul %644, %430, %cst_188 {dimension_numbers = #tpu.dot_dimension_numbers<[1], [0], [0], [1], [0, 0, 1, 1], [], []>} : vector<1x32xf32>, vector<32x128xf32>, vector<1x128xf32> -> vector<1x128xf32>
    %650 = arith.addf %648, %649 : vector<1x128xf32>
    %651 = vector.extract_strided_slice %647 {offsets = [0, 0], sizes = [1, 96], strides = [1, 1]} : vector<1x128xf32> to vector<1x96xf32>
    %cst_189 = arith.constant 5.000000e-01 : f32
    %652 = vector.broadcast %cst_189 : f32 to vector<1x96xf32>
    %653 = arith.mulf %651, %652 : vector<1x96xf32>
    %654 = math.tanh %653 : vector<1x96xf32>
    %cst_190 = arith.constant 5.000000e-01 : f32
    %655 = vector.broadcast %cst_190 : f32 to vector<1x96xf32>
    %656 = arith.mulf %654, %655 : vector<1x96xf32>
    %cst_191 = arith.constant 5.000000e-01 : f32
    %657 = vector.broadcast %cst_191 : f32 to vector<1x96xf32>
    %658 = arith.addf %656, %657 : vector<1x96xf32>
    %659 = vector.extract_strided_slice %647 {offsets = [0, 96], sizes = [1, 32], strides = [1, 1]} : vector<1x128xf32> to vector<1x32xf32>
    %660 = math.tanh %659 : vector<1x32xf32>
    %661 = vector.extract_strided_slice %658 {offsets = [0, 32], sizes = [1, 32], strides = [1, 1]} : vector<1x96xf32> to vector<1x32xf32>
    %662 = arith.mulf %661, %623 : vector<1x32xf32>
    %663 = vector.extract_strided_slice %658 {offsets = [0, 0], sizes = [1, 32], strides = [1, 1]} : vector<1x96xf32> to vector<1x32xf32>
    %664 = arith.mulf %663, %660 : vector<1x32xf32>
    %665 = arith.addf %662, %664 : vector<1x32xf32>
    %666 = vector.extract_strided_slice %658 {offsets = [0, 64], sizes = [1, 32], strides = [1, 1]} : vector<1x96xf32> to vector<1x32xf32>
    %667 = math.tanh %665 : vector<1x32xf32>
    %668 = arith.mulf %666, %667 : vector<1x32xf32>
    %669 = vector.extract_strided_slice %650 {offsets = [0, 0], sizes = [1, 96], strides = [1, 1]} : vector<1x128xf32> to vector<1x96xf32>
    %cst_192 = arith.constant 5.000000e-01 : f32
    %670 = vector.broadcast %cst_192 : f32 to vector<1x96xf32>
    %671 = arith.mulf %669, %670 : vector<1x96xf32>
    %672 = math.tanh %671 : vector<1x96xf32>
    %cst_193 = arith.constant 5.000000e-01 : f32
    %673 = vector.broadcast %cst_193 : f32 to vector<1x96xf32>
    %674 = arith.mulf %672, %673 : vector<1x96xf32>
    %cst_194 = arith.constant 5.000000e-01 : f32
    %675 = vector.broadcast %cst_194 : f32 to vector<1x96xf32>
    %676 = arith.addf %674, %675 : vector<1x96xf32>
    %677 = vector.extract_strided_slice %650 {offsets = [0, 96], sizes = [1, 32], strides = [1, 1]} : vector<1x128xf32> to vector<1x32xf32>
    %678 = math.tanh %677 : vector<1x32xf32>
    %679 = vector.extract_strided_slice %676 {offsets = [0, 32], sizes = [1, 32], strides = [1, 1]} : vector<1x96xf32> to vector<1x32xf32>
    %680 = arith.mulf %679, %641 : vector<1x32xf32>
    %681 = vector.extract_strided_slice %676 {offsets = [0, 0], sizes = [1, 32], strides = [1, 1]} : vector<1x96xf32> to vector<1x32xf32>
    %682 = arith.mulf %681, %678 : vector<1x32xf32>
    %683 = arith.addf %680, %682 : vector<1x32xf32>
    %684 = vector.extract_strided_slice %676 {offsets = [0, 64], sizes = [1, 32], strides = [1, 1]} : vector<1x96xf32> to vector<1x32xf32>
    %685 = math.tanh %683 : vector<1x32xf32>
    %686 = arith.mulf %684, %685 : vector<1x32xf32>
    %687 = vector.extract_strided_slice %419 {offsets = [6, 0], sizes = [1, 128], strides = [1, 1]} : vector<8x128xf32> to vector<1x128xf32>
    %cst_195 = arith.constant dense<0.000000e+00> : vector<1x128xf32>
    %688 = tpu.matmul %668, %428, %cst_195 {dimension_numbers = #tpu.dot_dimension_numbers<[1], [0], [0], [1], [0, 0, 1, 1], [], []>} : vector<1x32xf32>, vector<32x128xf32>, vector<1x128xf32> -> vector<1x128xf32>
    %689 = arith.addf %687, %688 : vector<1x128xf32>
    %690 = vector.extract_strided_slice %426 {offsets = [1, 0], sizes = [1, 128], strides = [1, 1]} : vector<8x128xf32> to vector<1x128xf32>
    %cst_196 = arith.constant dense<0.000000e+00> : vector<1x128xf32>
    %691 = tpu.matmul %686, %430, %cst_196 {dimension_numbers = #tpu.dot_dimension_numbers<[1], [0], [0], [1], [0, 0, 1, 1], [], []>} : vector<1x32xf32>, vector<32x128xf32>, vector<1x128xf32> -> vector<1x128xf32>
    %692 = arith.addf %690, %691 : vector<1x128xf32>
    %693 = vector.extract_strided_slice %689 {offsets = [0, 0], sizes = [1, 96], strides = [1, 1]} : vector<1x128xf32> to vector<1x96xf32>
    %cst_197 = arith.constant 5.000000e-01 : f32
    %694 = vector.broadcast %cst_197 : f32 to vector<1x96xf32>
    %695 = arith.mulf %693, %694 : vector<1x96xf32>
    %696 = math.tanh %695 : vector<1x96xf32>
    %cst_198 = arith.constant 5.000000e-01 : f32
    %697 = vector.broadcast %cst_198 : f32 to vector<1x96xf32>
    %698 = arith.mulf %696, %697 : vector<1x96xf32>
    %cst_199 = arith.constant 5.000000e-01 : f32
    %699 = vector.broadcast %cst_199 : f32 to vector<1x96xf32>
    %700 = arith.addf %698, %699 : vector<1x96xf32>
    %701 = vector.extract_strided_slice %689 {offsets = [0, 96], sizes = [1, 32], strides = [1, 1]} : vector<1x128xf32> to vector<1x32xf32>
    %702 = math.tanh %701 : vector<1x32xf32>
    %703 = vector.extract_strided_slice %700 {offsets = [0, 32], sizes = [1, 32], strides = [1, 1]} : vector<1x96xf32> to vector<1x32xf32>
    %704 = arith.mulf %703, %665 : vector<1x32xf32>
    %705 = vector.extract_strided_slice %700 {offsets = [0, 0], sizes = [1, 32], strides = [1, 1]} : vector<1x96xf32> to vector<1x32xf32>
    %706 = arith.mulf %705, %702 : vector<1x32xf32>
    %707 = arith.addf %704, %706 : vector<1x32xf32>
    %708 = vector.extract_strided_slice %700 {offsets = [0, 64], sizes = [1, 32], strides = [1, 1]} : vector<1x96xf32> to vector<1x32xf32>
    %709 = math.tanh %707 : vector<1x32xf32>
    %710 = arith.mulf %708, %709 : vector<1x32xf32>
    %711 = vector.extract_strided_slice %692 {offsets = [0, 0], sizes = [1, 96], strides = [1, 1]} : vector<1x128xf32> to vector<1x96xf32>
    %cst_200 = arith.constant 5.000000e-01 : f32
    %712 = vector.broadcast %cst_200 : f32 to vector<1x96xf32>
    %713 = arith.mulf %711, %712 : vector<1x96xf32>
    %714 = math.tanh %713 : vector<1x96xf32>
    %cst_201 = arith.constant 5.000000e-01 : f32
    %715 = vector.broadcast %cst_201 : f32 to vector<1x96xf32>
    %716 = arith.mulf %714, %715 : vector<1x96xf32>
    %cst_202 = arith.constant 5.000000e-01 : f32
    %717 = vector.broadcast %cst_202 : f32 to vector<1x96xf32>
    %718 = arith.addf %716, %717 : vector<1x96xf32>
    %719 = vector.extract_strided_slice %692 {offsets = [0, 96], sizes = [1, 32], strides = [1, 1]} : vector<1x128xf32> to vector<1x32xf32>
    %720 = math.tanh %719 : vector<1x32xf32>
    %721 = vector.extract_strided_slice %718 {offsets = [0, 32], sizes = [1, 32], strides = [1, 1]} : vector<1x96xf32> to vector<1x32xf32>
    %722 = arith.mulf %721, %683 : vector<1x32xf32>
    %723 = vector.extract_strided_slice %718 {offsets = [0, 0], sizes = [1, 32], strides = [1, 1]} : vector<1x96xf32> to vector<1x32xf32>
    %724 = arith.mulf %723, %720 : vector<1x32xf32>
    %725 = arith.addf %722, %724 : vector<1x32xf32>
    %726 = vector.extract_strided_slice %718 {offsets = [0, 64], sizes = [1, 32], strides = [1, 1]} : vector<1x96xf32> to vector<1x32xf32>
    %727 = math.tanh %725 : vector<1x32xf32>
    %728 = arith.mulf %726, %727 : vector<1x32xf32>
    %729 = vector.extract_strided_slice %419 {offsets = [7, 0], sizes = [1, 128], strides = [1, 1]} : vector<8x128xf32> to vector<1x128xf32>
    %cst_203 = arith.constant dense<0.000000e+00> : vector<1x128xf32>
    %730 = tpu.matmul %710, %428, %cst_203 {dimension_numbers = #tpu.dot_dimension_numbers<[1], [0], [0], [1], [0, 0, 1, 1], [], []>} : vector<1x32xf32>, vector<32x128xf32>, vector<1x128xf32> -> vector<1x128xf32>
    %731 = arith.addf %729, %730 : vector<1x128xf32>
    %732 = vector.extract_strided_slice %426 {offsets = [0, 0], sizes = [1, 128], strides = [1, 1]} : vector<8x128xf32> to vector<1x128xf32>
    %cst_204 = arith.constant dense<0.000000e+00> : vector<1x128xf32>
    %733 = tpu.matmul %728, %430, %cst_204 {dimension_numbers = #tpu.dot_dimension_numbers<[1], [0], [0], [1], [0, 0, 1, 1], [], []>} : vector<1x32xf32>, vector<32x128xf32>, vector<1x128xf32> -> vector<1x128xf32>
    %734 = arith.addf %732, %733 : vector<1x128xf32>
    %735 = vector.extract_strided_slice %731 {offsets = [0, 0], sizes = [1, 96], strides = [1, 1]} : vector<1x128xf32> to vector<1x96xf32>
    %cst_205 = arith.constant 5.000000e-01 : f32
    %736 = vector.broadcast %cst_205 : f32 to vector<1x96xf32>
    %737 = arith.mulf %735, %736 : vector<1x96xf32>
    %738 = math.tanh %737 : vector<1x96xf32>
    %cst_206 = arith.constant 5.000000e-01 : f32
    %739 = vector.broadcast %cst_206 : f32 to vector<1x96xf32>
    %740 = arith.mulf %738, %739 : vector<1x96xf32>
    %cst_207 = arith.constant 5.000000e-01 : f32
    %741 = vector.broadcast %cst_207 : f32 to vector<1x96xf32>
    %742 = arith.addf %740, %741 : vector<1x96xf32>
    %743 = vector.extract_strided_slice %731 {offsets = [0, 96], sizes = [1, 32], strides = [1, 1]} : vector<1x128xf32> to vector<1x32xf32>
    %744 = math.tanh %743 : vector<1x32xf32>
    %745 = vector.extract_strided_slice %742 {offsets = [0, 32], sizes = [1, 32], strides = [1, 1]} : vector<1x96xf32> to vector<1x32xf32>
    %746 = arith.mulf %745, %707 : vector<1x32xf32>
    %747 = vector.extract_strided_slice %742 {offsets = [0, 0], sizes = [1, 32], strides = [1, 1]} : vector<1x96xf32> to vector<1x32xf32>
    %748 = arith.mulf %747, %744 : vector<1x32xf32>
    %749 = arith.addf %746, %748 : vector<1x32xf32>
    %750 = vector.extract_strided_slice %742 {offsets = [0, 64], sizes = [1, 32], strides = [1, 1]} : vector<1x96xf32> to vector<1x32xf32>
    %751 = math.tanh %749 : vector<1x32xf32>
    %752 = arith.mulf %750, %751 : vector<1x32xf32>
    %753 = vector.extract_strided_slice %734 {offsets = [0, 0], sizes = [1, 96], strides = [1, 1]} : vector<1x128xf32> to vector<1x96xf32>
    %cst_208 = arith.constant 5.000000e-01 : f32
    %754 = vector.broadcast %cst_208 : f32 to vector<1x96xf32>
    %755 = arith.mulf %753, %754 : vector<1x96xf32>
    %756 = math.tanh %755 : vector<1x96xf32>
    %cst_209 = arith.constant 5.000000e-01 : f32
    %757 = vector.broadcast %cst_209 : f32 to vector<1x96xf32>
    %758 = arith.mulf %756, %757 : vector<1x96xf32>
    %cst_210 = arith.constant 5.000000e-01 : f32
    %759 = vector.broadcast %cst_210 : f32 to vector<1x96xf32>
    %760 = arith.addf %758, %759 : vector<1x96xf32>
    %761 = vector.extract_strided_slice %734 {offsets = [0, 96], sizes = [1, 32], strides = [1, 1]} : vector<1x128xf32> to vector<1x32xf32>
    %762 = math.tanh %761 : vector<1x32xf32>
    %763 = vector.extract_strided_slice %760 {offsets = [0, 32], sizes = [1, 32], strides = [1, 1]} : vector<1x96xf32> to vector<1x32xf32>
    %764 = arith.mulf %763, %725 : vector<1x32xf32>
    %765 = vector.extract_strided_slice %760 {offsets = [0, 0], sizes = [1, 32], strides = [1, 1]} : vector<1x96xf32> to vector<1x32xf32>
    %766 = arith.mulf %765, %762 : vector<1x32xf32>
    %767 = arith.addf %764, %766 : vector<1x32xf32>
    %768 = vector.extract_strided_slice %760 {offsets = [0, 64], sizes = [1, 32], strides = [1, 1]} : vector<1x96xf32> to vector<1x32xf32>
    %769 = math.tanh %767 : vector<1x32xf32>
    %770 = arith.mulf %768, %769 : vector<1x32xf32>
    %771 = tpu.concatenate %458, %500, %542, %584, %626, %668, %710, %752 in 0 : vector<1x32xf32>, vector<1x32xf32>, vector<1x32xf32>, vector<1x32xf32>, vector<1x32xf32>, vector<1x32xf32>, vector<1x32xf32>, vector<1x32xf32> -> vector<8x32xf32>
    %772 = tpu.concatenate %770, %728, %686, %644, %602, %560, %518, %476 in 0 : vector<1x32xf32>, vector<1x32xf32>, vector<1x32xf32>, vector<1x32xf32>, vector<1x32xf32>, vector<1x32xf32>, vector<1x32xf32>, vector<1x32xf32> -> vector<8x32xf32>
    %773 = tpu.concatenate %771, %772 in 1 : vector<8x32xf32>, vector<8x32xf32> -> vector<8x64xf32>
    %c0_211 = arith.constant 0 : index
    %c0_212 = arith.constant 0 : index
    %774 = vector.load %arg12[%c0_211, %c0_212] : memref<64x32xf32, #tpu.memory_space<vmem>>, vector<64x32xf32>
    %cst_213 = arith.constant dense<0.000000e+00> : vector<8x32xf32>
    %775 = tpu.matmul %773, %774, %cst_213 {dimension_numbers = #tpu.dot_dimension_numbers<[1], [0], [0], [1], [0, 0, 1, 1], [], []>} : vector<8x64xf32>, vector<64x32xf32>, vector<8x32xf32> -> vector<8x32xf32>
    %c0_214 = arith.constant 0 : index
    %c0_215 = arith.constant 0 : index
    %776 = vector.load %arg13[%c0_214, %c0_215] : memref<1x32xf32, #tpu.memory_space<vmem>>, vector<1x32xf32>
    %777 = vector.broadcast %776 : vector<1x32xf32> to vector<8x32xf32>
    %778 = arith.addf %775, %777 : vector<8x32xf32>
    %c0_216 = arith.constant 0 : index
    %c0_217 = arith.constant 0 : index
    %779 = vector.load %arg14[%c0_216, %c0_217] : memref<1x32xf32, #tpu.memory_space<vmem>>, vector<1x32xf32>
    %780 = vector.broadcast %779 : vector<1x32xf32> to vector<8x32xf32>
    %781 = arith.mulf %778, %780 : vector<8x32xf32>
    %cst_218 = arith.constant dense<0.000000e+00> : vector<8xf32>
    %782 = vector.multi_reduction <add>, %781, %cst_218 [1] : vector<8x32xf32> to vector<8xf32>
    %783 = vector.shape_cast %782 : vector<8xf32> to vector<8x1xf32>
    %c0_219 = arith.constant 0 : index
    %c0_220 = arith.constant 0 : index
    %784 = vector.load %arg15[%c0_219, %c0_220] : memref<1x1xf32, #tpu.memory_space<vmem>>, vector<1x1xf32>
    %785 = vector.broadcast %784 : vector<1x1xf32> to vector<8x1xf32>
    %786 = arith.addf %783, %785 : vector<8x1xf32>
    %cst_221 = arith.constant dense<0xFF800000> : vector<1xf32>
    %787 = vector.multi_reduction <maximumf>, %786, %cst_221 [0] : vector<8x1xf32> to vector<1xf32>
    %788 = vector.shape_cast %787 : vector<1xf32> to vector<1x1xf32>
    %789 = vector.broadcast %788 : vector<1x1xf32> to vector<8x1xf32>
    %790 = arith.subf %786, %789 : vector<8x1xf32>
    %791 = math.exp %790 : vector<8x1xf32>
    %cst_222 = arith.constant dense<0.000000e+00> : vector<1xf32>
    %792 = vector.multi_reduction <add>, %791, %cst_222 [0] : vector<8x1xf32> to vector<1xf32>
    %793 = vector.shape_cast %792 : vector<1xf32> to vector<1x1xf32>
    %794 = tpu.reciprocal %793 {approx = true} : vector<1x1xf32> -> vector<1x1xf32>
    %795 = vector.broadcast %794 : vector<1x1xf32> to vector<8x1xf32>
    %796 = arith.mulf %791, %795 : vector<8x1xf32>
    %797 = vector.broadcast %796 : vector<8x1xf32> to vector<8x32xf32>
    %798 = arith.mulf %797, %778 : vector<8x32xf32>
    %cst_223 = arith.constant dense<0.000000e+00> : vector<32xf32>
    %799 = vector.multi_reduction <add>, %798, %cst_223 [0] : vector<8x32xf32> to vector<32xf32>
    %800 = vector.shape_cast %799 : vector<32xf32> to vector<1x32xf32>
    %c0_224 = arith.constant 0 : index
    %c0_225 = arith.constant 0 : index
    %c0_226 = arith.constant 0 : index
    %801 = vector.load %arg16[%c0_224, %c0_225, %c0_226] : memref<1x1x32xf32, #tpu.memory_space<vmem>>, vector<1x1x32xf32>
    %802 = vector.shape_cast %801 : vector<1x1x32xf32> to vector<1x32xf32>
    %803 = vector.shape_cast %800 : vector<1x32xf32> to vector<1x1x32xf32>
    tpu.vector_store %arg16[%c0_224, %c0_225, %c0_226], %803 {strides = array<i32>} : memref<1x1x32xf32, #tpu.memory_space<vmem>>, vector<1x1x32xf32>,
    return
  }
  func.func @transform_0(%arg0: i32) -> (i32, i32, i32) {
    %c0_i32 = arith.constant 0 : i32
    %c0_i32_0 = arith.constant 0 : i32
    %c0_i32_1 = arith.constant 0 : i32
    return %arg0, %c0_i32, %c0_i32_0 : i32, i32, i32
  }
  func.func @transform_1(%arg0: i32) -> (i32, i32) {
    %c0_i32 = arith.constant 0 : i32
    %c0_i32_0 = arith.constant 0 : i32
    %c0_i32_1 = arith.constant 0 : i32
    return %c0_i32, %c0_i32_0 : i32, i32
  }
  func.func @transform_2(%arg0: i32) -> (i32, i32) {
    %c0_i32 = arith.constant 0 : i32
    %c0_i32_0 = arith.constant 0 : i32
    %c0_i32_1 = arith.constant 0 : i32
    return %c0_i32, %c0_i32_0 : i32, i32
  }
  func.func @transform_3(%arg0: i32) -> (i32, i32, i32) {
    %c0_i32 = arith.constant 0 : i32
    %c0_i32_0 = arith.constant 0 : i32
    %c0_i32_1 = arith.constant 0 : i32
    %c0_i32_2 = arith.constant 0 : i32
    return %c0_i32, %c0_i32_0, %c0_i32_1 : i32, i32, i32
  }
  func.func @transform_4(%arg0: i32) -> (i32, i32, i32) {
    %c0_i32 = arith.constant 0 : i32
    %c0_i32_0 = arith.constant 0 : i32
    %c0_i32_1 = arith.constant 0 : i32
    %c0_i32_2 = arith.constant 0 : i32
    return %c0_i32, %c0_i32_0, %c0_i32_1 : i32, i32, i32
  }
  func.func @transform_5(%arg0: i32) -> (i32, i32, i32) {
    %c0_i32 = arith.constant 0 : i32
    %c0_i32_0 = arith.constant 0 : i32
    %c0_i32_1 = arith.constant 0 : i32
    %c0_i32_2 = arith.constant 0 : i32
    return %c0_i32, %c0_i32_0, %c0_i32_1 : i32, i32, i32
  }
  func.func @transform_6(%arg0: i32) -> (i32, i32, i32) {
    %c0_i32 = arith.constant 0 : i32
    %c0_i32_0 = arith.constant 0 : i32
    %c0_i32_1 = arith.constant 0 : i32
    %c0_i32_2 = arith.constant 0 : i32
    return %c0_i32, %c0_i32_0, %c0_i32_1 : i32, i32, i32
  }
  func.func @transform_7(%arg0: i32) -> (i32, i32, i32) {
    %c0_i32 = arith.constant 0 : i32
    %c0_i32_0 = arith.constant 0 : i32
    %c0_i32_1 = arith.constant 0 : i32
    %c0_i32_2 = arith.constant 0 : i32
    return %c0_i32, %c0_i32_0, %c0_i32_1 : i32, i32, i32
  }
  func.func @transform_8(%arg0: i32) -> (i32, i32, i32) {
    %c0_i32 = arith.constant 0 : i32
    %c0_i32_0 = arith.constant 0 : i32
    %c0_i32_1 = arith.constant 0 : i32
    %c0_i32_2 = arith.constant 0 : i32
    return %c0_i32, %c0_i32_0, %c0_i32_1 : i32, i32, i32
  }
  func.func @transform_9(%arg0: i32) -> (i32, i32, i32) {
    %c0_i32 = arith.constant 0 : i32
    %c0_i32_0 = arith.constant 0 : i32
    %c0_i32_1 = arith.constant 0 : i32
    %c0_i32_2 = arith.constant 0 : i32
    return %c0_i32, %c0_i32_0, %c0_i32_1 : i32, i32, i32
  }
  func.func @transform_10(%arg0: i32) -> (i32, i32, i32) {
    %c0_i32 = arith.constant 0 : i32
    %c0_i32_0 = arith.constant 0 : i32
    %c0_i32_1 = arith.constant 0 : i32
    %c0_i32_2 = arith.constant 0 : i32
    return %c0_i32, %c0_i32_0, %c0_i32_1 : i32, i32, i32
  }
  func.func @transform_11(%arg0: i32) -> (i32, i32) {
    %c0_i32 = arith.constant 0 : i32
    %c0_i32_0 = arith.constant 0 : i32
    %c0_i32_1 = arith.constant 0 : i32
    return %c0_i32, %c0_i32_0 : i32, i32
  }
  func.func @transform_12(%arg0: i32) -> (i32, i32) {
    %c0_i32 = arith.constant 0 : i32
    %c0_i32_0 = arith.constant 0 : i32
    %c0_i32_1 = arith.constant 0 : i32
    return %c0_i32, %c0_i32_0 : i32, i32
  }
  func.func @transform_13(%arg0: i32) -> (i32, i32) {
    %c0_i32 = arith.constant 0 : i32
    %c0_i32_0 = arith.constant 0 : i32
    %c0_i32_1 = arith.constant 0 : i32
    return %c0_i32, %c0_i32_0 : i32, i32
  }
  func.func @transform_14(%arg0: i32) -> (i32, i32) {
    %c0_i32 = arith.constant 0 : i32
    %c0_i32_0 = arith.constant 0 : i32
    %c0_i32_1 = arith.constant 0 : i32
    return %c0_i32, %c0_i32_0 : i32, i32
  }
  func.func @transform_15(%arg0: i32) -> (i32, i32, i32) {
    %c0_i32 = arith.constant 0 : i32
    %c0_i32_0 = arith.constant 0 : i32
    %c0_i32_1 = arith.constant 0 : i32
    return %arg0, %c0_i32, %c0_i32_0 : i32, i32, i32
  }
}

</mosaic_0001>

<llo_original>
// kernel: clip_vid_encoder_forward.1
$region0: #{clip_vid_encoder_forward.1}
  #allocation0 [shape = 'u32[]', space=smem, size = 0x4, offset = 0x4, fixed_abs, tag = 'smem constant byte address 0x4 - core index']
  #allocation1 [shape = 'u32[144,128]{1,0:T(1,128)}', space=vmem, size = 0x12000, scoped, tag = 'internal scratch']
  #allocation2 [shape = 'f32[1,1]{1,0:T(1,128)S(1)}', space=vmem, size = 0x200, scoped, tag = 'scoped memory for clip_vid_encoder_forward.1']
  %s0 = inlined_call_operand.vmem [shape: f32[2,8,512], index: 0, kind: input, shape index: {}]
  %s1 = inlined_call_operand.vmem [shape: f32[512,32], index: 1, kind: input, shape index: {}]
  %s2 = inlined_call_operand.vmem [shape: f32[1,32], index: 2, kind: input, shape index: {}]
  %s3 = inlined_call_operand.vmem [shape: f32[6,32,32], index: 3, kind: input, shape index: {}]
  %s4 = inlined_call_operand.vmem [shape: f32[2,1,32], index: 4, kind: input, shape index: {}]
  %s5 = inlined_call_operand.vmem [shape: f32[2,32,128], index: 5, kind: input, shape index: {}]
  %s6 = inlined_call_operand.vmem [shape: f32[2,32,128], index: 6, kind: input, shape index: {}]
  %s7 = inlined_call_operand.vmem [shape: f32[2,1,128], index: 7, kind: input, shape index: {}]
  %s8 = inlined_call_operand.vmem [shape: f32[2,64,128], index: 8, kind: input, shape index: {}]
  %s9 = inlined_call_operand.vmem [shape: f32[2,32,128], index: 9, kind: input, shape index: {}]
  %s10 = inlined_call_operand.vmem [shape: f32[2,1,128], index: 10, kind: input, shape index: {}]
  %s11 = inlined_call_operand.vmem [shape: f32[64,32], index: 11, kind: input, shape index: {}]
  %s12 = inlined_call_operand.vmem [shape: f32[1,32], index: 12, kind: input, shape index: {}]
  %s13 = inlined_call_operand.vmem [shape: f32[1,32], index: 13, kind: input, shape index: {}]
  %s14 = inlined_call_operand.<no memory space> [shape: f32[1,1], index: 14, kind: input, shape index: {}]
  %s15 = inlined_call_operand.hbm [shape: f32[2,1,32], index: 15, kind: output, shape index: {}]
  %s16 = sld [smem:[#allocation0]]
  $region93: #{clip_vid_encoder_forward.1} parent=0
    _
  %s18 = ssub.s32 1, %s16
  %s19 = scalar_select 0, %s18, %s16
  %v20 = vstv %s14
  %21 = vst [vmem:[#allocation2] sm:$0x1] %v20
  $region1: #{clip_vid_encoder_forward.1} parent=0
    #allocation3 [shape = 'u8[1024]{0}', space=vmem, size = 0x400, scoped, tag = 'output window, operand 0']
    #allocation4 [shape = 's32[2]{0}', space=sflag, size = 0x8, scoped, tag = 'scoped memory for clip_vid_encoder_forward.1']
    %22 = vsyncpa [#allocation4], 0
    %s23 = scalar_lea.sflag [#allocation4], 1
    %24 = vsyncpa %s23, 0
    loop: start=0, step=1, limit=4
    $region2: #{clip_vid_encoder_forward.1} parent=1 // loop_pre_header
      _
    $region3: #{clip_vid_encoder_forward.1} parent=1 // loop_header
      %s26 = sphi 0, %s30
      %p27 = scmp.ge.s32.totalorder %s26, 4
      %s36 = sphi 0, %s38
      %s39 = sphi 0, %s36
      %s40 = sphi 0, %s39
      %s56 = sphi 0, %s40
      %s60 = sphi 0, %s60
      %s62 = sphi 0, %s60
      %s63 = sphi 0, %s62
      %s77 = sphi 0, %s63
      %s81 = sphi 0, %s81
      %s83 = sphi 0, %s81
      %s84 = sphi 0, %s83
      %s98 = sphi 0, %s84
      %s102 = sphi 0, %s102
      %s104 = sphi 0, %s102
      %s105 = sphi 0, %s104
      %s119 = sphi 0, %s105
      %s123 = sphi 0, %s123
      %s125 = sphi 0, %s123
      %s126 = sphi 0, %s125
      %s140 = sphi 0, %s126
      %s144 = sphi 0, %s144
      %s146 = sphi 0, %s144
      %s147 = sphi 0, %s146
      %s161 = sphi 0, %s147
      %s165 = sphi 0, %s165
      %s167 = sphi 0, %s165
      %s168 = sphi 0, %s167
      %s182 = sphi 0, %s168
      %s186 = sphi 0, %s186
      %s188 = sphi 0, %s186
      %s189 = sphi 0, %s188
      %s203 = sphi 0, %s189
      %s207 = sphi 0, %s207
      %s209 = sphi 0, %s207
      %s210 = sphi 0, %s209
      %s224 = sphi 0, %s210
      %s228 = sphi 0, %s228
      %s230 = sphi 0, %s228
      %s231 = sphi 0, %s230
      %s245 = sphi 0, %s231
      %s249 = sphi 0, %s249
      %s251 = sphi 0, %s249
      %s252 = sphi 0, %s251
      %s266 = sphi 0, %s252
      %s270 = sphi 0, %s270
      %s272 = sphi 0, %s270
      %s273 = sphi 0, %s272
      %s287 = sphi 0, %s273
      %s291 = sphi 0, %s291
      %s293 = sphi 0, %s291
      %s294 = sphi 0, %s293
      %s308 = sphi 0, %s294
      %s312 = sphi 0, %s312
      %s314 = sphi 0, %s312
      %s315 = sphi 0, %s314
      %s329 = sphi 0, %s315
      %s333 = sphi 0, %s333
      %s335 = sphi 0, %s333
      %s336 = sphi 0, %s335
      %s350 = sphi 0, %s336
      %s356 = sphi 0, %s358
      %s359 = sphi 0, %s356
      %s360 = sphi 0, %s359
      %s376 = sphi 0, %s360
    $region4: #{clip_vid_encoder_forward.1} parent=1 // loop_header_branch
      %29 = sbr.rel (%p27) target = $region8
    $region5: #{clip_vid_encoder_forward.1} parent=1 // loop_body
      %s31 = ssub.s32 %s26, 1
      %s32 = ssub.s32 %s26, 2
      %s33 = sadd.s32 %s26, 1
      %s34 = ssub.s32 %s26, %s33
      %p35 = scmp.eq.s32.totalorder %s34, 0
      %s37 = sadd.s32 %s36, 1
      %s38 = scalar_select %p35, %s36, %s37
      %p41 = pneg %p35
      %p42 = scmp.eq.s32.totalorder %s26, 1
      %p43 = por %p41, %p42
      %p44 = scmp.ne.s32.totalorder %s36, %s39
      %p45 = scmp.eq.s32.totalorder %s26, 0
      %p46 = por %p44, %p45
      %p47 = scmp.ne.s32.totalorder %s36, %s39
      %p48 = scmp.eq.s32.totalorder %s31, 1
      %p49 = por %p47, %p48
      %p50 = scmp.ne.s32.totalorder %s39, %s40
      %p51 = scmp.eq.s32.totalorder %s31, 0
      %p52 = por %p50, %p51
      %p53 = scmp.ne.s32.totalorder %s39, %s40
      %p54 = scmp.eq.s32.totalorder %s32, 1
      %p55 = por %p53, %p54
      %p57 = scmp.ne.s32.totalorder %s40, %s56
      %p58 = scmp.eq.s32.totalorder %s32, 0
      %p59 = por %p57, %p58
      %s61 = sadd.s32 %s60, 1
      %p64 = scmp.eq.s32.totalorder %s26, 1
      %p65 = scmp.ne.s32.totalorder %s60, %s62
      %p66 = scmp.eq.s32.totalorder %s26, 0
      %p67 = por %p65, %p66
      %p68 = scmp.ne.s32.totalorder %s60, %s62
      %p69 = scmp.eq.s32.totalorder %s31, 1
      %p70 = por %p68, %p69
      %p71 = scmp.ne.s32.totalorder %s62, %s63
      %p72 = scmp.eq.s32.totalorder %s31, 0
      %p73 = por %p71, %p72
      %p74 = scmp.ne.s32.totalorder %s62, %s63
      %p75 = scmp.eq.s32.totalorder %s32, 1
      %p76 = por %p74, %p75
      %p78 = scmp.ne.s32.totalorder %s63, %s77
      %p79 = scmp.eq.s32.totalorder %s32, 0
      %p80 = por %p78, %p79
      %s82 = sadd.s32 %s81, 1
      %p85 = scmp.eq.s32.totalorder %s26, 1
      %p86 = scmp.ne.s32.totalorder %s81, %s83
      %p87 = scmp.eq.s32.totalorder %s26, 0
      %p88 = por %p86, %p87
      %p89 = scmp.ne.s32.totalorder %s81, %s83
      %p90 = scmp.eq.s32.totalorder %s31, 1
      %p91 = por %p89, %p90
      %p92 = scmp.ne.s32.totalorder %s83, %s84
      %p93 = scmp.eq.s32.totalorder %s31, 0
      %p94 = por %p92, %p93
      %p95 = scmp.ne.s32.totalorder %s83, %s84
      %p96 = scmp.eq.s32.totalorder %s32, 1
      %p97 = por %p95, %p96
      %p99 = scmp.ne.s32.totalorder %s84, %s98
      %p100 = scmp.eq.s32.totalorder %s32, 0
      %p101 = por %p99, %p100
      %s103 = sadd.s32 %s102, 1
      %p106 = scmp.eq.s32.totalorder %s26, 1
      %p107 = scmp.ne.s32.totalorder %s102, %s104
      %p108 = scmp.eq.s32.totalorder %s26, 0
      %p109 = por %p107, %p108
      %p110 = scmp.ne.s32.totalorder %s102, %s104
      %p111 = scmp.eq.s32.totalorder %s31, 1
      %p112 = por %p110, %p111
      %p113 = scmp.ne.s32.totalorder %s104, %s105
      %p114 = scmp.eq.s32.totalorder %s31, 0
      %p115 = por %p113, %p114
      %p116 = scmp.ne.s32.totalorder %s104, %s105
      %p117 = scmp.eq.s32.totalorder %s32, 1
      %p118 = por %p116, %p117
      %p120 = scmp.ne.s32.totalorder %s105, %s119
      %p121 = scmp.eq.s32.totalorder %s32, 0
      %p122 = por %p120, %p121
      %s124 = sadd.s32 %s123, 1
      %p127 = scmp.eq.s32.totalorder %s26, 1
      %p128 = scmp.ne.s32.totalorder %s123, %s125
      %p129 = scmp.eq.s32.totalorder %s26, 0
      %p130 = por %p128, %p129
      %p131 = scmp.ne.s32.totalorder %s123, %s125
      %p132 = scmp.eq.s32.totalorder %s31, 1
      %p133 = por %p131, %p132
      %p134 = scmp.ne.s32.totalorder %s125, %s126
      %p135 = scmp.eq.s32.totalorder %s31, 0
      %p136 = por %p134, %p135
      %p137 = scmp.ne.s32.totalorder %s125, %s126
      %p138 = scmp.eq.s32.totalorder %s32, 1
      %p139 = por %p137, %p138
      %p141 = scmp.ne.s32.totalorder %s126, %s140
      %p142 = scmp.eq.s32.totalorder %s32, 0
      %p143 = por %p141, %p142
      %s145 = sadd.s32 %s144, 1
      %p148 = scmp.eq.s32.totalorder %s26, 1
      %p149 = scmp.ne.s32.totalorder %s144, %s146
      %p150 = scmp.eq.s32.totalorder %s26, 0
      %p151 = por %p149, %p150
      %p152 = scmp.ne.s32.totalorder %s144, %s146
      %p153 = scmp.eq.s32.totalorder %s31, 1
      %p154 = por %p152, %p153
      %p155 = scmp.ne.s32.totalorder %s146, %s147
      %p156 = scmp.eq.s32.totalorder %s31, 0
      %p157 = por %p155, %p156
      %p158 = scmp.ne.s32.totalorder %s146, %s147
      %p159 = scmp.eq.s32.totalorder %s32, 1
      %p160 = por %p158, %p159
      %p162 = scmp.ne.s32.totalorder %s147, %s161
      %p163 = scmp.eq.s32.totalorder %s32, 0
      %p164 = por %p162, %p163
      %s166 = sadd.s32 %s165, 1
      %p169 = scmp.eq.s32.totalorder %s26, 1
      %p170 = scmp.ne.s32.totalorder %s165, %s167
      %p171 = scmp.eq.s32.totalorder %s26, 0
      %p172 = por %p170, %p171
      %p173 = scmp.ne.s32.totalorder %s165, %s167
      %p174 = scmp.eq.s32.totalorder %s31, 1
      %p175 = por %p173, %p174
      %p176 = scmp.ne.s32.totalorder %s167, %s168
      %p177 = scmp.eq.s32.totalorder %s31, 0
      %p178 = por %p176, %p177
      %p179 = scmp.ne.s32.totalorder %s167, %s168
      %p180 = scmp.eq.s32.totalorder %s32, 1
      %p181 = por %p179, %p180
      %p183 = scmp.ne.s32.totalorder %s168, %s182
      %p184 = scmp.eq.s32.totalorder %s32, 0
      %p185 = por %p183, %p184
      %s187 = sadd.s32 %s186, 1
      %p190 = scmp.eq.s32.totalorder %s26, 1
      %p191 = scmp.ne.s32.totalorder %s186, %s188
      %p192 = scmp.eq.s32.totalorder %s26, 0
      %p193 = por %p191, %p192
      %p194 = scmp.ne.s32.totalorder %s186, %s188
      %p195 = scmp.eq.s32.totalorder %s31, 1
      %p196 = por %p194, %p195
      %p197 = scmp.ne.s32.totalorder %s188, %s189
      %p198 = scmp.eq.s32.totalorder %s31, 0
      %p199 = por %p197, %p198
      %p200 = scmp.ne.s32.totalorder %s188, %s189
      %p201 = scmp.eq.s32.totalorder %s32, 1
      %p202 = por %p200, %p201
      %p204 = scmp.ne.s32.totalorder %s189, %s203
      %p205 = scmp.eq.s32.totalorder %s32, 0
      %p206 = por %p204, %p205
      %s208 = sadd.s32 %s207, 1
      %p211 = scmp.eq.s32.totalorder %s26, 1
      %p212 = scmp.ne.s32.totalorder %s207, %s209
      %p213 = scmp.eq.s32.totalorder %s26, 0
      %p214 = por %p212, %p213
      %p215 = scmp.ne.s32.totalorder %s207, %s209
      %p216 = scmp.eq.s32.totalorder %s31, 1
      %p217 = por %p215, %p216
      %p218 = scmp.ne.s32.totalorder %s209, %s210
      %p219 = scmp.eq.s32.totalorder %s31, 0
      %p220 = por %p218, %p219
      %p221 = scmp.ne.s32.totalorder %s209, %s210
      %p222 = scmp.eq.s32.totalorder %s32, 1
      %p223 = por %p221, %p222
      %p225 = scmp.ne.s32.totalorder %s210, %s224
      %p226 = scmp.eq.s32.totalorder %s32, 0
      %p227 = por %p225, %p226
      %s229 = sadd.s32 %s228, 1
      %p232 = scmp.eq.s32.totalorder %s26, 1
      %p233 = scmp.ne.s32.totalorder %s228, %s230
      %p234 = scmp.eq.s32.totalorder %s26, 0
      %p235 = por %p233, %p234
      %p236 = scmp.ne.s32.totalorder %s228, %s230
      %p237 = scmp.eq.s32.totalorder %s31, 1
      %p238 = por %p236, %p237
      %p239 = scmp.ne.s32.totalorder %s230, %s231
      %p240 = scmp.eq.s32.totalorder %s31, 0
      %p241 = por %p239, %p240
      %p242 = scmp.ne.s32.totalorder %s230, %s231
      %p243 = scmp.eq.s32.totalorder %s32, 1
      %p244 = por %p242, %p243
      %p246 = scmp.ne.s32.totalorder %s231, %s245
      %p247 = scmp.eq.s32.totalorder %s32, 0
      %p248 = por %p246, %p247
      %s250 = sadd.s32 %s249, 1
      %p253 = scmp.eq.s32.totalorder %s26, 1
      %p254 = scmp.ne.s32.totalorder %s249, %s251
      %p255 = scmp.eq.s32.totalorder %s26, 0
      %p256 = por %p254, %p255
      %p257 = scmp.ne.s32.totalorder %s249, %s251
      %p258 = scmp.eq.s32.totalorder %s31, 1
      %p259 = por %p257, %p258
      %p260 = scmp.ne.s32.totalorder %s251, %s252
      %p261 = scmp.eq.s32.totalorder %s31, 0
      %p262 = por %p260, %p261
      %p263 = scmp.ne.s32.totalorder %s251, %s252
      %p264 = scmp.eq.s32.totalorder %s32, 1
      %p265 = por %p263, %p264
      %p267 = scmp.ne.s32.totalorder %s252, %s266
      %p268 = scmp.eq.s32.totalorder %s32, 0
      %p269 = por %p267, %p268
      %s271 = sadd.s32 %s270, 1
      %p274 = scmp.eq.s32.totalorder %s26, 1
      %p275 = scmp.ne.s32.totalorder %s270, %s272
      %p276 = scmp.eq.s32.totalorder %s26, 0
      %p277 = por %p275, %p276
      %p278 = scmp.ne.s32.totalorder %s270, %s272
      %p279 = scmp.eq.s32.totalorder %s31, 1
      %p280 = por %p278, %p279
      %p281 = scmp.ne.s32.totalorder %s272, %s273
      %p282 = scmp.eq.s32.totalorder %s31, 0
      %p283 = por %p281, %p282
      %p284 = scmp.ne.s32.totalorder %s272, %s273
      %p285 = scmp.eq.s32.totalorder %s32, 1
      %p286 = por %p284, %p285
      %p288 = scmp.ne.s32.totalorder %s273, %s287
      %p289 = scmp.eq.s32.totalorder %s32, 0
      %p290 = por %p288, %p289
      %s292 = sadd.s32 %s291, 1
      %p295 = scmp.eq.s32.totalorder %s26, 1
      %p296 = scmp.ne.s32.totalorder %s291, %s293
      %p297 = scmp.eq.s32.totalorder %s26, 0
      %p298 = por %p296, %p297
      %p299 = scmp.ne.s32.totalorder %s291, %s293
      %p300 = scmp.eq.s32.totalorder %s31, 1
      %p301 = por %p299, %p300
      %p302 = scmp.ne.s32.totalorder %s293, %s294
      %p303 = scmp.eq.s32.totalorder %s31, 0
      %p304 = por %p302, %p303
      %p305 = scmp.ne.s32.totalorder %s293, %s294
      %p306 = scmp.eq.s32.totalorder %s32, 1
      %p307 = por %p305, %p306
      %p309 = scmp.ne.s32.totalorder %s294, %s308
      %p310 = scmp.eq.s32.totalorder %s32, 0
      %p311 = por %p309, %p310
      %s313 = sadd.s32 %s312, 1
      %p316 = scmp.eq.s32.totalorder %s26, 1
      %p317 = scmp.ne.s32.totalorder %s312, %s314
      %p318 = scmp.eq.s32.totalorder %s26, 0
      %p319 = por %p317, %p318
      %p320 = scmp.ne.s32.totalorder %s312, %s314
      %p321 = scmp.eq.s32.totalorder %s31, 1
      %p322 = por %p320, %p321
      %p323 = scmp.ne.s32.totalorder %s314, %s315
      %p324 = scmp.eq.s32.totalorder %s31, 0
      %p325 = por %p323, %p324
      %p326 = scmp.ne.s32.totalorder %s314, %s315
      %p327 = scmp.eq.s32.totalorder %s32, 1
      %p328 = por %p326, %p327
      %p330 = scmp.ne.s32.totalorder %s315, %s329
      %p331 = scmp.eq.s32.totalorder %s32, 0
      %p332 = por %p330, %p331
      %s334 = sadd.s32 %s333, 1
      %p337 = scmp.eq.s32.totalorder %s26, 1
      %p338 = scmp.ne.s32.totalorder %s333, %s335
      %p339 = scmp.eq.s32.totalorder %s26, 0
      %p340 = por %p338, %p339
      %p341 = scmp.ne.s32.totalorder %s333, %s335
      %p342 = scmp.eq.s32.totalorder %s31, 1
      %p343 = por %p341, %p342
      %p344 = scmp.ne.s32.totalorder %s335, %s336
      %p345 = scmp.eq.s32.totalorder %s31, 0
      %p346 = por %p344, %p345
      %p347 = scmp.ne.s32.totalorder %s335, %s336
      %p348 = scmp.eq.s32.totalorder %s32, 1
      %p349 = por %p347, %p348
      %p351 = scmp.ne.s32.totalorder %s336, %s350
      %p352 = scmp.eq.s32.totalorder %s32, 0
      %p353 = por %p351, %p352
      %s354 = ssub.s32 %s26, %s33
      %p355 = scmp.eq.s32.totalorder %s354, 0
      %s357 = sadd.s32 %s356, 1
      %s358 = scalar_select %p355, %s356, %s357
      %p361 = pneg %p355
      %p362 = scmp.eq.s32.totalorder %s26, 1
      %p363 = por %p361, %p362
      %p364 = scmp.ne.s32.totalorder %s356, %s359
      %p365 = scmp.eq.s32.totalorder %s26, 0
      %p366 = por %p364, %p365
      %p367 = scmp.ne.s32.totalorder %s356, %s359
      %p368 = scmp.eq.s32.totalorder %s31, 1
      %p369 = por %p367, %p368
      %p370 = scmp.ne.s32.totalorder %s359, %s360
      %p371 = scmp.eq.s32.totalorder %s31, 0
      %p372 = por %p370, %p371
      %p373 = scmp.ne.s32.totalorder %s359, %s360
      %p374 = scmp.eq.s32.totalorder %s32, 1
      %p375 = por %p373, %p374
      %p377 = scmp.ne.s32.totalorder %s360, %s376
      %p378 = scmp.eq.s32.totalorder %s32, 0
      %p379 = por %p377, %p378
      %p380 = scmp.le.s32.totalorder 1, %s26
      %p381 = scmp.lt.s32.totalorder %s26, 3
      %p382 = pnand %p380, %p381
      %p383 = pneg %p382
      // Predicated region
      $region9: #{clip_vid_encoder_forward.1} parent=5 // pred_check
        _
      $region10: #{clip_vid_encoder_forward.1} parent=5 // pred_check_branch
        %385 = sbr.rel (%p382) target = $region12
      $region11: #{clip_vid_encoder_forward.1} parent=5 // pred_region
        %s386 = ssub.s32 %s26, 1
        // Predicated region
        $region13: #{clip_vid_encoder_forward.1} parent=11 // pred_check
          %p387 = pneg %p73
        $region14: #{clip_vid_encoder_forward.1} parent=11 // pred_check_branch
          %389 = sbr.rel (%p387) target = $region16
        $region15: #{clip_vid_encoder_forward.1} parent=11 // pred_region
          _
        $region16: #{clip_vid_encoder_forward.1} parent=11 // pred_fallthru
          _
        // Predicated region
        $region17: #{clip_vid_encoder_forward.1} parent=11 // pred_check
          %p390 = pneg %p94
        $region18: #{clip_vid_encoder_forward.1} parent=11 // pred_check_branch
          %392 = sbr.rel (%p390) target = $region20
        $region19: #{clip_vid_encoder_forward.1} parent=11 // pred_region
          _
        $region20: #{clip_vid_encoder_forward.1} parent=11 // pred_fallthru
          _
        // Predicated region
        $region21: #{clip_vid_encoder_forward.1} parent=11 // pred_check
          %p393 = pneg %p115
        $region22: #{clip_vid_encoder_forward.1} parent=11 // pred_check_branch
          %395 = sbr.rel (%p393) target = $region24
        $region23: #{clip_vid_encoder_forward.1} parent=11 // pred_region
          _
        $region24: #{clip_vid_encoder_forward.1} parent=11 // pred_fallthru
          _
        // Predicated region
        $region25: #{clip_vid_encoder_forward.1} parent=11 // pred_check
          %p396 = pneg %p136
        $region26: #{clip_vid_encoder_forward.1} parent=11 // pred_check_branch
          %398 = sbr.rel (%p396) target = $region28
        $region27: #{clip_vid_encoder_forward.1} parent=11 // pred_region
          _
        $region28: #{clip_vid_encoder_forward.1} parent=11 // pred_fallthru
          _
        // Predicated region
        $region29: #{clip_vid_encoder_forward.1} parent=11 // pred_check
          %p399 = pneg %p157
        $region30: #{clip_vid_encoder_forward.1} parent=11 // pred_check_branch
          %401 = sbr.rel (%p399) target = $region32
        $region31: #{clip_vid_encoder_forward.1} parent=11 // pred_region
          _
        $region32: #{clip_vid_encoder_forward.1} parent=11 // pred_fallthru
          _
        // Predicated region
        $region33: #{clip_vid_encoder_forward.1} parent=11 // pred_check
          %p402 = pneg %p178
        $region34: #{clip_vid_encoder_forward.1} parent=11 // pred_check_branch
          %404 = sbr.rel (%p402) target = $region36
        $region35: #{clip_vid_encoder_forward.1} parent=11 // pred_region
          _
        $region36: #{clip_vid_encoder_forward.1} parent=11 // pred_fallthru
          _
        // Predicated region
        $region37: #{clip_vid_encoder_forward.1} parent=11 // pred_check
          %p405 = pneg %p199
        $region38: #{clip_vid_encoder_forward.1} parent=11 // pred_check_branch
          %407 = sbr.rel (%p405) target = $region40
        $region39: #{clip_vid_encoder_forward.1} parent=11 // pred_region
          _
        $region40: #{clip_vid_encoder_forward.1} parent=11 // pred_fallthru
          _
        // Predicated region
        $region41: #{clip_vid_encoder_forward.1} parent=11 // pred_check
          %p408 = pneg %p220
        $region42: #{clip_vid_encoder_forward.1} parent=11 // pred_check_branch
          %410 = sbr.rel (%p408) target = $region44
        $region43: #{clip_vid_encoder_forward.1} parent=11 // pred_region
          _
        $region44: #{clip_vid_encoder_forward.1} parent=11 // pred_fallthru
          _
        // Predicated region
        $region45: #{clip_vid_encoder_forward.1} parent=11 // pred_check
          %p411 = pneg %p241
        $region46: #{clip_vid_encoder_forward.1} parent=11 // pred_check_branch
          %413 = sbr.rel (%p411) target = $region48
        $region47: #{clip_vid_encoder_forward.1} parent=11 // pred_region
          _
        $region48: #{clip_vid_encoder_forward.1} parent=11 // pred_fallthru
          _
        // Predicated region
        $region49: #{clip_vid_encoder_forward.1} parent=11 // pred_check
          %p414 = pneg %p262
        $region50: #{clip_vid_encoder_forward.1} parent=11 // pred_check_branch
          %416 = sbr.rel (%p414) target = $region52
        $region51: #{clip_vid_encoder_forward.1} parent=11 // pred_region
          _
        $region52: #{clip_vid_encoder_forward.1} parent=11 // pred_fallthru
          _
        // Predicated region
        $region53: #{clip_vid_encoder_forward.1} parent=11 // pred_check
          %p417 = pneg %p283
        $region54: #{clip_vid_encoder_forward.1} parent=11 // pred_check_branch
          %419 = sbr.rel (%p417) target = $region56
        $region55: #{clip_vid_encoder_forward.1} parent=11 // pred_region
          _
        $region56: #{clip_vid_encoder_forward.1} parent=11 // pred_fallthru
          _
        // Predicated region
        $region57: #{clip_vid_encoder_forward.1} parent=11 // pred_check
          %p420 = pneg %p304
        $region58: #{clip_vid_encoder_forward.1} parent=11 // pred_check_branch
          %422 = sbr.rel (%p420) target = $region60
        $region59: #{clip_vid_encoder_forward.1} parent=11 // pred_region
          _
        $region60: #{clip_vid_encoder_forward.1} parent=11 // pred_fallthru
          _
        // Predicated region
        $region61: #{clip_vid_encoder_forward.1} parent=11 // pred_check
          %p423 = pneg %p325
        $region62: #{clip_vid_encoder_forward.1} parent=11 // pred_check_branch
          %425 = sbr.rel (%p423) target = $region64
        $region63: #{clip_vid_encoder_forward.1} parent=11 // pred_region
          _
        $region64: #{clip_vid_encoder_forward.1} parent=11 // pred_fallthru
          _
        // Predicated region
        $region65: #{clip_vid_encoder_forward.1} parent=11 // pred_check
          %p426 = pneg %p346
        $region66: #{clip_vid_encoder_forward.1} parent=11 // pred_check_branch
          %428 = sbr.rel (%p426) target = $region68
        $region67: #{clip_vid_encoder_forward.1} parent=11 // pred_region
          _
        $region68: #{clip_vid_encoder_forward.1} parent=11 // pred_fallthru
          _
      $region12: #{clip_vid_encoder_forward.1} parent=5 // pred_fallthru
        _
      %p429 = scmp.lt.s32.totalorder %s26, 2
      // Predicated region
      $region69: #{clip_vid_encoder_forward.1} parent=5 // pred_check
        %p430 = pneg %p429
      $region70: #{clip_vid_encoder_forward.1} parent=5 // pred_check_branch
        %432 = sbr.rel (%p430) target = $region72
      $region71: #{clip_vid_encoder_forward.1} parent=5 // pred_region
        // Predicated region
        $region73: #{clip_vid_encoder_forward.1} parent=71 // pred_check
          %p433 = pneg %p46
        $region74: #{clip_vid_encoder_forward.1} parent=71 // pred_check_branch
          %435 = sbr.rel (%p433) target = $region76
        $region75: #{clip_vid_encoder_forward.1} parent=71 // pred_region
          %p436 = scmp.lt.s32.totalorder %s26, 1
          %s437 = scalar_select %p436, %s26, 1
          %s438 = smul.addr %s437, 4
          %s439 = smul.addr %s438, 8
          %s440 = scalar_lea.vmem %s0, %s439
        $region76: #{clip_vid_encoder_forward.1} parent=71 // pred_fallthru
          _
      $region72: #{clip_vid_encoder_forward.1} parent=5 // pred_fallthru
        _
      %p441 = scmp.le.s32.totalorder 1, %s26
      %p442 = scmp.lt.s32.totalorder %s26, 3
      %p443 = pnand %p441, %p442
      %p444 = pneg %p443
      // Predicated region
      $region77: #{clip_vid_encoder_forward.1} parent=5 // pred_check
        _
      $region78: #{clip_vid_encoder_forward.1} parent=5 // pred_check_branch
        %446 = sbr.rel (%p443) target = $region80
      $region79: #{clip_vid_encoder_forward.1} parent=5 // pred_region
        %s447 = ssub.s32 %s26, 1
        %p448 = scmp.lt.s32.totalorder %s31, 1
        %s449 = scalar_select %p448, %s31, 1
        %s450 = smul.addr %s449, 4
        %s451 = smul.addr %s450, 8
        %s452 = scalar_lea.vmem %s0, %s451
        %p453 = pneg %p52
        %p454 = pneg %p49
        %p455 = pneg %p73
        %p456 = pneg %p70
        %p457 = pneg %p94
        %p458 = pneg %p91
        %p459 = pneg %p115
        %p460 = pneg %p112
        %p461 = pneg %p136
        %p462 = pneg %p133
        %p463 = pneg %p157
        %p464 = pneg %p154
        %p465 = pneg %p178
        %p466 = pneg %p175
        %p467 = pneg %p199
        %p468 = pneg %p196
        %p469 = pneg %p220
        %p470 = pneg %p217
        %p471 = pneg %p241
        %p472 = pneg %p238
        %p473 = pneg %p262
        %p474 = pneg %p259
        %p475 = pneg %p283
        %p476 = pneg %p280
        %p477 = pneg %p304
        %p478 = pneg %p301
        %p479 = pneg %p325
        %p480 = pneg %p322
        %p481 = pneg %p346
        %p482 = pneg %p343
        %p483 = pneg %p372
        %p484 = pneg %p369
        %s485 = sand.u32 %s359, 1
        %s486 = scalar_lea.sflag [#allocation4], %s485
        %s487 = sand.u32 %s359, 1
        %s488 = scalar_lea.vmem [#allocation3], %s487
        %p489 = scmp.lt.s32.totalorder %s31, 1
        %s490 = scalar_select %p489, %s31, 1
        %s491 = smul.addr %s490, 4
        %s492 = smul.addr %s491, 8
        %s493 = scalar_lea.vmem %s0, %s492
        %v494 = vld [vmem:[%s493] sm:$0xff]
        %v495 = vld [vmem:[%s493 + $0x8] sm:$0xff]
        %v496 = vld [vmem:[%s493 + $0x10] sm:$0xff]
        %v497 = vld [vmem:[%s493 + $0x18] sm:$0xff]
        %v498 = vld [vmem:[%s1] sm:$0xff]
        %v499 = vld [vmem:[%s1 + $0x8] sm:$0xff]
        %v500 = vld [vmem:[%s1 + $0x10] sm:$0xff]
        %v501 = vld [vmem:[%s1 + $0x18] sm:$0xff]
        %v502 = vld [vmem:[%s1 + $0x20] sm:$0xff]
        %v503 = vld [vmem:[%s1 + $0x28] sm:$0xff]
        %v504 = vld [vmem:[%s1 + $0x30] sm:$0xff]
        %v505 = vld [vmem:[%s1 + $0x38] sm:$0xff]
        %v506 = vld [vmem:[%s1 + $0x40] sm:$0xff]
        %v507 = vld [vmem:[%s1 + $0x48] sm:$0xff]
        %v508 = vld [vmem:[%s1 + $0x50] sm:$0xff]
        %v509 = vld [vmem:[%s1 + $0x58] sm:$0xff]
        %v510 = vld [vmem:[%s1 + $0x60] sm:$0xff]
        %v511 = vld [vmem:[%s1 + $0x68] sm:$0xff]
        %v512 = vld [vmem:[%s1 + $0x70] sm:$0xff]
        %v513 = vld [vmem:[%s1 + $0x78] sm:$0xff]
        %v514 = vld [vmem:[%s1 + $0x80] sm:$0xff]
        %v515 = vld [vmem:[%s1 + $0x88] sm:$0xff]
        %v516 = vld [vmem:[%s1 + $0x90] sm:$0xff]
        %v517 = vld [vmem:[%s1 + $0x98] sm:$0xff]
        %v518 = vld [vmem:[%s1 + $0xa0] sm:$0xff]
        %v519 = vld [vmem:[%s1 + $0xa8] sm:$0xff]
        %v520 = vld [vmem:[%s1 + $0xb0] sm:$0xff]
        %v521 = vld [vmem:[%s1 + $0xb8] sm:$0xff]
        %v522 = vld [vmem:[%s1 + $0xc0] sm:$0xff]
        %v523 = vld [vmem:[%s1 + $0xc8] sm:$0xff]
        %v524 = vld [vmem:[%s1 + $0xd0] sm:$0xff]
        %v525 = vld [vmem:[%s1 + $0xd8] sm:$0xff]
        %v526 = vld [vmem:[%s1 + $0xe0] sm:$0xff]
        %v527 = vld [vmem:[%s1 + $0xe8] sm:$0xff]
        %v528 = vld [vmem:[%s1 + $0xf0] sm:$0xff]
        %v529 = vld [vmem:[%s1 + $0xf8] sm:$0xff]
        %v530 = vld [vmem:[%s1 + $0x100] sm:$0xff]
        %v531 = vld [vmem:[%s1 + $0x108] sm:$0xff]
        %v532 = vld [vmem:[%s1 + $0x110] sm:$0xff]
        %v533 = vld [vmem:[%s1 + $0x118] sm:$0xff]
        %v534 = vld [vmem:[%s1 + $0x120] sm:$0xff]
        %v535 = vld [vmem:[%s1 + $0x128] sm:$0xff]
        %v536 = vld [vmem:[%s1 + $0x130] sm:$0xff]
        %v537 = vld [vmem:[%s1 + $0x138] sm:$0xff]
        %v538 = vld [vmem:[%s1 + $0x140] sm:$0xff]
        %v539 = vld [vmem:[%s1 + $0x148] sm:$0xff]
        %v540 = vld [vmem:[%s1 + $0x150] sm:$0xff]
        %v541 = vld [vmem:[%s1 + $0x158] sm:$0xff]
        %v542 = vld [vmem:[%s1 + $0x160] sm:$0xff]
        %v543 = vld [vmem:[%s1 + $0x168] sm:$0xff]
        %v544 = vld [vmem:[%s1 + $0x170] sm:$0xff]
        %v545 = vld [vmem:[%s1 + $0x178] sm:$0xff]
        %v546 = vld [vmem:[%s1 + $0x180] sm:$0xff]
        %v547 = vld [vmem:[%s1 + $0x188] sm:$0xff]
        %v548 = vld [vmem:[%s1 + $0x190] sm:$0xff]
        %v549 = vld [vmem:[%s1 + $0x198] sm:$0xff]
        %v550 = vld [vmem:[%s1 + $0x1a0] sm:$0xff]
        %v551 = vld [vmem:[%s1 + $0x1a8] sm:$0xff]
        %v552 = vld [vmem:[%s1 + $0x1b0] sm:$0xff]
        %v553 = vld [vmem:[%s1 + $0x1b8] sm:$0xff]
        %v554 = vld [vmem:[%s1 + $0x1c0] sm:$0xff]
        %v555 = vld [vmem:[%s1 + $0x1c8] sm:$0xff]
        %v556 = vld [vmem:[%s1 + $0x1d0] sm:$0xff]
        %v557 = vld [vmem:[%s1 + $0x1d8] sm:$0xff]
        %v558 = vld [vmem:[%s1 + $0x1e0] sm:$0xff]
        %v559 = vld [vmem:[%s1 + $0x1e8] sm:$0xff]
        %v560 = vld [vmem:[%s1 + $0x1f0] sm:$0xff]
        %v561 = vld [vmem:[%s1 + $0x1f8] sm:$0xff]
        %v562 = vld [vmem:[%s2] sm:$0x1]
        %v564 = vlaneseq
        %v565 = vshrl.u32 %v564, 7
        %v566 = vsub.s32 0, %v565
        %v567 = vrot.slane %v562, %v566
        %569 = vmatprep.subr.mxu0 0.0
        %570 = vmatpush1.msra.mxu0 %v498
        %571 = vmatprep.subr.mxu0 0.0
        %572 = vmatpush1.msra.mxu0 %v499
        %573 = vmatprep.subr.mxu0 0.0
        %574 = vmatpush1.msra.mxu0 %v500
        %575 = vmatprep.subr.mxu0 0.0
        %576 = vmatpush1.msra.mxu0 %v501
        %577 = vmatprep.subr.mxu0 0.0
        %578 = vmatpush1.msra.mxu0 %v502
        %579 = vmatprep.subr.mxu0 0.0
        %580 = vmatpush1.msra.mxu0 %v503
        %581 = vmatprep.subr.mxu0 0.0
        %582 = vmatpush1.msra.mxu0 %v504
        %583 = vmatprep.subr.mxu0 0.0
        %584 = vmatpush1.msra.mxu0 %v505
        %585 = vmatprep.subr.mxu0 0.0
        %586 = vmatpush1.msra.mxu0 %v506
        %587 = vmatprep.subr.mxu0 0.0
        %588 = vmatpush1.msra.mxu0 %v507
        %589 = vmatprep.subr.mxu0 0.0
        %590 = vmatpush1.msra.mxu0 %v508
        %591 = vmatprep.subr.mxu0 0.0
        %592 = vmatpush1.msra.mxu0 %v509
        %593 = vmatprep.subr.mxu0 0.0
        %594 = vmatpush1.msra.mxu0 %v510
        %595 = vmatprep.subr.mxu0 0.0
        %596 = vmatpush1.msra.mxu0 %v511
        %597 = vmatprep.subr.mxu0 0.0
        %598 = vmatpush1.msra.mxu0 %v512
        %599 = vmatprep.subr.mxu0 0.0
        %600 = vmatpush1.msra.mxu0 %v513
        %601 = vmatprep.subr.mxu0 0.0
        %602 = vmatpush1.msra.mxu0 %v514
        %603 = vmatprep.subr.mxu0 0.0
        %604 = vmatpush1.msra.mxu0 %v515
        %605 = vmatprep.subr.mxu0 0.0
        %606 = vmatpush1.msra.mxu0 %v516
        %607 = vmatprep.subr.mxu0 0.0
        %608 = vmatpush1.msra.mxu0 %v517
        %609 = vmatprep.subr.mxu0 0.0
        %610 = vmatpush1.msra.mxu0 %v518
        %611 = vmatprep.subr.mxu0 0.0
        %612 = vmatpush1.msra.mxu0 %v519
        %613 = vmatprep.subr.mxu0 0.0
        %614 = vmatpush1.msra.mxu0 %v520
        %615 = vmatprep.subr.mxu0 0.0
        %616 = vmatpush1.msra.mxu0 %v521
        %617 = vmatprep.subr.mxu0 0.0
        %618 = vmatpush1.msra.mxu0 %v522
        %619 = vmatprep.subr.mxu0 0.0
        %620 = vmatpush1.msra.mxu0 %v523
        %621 = vmatprep.subr.mxu0 0.0
        %622 = vmatpush1.msra.mxu0 %v524
        %623 = vmatprep.subr.mxu0 0.0
        %624 = vmatpush1.msra.mxu0 %v525
        %625 = vmatprep.subr.mxu0 0.0
        %626 = vmatpush1.msra.mxu0 %v526
        %627 = vmatprep.subr.mxu0 0.0
        %628 = vmatpush1.msra.mxu0 %v527
        %629 = vmatprep.subr.mxu0 0.0
        %630 = vmatpush1.msra.mxu0 %v528
        %631 = vmatprep.subr.mxu0 0.0
        %632 = vmatpush1.msra.mxu0 %v529
        %633 = vmatprep.mubr.f32.mxu0 %v495
        %634 = vmatmul.mubr.f32.gmra.mrb[0].mxu0 %v494
        %v635 = vpop.f32.mrb[0].mxu0
        %v636 = vadd.f32 %v567, %v635
        %v637 = vpop.f32.mrb[0].mxu0
        %638 = vdwg.mxu0
        %639 = vmatprep.subr.mxu0 0.0
        %640 = vmatpush1.msra.mxu0 %v530
        %641 = vmatprep.subr.mxu0 0.0
        %642 = vmatpush1.msra.mxu0 %v531
        %643 = vmatprep.subr.mxu0 0.0
        %644 = vmatpush1.msra.mxu0 %v532
        %645 = vmatprep.subr.mxu0 0.0
        %646 = vmatpush1.msra.mxu0 %v533
        %647 = vmatprep.subr.mxu0 0.0
        %648 = vmatpush1.msra.mxu0 %v534
        %649 = vmatprep.subr.mxu0 0.0
        %650 = vmatpush1.msra.mxu0 %v535
        %651 = vmatprep.subr.mxu0 0.0
        %652 = vmatpush1.msra.mxu0 %v536
        %653 = vmatprep.subr.mxu0 0.0
        %654 = vmatpush1.msra.mxu0 %v537
        %655 = vmatprep.subr.mxu0 0.0
        %656 = vmatpush1.msra.mxu0 %v538
        %657 = vmatprep.subr.mxu0 0.0
        %658 = vmatpush1.msra.mxu0 %v539
        %659 = vmatprep.subr.mxu0 0.0
        %660 = vmatpush1.msra.mxu0 %v540
        %661 = vmatprep.subr.mxu0 0.0
        %662 = vmatpush1.msra.mxu0 %v541
        %663 = vmatprep.subr.mxu0 0.0
        %664 = vmatpush1.msra.mxu0 %v542
        %665 = vmatprep.subr.mxu0 0.0
        %666 = vmatpush1.msra.mxu0 %v543
        %667 = vmatprep.subr.mxu0 0.0
        %668 = vmatpush1.msra.mxu0 %v544
        %669 = vmatprep.subr.mxu0 0.0
        %670 = vmatpush1.msra.mxu0 %v545
        %671 = vmatprep.subr.mxu0 0.0
        %672 = vmatpush1.msra.mxu0 %v546
        %673 = vmatprep.subr.mxu0 0.0
        %674 = vmatpush1.msra.mxu0 %v547
        %675 = vmatprep.subr.mxu0 0.0
        %676 = vmatpush1.msra.mxu0 %v548
        %677 = vmatprep.subr.mxu0 0.0
        %678 = vmatpush1.msra.mxu0 %v549
        %679 = vmatprep.subr.mxu0 0.0
        %680 = vmatpush1.msra.mxu0 %v550
        %681 = vmatprep.subr.mxu0 0.0
        %682 = vmatpush1.msra.mxu0 %v551
        %683 = vmatprep.subr.mxu0 0.0
        %684 = vmatpush1.msra.mxu0 %v552
        %685 = vmatprep.subr.mxu0 0.0
        %686 = vmatpush1.msra.mxu0 %v553
        %687 = vmatprep.subr.mxu0 0.0
        %688 = vmatpush1.msra.mxu0 %v554
        %689 = vmatprep.subr.mxu0 0.0
        %690 = vmatpush1.msra.mxu0 %v555
        %691 = vmatprep.subr.mxu0 0.0
        %692 = vmatpush1.msra.mxu0 %v556
        %693 = vmatprep.subr.mxu0 0.0
        %694 = vmatpush1.msra.mxu0 %v557
        %695 = vmatprep.subr.mxu0 0.0
        %696 = vmatpush1.msra.mxu0 %v558
        %697 = vmatprep.subr.mxu0 0.0
        %698 = vmatpush1.msra.mxu0 %v559
        %699 = vmatprep.subr.mxu0 0.0
        %700 = vmatpush1.msra.mxu0 %v560
        %701 = vmatprep.subr.mxu0 0.0
        %702 = vmatpush1.msra.mxu0 %v561
        %703 = vmatprep.mubr.f32.mxu0 %v497
        %704 = vmatmul.mubr.f32.gmra.mrb[0].mxu0 %v496
        %v705 = vpop.f32.mrb[0].mxu0
        %v706 = vadd.f32 %v636, %v705
        %v707 = vpop.f32.mrb[0].mxu0
        %708 = vdwg.mxu0
        %v709 = vmax.f32 %v706, 0.0
        %v711 = vrot.slane %v709, 7
        %vm713 = vcmask 1040384
        %v714 = vsel %vm713, 0.0, %v711
        %v715 = vrot.slane %v709, 1
        %vm717 = vcmask 1046528
        %v718 = vsel %vm717, %v715, 0.0
        %v719 = vld [vmem:[%s3] sm:$0xff]
        %v720 = vld [vmem:[%s3 + $0x8] sm:$0xff]
        %v721 = vld [vmem:[%s3 + $0x10] sm:$0xff]
        %v722 = vld [vmem:[%s3 + $0x18] sm:$0xff]
        %s723 = scalar_lea.vmem %s3, 32
        %v724 = vld [vmem:[%s723] sm:$0xff]
        %v725 = vld [vmem:[%s723 + $0x8] sm:$0xff]
        %v726 = vld [vmem:[%s723 + $0x10] sm:$0xff]
        %v727 = vld [vmem:[%s723 + $0x18] sm:$0xff]
        %vm728 = vcmask 261120
        %v729 = vsel %vm728, %v709, 0
        %731 = vmatprep.subr.mxu0 0.0
        %732 = vmatpush1.msra.mxu0 %v724
        %733 = vmatprep.subr.mxu0 0.0
        %734 = vmatpush1.msra.mxu0 %v725
        %735 = vmatprep.subr.mxu0 0.0
        %736 = vmatpush1.msra.mxu0 %v726
        %737 = vmatprep.subr.mxu0 0.0
        %738 = vmatpush1.msra.mxu0 %v727
        %739 = vmatprep.subr.mxu0 0.0
        %740 = vmatpush1.msra.mxu0 0.0
        %741 = vmatprep.subr.mxu0 0.0
        %742 = vmatpush1.msra.mxu0 0.0
        %743 = vmatprep.subr.mxu0 0.0
        %744 = vmatpush1.msra.mxu0 0.0
        %745 = vmatprep.subr.mxu0 0.0
        %746 = vmatpush1.msra.mxu0 0.0
        %747 = vmatprep.subr.mxu0 0.0
        %748 = vmatpush1.msra.mxu0 0.0
        %749 = vmatprep.subr.mxu0 0.0
        %750 = vmatpush1.msra.mxu0 0.0
        %751 = vmatprep.subr.mxu0 0.0
        %752 = vmatpush1.msra.mxu0 0.0
        %753 = vmatprep.subr.mxu0 0.0
        %754 = vmatpush1.msra.mxu0 0.0
        %755 = vmatprep.subr.mxu0 0.0
        %756 = vmatpush1.msra.mxu0 0.0
        %757 = vmatprep.subr.mxu0 0.0
        %758 = vmatpush1.msra.mxu0 0.0
        %759 = vmatprep.subr.mxu0 0.0
        %760 = vmatpush1.msra.mxu0 0.0
        %761 = vmatprep.subr.mxu0 0.0
        %762 = vmatpush1.msra.mxu0 0.0
        %763 = vmatprep.subr.mxu0 0.0
        %764 = vmatpush1.msra.mxu0 0.0
        %765 = vmatprep.subr.mxu0 0.0
        %766 = vmatpush1.msra.mxu0 0.0
        %767 = vmatprep.subr.mxu0 0.0
        %768 = vmatpush1.msra.mxu0 0.0
        %769 = vmatprep.subr.mxu0 0.0
        %770 = vmatpush1.msra.mxu0 0.0
        %771 = vmatprep.subr.mxu0 0.0
        %772 = vmatpush1.msra.mxu0 0.0
        %773 = vmatprep.subr.mxu0 0.0
        %774 = vmatpush1.msra.mxu0 0.0
        %775 = vmatprep.subr.mxu0 0.0
        %776 = vmatpush1.msra.mxu0 0.0
        %777 = vmatprep.subr.mxu0 0.0
        %778 = vmatpush1.msra.mxu0 0.0
        %779 = vmatprep.subr.mxu0 0.0
        %780 = vmatpush1.msra.mxu0 0.0
        %781 = vmatprep.subr.mxu0 0.0
        %782 = vmatpush1.msra.mxu0 0.0
        %783 = vmatprep.subr.mxu0 0.0
        %784 = vmatpush1.msra.mxu0 0.0
        %785 = vmatprep.subr.mxu0 0.0
        %786 = vmatpush1.msra.mxu0 0.0
        %787 = vmatprep.subr.mxu0 0.0
        %788 = vmatpush1.msra.mxu0 0.0
        %789 = vmatprep.subr.mxu0 0.0
        %790 = vmatpush1.msra.mxu0 0.0
        %791 = vmatprep.subr.mxu0 0.0
        %792 = vmatpush1.msra.mxu0 0.0
        %793 = vmatprep.subr.mxu0 0.0
        %794 = vmatpush1.msra.mxu0 0.0
        %795 = vmatprep.mubr.f32.mxu0 0.0
        %796 = vmatmul.mubr.f32.gmra.mrb[0].mxu0 %v729
        %v797 = vpop.f32.mrb[0].mxu0
        %v798 = vadd.f32 0.0, %v797
        %v799 = vpop.f32.mrb[0].mxu0
        %800 = vdwg.mxu0
        %v802 = vsel %vm728, %v714, 0
        %804 = vmatprep.subr.mxu0 0.0
        %805 = vmatpush1.msra.mxu0 %v719
        %806 = vmatprep.subr.mxu0 0.0
        %807 = vmatpush1.msra.mxu0 %v720
        %808 = vmatprep.subr.mxu0 0.0
        %809 = vmatpush1.msra.mxu0 %v721
        %810 = vmatprep.subr.mxu0 0.0
        %811 = vmatpush1.msra.mxu0 %v722
        %812 = vmatprep.subr.mxu0 0.0
        %813 = vmatpush1.msra.mxu0 0.0
        %814 = vmatprep.subr.mxu0 0.0
        %815 = vmatpush1.msra.mxu0 0.0
        %816 = vmatprep.subr.mxu0 0.0
        %817 = vmatpush1.msra.mxu0 0.0
        %818 = vmatprep.subr.mxu0 0.0
        %819 = vmatpush1.msra.mxu0 0.0
        %820 = vmatprep.subr.mxu0 0.0
        %821 = vmatpush1.msra.mxu0 0.0
        %822 = vmatprep.subr.mxu0 0.0
        %823 = vmatpush1.msra.mxu0 0.0
        %824 = vmatprep.subr.mxu0 0.0
        %825 = vmatpush1.msra.mxu0 0.0
        %826 = vmatprep.subr.mxu0 0.0
        %827 = vmatpush1.msra.mxu0 0.0
        %828 = vmatprep.subr.mxu0 0.0
        %829 = vmatpush1.msra.mxu0 0.0
        %830 = vmatprep.subr.mxu0 0.0
        %831 = vmatpush1.msra.mxu0 0.0
        %832 = vmatprep.subr.mxu0 0.0
        %833 = vmatpush1.msra.mxu0 0.0
        %834 = vmatprep.subr.mxu0 0.0
        %835 = vmatpush1.msra.mxu0 0.0
        %836 = vmatprep.subr.mxu0 0.0
        %837 = vmatpush1.msra.mxu0 0.0
        %838 = vmatprep.subr.mxu0 0.0
        %839 = vmatpush1.msra.mxu0 0.0
        %840 = vmatprep.subr.mxu0 0.0
        %841 = vmatpush1.msra.mxu0 0.0
        %842 = vmatprep.subr.mxu0 0.0
        %843 = vmatpush1.msra.mxu0 0.0
        %844 = vmatprep.subr.mxu0 0.0
        %845 = vmatpush1.msra.mxu0 0.0
        %846 = vmatprep.subr.mxu0 0.0
        %847 = vmatpush1.msra.mxu0 0.0
        %848 = vmatprep.subr.mxu0 0.0
        %849 = vmatpush1.msra.mxu0 0.0
        %850 = vmatprep.subr.mxu0 0.0
        %851 = vmatpush1.msra.mxu0 0.0
        %852 = vmatprep.subr.mxu0 0.0
        %853 = vmatpush1.msra.mxu0 0.0
        %854 = vmatprep.subr.mxu0 0.0
        %855 = vmatpush1.msra.mxu0 0.0
        %856 = vmatprep.subr.mxu0 0.0
        %857 = vmatpush1.msra.mxu0 0.0
        %858 = vmatprep.subr.mxu0 0.0
        %859 = vmatpush1.msra.mxu0 0.0
        %860 = vmatprep.subr.mxu0 0.0
        %861 = vmatpush1.msra.mxu0 0.0
        %862 = vmatprep.subr.mxu0 0.0
        %863 = vmatpush1.msra.mxu0 0.0
        %864 = vmatprep.subr.mxu0 0.0
        %865 = vmatpush1.msra.mxu0 0.0
        %866 = vmatprep.subr.mxu0 0.0
        %867 = vmatpush1.msra.mxu0 0.0
        %868 = vmatprep.mubr.f32.mxu0 0.0
        %869 = vmatmul.mubr.f32.gmra.mrb[0].mxu0 %v802
        %v870 = vpop.f32.mrb[0].mxu0
        %v871 = vadd.f32 %v798, %v870
        %v872 = vpop.f32.mrb[0].mxu0
        %873 = vdwg.mxu0
        %s874 = scalar_lea.vmem %s3, 64
        %v875 = vld [vmem:[%s874] sm:$0xff]
        %v876 = vld [vmem:[%s874 + $0x8] sm:$0xff]
        %v877 = vld [vmem:[%s874 + $0x10] sm:$0xff]
        %v878 = vld [vmem:[%s874 + $0x18] sm:$0xff]
        %v880 = vsel %vm728, %v718, 0
        %882 = vmatprep.subr.mxu0 0.0
        %883 = vmatpush1.msra.mxu0 %v875
        %884 = vmatprep.subr.mxu0 0.0
        %885 = vmatpush1.msra.mxu0 %v876
        %886 = vmatprep.subr.mxu0 0.0
        %887 = vmatpush1.msra.mxu0 %v877
        %888 = vmatprep.subr.mxu0 0.0
        %889 = vmatpush1.msra.mxu0 %v878
        %890 = vmatprep.subr.mxu0 0.0
        %891 = vmatpush1.msra.mxu0 0.0
        %892 = vmatprep.subr.mxu0 0.0
        %893 = vmatpush1.msra.mxu0 0.0
        %894 = vmatprep.subr.mxu0 0.0
        %895 = vmatpush1.msra.mxu0 0.0
        %896 = vmatprep.subr.mxu0 0.0
        %897 = vmatpush1.msra.mxu0 0.0
        %898 = vmatprep.subr.mxu0 0.0
        %899 = vmatpush1.msra.mxu0 0.0
        %900 = vmatprep.subr.mxu0 0.0
        %901 = vmatpush1.msra.mxu0 0.0
        %902 = vmatprep.subr.mxu0 0.0
        %903 = vmatpush1.msra.mxu0 0.0
        %904 = vmatprep.subr.mxu0 0.0
        %905 = vmatpush1.msra.mxu0 0.0
        %906 = vmatprep.subr.mxu0 0.0
        %907 = vmatpush1.msra.mxu0 0.0
        %908 = vmatprep.subr.mxu0 0.0
        %909 = vmatpush1.msra.mxu0 0.0
        %910 = vmatprep.subr.mxu0 0.0
        %911 = vmatpush1.msra.mxu0 0.0
        %912 = vmatprep.subr.mxu0 0.0
        %913 = vmatpush1.msra.mxu0 0.0
        %914 = vmatprep.subr.mxu0 0.0
        %915 = vmatpush1.msra.mxu0 0.0
        %916 = vmatprep.subr.mxu0 0.0
        %917 = vmatpush1.msra.mxu0 0.0
        %918 = vmatprep.subr.mxu0 0.0
        %919 = vmatpush1.msra.mxu0 0.0
        %920 = vmatprep.subr.mxu0 0.0
        %921 = vmatpush1.msra.mxu0 0.0
        %922 = vmatprep.subr.mxu0 0.0
        %923 = vmatpush1.msra.mxu0 0.0
        %924 = vmatprep.subr.mxu0 0.0
        %925 = vmatpush1.msra.mxu0 0.0
        %926 = vmatprep.subr.mxu0 0.0
        %927 = vmatpush1.msra.mxu0 0.0
        %928 = vmatprep.subr.mxu0 0.0
        %929 = vmatpush1.msra.mxu0 0.0
        %930 = vmatprep.subr.mxu0 0.0
        %931 = vmatpush1.msra.mxu0 0.0
        %932 = vmatprep.subr.mxu0 0.0
        %933 = vmatpush1.msra.mxu0 0.0
        %934 = vmatprep.subr.mxu0 0.0
        %935 = vmatpush1.msra.mxu0 0.0
        %936 = vmatprep.subr.mxu0 0.0
        %937 = vmatpush1.msra.mxu0 0.0
        %938 = vmatprep.subr.mxu0 0.0
        %939 = vmatpush1.msra.mxu0 0.0
        %940 = vmatprep.subr.mxu0 0.0
        %941 = vmatpush1.msra.mxu0 0.0
        %942 = vmatprep.subr.mxu0 0.0
        %943 = vmatpush1.msra.mxu0 0.0
        %944 = vmatprep.subr.mxu0 0.0
        %945 = vmatpush1.msra.mxu0 0.0
        %946 = vmatprep.mubr.f32.mxu0 0.0
        %947 = vmatmul.mubr.f32.gmra.mrb[0].mxu0 %v880
        %v948 = vpop.f32.mrb[0].mxu0
        %v949 = vadd.f32 0.0, %v948
        %v950 = vpop.f32.mrb[0].mxu0
        %951 = vdwg.mxu0
        %v952 = vadd.f32 %v871, %v949
        %v953 = vld [vmem:[%s4] sm:$0x1]
        %v955 = vlaneseq
        %v956 = vshrl.u32 %v955, 7
        %v957 = vsub.s32 0, %v956
        %v958 = vrot.slane %v953, %v957
        %v960 = vadd.f32 %v952, %v958
        %v961 = vmax.f32 %v960, 0.0
        %v963 = vrot.slane %v961, 7
        %v965 = vsel %vm713, 0.0, %v963
        %v966 = vrot.slane %v961, 1
        %v968 = vsel %vm717, %v966, 0.0
        %s969 = scalar_lea.vmem %s3, 96
        %v970 = vld [vmem:[%s969] sm:$0xff]
        %v971 = vld [vmem:[%s969 + $0x8] sm:$0xff]
        %v972 = vld [vmem:[%s969 + $0x10] sm:$0xff]
        %v973 = vld [vmem:[%s969 + $0x18] sm:$0xff]
        %s974 = scalar_lea.vmem %s3, 128
        %v975 = vld [vmem:[%s974] sm:$0xff]
        %v976 = vld [vmem:[%s974 + $0x8] sm:$0xff]
        %v977 = vld [vmem:[%s974 + $0x10] sm:$0xff]
        %v978 = vld [vmem:[%s974 + $0x18] sm:$0xff]
        %v979 = vsel %vm728, %v961, 0
        %981 = vmatprep.subr.mxu0 0.0
        %982 = vmatpush1.msra.mxu0 %v975
        %983 = vmatprep.subr.mxu0 0.0
        %984 = vmatpush1.msra.mxu0 %v976
        %985 = vmatprep.subr.mxu0 0.0
        %986 = vmatpush1.msra.mxu0 %v977
        %987 = vmatprep.subr.mxu0 0.0
        %988 = vmatpush1.msra.mxu0 %v978
        %989 = vmatprep.subr.mxu0 0.0
        %990 = vmatpush1.msra.mxu0 0.0
        %991 = vmatprep.subr.mxu0 0.0
        %992 = vmatpush1.msra.mxu0 0.0
        %993 = vmatprep.subr.mxu0 0.0
        %994 = vmatpush1.msra.mxu0 0.0
        %995 = vmatprep.subr.mxu0 0.0
        %996 = vmatpush1.msra.mxu0 0.0
        %997 = vmatprep.subr.mxu0 0.0
        %998 = vmatpush1.msra.mxu0 0.0
        %999 = vmatprep.subr.mxu0 0.0
        %1000 = vmatpush1.msra.mxu0 0.0
        %1001 = vmatprep.subr.mxu0 0.0
        %1002 = vmatpush1.msra.mxu0 0.0
        %1003 = vmatprep.subr.mxu0 0.0
        %1004 = vmatpush1.msra.mxu0 0.0
        %1005 = vmatprep.subr.mxu0 0.0
        %1006 = vmatpush1.msra.mxu0 0.0
        %1007 = vmatprep.subr.mxu0 0.0
        %1008 = vmatpush1.msra.mxu0 0.0
        %1009 = vmatprep.subr.mxu0 0.0
        %1010 = vmatpush1.msra.mxu0 0.0
        %1011 = vmatprep.subr.mxu0 0.0
        %1012 = vmatpush1.msra.mxu0 0.0
        %1013 = vmatprep.subr.mxu0 0.0
        %1014 = vmatpush1.msra.mxu0 0.0
        %1015 = vmatprep.subr.mxu0 0.0
        %1016 = vmatpush1.msra.mxu0 0.0
        %1017 = vmatprep.subr.mxu0 0.0
        %1018 = vmatpush1.msra.mxu0 0.0
        %1019 = vmatprep.subr.mxu0 0.0
        %1020 = vmatpush1.msra.mxu0 0.0
        %1021 = vmatprep.subr.mxu0 0.0
        %1022 = vmatpush1.msra.mxu0 0.0
        %1023 = vmatprep.subr.mxu0 0.0
        %1024 = vmatpush1.msra.mxu0 0.0
        %1025 = vmatprep.subr.mxu0 0.0
        %1026 = vmatpush1.msra.mxu0 0.0
        %1027 = vmatprep.subr.mxu0 0.0
        %1028 = vmatpush1.msra.mxu0 0.0
        %1029 = vmatprep.subr.mxu0 0.0
        %1030 = vmatpush1.msra.mxu0 0.0
        %1031 = vmatprep.subr.mxu0 0.0
        %1032 = vmatpush1.msra.mxu0 0.0
        %1033 = vmatprep.subr.mxu0 0.0
        %1034 = vmatpush1.msra.mxu0 0.0
        %1035 = vmatprep.subr.mxu0 0.0
        %1036 = vmatpush1.msra.mxu0 0.0
        %1037 = vmatprep.subr.mxu0 0.0
        %1038 = vmatpush1.msra.mxu0 0.0
        %1039 = vmatprep.subr.mxu0 0.0
        %1040 = vmatpush1.msra.mxu0 0.0
        %1041 = vmatprep.subr.mxu0 0.0
        %1042 = vmatpush1.msra.mxu0 0.0
        %1043 = vmatprep.subr.mxu0 0.0
        %1044 = vmatpush1.msra.mxu0 0.0
        %1045 = vmatprep.mubr.f32.mxu0 0.0
        %1046 = vmatmul.mubr.f32.gmra.mrb[0].mxu0 %v979
        %v1047 = vpop.f32.mrb[0].mxu0
        %v1048 = vadd.f32 0.0, %v1047
        %v1049 = vpop.f32.mrb[0].mxu0
        %1050 = vdwg.mxu0
        %v1052 = vsel %vm728, %v965, 0
        %1054 = vmatprep.subr.mxu0 0.0
        %1055 = vmatpush1.msra.mxu0 %v970
        %1056 = vmatprep.subr.mxu0 0.0
        %1057 = vmatpush1.msra.mxu0 %v971
        %1058 = vmatprep.subr.mxu0 0.0
        %1059 = vmatpush1.msra.mxu0 %v972
        %1060 = vmatprep.subr.mxu0 0.0
        %1061 = vmatpush1.msra.mxu0 %v973
        %1062 = vmatprep.subr.mxu0 0.0
        %1063 = vmatpush1.msra.mxu0 0.0
        %1064 = vmatprep.subr.mxu0 0.0
        %1065 = vmatpush1.msra.mxu0 0.0
        %1066 = vmatprep.subr.mxu0 0.0
        %1067 = vmatpush1.msra.mxu0 0.0
        %1068 = vmatprep.subr.mxu0 0.0
        %1069 = vmatpush1.msra.mxu0 0.0
        %1070 = vmatprep.subr.mxu0 0.0
        %1071 = vmatpush1.msra.mxu0 0.0
        %1072 = vmatprep.subr.mxu0 0.0
        %1073 = vmatpush1.msra.mxu0 0.0
        %1074 = vmatprep.subr.mxu0 0.0
        %1075 = vmatpush1.msra.mxu0 0.0
        %1076 = vmatprep.subr.mxu0 0.0
        %1077 = vmatpush1.msra.mxu0 0.0
        %1078 = vmatprep.subr.mxu0 0.0
        %1079 = vmatpush1.msra.mxu0 0.0
        %1080 = vmatprep.subr.mxu0 0.0
        %1081 = vmatpush1.msra.mxu0 0.0
        %1082 = vmatprep.subr.mxu0 0.0
        %1083 = vmatpush1.msra.mxu0 0.0
        %1084 = vmatprep.subr.mxu0 0.0
        %1085 = vmatpush1.msra.mxu0 0.0
        %1086 = vmatprep.subr.mxu0 0.0
        %1087 = vmatpush1.msra.mxu0 0.0
        %1088 = vmatprep.subr.mxu0 0.0
        %1089 = vmatpush1.msra.mxu0 0.0
        %1090 = vmatprep.subr.mxu0 0.0
        %1091 = vmatpush1.msra.mxu0 0.0
        %1092 = vmatprep.subr.mxu0 0.0
        %1093 = vmatpush1.msra.mxu0 0.0
        %1094 = vmatprep.subr.mxu0 0.0
        %1095 = vmatpush1.msra.mxu0 0.0
        %1096 = vmatprep.subr.mxu0 0.0
        %1097 = vmatpush1.msra.mxu0 0.0
        %1098 = vmatprep.subr.mxu0 0.0
        %1099 = vmatpush1.msra.mxu0 0.0
        %1100 = vmatprep.subr.mxu0 0.0
        %1101 = vmatpush1.msra.mxu0 0.0
        %1102 = vmatprep.subr.mxu0 0.0
        %1103 = vmatpush1.msra.mxu0 0.0
        %1104 = vmatprep.subr.mxu0 0.0
        %1105 = vmatpush1.msra.mxu0 0.0
        %1106 = vmatprep.subr.mxu0 0.0
        %1107 = vmatpush1.msra.mxu0 0.0
        %1108 = vmatprep.subr.mxu0 0.0
        %1109 = vmatpush1.msra.mxu0 0.0
        %1110 = vmatprep.subr.mxu0 0.0
        %1111 = vmatpush1.msra.mxu0 0.0
        %1112 = vmatprep.subr.mxu0 0.0
        %1113 = vmatpush1.msra.mxu0 0.0
        %1114 = vmatprep.subr.mxu0 0.0
        %1115 = vmatpush1.msra.mxu0 0.0
        %1116 = vmatprep.subr.mxu0 0.0
        %1117 = vmatpush1.msra.mxu0 0.0
        %1118 = vmatprep.mubr.f32.mxu0 0.0
        %1119 = vmatmul.mubr.f32.gmra.mrb[0].mxu0 %v1052
        %v1120 = vpop.f32.mrb[0].mxu0
        %v1121 = vadd.f32 %v1048, %v1120
        %v1122 = vpop.f32.mrb[0].mxu0
        %1123 = vdwg.mxu0
        %s1124 = scalar_lea.vmem %s3, 160
        %v1125 = vld [vmem:[%s1124] sm:$0xff]
        %v1126 = vld [vmem:[%s1124 + $0x8] sm:$0xff]
        %v1127 = vld [vmem:[%s1124 + $0x10] sm:$0xff]
        %v1128 = vld [vmem:[%s1124 + $0x18] sm:$0xff]
        %v1130 = vsel %vm728, %v968, 0
        %1132 = vmatprep.subr.mxu0 0.0
        %1133 = vmatpush1.msra.mxu0 %v1125
        %1134 = vmatprep.subr.mxu0 0.0
        %1135 = vmatpush1.msra.mxu0 %v1126
        %1136 = vmatprep.subr.mxu0 0.0
        %1137 = vmatpush1.msra.mxu0 %v1127
        %1138 = vmatprep.subr.mxu0 0.0
        %1139 = vmatpush1.msra.mxu0 %v1128
        %1140 = vmatprep.subr.mxu0 0.0
        %1141 = vmatpush1.msra.mxu0 0.0
        %1142 = vmatprep.subr.mxu0 0.0
        %1143 = vmatpush1.msra.mxu0 0.0
        %1144 = vmatprep.subr.mxu0 0.0
        %1145 = vmatpush1.msra.mxu0 0.0
        %1146 = vmatprep.subr.mxu0 0.0
        %1147 = vmatpush1.msra.mxu0 0.0
        %1148 = vmatprep.subr.mxu0 0.0
        %1149 = vmatpush1.msra.mxu0 0.0
        %1150 = vmatprep.subr.mxu0 0.0
        %1151 = vmatpush1.msra.mxu0 0.0
        %1152 = vmatprep.subr.mxu0 0.0
        %1153 = vmatpush1.msra.mxu0 0.0
        %1154 = vmatprep.subr.mxu0 0.0
        %1155 = vmatpush1.msra.mxu0 0.0
        %1156 = vmatprep.subr.mxu0 0.0
        %1157 = vmatpush1.msra.mxu0 0.0
        %1158 = vmatprep.subr.mxu0 0.0
        %1159 = vmatpush1.msra.mxu0 0.0
        %1160 = vmatprep.subr.mxu0 0.0
        %1161 = vmatpush1.msra.mxu0 0.0
        %1162 = vmatprep.subr.mxu0 0.0
        %1163 = vmatpush1.msra.mxu0 0.0
        %1164 = vmatprep.subr.mxu0 0.0
        %1165 = vmatpush1.msra.mxu0 0.0
        %1166 = vmatprep.subr.mxu0 0.0
        %1167 = vmatpush1.msra.mxu0 0.0
        %1168 = vmatprep.subr.mxu0 0.0
        %1169 = vmatpush1.msra.mxu0 0.0
        %1170 = vmatprep.subr.mxu0 0.0
        %1171 = vmatpush1.msra.mxu0 0.0
        %1172 = vmatprep.subr.mxu0 0.0
        %1173 = vmatpush1.msra.mxu0 0.0
        %1174 = vmatprep.subr.mxu0 0.0
        %1175 = vmatpush1.msra.mxu0 0.0
        %1176 = vmatprep.subr.mxu0 0.0
        %1177 = vmatpush1.msra.mxu0 0.0
        %1178 = vmatprep.subr.mxu0 0.0
        %1179 = vmatpush1.msra.mxu0 0.0
        %1180 = vmatprep.subr.mxu0 0.0
        %1181 = vmatpush1.msra.mxu0 0.0
        %1182 = vmatprep.subr.mxu0 0.0
        %1183 = vmatpush1.msra.mxu0 0.0
        %1184 = vmatprep.subr.mxu0 0.0
        %1185 = vmatpush1.msra.mxu0 0.0
        %1186 = vmatprep.subr.mxu0 0.0
        %1187 = vmatpush1.msra.mxu0 0.0
        %1188 = vmatprep.subr.mxu0 0.0
        %1189 = vmatpush1.msra.mxu0 0.0
        %1190 = vmatprep.subr.mxu0 0.0
        %1191 = vmatpush1.msra.mxu0 0.0
        %1192 = vmatprep.subr.mxu0 0.0
        %1193 = vmatpush1.msra.mxu0 0.0
        %1194 = vmatprep.subr.mxu0 0.0
        %1195 = vmatpush1.msra.mxu0 0.0
        %1196 = vmatprep.mubr.f32.mxu0 0.0
        %1197 = vmatmul.mubr.f32.gmra.mrb[0].mxu0 %v1130
        %v1198 = vpop.f32.mrb[0].mxu0
        %v1199 = vadd.f32 0.0, %v1198
        %v1200 = vpop.f32.mrb[0].mxu0
        %1201 = vdwg.mxu0
        %v1202 = vadd.f32 %v1121, %v1199
        %s1203 = scalar_lea.vmem %s4, 1
        %v1204 = vld [vmem:[%s1203] sm:$0x1]
        %v1206 = vlaneseq
        %v1207 = vshrl.u32 %v1206, 7
        %v1208 = vsub.s32 0, %v1207
        %v1209 = vrot.slane %v1204, %v1208
        %v1211 = vadd.f32 %v1202, %v1209
        %v1212 = vmax.f32 %v1211, 0.0
        %v1213 = vld [vmem:[%s5] sm:$0xff]
        %v1214 = vld [vmem:[%s5 + $0x8] sm:$0xff]
        %v1215 = vld [vmem:[%s5 + $0x10] sm:$0xff]
        %v1216 = vld [vmem:[%s5 + $0x18] sm:$0xff]
        %v1217 = vld [vmem:[%s7] sm:$0x1]
        %v1219 = vlaneseq
        %v1220 = vshrl.u32 %v1219, 7
        %v1221 = vsub.s32 0, %v1220
        %v1222 = vrot.slane %v1217, %v1221
        %v1225 = vsel %vm728, %v1212, 0
        %1227 = vmatprep.subr.mxu0 0.0
        %1228 = vmatpush1.msra.mxu0 %v1213
        %1229 = vmatprep.subr.mxu0 0.0
        %1230 = vmatpush1.msra.mxu0 %v1214
        %1231 = vmatprep.subr.mxu0 0.0
        %1232 = vmatpush1.msra.mxu0 %v1215
        %1233 = vmatprep.subr.mxu0 0.0
        %1234 = vmatpush1.msra.mxu0 %v1216
        %1235 = vmatprep.subr.mxu0 0.0
        %1236 = vmatpush1.msra.mxu0 0.0
        %1237 = vmatprep.subr.mxu0 0.0
        %1238 = vmatpush1.msra.mxu0 0.0
        %1239 = vmatprep.subr.mxu0 0.0
        %1240 = vmatpush1.msra.mxu0 0.0
        %1241 = vmatprep.subr.mxu0 0.0
        %1242 = vmatpush1.msra.mxu0 0.0
        %1243 = vmatprep.subr.mxu0 0.0
        %1244 = vmatpush1.msra.mxu0 0.0
        %1245 = vmatprep.subr.mxu0 0.0
        %1246 = vmatpush1.msra.mxu0 0.0
        %1247 = vmatprep.subr.mxu0 0.0
        %1248 = vmatpush1.msra.mxu0 0.0
        %1249 = vmatprep.subr.mxu0 0.0
        %1250 = vmatpush1.msra.mxu0 0.0
        %1251 = vmatprep.subr.mxu0 0.0
        %1252 = vmatpush1.msra.mxu0 0.0
        %1253 = vmatprep.subr.mxu0 0.0
        %1254 = vmatpush1.msra.mxu0 0.0
        %1255 = vmatprep.subr.mxu0 0.0
        %1256 = vmatpush1.msra.mxu0 0.0
        %1257 = vmatprep.subr.mxu0 0.0
        %1258 = vmatpush1.msra.mxu0 0.0
        %1259 = vmatprep.subr.mxu0 0.0
        %1260 = vmatpush1.msra.mxu0 0.0
        %1261 = vmatprep.subr.mxu0 0.0
        %1262 = vmatpush1.msra.mxu0 0.0
        %1263 = vmatprep.subr.mxu0 0.0
        %1264 = vmatpush1.msra.mxu0 0.0
        %1265 = vmatprep.subr.mxu0 0.0
        %1266 = vmatpush1.msra.mxu0 0.0
        %1267 = vmatprep.subr.mxu0 0.0
        %1268 = vmatpush1.msra.mxu0 0.0
        %1269 = vmatprep.subr.mxu0 0.0
        %1270 = vmatpush1.msra.mxu0 0.0
        %1271 = vmatprep.subr.mxu0 0.0
        %1272 = vmatpush1.msra.mxu0 0.0
        %1273 = vmatprep.subr.mxu0 0.0
        %1274 = vmatpush1.msra.mxu0 0.0
        %1275 = vmatprep.subr.mxu0 0.0
        %1276 = vmatpush1.msra.mxu0 0.0
        %1277 = vmatprep.subr.mxu0 0.0
        %1278 = vmatpush1.msra.mxu0 0.0
        %1279 = vmatprep.subr.mxu0 0.0
        %1280 = vmatpush1.msra.mxu0 0.0
        %1281 = vmatprep.subr.mxu0 0.0
        %1282 = vmatpush1.msra.mxu0 0.0
        %1283 = vmatprep.subr.mxu0 0.0
        %1284 = vmatpush1.msra.mxu0 0.0
        %1285 = vmatprep.subr.mxu0 0.0
        %1286 = vmatpush1.msra.mxu0 0.0
        %1287 = vmatprep.subr.mxu0 0.0
        %1288 = vmatpush1.msra.mxu0 0.0
        %1289 = vmatprep.subr.mxu0 0.0
        %1290 = vmatpush1.msra.mxu0 0.0
        %1291 = vmatprep.mubr.f32.mxu0 0.0
        %1292 = vmatmul.mubr.f32.gmra.mrb[0].mxu0 %v1225
        %v1293 = vpop.f32.mrb[0].mxu0
        %v1294 = vadd.f32 %v1222, %v1293
        %v1295 = vpop.f32.mrb[0].mxu0
        %1296 = vdwg.mxu0
        %s1297 = scalar_lea.vmem %s5, 32
        %v1298 = vld [vmem:[%s1297] sm:$0xff]
        %v1299 = vld [vmem:[%s1297 + $0x8] sm:$0xff]
        %v1300 = vld [vmem:[%s1297 + $0x10] sm:$0xff]
        %v1301 = vld [vmem:[%s1297 + $0x18] sm:$0xff]
        %s1302 = scalar_lea.vmem %s7, 1
        %v1303 = vld [vmem:[%s1302] sm:$0x1]
        %v1305 = vlaneseq
        %v1306 = vshrl.u32 %v1305, 7
        %v1307 = vsub.s32 0, %v1306
        %v1308 = vrot.slane %v1303, %v1307
        %1310 = vmatprep.subr.mxu0 0.0
        %1311 = vmatpush1.msra.mxu0 %v1298
        %1312 = vmatprep.subr.mxu0 0.0
        %1313 = vmatpush1.msra.mxu0 %v1299
        %1314 = vmatprep.subr.mxu0 0.0
        %1315 = vmatpush1.msra.mxu0 %v1300
        %1316 = vmatprep.subr.mxu0 0.0
        %1317 = vmatpush1.msra.mxu0 %v1301
        %1318 = vmatprep.subr.mxu0 0.0
        %1319 = vmatpush1.msra.mxu0 0.0
        %1320 = vmatprep.subr.mxu0 0.0
        %1321 = vmatpush1.msra.mxu0 0.0
        %1322 = vmatprep.subr.mxu0 0.0
        %1323 = vmatpush1.msra.mxu0 0.0
        %1324 = vmatprep.subr.mxu0 0.0
        %1325 = vmatpush1.msra.mxu0 0.0
        %1326 = vmatprep.subr.mxu0 0.0
        %1327 = vmatpush1.msra.mxu0 0.0
        %1328 = vmatprep.subr.mxu0 0.0
        %1329 = vmatpush1.msra.mxu0 0.0
        %1330 = vmatprep.subr.mxu0 0.0
        %1331 = vmatpush1.msra.mxu0 0.0
        %1332 = vmatprep.subr.mxu0 0.0
        %1333 = vmatpush1.msra.mxu0 0.0
        %1334 = vmatprep.subr.mxu0 0.0
        %1335 = vmatpush1.msra.mxu0 0.0
        %1336 = vmatprep.subr.mxu0 0.0
        %1337 = vmatpush1.msra.mxu0 0.0
        %1338 = vmatprep.subr.mxu0 0.0
        %1339 = vmatpush1.msra.mxu0 0.0
        %1340 = vmatprep.subr.mxu0 0.0
        %1341 = vmatpush1.msra.mxu0 0.0
        %1342 = vmatprep.subr.mxu0 0.0
        %1343 = vmatpush1.msra.mxu0 0.0
        %1344 = vmatprep.subr.mxu0 0.0
        %1345 = vmatpush1.msra.mxu0 0.0
        %1346 = vmatprep.subr.mxu0 0.0
        %1347 = vmatpush1.msra.mxu0 0.0
        %1348 = vmatprep.subr.mxu0 0.0
        %1349 = vmatpush1.msra.mxu0 0.0
        %1350 = vmatprep.subr.mxu0 0.0
        %1351 = vmatpush1.msra.mxu0 0.0
        %1352 = vmatprep.subr.mxu0 0.0
        %1353 = vmatpush1.msra.mxu0 0.0
        %1354 = vmatprep.subr.mxu0 0.0
        %1355 = vmatpush1.msra.mxu0 0.0
        %1356 = vmatprep.subr.mxu0 0.0
        %1357 = vmatpush1.msra.mxu0 0.0
        %1358 = vmatprep.subr.mxu0 0.0
        %1359 = vmatpush1.msra.mxu0 0.0
        %1360 = vmatprep.subr.mxu0 0.0
        %1361 = vmatpush1.msra.mxu0 0.0
        %1362 = vmatprep.subr.mxu0 0.0
        %1363 = vmatpush1.msra.mxu0 0.0
        %1364 = vmatprep.subr.mxu0 0.0
        %1365 = vmatpush1.msra.mxu0 0.0
        %1366 = vmatprep.subr.mxu0 0.0
        %1367 = vmatpush1.msra.mxu0 0.0
        %1368 = vmatprep.subr.mxu0 0.0
        %1369 = vmatpush1.msra.mxu0 0.0
        %1370 = vmatprep.subr.mxu0 0.0
        %1371 = vmatpush1.msra.mxu0 0.0
        %1372 = vmatprep.subr.mxu0 0.0
        %1373 = vmatpush1.msra.mxu0 0.0
        %1374 = vmatprep.mubr.f32.mxu0 0.0
        %1375 = vmatmul.mubr.f32.gmra.mrb[0].mxu0 %v1225
        %v1376 = vpop.f32.mrb[0].mxu0
        %v1377 = vadd.f32 %v1308, %v1376
        %v1378 = vpop.f32.mrb[0].mxu0
        %1379 = vdwg.mxu0
        %v1380 = vld [vmem:[%s6] sm:$0xff]
        %v1381 = vld [vmem:[%s6 + $0x8] sm:$0xff]
        %v1382 = vld [vmem:[%s6 + $0x10] sm:$0xff]
        %v1383 = vld [vmem:[%s6 + $0x18] sm:$0xff]
        %s1384 = scalar_lea.vmem %s6, 32
        %v1385 = vld [vmem:[%s1384] sm:$0xff]
        %v1386 = vld [vmem:[%s1384 + $0x8] sm:$0xff]
        %v1387 = vld [vmem:[%s1384 + $0x10] sm:$0xff]
        %v1388 = vld [vmem:[%s1384 + $0x18] sm:$0xff]
        %v1390 = vsel %vm728, 0.0, 0
        %1392 = vmatprep.subr.mxu0 0.0
        %1393 = vmatpush1.msra.mxu0 %v1380
        %1394 = vmatprep.subr.mxu0 0.0
        %1395 = vmatpush1.msra.mxu0 %v1381
        %1396 = vmatprep.subr.mxu0 0.0
        %1397 = vmatpush1.msra.mxu0 %v1382
        %1398 = vmatprep.subr.mxu0 0.0
        %1399 = vmatpush1.msra.mxu0 %v1383
        %1400 = vmatprep.subr.mxu0 0.0
        %1401 = vmatpush1.msra.mxu0 0.0
        %1402 = vmatprep.subr.mxu0 0.0
        %1403 = vmatpush1.msra.mxu0 0.0
        %1404 = vmatprep.subr.mxu0 0.0
        %1405 = vmatpush1.msra.mxu0 0.0
        %1406 = vmatprep.subr.mxu0 0.0
        %1407 = vmatpush1.msra.mxu0 0.0
        %1408 = vmatprep.subr.mxu0 0.0
        %1409 = vmatpush1.msra.mxu0 0.0
        %1410 = vmatprep.subr.mxu0 0.0
        %1411 = vmatpush1.msra.mxu0 0.0
        %1412 = vmatprep.subr.mxu0 0.0
        %1413 = vmatpush1.msra.mxu0 0.0
        %1414 = vmatprep.subr.mxu0 0.0
        %1415 = vmatpush1.msra.mxu0 0.0
        %1416 = vmatprep.subr.mxu0 0.0
        %1417 = vmatpush1.msra.mxu0 0.0
        %1418 = vmatprep.subr.mxu0 0.0
        %1419 = vmatpush1.msra.mxu0 0.0
        %1420 = vmatprep.subr.mxu0 0.0
        %1421 = vmatpush1.msra.mxu0 0.0
        %1422 = vmatprep.subr.mxu0 0.0
        %1423 = vmatpush1.msra.mxu0 0.0
        %1424 = vmatprep.subr.mxu0 0.0
        %1425 = vmatpush1.msra.mxu0 0.0
        %1426 = vmatprep.subr.mxu0 0.0
        %1427 = vmatpush1.msra.mxu0 0.0
        %1428 = vmatprep.subr.mxu0 0.0
        %1429 = vmatpush1.msra.mxu0 0.0
        %1430 = vmatprep.subr.mxu0 0.0
        %1431 = vmatpush1.msra.mxu0 0.0
        %1432 = vmatprep.subr.mxu0 0.0
        %1433 = vmatpush1.msra.mxu0 0.0
        %1434 = vmatprep.subr.mxu0 0.0
        %1435 = vmatpush1.msra.mxu0 0.0
        %1436 = vmatprep.subr.mxu0 0.0
        %1437 = vmatpush1.msra.mxu0 0.0
        %1438 = vmatprep.subr.mxu0 0.0
        %1439 = vmatpush1.msra.mxu0 0.0
        %1440 = vmatprep.subr.mxu0 0.0
        %1441 = vmatpush1.msra.mxu0 0.0
        %1442 = vmatprep.subr.mxu0 0.0
        %1443 = vmatpush1.msra.mxu0 0.0
        %1444 = vmatprep.subr.mxu0 0.0
        %1445 = vmatpush1.msra.mxu0 0.0
        %1446 = vmatprep.subr.mxu0 0.0
        %1447 = vmatpush1.msra.mxu0 0.0
        %1448 = vmatprep.subr.mxu0 0.0
        %1449 = vmatpush1.msra.mxu0 0.0
        %1450 = vmatprep.subr.mxu0 0.0
        %1451 = vmatpush1.msra.mxu0 0.0
        %1452 = vmatprep.subr.mxu0 0.0
        %1453 = vmatpush1.msra.mxu0 0.0
        %1454 = vmatprep.subr.mxu0 0.0
        %1455 = vmatpush1.msra.mxu0 0.0
        %1456 = vmatprep.mubr.f32.mxu0 0.0
        %1457 = vmatmul.mubr.f32.gmra.mrb[0].mxu0 %v1390
        %v1458 = vpop.f32.mrb[0].mxu0
        %v1459 = vadd.f32 0.0, %v1458
        %v1460 = vpop.f32.mrb[0].mxu0
        %1461 = vdwg.mxu0
        %v1462 = vadd.f32 %v1294, %v1459
        %1463 = vmatprep.subr.mxu0 0.0
        %1464 = vmatpush1.msra.mxu0 %v1385
        %1465 = vmatprep.subr.mxu0 0.0
        %1466 = vmatpush1.msra.mxu0 %v1386
        %1467 = vmatprep.subr.mxu0 0.0
        %1468 = vmatpush1.msra.mxu0 %v1387
        %1469 = vmatprep.subr.mxu0 0.0
        %1470 = vmatpush1.msra.mxu0 %v1388
        %1471 = vmatprep.subr.mxu0 0.0
        %1472 = vmatpush1.msra.mxu0 0.0
        %1473 = vmatprep.subr.mxu0 0.0
        %1474 = vmatpush1.msra.mxu0 0.0
        %1475 = vmatprep.subr.mxu0 0.0
        %1476 = vmatpush1.msra.mxu0 0.0
        %1477 = vmatprep.subr.mxu0 0.0
        %1478 = vmatpush1.msra.mxu0 0.0
        %1479 = vmatprep.subr.mxu0 0.0
        %1480 = vmatpush1.msra.mxu0 0.0
        %1481 = vmatprep.subr.mxu0 0.0
        %1482 = vmatpush1.msra.mxu0 0.0
        %1483 = vmatprep.subr.mxu0 0.0
        %1484 = vmatpush1.msra.mxu0 0.0
        %1485 = vmatprep.subr.mxu0 0.0
        %1486 = vmatpush1.msra.mxu0 0.0
        %1487 = vmatprep.subr.mxu0 0.0
        %1488 = vmatpush1.msra.mxu0 0.0
        %1489 = vmatprep.subr.mxu0 0.0
        %1490 = vmatpush1.msra.mxu0 0.0
        %1491 = vmatprep.subr.mxu0 0.0
        %1492 = vmatpush1.msra.mxu0 0.0
        %1493 = vmatprep.subr.mxu0 0.0
        %1494 = vmatpush1.msra.mxu0 0.0
        %1495 = vmatprep.subr.mxu0 0.0
        %1496 = vmatpush1.msra.mxu0 0.0
        %1497 = vmatprep.subr.mxu0 0.0
        %1498 = vmatpush1.msra.mxu0 0.0
        %1499 = vmatprep.subr.mxu0 0.0
        %1500 = vmatpush1.msra.mxu0 0.0
        %1501 = vmatprep.subr.mxu0 0.0
        %1502 = vmatpush1.msra.mxu0 0.0
        %1503 = vmatprep.subr.mxu0 0.0
        %1504 = vmatpush1.msra.mxu0 0.0
        %1505 = vmatprep.subr.mxu0 0.0
        %1506 = vmatpush1.msra.mxu0 0.0
        %1507 = vmatprep.subr.mxu0 0.0
        %1508 = vmatpush1.msra.mxu0 0.0
        %1509 = vmatprep.subr.mxu0 0.0
        %1510 = vmatpush1.msra.mxu0 0.0
        %1511 = vmatprep.subr.mxu0 0.0
        %1512 = vmatpush1.msra.mxu0 0.0
        %1513 = vmatprep.subr.mxu0 0.0
        %1514 = vmatpush1.msra.mxu0 0.0
        %1515 = vmatprep.subr.mxu0 0.0
        %1516 = vmatpush1.msra.mxu0 0.0
        %1517 = vmatprep.subr.mxu0 0.0
        %1518 = vmatpush1.msra.mxu0 0.0
        %1519 = vmatprep.subr.mxu0 0.0
        %1520 = vmatpush1.msra.mxu0 0.0
        %1521 = vmatprep.subr.mxu0 0.0
        %1522 = vmatpush1.msra.mxu0 0.0
        %1523 = vmatprep.subr.mxu0 0.0
        %1524 = vmatpush1.msra.mxu0 0.0
        %1525 = vmatprep.subr.mxu0 0.0
        %1526 = vmatpush1.msra.mxu0 0.0
        %1527 = vmatprep.mubr.f32.mxu0 0.0
        %1528 = vmatmul.mubr.f32.gmra.mrb[0].mxu0 %v1390
        %v1529 = vpop.f32.mrb[0].mxu0
        %v1530 = vadd.f32 0.0, %v1529
        %v1531 = vpop.f32.mrb[0].mxu0
        %1532 = vdwg.mxu0
        %v1534 = vrot.slane %v1530, 1
        %v1536 = vadd.f32 %v1377, %v1534
        %v1537 = vmul.f32 %v1462, 0.5
        %v1538 = vtanh.pop %v1537
        %v1539 = vmul.f32 %v1538, 0.5
        %v1540 = vadd.f32 %v1539, 0.5
        %v1541 = vtanh.pop %v1462
        %v1542 = vmul.f32 %v1540, 0.0
        %1544 = vrot.lane.b32.xlu0 %v1541, 32
        %v1545 = vpop.permute.xlu0 %1544
        %v1547 = vmul.f32 %v1540, %v1545
        %1549 = vrot.lane.b32.xlu0 %v1547, 32
        %v1550 = vpop.permute.xlu0 %1549
        %v1552 = vadd.f32 %v1542, %v1550
        %v1553 = vtanh.pop %v1552
        %1555 = vrot.lane.b32.xlu0 %v1553, 32
        %v1556 = vpop.permute.xlu0 %1555
        %v1558 = vmul.f32 %v1540, %v1556
        %v1559 = vmul.f32 %v1536, 0.5
        %v1560 = vtanh.pop %v1559
        %v1561 = vmul.f32 %v1560, 0.5
        %v1562 = vadd.f32 %v1561, 0.5
        %v1563 = vtanh.pop %v1536
        %v1564 = vmul.f32 %v1562, 0.0
        %1566 = vrot.lane.b32.xlu0 %v1563, 32
        %v1567 = vpop.permute.xlu0 %1566
        %v1569 = vmul.f32 %v1562, %v1567
        %1571 = vrot.lane.b32.xlu0 %v1569, 32
        %v1572 = vpop.permute.xlu0 %1571
        %v1574 = vadd.f32 %v1564, %v1572
        %v1575 = vtanh.pop %v1574
        %1577 = vrot.lane.b32.xlu0 %v1575, 32
        %v1578 = vpop.permute.xlu0 %1577
        %v1580 = vmul.f32 %v1562, %v1578
        %1582 = vrot.lane.b32.xlu0 %v1558, 64
        %v1583 = vpop.permute.xlu0 %1582
        %v1584 = vsel %vm728, %v1583, 0
        %1586 = vmatprep.subr.mxu0 0.0
        %1587 = vmatpush1.msra.mxu0 %v1380
        %1588 = vmatprep.subr.mxu0 0.0
        %1589 = vmatpush1.msra.mxu0 %v1381
        %1590 = vmatprep.subr.mxu0 0.0
        %1591 = vmatpush1.msra.mxu0 %v1382
        %1592 = vmatprep.subr.mxu0 0.0
        %1593 = vmatpush1.msra.mxu0 %v1383
        %1594 = vmatprep.subr.mxu0 0.0
        %1595 = vmatpush1.msra.mxu0 0.0
        %1596 = vmatprep.subr.mxu0 0.0
        %1597 = vmatpush1.msra.mxu0 0.0
        %1598 = vmatprep.subr.mxu0 0.0
        %1599 = vmatpush1.msra.mxu0 0.0
        %1600 = vmatprep.subr.mxu0 0.0
        %1601 = vmatpush1.msra.mxu0 0.0
        %1602 = vmatprep.subr.mxu0 0.0
        %1603 = vmatpush1.msra.mxu0 0.0
        %1604 = vmatprep.subr.mxu0 0.0
        %1605 = vmatpush1.msra.mxu0 0.0
        %1606 = vmatprep.subr.mxu0 0.0
        %1607 = vmatpush1.msra.mxu0 0.0
        %1608 = vmatprep.subr.mxu0 0.0
        %1609 = vmatpush1.msra.mxu0 0.0
        %1610 = vmatprep.subr.mxu0 0.0
        %1611 = vmatpush1.msra.mxu0 0.0
        %1612 = vmatprep.subr.mxu0 0.0
        %1613 = vmatpush1.msra.mxu0 0.0
        %1614 = vmatprep.subr.mxu0 0.0
        %1615 = vmatpush1.msra.mxu0 0.0
        %1616 = vmatprep.subr.mxu0 0.0
        %1617 = vmatpush1.msra.mxu0 0.0
        %1618 = vmatprep.subr.mxu0 0.0
        %1619 = vmatpush1.msra.mxu0 0.0
        %1620 = vmatprep.subr.mxu0 0.0
        %1621 = vmatpush1.msra.mxu0 0.0
        %1622 = vmatprep.subr.mxu0 0.0
        %1623 = vmatpush1.msra.mxu0 0.0
        %1624 = vmatprep.subr.mxu0 0.0
        %1625 = vmatpush1.msra.mxu0 0.0
        %1626 = vmatprep.subr.mxu0 0.0
        %1627 = vmatpush1.msra.mxu0 0.0
        %1628 = vmatprep.subr.mxu0 0.0
        %1629 = vmatpush1.msra.mxu0 0.0
        %1630 = vmatprep.subr.mxu0 0.0
        %1631 = vmatpush1.msra.mxu0 0.0
        %1632 = vmatprep.subr.mxu0 0.0
        %1633 = vmatpush1.msra.mxu0 0.0
        %1634 = vmatprep.subr.mxu0 0.0
        %1635 = vmatpush1.msra.mxu0 0.0
        %1636 = vmatprep.subr.mxu0 0.0
        %1637 = vmatpush1.msra.mxu0 0.0
        %1638 = vmatprep.subr.mxu0 0.0
        %1639 = vmatpush1.msra.mxu0 0.0
        %1640 = vmatprep.subr.mxu0 0.0
        %1641 = vmatpush1.msra.mxu0 0.0
        %1642 = vmatprep.subr.mxu0 0.0
        %1643 = vmatpush1.msra.mxu0 0.0
        %1644 = vmatprep.subr.mxu0 0.0
        %1645 = vmatpush1.msra.mxu0 0.0
        %1646 = vmatprep.subr.mxu0 0.0
        %1647 = vmatpush1.msra.mxu0 0.0
        %1648 = vmatprep.subr.mxu0 0.0
        %1649 = vmatpush1.msra.mxu0 0.0
        %1650 = vmatprep.mubr.f32.mxu0 0.0
        %1651 = vmatmul.mubr.f32.gmra.mrb[0].mxu0 %v1584
        %v1652 = vpop.f32.mrb[0].mxu0
        %v1653 = vadd.f32 0.0, %v1652
        %v1654 = vpop.f32.mrb[0].mxu0
        %1655 = vdwg.mxu0
        %v1657 = vrot.slane %v1653, 7
        %v1659 = vadd.f32 %v1294, %v1657
        %v1661 = vrot.slane %v1580, 7
        %1662 = vrot.lane.b32.xlu0 %v1661, 64
        %v1663 = vpop.permute.xlu0 %1662
        %v1664 = vsel %vm728, %v1663, 0
        %1666 = vmatprep.subr.mxu0 0.0
        %1667 = vmatpush1.msra.mxu0 %v1385
        %1668 = vmatprep.subr.mxu0 0.0
        %1669 = vmatpush1.msra.mxu0 %v1386
        %1670 = vmatprep.subr.mxu0 0.0
        %1671 = vmatpush1.msra.mxu0 %v1387
        %1672 = vmatprep.subr.mxu0 0.0
        %1673 = vmatpush1.msra.mxu0 %v1388
        %1674 = vmatprep.subr.mxu0 0.0
        %1675 = vmatpush1.msra.mxu0 0.0
        %1676 = vmatprep.subr.mxu0 0.0
        %1677 = vmatpush1.msra.mxu0 0.0
        %1678 = vmatprep.subr.mxu0 0.0
        %1679 = vmatpush1.msra.mxu0 0.0
        %1680 = vmatprep.subr.mxu0 0.0
        %1681 = vmatpush1.msra.mxu0 0.0
        %1682 = vmatprep.subr.mxu0 0.0
        %1683 = vmatpush1.msra.mxu0 0.0
        %1684 = vmatprep.subr.mxu0 0.0
        %1685 = vmatpush1.msra.mxu0 0.0
        %1686 = vmatprep.subr.mxu0 0.0
        %1687 = vmatpush1.msra.mxu0 0.0
        %1688 = vmatprep.subr.mxu0 0.0
        %1689 = vmatpush1.msra.mxu0 0.0
        %1690 = vmatprep.subr.mxu0 0.0
        %1691 = vmatpush1.msra.mxu0 0.0
        %1692 = vmatprep.subr.mxu0 0.0
        %1693 = vmatpush1.msra.mxu0 0.0
        %1694 = vmatprep.subr.mxu0 0.0
        %1695 = vmatpush1.msra.mxu0 0.0
        %1696 = vmatprep.subr.mxu0 0.0
        %1697 = vmatpush1.msra.mxu0 0.0
        %1698 = vmatprep.subr.mxu0 0.0
        %1699 = vmatpush1.msra.mxu0 0.0
        %1700 = vmatprep.subr.mxu0 0.0
        %1701 = vmatpush1.msra.mxu0 0.0
        %1702 = vmatprep.subr.mxu0 0.0
        %1703 = vmatpush1.msra.mxu0 0.0
        %1704 = vmatprep.subr.mxu0 0.0
        %1705 = vmatpush1.msra.mxu0 0.0
        %1706 = vmatprep.subr.mxu0 0.0
        %1707 = vmatpush1.msra.mxu0 0.0
        %1708 = vmatprep.subr.mxu0 0.0
        %1709 = vmatpush1.msra.mxu0 0.0
        %1710 = vmatprep.subr.mxu0 0.0
        %1711 = vmatpush1.msra.mxu0 0.0
        %1712 = vmatprep.subr.mxu0 0.0
        %1713 = vmatpush1.msra.mxu0 0.0
        %1714 = vmatprep.subr.mxu0 0.0
        %1715 = vmatpush1.msra.mxu0 0.0
        %1716 = vmatprep.subr.mxu0 0.0
        %1717 = vmatpush1.msra.mxu0 0.0
        %1718 = vmatprep.subr.mxu0 0.0
        %1719 = vmatpush1.msra.mxu0 0.0
        %1720 = vmatprep.subr.mxu0 0.0
        %1721 = vmatpush1.msra.mxu0 0.0
        %1722 = vmatprep.subr.mxu0 0.0
        %1723 = vmatpush1.msra.mxu0 0.0
        %1724 = vmatprep.subr.mxu0 0.0
        %1725 = vmatpush1.msra.mxu0 0.0
        %1726 = vmatprep.subr.mxu0 0.0
        %1727 = vmatpush1.msra.mxu0 0.0
        %1728 = vmatprep.subr.mxu0 0.0
        %1729 = vmatpush1.msra.mxu0 0.0
        %1730 = vmatprep.mubr.f32.mxu0 0.0
        %1731 = vmatmul.mubr.f32.gmra.mrb[0].mxu0 %v1664
        %v1732 = vpop.f32.mrb[0].mxu0
        %v1733 = vadd.f32 0.0, %v1732
        %v1734 = vpop.f32.mrb[0].mxu0
        %1735 = vdwg.mxu0
        %v1737 = vrot.slane %v1733, 2
        %v1739 = vadd.f32 %v1377, %v1737
        %v1740 = vmul.f32 %v1659, 0.5
        %v1741 = vtanh.pop %v1740
        %v1742 = vmul.f32 %v1741, 0.5
        %v1743 = vadd.f32 %v1742, 0.5
        %v1744 = vtanh.pop %v1659
        %v1746 = vrot.slane %v1552, 7
        %v1748 = vmul.f32 %v1743, %v1746
        %1750 = vrot.lane.b32.xlu0 %v1744, 32
        %v1751 = vpop.permute.xlu0 %1750
        %v1753 = vmul.f32 %v1743, %v1751
        %1755 = vrot.lane.b32.xlu0 %v1753, 32
        %v1756 = vpop.permute.xlu0 %1755
        %v1758 = vadd.f32 %v1748, %v1756
        %v1759 = vtanh.pop %v1758
        %1761 = vrot.lane.b32.xlu0 %v1759, 32
        %v1762 = vpop.permute.xlu0 %1761
        %v1764 = vmul.f32 %v1743, %v1762
        %v1765 = vmul.f32 %v1739, 0.5
        %v1766 = vtanh.pop %v1765
        %v1767 = vmul.f32 %v1766, 0.5
        %v1768 = vadd.f32 %v1767, 0.5
        %v1769 = vtanh.pop %v1739
        %v1771 = vrot.slane %v1574, 1
        %v1773 = vmul.f32 %v1768, %v1771
        %1775 = vrot.lane.b32.xlu0 %v1769, 32
        %v1776 = vpop.permute.xlu0 %1775
        %v1778 = vmul.f32 %v1768, %v1776
        %1780 = vrot.lane.b32.xlu0 %v1778, 32
        %v1781 = vpop.permute.xlu0 %1780
        %v1783 = vadd.f32 %v1773, %v1781
        %v1784 = vtanh.pop %v1783
        %1786 = vrot.lane.b32.xlu0 %v1784, 32
        %v1787 = vpop.permute.xlu0 %1786
        %v1789 = vmul.f32 %v1768, %v1787
        %v1791 = vrot.slane %v1764, 1
        %1792 = vrot.lane.b32.xlu0 %v1791, 64
        %v1793 = vpop.permute.xlu0 %1792
        %v1794 = vsel %vm728, %v1793, 0
        %1796 = vmatprep.subr.mxu0 0.0
        %1797 = vmatpush1.msra.mxu0 %v1380
        %1798 = vmatprep.subr.mxu0 0.0
        %1799 = vmatpush1.msra.mxu0 %v1381
        %1800 = vmatprep.subr.mxu0 0.0
        %1801 = vmatpush1.msra.mxu0 %v1382
        %1802 = vmatprep.subr.mxu0 0.0
        %1803 = vmatpush1.msra.mxu0 %v1383
        %1804 = vmatprep.subr.mxu0 0.0
        %1805 = vmatpush1.msra.mxu0 0.0
        %1806 = vmatprep.subr.mxu0 0.0
        %1807 = vmatpush1.msra.mxu0 0.0
        %1808 = vmatprep.subr.mxu0 0.0
        %1809 = vmatpush1.msra.mxu0 0.0
        %1810 = vmatprep.subr.mxu0 0.0
        %1811 = vmatpush1.msra.mxu0 0.0
        %1812 = vmatprep.subr.mxu0 0.0
        %1813 = vmatpush1.msra.mxu0 0.0
        %1814 = vmatprep.subr.mxu0 0.0
        %1815 = vmatpush1.msra.mxu0 0.0
        %1816 = vmatprep.subr.mxu0 0.0
        %1817 = vmatpush1.msra.mxu0 0.0
        %1818 = vmatprep.subr.mxu0 0.0
        %1819 = vmatpush1.msra.mxu0 0.0
        %1820 = vmatprep.subr.mxu0 0.0
        %1821 = vmatpush1.msra.mxu0 0.0
        %1822 = vmatprep.subr.mxu0 0.0
        %1823 = vmatpush1.msra.mxu0 0.0
        %1824 = vmatprep.subr.mxu0 0.0
        %1825 = vmatpush1.msra.mxu0 0.0
        %1826 = vmatprep.subr.mxu0 0.0
        %1827 = vmatpush1.msra.mxu0 0.0
        %1828 = vmatprep.subr.mxu0 0.0
        %1829 = vmatpush1.msra.mxu0 0.0
        %1830 = vmatprep.subr.mxu0 0.0
        %1831 = vmatpush1.msra.mxu0 0.0
        %1832 = vmatprep.subr.mxu0 0.0
        %1833 = vmatpush1.msra.mxu0 0.0
        %1834 = vmatprep.subr.mxu0 0.0
        %1835 = vmatpush1.msra.mxu0 0.0
        %1836 = vmatprep.subr.mxu0 0.0
        %1837 = vmatpush1.msra.mxu0 0.0
        %1838 = vmatprep.subr.mxu0 0.0
        %1839 = vmatpush1.msra.mxu0 0.0
        %1840 = vmatprep.subr.mxu0 0.0
        %1841 = vmatpush1.msra.mxu0 0.0
        %1842 = vmatprep.subr.mxu0 0.0
        %1843 = vmatpush1.msra.mxu0 0.0
        %1844 = vmatprep.subr.mxu0 0.0
        %1845 = vmatpush1.msra.mxu0 0.0
        %1846 = vmatprep.subr.mxu0 0.0
        %1847 = vmatpush1.msra.mxu0 0.0
        %1848 = vmatprep.subr.mxu0 0.0
        %1849 = vmatpush1.msra.mxu0 0.0
        %1850 = vmatprep.subr.mxu0 0.0
        %1851 = vmatpush1.msra.mxu0 0.0
        %1852 = vmatprep.subr.mxu0 0.0
        %1853 = vmatpush1.msra.mxu0 0.0
        %1854 = vmatprep.subr.mxu0 0.0
        %1855 = vmatpush1.msra.mxu0 0.0
        %1856 = vmatprep.subr.mxu0 0.0
        %1857 = vmatpush1.msra.mxu0 0.0
        %1858 = vmatprep.subr.mxu0 0.0
        %1859 = vmatpush1.msra.mxu0 0.0
        %1860 = vmatprep.mubr.f32.mxu0 0.0
        %1861 = vmatmul.mubr.f32.gmra.mrb[0].mxu0 %v1794
        %v1862 = vpop.f32.mrb[0].mxu0
        %v1863 = vadd.f32 0.0, %v1862
        %v1864 = vpop.f32.mrb[0].mxu0
        %1865 = vdwg.mxu0
        %v1867 = vrot.slane %v1863, 6
        %v1869 = vadd.f32 %v1294, %v1867
        %v1871 = vrot.slane %v1789, 6
        %1872 = vrot.lane.b32.xlu0 %v1871, 64
        %v1873 = vpop.permute.xlu0 %1872
        %v1874 = vsel %vm728, %v1873, 0
        %1876 = vmatprep.subr.mxu0 0.0
        %1877 = vmatpush1.msra.mxu0 %v1385
        %1878 = vmatprep.subr.mxu0 0.0
        %1879 = vmatpush1.msra.mxu0 %v1386
        %1880 = vmatprep.subr.mxu0 0.0
        %1881 = vmatpush1.msra.mxu0 %v1387
        %1882 = vmatprep.subr.mxu0 0.0
        %1883 = vmatpush1.msra.mxu0 %v1388
        %1884 = vmatprep.subr.mxu0 0.0
        %1885 = vmatpush1.msra.mxu0 0.0
        %1886 = vmatprep.subr.mxu0 0.0
        %1887 = vmatpush1.msra.mxu0 0.0
        %1888 = vmatprep.subr.mxu0 0.0
        %1889 = vmatpush1.msra.mxu0 0.0
        %1890 = vmatprep.subr.mxu0 0.0
        %1891 = vmatpush1.msra.mxu0 0.0
        %1892 = vmatprep.subr.mxu0 0.0
        %1893 = vmatpush1.msra.mxu0 0.0
        %1894 = vmatprep.subr.mxu0 0.0
        %1895 = vmatpush1.msra.mxu0 0.0
        %1896 = vmatprep.subr.mxu0 0.0
        %1897 = vmatpush1.msra.mxu0 0.0
        %1898 = vmatprep.subr.mxu0 0.0
        %1899 = vmatpush1.msra.mxu0 0.0
        %1900 = vmatprep.subr.mxu0 0.0
        %1901 = vmatpush1.msra.mxu0 0.0
        %1902 = vmatprep.subr.mxu0 0.0
        %1903 = vmatpush1.msra.mxu0 0.0
        %1904 = vmatprep.subr.mxu0 0.0
        %1905 = vmatpush1.msra.mxu0 0.0
        %1906 = vmatprep.subr.mxu0 0.0
        %1907 = vmatpush1.msra.mxu0 0.0
        %1908 = vmatprep.subr.mxu0 0.0
        %1909 = vmatpush1.msra.mxu0 0.0
        %1910 = vmatprep.subr.mxu0 0.0
        %1911 = vmatpush1.msra.mxu0 0.0
        %1912 = vmatprep.subr.mxu0 0.0
        %1913 = vmatpush1.msra.mxu0 0.0
        %1914 = vmatprep.subr.mxu0 0.0
        %1915 = vmatpush1.msra.mxu0 0.0
        %1916 = vmatprep.subr.mxu0 0.0
        %1917 = vmatpush1.msra.mxu0 0.0
        %1918 = vmatprep.subr.mxu0 0.0
        %1919 = vmatpush1.msra.mxu0 0.0
        %1920 = vmatprep.subr.mxu0 0.0
        %1921 = vmatpush1.msra.mxu0 0.0
        %1922 = vmatprep.subr.mxu0 0.0
        %1923 = vmatpush1.msra.mxu0 0.0
        %1924 = vmatprep.subr.mxu0 0.0
        %1925 = vmatpush1.msra.mxu0 0.0
        %1926 = vmatprep.subr.mxu0 0.0
        %1927 = vmatpush1.msra.mxu0 0.0
        %1928 = vmatprep.subr.mxu0 0.0
        %1929 = vmatpush1.msra.mxu0 0.0
        %1930 = vmatprep.subr.mxu0 0.0
        %1931 = vmatpush1.msra.mxu0 0.0
        %1932 = vmatprep.subr.mxu0 0.0
        %1933 = vmatpush1.msra.mxu0 0.0
        %1934 = vmatprep.subr.mxu0 0.0
        %1935 = vmatpush1.msra.mxu0 0.0
        %1936 = vmatprep.subr.mxu0 0.0
        %1937 = vmatpush1.msra.mxu0 0.0
        %1938 = vmatprep.subr.mxu0 0.0
        %1939 = vmatpush1.msra.mxu0 0.0
        %1940 = vmatprep.mubr.f32.mxu0 0.0
        %1941 = vmatmul.mubr.f32.gmra.mrb[0].mxu0 %v1874
        %v1942 = vpop.f32.mrb[0].mxu0
        %v1943 = vadd.f32 0.0, %v1942
        %v1944 = vpop.f32.mrb[0].mxu0
        %1945 = vdwg.mxu0
        %v1947 = vrot.slane %v1943, 3
        %v1949 = vadd.f32 %v1377, %v1947
        %v1950 = vmul.f32 %v1869, 0.5
        %v1951 = vtanh.pop %v1950
        %v1952 = vmul.f32 %v1951, 0.5
        %v1953 = vadd.f32 %v1952, 0.5
        %v1954 = vtanh.pop %v1869
        %v1956 = vrot.slane %v1758, 7
        %v1958 = vmul.f32 %v1953, %v1956
        %1960 = vrot.lane.b32.xlu0 %v1954, 32
        %v1961 = vpop.permute.xlu0 %1960
        %v1963 = vmul.f32 %v1953, %v1961
        %1965 = vrot.lane.b32.xlu0 %v1963, 32
        %v1966 = vpop.permute.xlu0 %1965
        %v1968 = vadd.f32 %v1958, %v1966
        %v1969 = vtanh.pop %v1968
        %1971 = vrot.lane.b32.xlu0 %v1969, 32
        %v1972 = vpop.permute.xlu0 %1971
        %v1974 = vmul.f32 %v1953, %v1972
        %v1975 = vmul.f32 %v1949, 0.5
        %v1976 = vtanh.pop %v1975
        %v1977 = vmul.f32 %v1976, 0.5
        %v1978 = vadd.f32 %v1977, 0.5
        %v1979 = vtanh.pop %v1949
        %v1981 = vrot.slane %v1783, 1
        %v1983 = vmul.f32 %v1978, %v1981
        %1985 = vrot.lane.b32.xlu0 %v1979, 32
        %v1986 = vpop.permute.xlu0 %1985
        %v1988 = vmul.f32 %v1978, %v1986
        %1990 = vrot.lane.b32.xlu0 %v1988, 32
        %v1991 = vpop.permute.xlu0 %1990
        %v1993 = vadd.f32 %v1983, %v1991
        %v1994 = vtanh.pop %v1993
        %1996 = vrot.lane.b32.xlu0 %v1994, 32
        %v1997 = vpop.permute.xlu0 %1996
        %v1999 = vmul.f32 %v1978, %v1997
        %v2001 = vrot.slane %v1974, 2
        %2002 = vrot.lane.b32.xlu0 %v2001, 64
        %v2003 = vpop.permute.xlu0 %2002
        %v2004 = vsel %vm728, %v2003, 0
        %2006 = vmatprep.subr.mxu0 0.0
        %2007 = vmatpush1.msra.mxu0 %v1380
        %2008 = vmatprep.subr.mxu0 0.0
        %2009 = vmatpush1.msra.mxu0 %v1381
        %2010 = vmatprep.subr.mxu0 0.0
        %2011 = vmatpush1.msra.mxu0 %v1382
        %2012 = vmatprep.subr.mxu0 0.0
        %2013 = vmatpush1.msra.mxu0 %v1383
        %2014 = vmatprep.subr.mxu0 0.0
        %2015 = vmatpush1.msra.mxu0 0.0
        %2016 = vmatprep.subr.mxu0 0.0
        %2017 = vmatpush1.msra.mxu0 0.0
        %2018 = vmatprep.subr.mxu0 0.0
        %2019 = vmatpush1.msra.mxu0 0.0
        %2020 = vmatprep.subr.mxu0 0.0
        %2021 = vmatpush1.msra.mxu0 0.0
        %2022 = vmatprep.subr.mxu0 0.0
        %2023 = vmatpush1.msra.mxu0 0.0
        %2024 = vmatprep.subr.mxu0 0.0
        %2025 = vmatpush1.msra.mxu0 0.0
        %2026 = vmatprep.subr.mxu0 0.0
        %2027 = vmatpush1.msra.mxu0 0.0
        %2028 = vmatprep.subr.mxu0 0.0
        %2029 = vmatpush1.msra.mxu0 0.0
        %2030 = vmatprep.subr.mxu0 0.0
        %2031 = vmatpush1.msra.mxu0 0.0
        %2032 = vmatprep.subr.mxu0 0.0
        %2033 = vmatpush1.msra.mxu0 0.0
        %2034 = vmatprep.subr.mxu0 0.0
        %2035 = vmatpush1.msra.mxu0 0.0
        %2036 = vmatprep.subr.mxu0 0.0
        %2037 = vmatpush1.msra.mxu0 0.0
        %2038 = vmatprep.subr.mxu0 0.0
        %2039 = vmatpush1.msra.mxu0 0.0
        %2040 = vmatprep.subr.mxu0 0.0
        %2041 = vmatpush1.msra.mxu0 0.0
        %2042 = vmatprep.subr.mxu0 0.0
        %2043 = vmatpush1.msra.mxu0 0.0
        %2044 = vmatprep.subr.mxu0 0.0
        %2045 = vmatpush1.msra.mxu0 0.0
        %2046 = vmatprep.subr.mxu0 0.0
        %2047 = vmatpush1.msra.mxu0 0.0
        %2048 = vmatprep.subr.mxu0 0.0
        %2049 = vmatpush1.msra.mxu0 0.0
        %2050 = vmatprep.subr.mxu0 0.0
        %2051 = vmatpush1.msra.mxu0 0.0
        %2052 = vmatprep.subr.mxu0 0.0
        %2053 = vmatpush1.msra.mxu0 0.0
        %2054 = vmatprep.subr.mxu0 0.0
        %2055 = vmatpush1.msra.mxu0 0.0
        %2056 = vmatprep.subr.mxu0 0.0
        %2057 = vmatpush1.msra.mxu0 0.0
        %2058 = vmatprep.subr.mxu0 0.0
        %2059 = vmatpush1.msra.mxu0 0.0
        %2060 = vmatprep.subr.mxu0 0.0
        %2061 = vmatpush1.msra.mxu0 0.0
        %2062 = vmatprep.subr.mxu0 0.0
        %2063 = vmatpush1.msra.mxu0 0.0
        %2064 = vmatprep.subr.mxu0 0.0
        %2065 = vmatpush1.msra.mxu0 0.0
        %2066 = vmatprep.subr.mxu0 0.0
        %2067 = vmatpush1.msra.mxu0 0.0
        %2068 = vmatprep.subr.mxu0 0.0
        %2069 = vmatpush1.msra.mxu0 0.0
        %2070 = vmatprep.mubr.f32.mxu0 0.0
        %2071 = vmatmul.mubr.f32.gmra.mrb[0].mxu0 %v2004
        %v2072 = vpop.f32.mrb[0].mxu0
        %v2073 = vadd.f32 0.0, %v2072
        %v2074 = vpop.f32.mrb[0].mxu0
        %2075 = vdwg.mxu0
        %v2077 = vrot.slane %v2073, 5
        %v2079 = vadd.f32 %v1294, %v2077
        %v2081 = vrot.slane %v1999, 5
        %2082 = vrot.lane.b32.xlu0 %v2081, 64
        %v2083 = vpop.permute.xlu0 %2082
        %v2084 = vsel %vm728, %v2083, 0
        %2086 = vmatprep.subr.mxu0 0.0
        %2087 = vmatpush1.msra.mxu0 %v1385
        %2088 = vmatprep.subr.mxu0 0.0
        %2089 = vmatpush1.msra.mxu0 %v1386
        %2090 = vmatprep.subr.mxu0 0.0
        %2091 = vmatpush1.msra.mxu0 %v1387
        %2092 = vmatprep.subr.mxu0 0.0
        %2093 = vmatpush1.msra.mxu0 %v1388
        %2094 = vmatprep.subr.mxu0 0.0
        %2095 = vmatpush1.msra.mxu0 0.0
        %2096 = vmatprep.subr.mxu0 0.0
        %2097 = vmatpush1.msra.mxu0 0.0
        %2098 = vmatprep.subr.mxu0 0.0
        %2099 = vmatpush1.msra.mxu0 0.0
        %2100 = vmatprep.subr.mxu0 0.0
        %2101 = vmatpush1.msra.mxu0 0.0
        %2102 = vmatprep.subr.mxu0 0.0
        %2103 = vmatpush1.msra.mxu0 0.0
        %2104 = vmatprep.subr.mxu0 0.0
        %2105 = vmatpush1.msra.mxu0 0.0
        %2106 = vmatprep.subr.mxu0 0.0
        %2107 = vmatpush1.msra.mxu0 0.0
        %2108 = vmatprep.subr.mxu0 0.0
        %2109 = vmatpush1.msra.mxu0 0.0
        %2110 = vmatprep.subr.mxu0 0.0
        %2111 = vmatpush1.msra.mxu0 0.0
        %2112 = vmatprep.subr.mxu0 0.0
        %2113 = vmatpush1.msra.mxu0 0.0
        %2114 = vmatprep.subr.mxu0 0.0
        %2115 = vmatpush1.msra.mxu0 0.0
        %2116 = vmatprep.subr.mxu0 0.0
        %2117 = vmatpush1.msra.mxu0 0.0
        %2118 = vmatprep.subr.mxu0 0.0
        %2119 = vmatpush1.msra.mxu0 0.0
        %2120 = vmatprep.subr.mxu0 0.0
        %2121 = vmatpush1.msra.mxu0 0.0
        %2122 = vmatprep.subr.mxu0 0.0
        %2123 = vmatpush1.msra.mxu0 0.0
        %2124 = vmatprep.subr.mxu0 0.0
        %2125 = vmatpush1.msra.mxu0 0.0
        %2126 = vmatprep.subr.mxu0 0.0
        %2127 = vmatpush1.msra.mxu0 0.0
        %2128 = vmatprep.subr.mxu0 0.0
        %2129 = vmatpush1.msra.mxu0 0.0
        %2130 = vmatprep.subr.mxu0 0.0
        %2131 = vmatpush1.msra.mxu0 0.0
        %2132 = vmatprep.subr.mxu0 0.0
        %2133 = vmatpush1.msra.mxu0 0.0
        %2134 = vmatprep.subr.mxu0 0.0
        %2135 = vmatpush1.msra.mxu0 0.0
        %2136 = vmatprep.subr.mxu0 0.0
        %2137 = vmatpush1.msra.mxu0 0.0
        %2138 = vmatprep.subr.mxu0 0.0
        %2139 = vmatpush1.msra.mxu0 0.0
        %2140 = vmatprep.subr.mxu0 0.0
        %2141 = vmatpush1.msra.mxu0 0.0
        %2142 = vmatprep.subr.mxu0 0.0
        %2143 = vmatpush1.msra.mxu0 0.0
        %2144 = vmatprep.subr.mxu0 0.0
        %2145 = vmatpush1.msra.mxu0 0.0
        %2146 = vmatprep.subr.mxu0 0.0
        %2147 = vmatpush1.msra.mxu0 0.0
        %2148 = vmatprep.subr.mxu0 0.0
        %2149 = vmatpush1.msra.mxu0 0.0
        %2150 = vmatprep.mubr.f32.mxu0 0.0
        %2151 = vmatmul.mubr.f32.gmra.mrb[0].mxu0 %v2084
        %v2152 = vpop.f32.mrb[0].mxu0
        %v2153 = vadd.f32 0.0, %v2152
        %v2154 = vpop.f32.mrb[0].mxu0
        %2155 = vdwg.mxu0
        %v2157 = vrot.slane %v2153, 4
        %v2159 = vadd.f32 %v1377, %v2157
        %v2160 = vmul.f32 %v2079, 0.5
        %v2161 = vtanh.pop %v2160
        %v2162 = vmul.f32 %v2161, 0.5
        %v2163 = vadd.f32 %v2162, 0.5
        %v2164 = vtanh.pop %v2079
        %v2166 = vrot.slane %v1968, 7
        %v2168 = vmul.f32 %v2163, %v2166
        %2170 = vrot.lane.b32.xlu0 %v2164, 32
        %v2171 = vpop.permute.xlu0 %2170
        %v2173 = vmul.f32 %v2163, %v2171
        %2175 = vrot.lane.b32.xlu0 %v2173, 32
        %v2176 = vpop.permute.xlu0 %2175
        %v2178 = vadd.f32 %v2168, %v2176
        %v2179 = vtanh.pop %v2178
        %2181 = vrot.lane.b32.xlu0 %v2179, 32
        %v2182 = vpop.permute.xlu0 %2181
        %v2184 = vmul.f32 %v2163, %v2182
        %v2185 = vmul.f32 %v2159, 0.5
        %v2186 = vtanh.pop %v2185
        %v2187 = vmul.f32 %v2186, 0.5
        %v2188 = vadd.f32 %v2187, 0.5
        %v2189 = vtanh.pop %v2159
        %v2191 = vrot.slane %v1993, 1
        %v2193 = vmul.f32 %v2188, %v2191
        %2195 = vrot.lane.b32.xlu0 %v2189, 32
        %v2196 = vpop.permute.xlu0 %2195
        %v2198 = vmul.f32 %v2188, %v2196
        %2200 = vrot.lane.b32.xlu0 %v2198, 32
        %v2201 = vpop.permute.xlu0 %2200
        %v2203 = vadd.f32 %v2193, %v2201
        %v2204 = vtanh.pop %v2203
        %2206 = vrot.lane.b32.xlu0 %v2204, 32
        %v2207 = vpop.permute.xlu0 %2206
        %v2209 = vmul.f32 %v2188, %v2207
        %v2211 = vrot.slane %v2184, 3
        %2212 = vrot.lane.b32.xlu0 %v2211, 64
        %v2213 = vpop.permute.xlu0 %2212
        %v2214 = vsel %vm728, %v2213, 0
        %2216 = vmatprep.subr.mxu0 0.0
        %2217 = vmatpush1.msra.mxu0 %v1380
        %2218 = vmatprep.subr.mxu0 0.0
        %2219 = vmatpush1.msra.mxu0 %v1381
        %2220 = vmatprep.subr.mxu0 0.0
        %2221 = vmatpush1.msra.mxu0 %v1382
        %2222 = vmatprep.subr.mxu0 0.0
        %2223 = vmatpush1.msra.mxu0 %v1383
        %2224 = vmatprep.subr.mxu0 0.0
        %2225 = vmatpush1.msra.mxu0 0.0
        %2226 = vmatprep.subr.mxu0 0.0
        %2227 = vmatpush1.msra.mxu0 0.0
        %2228 = vmatprep.subr.mxu0 0.0
        %2229 = vmatpush1.msra.mxu0 0.0
        %2230 = vmatprep.subr.mxu0 0.0
        %2231 = vmatpush1.msra.mxu0 0.0
        %2232 = vmatprep.subr.mxu0 0.0
        %2233 = vmatpush1.msra.mxu0 0.0
        %2234 = vmatprep.subr.mxu0 0.0
        %2235 = vmatpush1.msra.mxu0 0.0
        %2236 = vmatprep.subr.mxu0 0.0
        %2237 = vmatpush1.msra.mxu0 0.0
        %2238 = vmatprep.subr.mxu0 0.0
        %2239 = vmatpush1.msra.mxu0 0.0
        %2240 = vmatprep.subr.mxu0 0.0
        %2241 = vmatpush1.msra.mxu0 0.0
        %2242 = vmatprep.subr.mxu0 0.0
        %2243 = vmatpush1.msra.mxu0 0.0
        %2244 = vmatprep.subr.mxu0 0.0
        %2245 = vmatpush1.msra.mxu0 0.0
        %2246 = vmatprep.subr.mxu0 0.0
        %2247 = vmatpush1.msra.mxu0 0.0
        %2248 = vmatprep.subr.mxu0 0.0
        %2249 = vmatpush1.msra.mxu0 0.0
        %2250 = vmatprep.subr.mxu0 0.0
        %2251 = vmatpush1.msra.mxu0 0.0
        %2252 = vmatprep.subr.mxu0 0.0
        %2253 = vmatpush1.msra.mxu0 0.0
        %2254 = vmatprep.subr.mxu0 0.0
        %2255 = vmatpush1.msra.mxu0 0.0
        %2256 = vmatprep.subr.mxu0 0.0
        %2257 = vmatpush1.msra.mxu0 0.0
        %2258 = vmatprep.subr.mxu0 0.0
        %2259 = vmatpush1.msra.mxu0 0.0
        %2260 = vmatprep.subr.mxu0 0.0
        %2261 = vmatpush1.msra.mxu0 0.0
        %2262 = vmatprep.subr.mxu0 0.0
        %2263 = vmatpush1.msra.mxu0 0.0
        %2264 = vmatprep.subr.mxu0 0.0
        %2265 = vmatpush1.msra.mxu0 0.0
        %2266 = vmatprep.subr.mxu0 0.0
        %2267 = vmatpush1.msra.mxu0 0.0
        %2268 = vmatprep.subr.mxu0 0.0
        %2269 = vmatpush1.msra.mxu0 0.0
        %2270 = vmatprep.subr.mxu0 0.0
        %2271 = vmatpush1.msra.mxu0 0.0
        %2272 = vmatprep.subr.mxu0 0.0
        %2273 = vmatpush1.msra.mxu0 0.0
        %2274 = vmatprep.subr.mxu0 0.0
        %2275 = vmatpush1.msra.mxu0 0.0
        %2276 = vmatprep.subr.mxu0 0.0
        %2277 = vmatpush1.msra.mxu0 0.0
        %2278 = vmatprep.subr.mxu0 0.0
        %2279 = vmatpush1.msra.mxu0 0.0
        %2280 = vmatprep.mubr.f32.mxu0 0.0
        %2281 = vmatmul.mubr.f32.gmra.mrb[0].mxu0 %v2214
        %v2282 = vpop.f32.mrb[0].mxu0
        %v2283 = vadd.f32 0.0, %v2282
        %v2284 = vpop.f32.mrb[0].mxu0
        %2285 = vdwg.mxu0
        %v2287 = vrot.slane %v2283, 4
        %v2289 = vadd.f32 %v1294, %v2287
        %v2291 = vrot.slane %v2209, 4
        %2292 = vrot.lane.b32.xlu0 %v2291, 64
        %v2293 = vpop.permute.xlu0 %2292
        %v2294 = vsel %vm728, %v2293, 0
        %2296 = vmatprep.subr.mxu0 0.0
        %2297 = vmatpush1.msra.mxu0 %v1385
        %2298 = vmatprep.subr.mxu0 0.0
        %2299 = vmatpush1.msra.mxu0 %v1386
        %2300 = vmatprep.subr.mxu0 0.0
        %2301 = vmatpush1.msra.mxu0 %v1387
        %2302 = vmatprep.subr.mxu0 0.0
        %2303 = vmatpush1.msra.mxu0 %v1388
        %2304 = vmatprep.subr.mxu0 0.0
        %2305 = vmatpush1.msra.mxu0 0.0
        %2306 = vmatprep.subr.mxu0 0.0
        %2307 = vmatpush1.msra.mxu0 0.0
        %2308 = vmatprep.subr.mxu0 0.0
        %2309 = vmatpush1.msra.mxu0 0.0
        %2310 = vmatprep.subr.mxu0 0.0
        %2311 = vmatpush1.msra.mxu0 0.0
        %2312 = vmatprep.subr.mxu0 0.0
        %2313 = vmatpush1.msra.mxu0 0.0
        %2314 = vmatprep.subr.mxu0 0.0
        %2315 = vmatpush1.msra.mxu0 0.0
        %2316 = vmatprep.subr.mxu0 0.0
        %2317 = vmatpush1.msra.mxu0 0.0
        %2318 = vmatprep.subr.mxu0 0.0
        %2319 = vmatpush1.msra.mxu0 0.0
        %2320 = vmatprep.subr.mxu0 0.0
        %2321 = vmatpush1.msra.mxu0 0.0
        %2322 = vmatprep.subr.mxu0 0.0
        %2323 = vmatpush1.msra.mxu0 0.0
        %2324 = vmatprep.subr.mxu0 0.0
        %2325 = vmatpush1.msra.mxu0 0.0
        %2326 = vmatprep.subr.mxu0 0.0
        %2327 = vmatpush1.msra.mxu0 0.0
        %2328 = vmatprep.subr.mxu0 0.0
        %2329 = vmatpush1.msra.mxu0 0.0
        %2330 = vmatprep.subr.mxu0 0.0
        %2331 = vmatpush1.msra.mxu0 0.0
        %2332 = vmatprep.subr.mxu0 0.0
        %2333 = vmatpush1.msra.mxu0 0.0
        %2334 = vmatprep.subr.mxu0 0.0
        %2335 = vmatpush1.msra.mxu0 0.0
        %2336 = vmatprep.subr.mxu0 0.0
        %2337 = vmatpush1.msra.mxu0 0.0
        %2338 = vmatprep.subr.mxu0 0.0
        %2339 = vmatpush1.msra.mxu0 0.0
        %2340 = vmatprep.subr.mxu0 0.0
        %2341 = vmatpush1.msra.mxu0 0.0
        %2342 = vmatprep.subr.mxu0 0.0
        %2343 = vmatpush1.msra.mxu0 0.0
        %2344 = vmatprep.subr.mxu0 0.0
        %2345 = vmatpush1.msra.mxu0 0.0
        %2346 = vmatprep.subr.mxu0 0.0
        %2347 = vmatpush1.msra.mxu0 0.0
        %2348 = vmatprep.subr.mxu0 0.0
        %2349 = vmatpush1.msra.mxu0 0.0
        %2350 = vmatprep.subr.mxu0 0.0
        %2351 = vmatpush1.msra.mxu0 0.0
        %2352 = vmatprep.subr.mxu0 0.0
        %2353 = vmatpush1.msra.mxu0 0.0
        %2354 = vmatprep.subr.mxu0 0.0
        %2355 = vmatpush1.msra.mxu0 0.0
        %2356 = vmatprep.subr.mxu0 0.0
        %2357 = vmatpush1.msra.mxu0 0.0
        %2358 = vmatprep.subr.mxu0 0.0
        %2359 = vmatpush1.msra.mxu0 0.0
        %2360 = vmatprep.mubr.f32.mxu0 0.0
        %2361 = vmatmul.mubr.f32.gmra.mrb[0].mxu0 %v2294
        %v2362 = vpop.f32.mrb[0].mxu0
        %v2363 = vadd.f32 0.0, %v2362
        %v2364 = vpop.f32.mrb[0].mxu0
        %2365 = vdwg.mxu0
        %v2367 = vrot.slane %v2363, 5
        %v2369 = vadd.f32 %v1377, %v2367
        %v2370 = vmul.f32 %v2289, 0.5
        %v2371 = vtanh.pop %v2370
        %v2372 = vmul.f32 %v2371, 0.5
        %v2373 = vadd.f32 %v2372, 0.5
        %v2374 = vtanh.pop %v2289
        %v2376 = vrot.slane %v2178, 7
        %v2378 = vmul.f32 %v2373, %v2376
        %2380 = vrot.lane.b32.xlu0 %v2374, 32
        %v2381 = vpop.permute.xlu0 %2380
        %v2383 = vmul.f32 %v2373, %v2381
        %2385 = vrot.lane.b32.xlu0 %v2383, 32
        %v2386 = vpop.permute.xlu0 %2385
        %v2388 = vadd.f32 %v2378, %v2386
        %v2389 = vtanh.pop %v2388
        %2391 = vrot.lane.b32.xlu0 %v2389, 32
        %v2392 = vpop.permute.xlu0 %2391
        %v2394 = vmul.f32 %v2373, %v2392
        %v2395 = vmul.f32 %v2369, 0.5
        %v2396 = vtanh.pop %v2395
        %v2397 = vmul.f32 %v2396, 0.5
        %v2398 = vadd.f32 %v2397, 0.5
        %v2399 = vtanh.pop %v2369
        %v2401 = vrot.slane %v2203, 1
        %v2403 = vmul.f32 %v2398, %v2401
        %2405 = vrot.lane.b32.xlu0 %v2399, 32
        %v2406 = vpop.permute.xlu0 %2405
        %v2408 = vmul.f32 %v2398, %v2406
        %2410 = vrot.lane.b32.xlu0 %v2408, 32
        %v2411 = vpop.permute.xlu0 %2410
        %v2413 = vadd.f32 %v2403, %v2411
        %v2414 = vtanh.pop %v2413
        %2416 = vrot.lane.b32.xlu0 %v2414, 32
        %v2417 = vpop.permute.xlu0 %2416
        %v2419 = vmul.f32 %v2398, %v2417
        %v2421 = vrot.slane %v2394, 4
        %2422 = vrot.lane.b32.xlu0 %v2421, 64
        %v2423 = vpop.permute.xlu0 %2422
        %v2424 = vsel %vm728, %v2423, 0
        %2426 = vmatprep.subr.mxu0 0.0
        %2427 = vmatpush1.msra.mxu0 %v1380
        %2428 = vmatprep.subr.mxu0 0.0
        %2429 = vmatpush1.msra.mxu0 %v1381
        %2430 = vmatprep.subr.mxu0 0.0
        %2431 = vmatpush1.msra.mxu0 %v1382
        %2432 = vmatprep.subr.mxu0 0.0
        %2433 = vmatpush1.msra.mxu0 %v1383
        %2434 = vmatprep.subr.mxu0 0.0
        %2435 = vmatpush1.msra.mxu0 0.0
        %2436 = vmatprep.subr.mxu0 0.0
        %2437 = vmatpush1.msra.mxu0 0.0
        %2438 = vmatprep.subr.mxu0 0.0
        %2439 = vmatpush1.msra.mxu0 0.0
        %2440 = vmatprep.subr.mxu0 0.0
        %2441 = vmatpush1.msra.mxu0 0.0
        %2442 = vmatprep.subr.mxu0 0.0
        %2443 = vmatpush1.msra.mxu0 0.0
        %2444 = vmatprep.subr.mxu0 0.0
        %2445 = vmatpush1.msra.mxu0 0.0
        %2446 = vmatprep.subr.mxu0 0.0
        %2447 = vmatpush1.msra.mxu0 0.0
        %2448 = vmatprep.subr.mxu0 0.0
        %2449 = vmatpush1.msra.mxu0 0.0
        %2450 = vmatprep.subr.mxu0 0.0
        %2451 = vmatpush1.msra.mxu0 0.0
        %2452 = vmatprep.subr.mxu0 0.0
        %2453 = vmatpush1.msra.mxu0 0.0
        %2454 = vmatprep.subr.mxu0 0.0
        %2455 = vmatpush1.msra.mxu0 0.0
        %2456 = vmatprep.subr.mxu0 0.0
        %2457 = vmatpush1.msra.mxu0 0.0
        %2458 = vmatprep.subr.mxu0 0.0
        %2459 = vmatpush1.msra.mxu0 0.0
        %2460 = vmatprep.subr.mxu0 0.0
        %2461 = vmatpush1.msra.mxu0 0.0
        %2462 = vmatprep.subr.mxu0 0.0
        %2463 = vmatpush1.msra.mxu0 0.0
        %2464 = vmatprep.subr.mxu0 0.0
        %2465 = vmatpush1.msra.mxu0 0.0
        %2466 = vmatprep.subr.mxu0 0.0
        %2467 = vmatpush1.msra.mxu0 0.0
        %2468 = vmatprep.subr.mxu0 0.0
        %2469 = vmatpush1.msra.mxu0 0.0
        %2470 = vmatprep.subr.mxu0 0.0
        %2471 = vmatpush1.msra.mxu0 0.0
        %2472 = vmatprep.subr.mxu0 0.0
        %2473 = vmatpush1.msra.mxu0 0.0
        %2474 = vmatprep.subr.mxu0 0.0
        %2475 = vmatpush1.msra.mxu0 0.0
        %2476 = vmatprep.subr.mxu0 0.0
        %2477 = vmatpush1.msra.mxu0 0.0
        %2478 = vmatprep.subr.mxu0 0.0
        %2479 = vmatpush1.msra.mxu0 0.0
        %2480 = vmatprep.subr.mxu0 0.0
        %2481 = vmatpush1.msra.mxu0 0.0
        %2482 = vmatprep.subr.mxu0 0.0
        %2483 = vmatpush1.msra.mxu0 0.0
        %2484 = vmatprep.subr.mxu0 0.0
        %2485 = vmatpush1.msra.mxu0 0.0
        %2486 = vmatprep.subr.mxu0 0.0
        %2487 = vmatpush1.msra.mxu0 0.0
        %2488 = vmatprep.subr.mxu0 0.0
        %2489 = vmatpush1.msra.mxu0 0.0
        %2490 = vmatprep.mubr.f32.mxu0 0.0
        %2491 = vmatmul.mubr.f32.gmra.mrb[0].mxu0 %v2424
        %v2492 = vpop.f32.mrb[0].mxu0
        %v2493 = vadd.f32 0.0, %v2492
        %v2494 = vpop.f32.mrb[0].mxu0
        %2495 = vdwg.mxu0
        %v2497 = vrot.slane %v2493, 3
        %v2499 = vadd.f32 %v1294, %v2497
        %v2501 = vrot.slane %v2419, 3
        %2502 = vrot.lane.b32.xlu0 %v2501, 64
        %v2503 = vpop.permute.xlu0 %2502
        %v2504 = vsel %vm728, %v2503, 0
        %2506 = vmatprep.subr.mxu0 0.0
        %2507 = vmatpush1.msra.mxu0 %v1385
        %2508 = vmatprep.subr.mxu0 0.0
        %2509 = vmatpush1.msra.mxu0 %v1386
        %2510 = vmatprep.subr.mxu0 0.0
        %2511 = vmatpush1.msra.mxu0 %v1387
        %2512 = vmatprep.subr.mxu0 0.0
        %2513 = vmatpush1.msra.mxu0 %v1388
        %2514 = vmatprep.subr.mxu0 0.0
        %2515 = vmatpush1.msra.mxu0 0.0
        %2516 = vmatprep.subr.mxu0 0.0
        %2517 = vmatpush1.msra.mxu0 0.0
        %2518 = vmatprep.subr.mxu0 0.0
        %2519 = vmatpush1.msra.mxu0 0.0
        %2520 = vmatprep.subr.mxu0 0.0
        %2521 = vmatpush1.msra.mxu0 0.0
        %2522 = vmatprep.subr.mxu0 0.0
        %2523 = vmatpush1.msra.mxu0 0.0
        %2524 = vmatprep.subr.mxu0 0.0
        %2525 = vmatpush1.msra.mxu0 0.0
        %2526 = vmatprep.subr.mxu0 0.0
        %2527 = vmatpush1.msra.mxu0 0.0
        %2528 = vmatprep.subr.mxu0 0.0
        %2529 = vmatpush1.msra.mxu0 0.0
        %2530 = vmatprep.subr.mxu0 0.0
        %2531 = vmatpush1.msra.mxu0 0.0
        %2532 = vmatprep.subr.mxu0 0.0
        %2533 = vmatpush1.msra.mxu0 0.0
        %2534 = vmatprep.subr.mxu0 0.0
        %2535 = vmatpush1.msra.mxu0 0.0
        %2536 = vmatprep.subr.mxu0 0.0
        %2537 = vmatpush1.msra.mxu0 0.0
        %2538 = vmatprep.subr.mxu0 0.0
        %2539 = vmatpush1.msra.mxu0 0.0
        %2540 = vmatprep.subr.mxu0 0.0
        %2541 = vmatpush1.msra.mxu0 0.0
        %2542 = vmatprep.subr.mxu0 0.0
        %2543 = vmatpush1.msra.mxu0 0.0
        %2544 = vmatprep.subr.mxu0 0.0
        %2545 = vmatpush1.msra.mxu0 0.0
        %2546 = vmatprep.subr.mxu0 0.0
        %2547 = vmatpush1.msra.mxu0 0.0
        %2548 = vmatprep.subr.mxu0 0.0
        %2549 = vmatpush1.msra.mxu0 0.0
        %2550 = vmatprep.subr.mxu0 0.0
        %2551 = vmatpush1.msra.mxu0 0.0
        %2552 = vmatprep.subr.mxu0 0.0
        %2553 = vmatpush1.msra.mxu0 0.0
        %2554 = vmatprep.subr.mxu0 0.0
        %2555 = vmatpush1.msra.mxu0 0.0
        %2556 = vmatprep.subr.mxu0 0.0
        %2557 = vmatpush1.msra.mxu0 0.0
        %2558 = vmatprep.subr.mxu0 0.0
        %2559 = vmatpush1.msra.mxu0 0.0
        %2560 = vmatprep.subr.mxu0 0.0
        %2561 = vmatpush1.msra.mxu0 0.0
        %2562 = vmatprep.subr.mxu0 0.0
        %2563 = vmatpush1.msra.mxu0 0.0
        %2564 = vmatprep.subr.mxu0 0.0
        %2565 = vmatpush1.msra.mxu0 0.0
        %2566 = vmatprep.subr.mxu0 0.0
        %2567 = vmatpush1.msra.mxu0 0.0
        %2568 = vmatprep.subr.mxu0 0.0
        %2569 = vmatpush1.msra.mxu0 0.0
        %2570 = vmatprep.mubr.f32.mxu0 0.0
        %2571 = vmatmul.mubr.f32.gmra.mrb[0].mxu0 %v2504
        %v2572 = vpop.f32.mrb[0].mxu0
        %v2573 = vadd.f32 0.0, %v2572
        %v2574 = vpop.f32.mrb[0].mxu0
        %2575 = vdwg.mxu0
        %v2577 = vrot.slane %v2573, 6
        %v2579 = vadd.f32 %v1377, %v2577
        %v2580 = vmul.f32 %v2499, 0.5
        %v2581 = vtanh.pop %v2580
        %v2582 = vmul.f32 %v2581, 0.5
        %v2583 = vadd.f32 %v2582, 0.5
        %v2584 = vtanh.pop %v2499
        %v2586 = vrot.slane %v2388, 7
        %v2588 = vmul.f32 %v2583, %v2586
        %2590 = vrot.lane.b32.xlu0 %v2584, 32
        %v2591 = vpop.permute.xlu0 %2590
        %v2593 = vmul.f32 %v2583, %v2591
        %2595 = vrot.lane.b32.xlu0 %v2593, 32
        %v2596 = vpop.permute.xlu0 %2595
        %v2598 = vadd.f32 %v2588, %v2596
        %v2599 = vtanh.pop %v2598
        %2601 = vrot.lane.b32.xlu0 %v2599, 32
        %v2602 = vpop.permute.xlu0 %2601
        %v2604 = vmul.f32 %v2583, %v2602
        %v2605 = vmul.f32 %v2579, 0.5
        %v2606 = vtanh.pop %v2605
        %v2607 = vmul.f32 %v2606, 0.5
        %v2608 = vadd.f32 %v2607, 0.5
        %v2609 = vtanh.pop %v2579
        %v2611 = vrot.slane %v2413, 1
        %v2613 = vmul.f32 %v2608, %v2611
        %2615 = vrot.lane.b32.xlu0 %v2609, 32
        %v2616 = vpop.permute.xlu0 %2615
        %v2618 = vmul.f32 %v2608, %v2616
        %2620 = vrot.lane.b32.xlu0 %v2618, 32
        %v2621 = vpop.permute.xlu0 %2620
        %v2623 = vadd.f32 %v2613, %v2621
        %v2624 = vtanh.pop %v2623
        %2626 = vrot.lane.b32.xlu0 %v2624, 32
        %v2627 = vpop.permute.xlu0 %2626
        %v2629 = vmul.f32 %v2608, %v2627
        %v2631 = vrot.slane %v2604, 5
        %2632 = vrot.lane.b32.xlu0 %v2631, 64
        %v2633 = vpop.permute.xlu0 %2632
        %v2634 = vsel %vm728, %v2633, 0
        %2636 = vmatprep.subr.mxu0 0.0
        %2637 = vmatpush1.msra.mxu0 %v1380
        %2638 = vmatprep.subr.mxu0 0.0
        %2639 = vmatpush1.msra.mxu0 %v1381
        %2640 = vmatprep.subr.mxu0 0.0
        %2641 = vmatpush1.msra.mxu0 %v1382
        %2642 = vmatprep.subr.mxu0 0.0
        %2643 = vmatpush1.msra.mxu0 %v1383
        %2644 = vmatprep.subr.mxu0 0.0
        %2645 = vmatpush1.msra.mxu0 0.0
        %2646 = vmatprep.subr.mxu0 0.0
        %2647 = vmatpush1.msra.mxu0 0.0
        %2648 = vmatprep.subr.mxu0 0.0
        %2649 = vmatpush1.msra.mxu0 0.0
        %2650 = vmatprep.subr.mxu0 0.0
        %2651 = vmatpush1.msra.mxu0 0.0
        %2652 = vmatprep.subr.mxu0 0.0
        %2653 = vmatpush1.msra.mxu0 0.0
        %2654 = vmatprep.subr.mxu0 0.0
        %2655 = vmatpush1.msra.mxu0 0.0
        %2656 = vmatprep.subr.mxu0 0.0
        %2657 = vmatpush1.msra.mxu0 0.0
        %2658 = vmatprep.subr.mxu0 0.0
        %2659 = vmatpush1.msra.mxu0 0.0
        %2660 = vmatprep.subr.mxu0 0.0
        %2661 = vmatpush1.msra.mxu0 0.0
        %2662 = vmatprep.subr.mxu0 0.0
        %2663 = vmatpush1.msra.mxu0 0.0
        %2664 = vmatprep.subr.mxu0 0.0
        %2665 = vmatpush1.msra.mxu0 0.0
        %2666 = vmatprep.subr.mxu0 0.0
        %2667 = vmatpush1.msra.mxu0 0.0
        %2668 = vmatprep.subr.mxu0 0.0
        %2669 = vmatpush1.msra.mxu0 0.0
        %2670 = vmatprep.subr.mxu0 0.0
        %2671 = vmatpush1.msra.mxu0 0.0
        %2672 = vmatprep.subr.mxu0 0.0
        %2673 = vmatpush1.msra.mxu0 0.0
        %2674 = vmatprep.subr.mxu0 0.0
        %2675 = vmatpush1.msra.mxu0 0.0
        %2676 = vmatprep.subr.mxu0 0.0
        %2677 = vmatpush1.msra.mxu0 0.0
        %2678 = vmatprep.subr.mxu0 0.0
        %2679 = vmatpush1.msra.mxu0 0.0
        %2680 = vmatprep.subr.mxu0 0.0
        %2681 = vmatpush1.msra.mxu0 0.0
        %2682 = vmatprep.subr.mxu0 0.0
        %2683 = vmatpush1.msra.mxu0 0.0
        %2684 = vmatprep.subr.mxu0 0.0
        %2685 = vmatpush1.msra.mxu0 0.0
        %2686 = vmatprep.subr.mxu0 0.0
        %2687 = vmatpush1.msra.mxu0 0.0
        %2688 = vmatprep.subr.mxu0 0.0
        %2689 = vmatpush1.msra.mxu0 0.0
        %2690 = vmatprep.subr.mxu0 0.0
        %2691 = vmatpush1.msra.mxu0 0.0
        %2692 = vmatprep.subr.mxu0 0.0
        %2693 = vmatpush1.msra.mxu0 0.0
        %2694 = vmatprep.subr.mxu0 0.0
        %2695 = vmatpush1.msra.mxu0 0.0
        %2696 = vmatprep.subr.mxu0 0.0
        %2697 = vmatpush1.msra.mxu0 0.0
        %2698 = vmatprep.subr.mxu0 0.0
        %2699 = vmatpush1.msra.mxu0 0.0
        %2700 = vmatprep.mubr.f32.mxu0 0.0
        %2701 = vmatmul.mubr.f32.gmra.mrb[0].mxu0 %v2634
        %v2702 = vpop.f32.mrb[0].mxu0
        %v2703 = vadd.f32 0.0, %v2702
        %v2704 = vpop.f32.mrb[0].mxu0
        %2705 = vdwg.mxu0
        %v2707 = vrot.slane %v2703, 2
        %v2709 = vadd.f32 %v1294, %v2707
        %v2711 = vrot.slane %v2629, 2
        %2712 = vrot.lane.b32.xlu0 %v2711, 64
        %v2713 = vpop.permute.xlu0 %2712
        %v2714 = vsel %vm728, %v2713, 0
        %2716 = vmatprep.subr.mxu0 0.0
        %2717 = vmatpush1.msra.mxu0 %v1385
        %2718 = vmatprep.subr.mxu0 0.0
        %2719 = vmatpush1.msra.mxu0 %v1386
        %2720 = vmatprep.subr.mxu0 0.0
        %2721 = vmatpush1.msra.mxu0 %v1387
        %2722 = vmatprep.subr.mxu0 0.0
        %2723 = vmatpush1.msra.mxu0 %v1388
        %2724 = vmatprep.subr.mxu0 0.0
        %2725 = vmatpush1.msra.mxu0 0.0
        %2726 = vmatprep.subr.mxu0 0.0
        %2727 = vmatpush1.msra.mxu0 0.0
        %2728 = vmatprep.subr.mxu0 0.0
        %2729 = vmatpush1.msra.mxu0 0.0
        %2730 = vmatprep.subr.mxu0 0.0
        %2731 = vmatpush1.msra.mxu0 0.0
        %2732 = vmatprep.subr.mxu0 0.0
        %2733 = vmatpush1.msra.mxu0 0.0
        %2734 = vmatprep.subr.mxu0 0.0
        %2735 = vmatpush1.msra.mxu0 0.0
        %2736 = vmatprep.subr.mxu0 0.0
        %2737 = vmatpush1.msra.mxu0 0.0
        %2738 = vmatprep.subr.mxu0 0.0
        %2739 = vmatpush1.msra.mxu0 0.0
        %2740 = vmatprep.subr.mxu0 0.0
        %2741 = vmatpush1.msra.mxu0 0.0
        %2742 = vmatprep.subr.mxu0 0.0
        %2743 = vmatpush1.msra.mxu0 0.0
        %2744 = vmatprep.subr.mxu0 0.0
        %2745 = vmatpush1.msra.mxu0 0.0
        %2746 = vmatprep.subr.mxu0 0.0
        %2747 = vmatpush1.msra.mxu0 0.0
        %2748 = vmatprep.subr.mxu0 0.0
        %2749 = vmatpush1.msra.mxu0 0.0
        %2750 = vmatprep.subr.mxu0 0.0
        %2751 = vmatpush1.msra.mxu0 0.0
        %2752 = vmatprep.subr.mxu0 0.0
        %2753 = vmatpush1.msra.mxu0 0.0
        %2754 = vmatprep.subr.mxu0 0.0
        %2755 = vmatpush1.msra.mxu0 0.0
        %2756 = vmatprep.subr.mxu0 0.0
        %2757 = vmatpush1.msra.mxu0 0.0
        %2758 = vmatprep.subr.mxu0 0.0
        %2759 = vmatpush1.msra.mxu0 0.0
        %2760 = vmatprep.subr.mxu0 0.0
        %2761 = vmatpush1.msra.mxu0 0.0
        %2762 = vmatprep.subr.mxu0 0.0
        %2763 = vmatpush1.msra.mxu0 0.0
        %2764 = vmatprep.subr.mxu0 0.0
        %2765 = vmatpush1.msra.mxu0 0.0
        %2766 = vmatprep.subr.mxu0 0.0
        %2767 = vmatpush1.msra.mxu0 0.0
        %2768 = vmatprep.subr.mxu0 0.0
        %2769 = vmatpush1.msra.mxu0 0.0
        %2770 = vmatprep.subr.mxu0 0.0
        %2771 = vmatpush1.msra.mxu0 0.0
        %2772 = vmatprep.subr.mxu0 0.0
        %2773 = vmatpush1.msra.mxu0 0.0
        %2774 = vmatprep.subr.mxu0 0.0
        %2775 = vmatpush1.msra.mxu0 0.0
        %2776 = vmatprep.subr.mxu0 0.0
        %2777 = vmatpush1.msra.mxu0 0.0
        %2778 = vmatprep.subr.mxu0 0.0
        %2779 = vmatpush1.msra.mxu0 0.0
        %2780 = vmatprep.mubr.f32.mxu0 0.0
        %2781 = vmatmul.mubr.f32.gmra.mrb[0].mxu0 %v2714
        %v2782 = vpop.f32.mrb[0].mxu0
        %v2783 = vadd.f32 0.0, %v2782
        %v2784 = vpop.f32.mrb[0].mxu0
        %2785 = vdwg.mxu0
        %v2787 = vrot.slane %v2783, 7
        %v2789 = vadd.f32 %v1377, %v2787
        %v2790 = vmul.f32 %v2709, 0.5
        %v2791 = vtanh.pop %v2790
        %v2792 = vmul.f32 %v2791, 0.5
        %v2793 = vadd.f32 %v2792, 0.5
        %v2794 = vtanh.pop %v2709
        %v2796 = vrot.slane %v2598, 7
        %v2798 = vmul.f32 %v2793, %v2796
        %2800 = vrot.lane.b32.xlu0 %v2794, 32
        %v2801 = vpop.permute.xlu0 %2800
        %v2803 = vmul.f32 %v2793, %v2801
        %2805 = vrot.lane.b32.xlu0 %v2803, 32
        %v2806 = vpop.permute.xlu0 %2805
        %v2808 = vadd.f32 %v2798, %v2806
        %v2809 = vtanh.pop %v2808
        %2811 = vrot.lane.b32.xlu0 %v2809, 32
        %v2812 = vpop.permute.xlu0 %2811
        %v2814 = vmul.f32 %v2793, %v2812
        %v2815 = vmul.f32 %v2789, 0.5
        %v2816 = vtanh.pop %v2815
        %v2817 = vmul.f32 %v2816, 0.5
        %v2818 = vadd.f32 %v2817, 0.5
        %v2819 = vtanh.pop %v2789
        %v2821 = vrot.slane %v2623, 1
        %v2823 = vmul.f32 %v2818, %v2821
        %2825 = vrot.lane.b32.xlu0 %v2819, 32
        %v2826 = vpop.permute.xlu0 %2825
        %v2828 = vmul.f32 %v2818, %v2826
        %2830 = vrot.lane.b32.xlu0 %v2828, 32
        %v2831 = vpop.permute.xlu0 %2830
        %v2833 = vadd.f32 %v2823, %v2831
        %v2834 = vtanh.pop %v2833
        %2836 = vrot.lane.b32.xlu0 %v2834, 32
        %v2837 = vpop.permute.xlu0 %2836
        %v2839 = vmul.f32 %v2818, %v2837
        %v2841 = vrot.slane %v2814, 6
        %2842 = vrot.lane.b32.xlu0 %v2841, 64
        %v2843 = vpop.permute.xlu0 %2842
        %v2844 = vsel %vm728, %v2843, 0
        %2846 = vmatprep.subr.mxu0 0.0
        %2847 = vmatpush1.msra.mxu0 %v1380
        %2848 = vmatprep.subr.mxu0 0.0
        %2849 = vmatpush1.msra.mxu0 %v1381
        %2850 = vmatprep.subr.mxu0 0.0
        %2851 = vmatpush1.msra.mxu0 %v1382
        %2852 = vmatprep.subr.mxu0 0.0
        %2853 = vmatpush1.msra.mxu0 %v1383
        %2854 = vmatprep.subr.mxu0 0.0
        %2855 = vmatpush1.msra.mxu0 0.0
        %2856 = vmatprep.subr.mxu0 0.0
        %2857 = vmatpush1.msra.mxu0 0.0
        %2858 = vmatprep.subr.mxu0 0.0
        %2859 = vmatpush1.msra.mxu0 0.0
        %2860 = vmatprep.subr.mxu0 0.0
        %2861 = vmatpush1.msra.mxu0 0.0
        %2862 = vmatprep.subr.mxu0 0.0
        %2863 = vmatpush1.msra.mxu0 0.0
        %2864 = vmatprep.subr.mxu0 0.0
        %2865 = vmatpush1.msra.mxu0 0.0
        %2866 = vmatprep.subr.mxu0 0.0
        %2867 = vmatpush1.msra.mxu0 0.0
        %2868 = vmatprep.subr.mxu0 0.0
        %2869 = vmatpush1.msra.mxu0 0.0
        %2870 = vmatprep.subr.mxu0 0.0
        %2871 = vmatpush1.msra.mxu0 0.0
        %2872 = vmatprep.subr.mxu0 0.0
        %2873 = vmatpush1.msra.mxu0 0.0
        %2874 = vmatprep.subr.mxu0 0.0
        %2875 = vmatpush1.msra.mxu0 0.0
        %2876 = vmatprep.subr.mxu0 0.0
        %2877 = vmatpush1.msra.mxu0 0.0
        %2878 = vmatprep.subr.mxu0 0.0
        %2879 = vmatpush1.msra.mxu0 0.0
        %2880 = vmatprep.subr.mxu0 0.0
        %2881 = vmatpush1.msra.mxu0 0.0
        %2882 = vmatprep.subr.mxu0 0.0
        %2883 = vmatpush1.msra.mxu0 0.0
        %2884 = vmatprep.subr.mxu0 0.0
        %2885 = vmatpush1.msra.mxu0 0.0
        %2886 = vmatprep.subr.mxu0 0.0
        %2887 = vmatpush1.msra.mxu0 0.0
        %2888 = vmatprep.subr.mxu0 0.0
        %2889 = vmatpush1.msra.mxu0 0.0
        %2890 = vmatprep.subr.mxu0 0.0
        %2891 = vmatpush1.msra.mxu0 0.0
        %2892 = vmatprep.subr.mxu0 0.0
        %2893 = vmatpush1.msra.mxu0 0.0
        %2894 = vmatprep.subr.mxu0 0.0
        %2895 = vmatpush1.msra.mxu0 0.0
        %2896 = vmatprep.subr.mxu0 0.0
        %2897 = vmatpush1.msra.mxu0 0.0
        %2898 = vmatprep.subr.mxu0 0.0
        %2899 = vmatpush1.msra.mxu0 0.0
        %2900 = vmatprep.subr.mxu0 0.0
        %2901 = vmatpush1.msra.mxu0 0.0
        %2902 = vmatprep.subr.mxu0 0.0
        %2903 = vmatpush1.msra.mxu0 0.0
        %2904 = vmatprep.subr.mxu0 0.0
        %2905 = vmatpush1.msra.mxu0 0.0
        %2906 = vmatprep.subr.mxu0 0.0
        %2907 = vmatpush1.msra.mxu0 0.0
        %2908 = vmatprep.subr.mxu0 0.0
        %2909 = vmatpush1.msra.mxu0 0.0
        %2910 = vmatprep.mubr.f32.mxu0 0.0
        %2911 = vmatmul.mubr.f32.gmra.mrb[0].mxu0 %v2844
        %v2912 = vpop.f32.mrb[0].mxu0
        %v2913 = vadd.f32 0.0, %v2912
        %v2914 = vpop.f32.mrb[0].mxu0
        %2915 = vdwg.mxu0
        %v2917 = vrot.slane %v2913, 1
        %v2919 = vadd.f32 %v1294, %v2917
        %v2921 = vrot.slane %v2839, 1
        %2922 = vrot.lane.b32.xlu0 %v2921, 64
        %v2923 = vpop.permute.xlu0 %2922
        %v2924 = vsel %vm728, %v2923, 0
        %2926 = vmatprep.subr.mxu0 0.0
        %2927 = vmatpush1.msra.mxu0 %v1385
        %2928 = vmatprep.subr.mxu0 0.0
        %2929 = vmatpush1.msra.mxu0 %v1386
        %2930 = vmatprep.subr.mxu0 0.0
        %2931 = vmatpush1.msra.mxu0 %v1387
        %2932 = vmatprep.subr.mxu0 0.0
        %2933 = vmatpush1.msra.mxu0 %v1388
        %2934 = vmatprep.subr.mxu0 0.0
        %2935 = vmatpush1.msra.mxu0 0.0
        %2936 = vmatprep.subr.mxu0 0.0
        %2937 = vmatpush1.msra.mxu0 0.0
        %2938 = vmatprep.subr.mxu0 0.0
        %2939 = vmatpush1.msra.mxu0 0.0
        %2940 = vmatprep.subr.mxu0 0.0
        %2941 = vmatpush1.msra.mxu0 0.0
        %2942 = vmatprep.subr.mxu0 0.0
        %2943 = vmatpush1.msra.mxu0 0.0
        %2944 = vmatprep.subr.mxu0 0.0
        %2945 = vmatpush1.msra.mxu0 0.0
        %2946 = vmatprep.subr.mxu0 0.0
        %2947 = vmatpush1.msra.mxu0 0.0
        %2948 = vmatprep.subr.mxu0 0.0
        %2949 = vmatpush1.msra.mxu0 0.0
        %2950 = vmatprep.subr.mxu0 0.0
        %2951 = vmatpush1.msra.mxu0 0.0
        %2952 = vmatprep.subr.mxu0 0.0
        %2953 = vmatpush1.msra.mxu0 0.0
        %2954 = vmatprep.subr.mxu0 0.0
        %2955 = vmatpush1.msra.mxu0 0.0
        %2956 = vmatprep.subr.mxu0 0.0
        %2957 = vmatpush1.msra.mxu0 0.0
        %2958 = vmatprep.subr.mxu0 0.0
        %2959 = vmatpush1.msra.mxu0 0.0
        %2960 = vmatprep.subr.mxu0 0.0
        %2961 = vmatpush1.msra.mxu0 0.0
        %2962 = vmatprep.subr.mxu0 0.0
        %2963 = vmatpush1.msra.mxu0 0.0
        %2964 = vmatprep.subr.mxu0 0.0
        %2965 = vmatpush1.msra.mxu0 0.0
        %2966 = vmatprep.subr.mxu0 0.0
        %2967 = vmatpush1.msra.mxu0 0.0
        %2968 = vmatprep.subr.mxu0 0.0
        %2969 = vmatpush1.msra.mxu0 0.0
        %2970 = vmatprep.subr.mxu0 0.0
        %2971 = vmatpush1.msra.mxu0 0.0
        %2972 = vmatprep.subr.mxu0 0.0
        %2973 = vmatpush1.msra.mxu0 0.0
        %2974 = vmatprep.subr.mxu0 0.0
        %2975 = vmatpush1.msra.mxu0 0.0
        %2976 = vmatprep.subr.mxu0 0.0
        %2977 = vmatpush1.msra.mxu0 0.0
        %2978 = vmatprep.subr.mxu0 0.0
        %2979 = vmatpush1.msra.mxu0 0.0
        %2980 = vmatprep.subr.mxu0 0.0
        %2981 = vmatpush1.msra.mxu0 0.0
        %2982 = vmatprep.subr.mxu0 0.0
        %2983 = vmatpush1.msra.mxu0 0.0
        %2984 = vmatprep.subr.mxu0 0.0
        %2985 = vmatpush1.msra.mxu0 0.0
        %2986 = vmatprep.subr.mxu0 0.0
        %2987 = vmatpush1.msra.mxu0 0.0
        %2988 = vmatprep.subr.mxu0 0.0
        %2989 = vmatpush1.msra.mxu0 0.0
        %2990 = vmatprep.mubr.f32.mxu0 0.0
        %2991 = vmatmul.mubr.f32.gmra.mrb[0].mxu0 %v2924
        %v2992 = vpop.f32.mrb[0].mxu0
        %v2993 = vadd.f32 0.0, %v2992
        %v2994 = vpop.f32.mrb[0].mxu0
        %2995 = vdwg.mxu0
        %v2996 = vadd.f32 %v1377, %v2993
        %v2997 = vmul.f32 %v2919, 0.5
        %v2998 = vtanh.pop %v2997
        %v2999 = vmul.f32 %v2998, 0.5
        %v3000 = vadd.f32 %v2999, 0.5
        %v3001 = vtanh.pop %v2919
        %v3003 = vrot.slane %v2808, 7
        %v3005 = vmul.f32 %v3000, %v3003
        %3007 = vrot.lane.b32.xlu0 %v3001, 32
        %v3008 = vpop.permute.xlu0 %3007
        %v3010 = vmul.f32 %v3000, %v3008
        %3012 = vrot.lane.b32.xlu0 %v3010, 32
        %v3013 = vpop.permute.xlu0 %3012
        %v3015 = vadd.f32 %v3005, %v3013
        %v3016 = vtanh.pop %v3015
        %3018 = vrot.lane.b32.xlu0 %v3016, 32
        %v3019 = vpop.permute.xlu0 %3018
        %v3021 = vmul.f32 %v3000, %v3019
        %v3022 = vmul.f32 %v2996, 0.5
        %v3023 = vtanh.pop %v3022
        %v3024 = vmul.f32 %v3023, 0.5
        %v3025 = vadd.f32 %v3024, 0.5
        %v3026 = vtanh.pop %v2996
        %v3028 = vrot.slane %v2833, 1
        %v3030 = vmul.f32 %v3025, %v3028
        %3032 = vrot.lane.b32.xlu0 %v3026, 32
        %v3033 = vpop.permute.xlu0 %3032
        %v3035 = vmul.f32 %v3025, %v3033
        %3037 = vrot.lane.b32.xlu0 %v3035, 32
        %v3038 = vpop.permute.xlu0 %3037
        %v3040 = vadd.f32 %v3030, %v3038
        %v3041 = vtanh.pop %v3040
        %3043 = vrot.lane.b32.xlu0 %v3041, 32
        %v3044 = vpop.permute.xlu0 %3043
        %v3046 = vmul.f32 %v3025, %v3044
        %v3047 = vsel %vm713, %v1558, %v1764
        %vm3048 = vcmask 1041408
        %v3049 = vsel %vm3048, %v3047, %v1974
        %vm3050 = vcmask 1042432
        %v3051 = vsel %vm3050, %v3049, %v2184
        %vm3052 = vcmask 1043456
        %v3053 = vsel %vm3052, %v3051, %v2394
        %vm3054 = vcmask 1044480
        %v3055 = vsel %vm3054, %v3053, %v2604
        %vm3056 = vcmask 1045504
        %v3057 = vsel %vm3056, %v3055, %v2814
        %v3058 = vsel %vm717, %v3057, %v3021
        %v3059 = vsel %vm713, %v3046, %v2839
        %v3060 = vsel %vm3048, %v3059, %v2629
        %v3061 = vsel %vm3050, %v3060, %v2419
        %v3062 = vsel %vm3052, %v3061, %v2209
        %v3063 = vsel %vm3054, %v3062, %v1999
        %v3064 = vsel %vm3056, %v3063, %v1789
        %v3065 = vsel %vm717, %v3064, %v1580
        %3067 = vrot.lane.b32.xlu0 %v3058, 64
        %v3068 = vpop.permute.xlu0 %3067
        %3071 = vrot.lane.b32.xlu0 %v3065, 96
        %v3072 = vpop.permute.xlu0 %3071
        %v3074 = vsel %vm728, %v3068, %v3072
        %v3075 = vld [vmem:[%s8] sm:$0xff]
        %v3076 = vld [vmem:[%s8 + $0x8] sm:$0xff]
        %v3077 = vld [vmem:[%s8 + $0x10] sm:$0xff]
        %v3078 = vld [vmem:[%s8 + $0x18] sm:$0xff]
        %v3079 = vld [vmem:[%s8 + $0x20] sm:$0xff]
        %v3080 = vld [vmem:[%s8 + $0x28] sm:$0xff]
        %v3081 = vld [vmem:[%s8 + $0x30] sm:$0xff]
        %v3082 = vld [vmem:[%s8 + $0x38] sm:$0xff]
        %v3083 = vld [vmem:[%s10] sm:$0x1]
        %v3085 = vlaneseq
        %v3086 = vshrl.u32 %v3085, 7
        %v3087 = vsub.s32 0, %v3086
        %v3088 = vrot.slane %v3083, %v3087
        %vm3090 = vcmask 523264
        %v3092 = vsel %vm3090, %v3074, 0
        %3094 = vmatprep.subr.mxu0 0.0
        %3095 = vmatpush1.msra.mxu0 %v3075
        %3096 = vmatprep.subr.mxu0 0.0
        %3097 = vmatpush1.msra.mxu0 %v3076
        %3098 = vmatprep.subr.mxu0 0.0
        %3099 = vmatpush1.msra.mxu0 %v3077
        %3100 = vmatprep.subr.mxu0 0.0
        %3101 = vmatpush1.msra.mxu0 %v3078
        %3102 = vmatprep.subr.mxu0 0.0
        %3103 = vmatpush1.msra.mxu0 %v3079
        %3104 = vmatprep.subr.mxu0 0.0
        %3105 = vmatpush1.msra.mxu0 %v3080
        %3106 = vmatprep.subr.mxu0 0.0
        %3107 = vmatpush1.msra.mxu0 %v3081
        %3108 = vmatprep.subr.mxu0 0.0
        %3109 = vmatpush1.msra.mxu0 %v3082
        %3110 = vmatprep.subr.mxu0 0.0
        %3111 = vmatpush1.msra.mxu0 0.0
        %3112 = vmatprep.subr.mxu0 0.0
        %3113 = vmatpush1.msra.mxu0 0.0
        %3114 = vmatprep.subr.mxu0 0.0
        %3115 = vmatpush1.msra.mxu0 0.0
        %3116 = vmatprep.subr.mxu0 0.0
        %3117 = vmatpush1.msra.mxu0 0.0
        %3118 = vmatprep.subr.mxu0 0.0
        %3119 = vmatpush1.msra.mxu0 0.0
        %3120 = vmatprep.subr.mxu0 0.0
        %3121 = vmatpush1.msra.mxu0 0.0
        %3122 = vmatprep.subr.mxu0 0.0
        %3123 = vmatpush1.msra.mxu0 0.0
        %3124 = vmatprep.subr.mxu0 0.0
        %3125 = vmatpush1.msra.mxu0 0.0
        %3126 = vmatprep.subr.mxu0 0.0
        %3127 = vmatpush1.msra.mxu0 0.0
        %3128 = vmatprep.subr.mxu0 0.0
        %3129 = vmatpush1.msra.mxu0 0.0
        %3130 = vmatprep.subr.mxu0 0.0
        %3131 = vmatpush1.msra.mxu0 0.0
        %3132 = vmatprep.subr.mxu0 0.0
        %3133 = vmatpush1.msra.mxu0 0.0
        %3134 = vmatprep.subr.mxu0 0.0
        %3135 = vmatpush1.msra.mxu0 0.0
        %3136 = vmatprep.subr.mxu0 0.0
        %3137 = vmatpush1.msra.mxu0 0.0
        %3138 = vmatprep.subr.mxu0 0.0
        %3139 = vmatpush1.msra.mxu0 0.0
        %3140 = vmatprep.subr.mxu0 0.0
        %3141 = vmatpush1.msra.mxu0 0.0
        %3142 = vmatprep.subr.mxu0 0.0
        %3143 = vmatpush1.msra.mxu0 0.0
        %3144 = vmatprep.subr.mxu0 0.0
        %3145 = vmatpush1.msra.mxu0 0.0
        %3146 = vmatprep.subr.mxu0 0.0
        %3147 = vmatpush1.msra.mxu0 0.0
        %3148 = vmatprep.subr.mxu0 0.0
        %3149 = vmatpush1.msra.mxu0 0.0
        %3150 = vmatprep.subr.mxu0 0.0
        %3151 = vmatpush1.msra.mxu0 0.0
        %3152 = vmatprep.subr.mxu0 0.0
        %3153 = vmatpush1.msra.mxu0 0.0
        %3154 = vmatprep.subr.mxu0 0.0
        %3155 = vmatpush1.msra.mxu0 0.0
        %3156 = vmatprep.subr.mxu0 0.0
        %3157 = vmatpush1.msra.mxu0 0.0
        %3158 = vmatprep.mubr.f32.mxu0 0.0
        %3159 = vmatmul.mubr.f32.gmra.mrb[0].mxu0 %v3092
        %v3160 = vpop.f32.mrb[0].mxu0
        %v3161 = vadd.f32 %v3088, %v3160
        %v3162 = vpop.f32.mrb[0].mxu0
        %3163 = vdwg.mxu0
        %s3164 = scalar_lea.vmem %s8, 64
        %v3165 = vld [vmem:[%s3164] sm:$0xff]
        %v3166 = vld [vmem:[%s3164 + $0x8] sm:$0xff]
        %v3167 = vld [vmem:[%s3164 + $0x10] sm:$0xff]
        %v3168 = vld [vmem:[%s3164 + $0x18] sm:$0xff]
        %v3169 = vld [vmem:[%s3164 + $0x20] sm:$0xff]
        %v3170 = vld [vmem:[%s3164 + $0x28] sm:$0xff]
        %v3171 = vld [vmem:[%s3164 + $0x30] sm:$0xff]
        %v3172 = vld [vmem:[%s3164 + $0x38] sm:$0xff]
        %s3173 = scalar_lea.vmem %s10, 1
        %v3174 = vld [vmem:[%s3173] sm:$0x1]
        %v3176 = vlaneseq
        %v3177 = vshrl.u32 %v3176, 7
        %v3178 = vsub.s32 0, %v3177
        %v3179 = vrot.slane %v3174, %v3178
        %3181 = vmatprep.subr.mxu0 0.0
        %3182 = vmatpush1.msra.mxu0 %v3165
        %3183 = vmatprep.subr.mxu0 0.0
        %3184 = vmatpush1.msra.mxu0 %v3166
        %3185 = vmatprep.subr.mxu0 0.0
        %3186 = vmatpush1.msra.mxu0 %v3167
        %3187 = vmatprep.subr.mxu0 0.0
        %3188 = vmatpush1.msra.mxu0 %v3168
        %3189 = vmatprep.subr.mxu0 0.0
        %3190 = vmatpush1.msra.mxu0 %v3169
        %3191 = vmatprep.subr.mxu0 0.0
        %3192 = vmatpush1.msra.mxu0 %v3170
        %3193 = vmatprep.subr.mxu0 0.0
        %3194 = vmatpush1.msra.mxu0 %v3171
        %3195 = vmatprep.subr.mxu0 0.0
        %3196 = vmatpush1.msra.mxu0 %v3172
        %3197 = vmatprep.subr.mxu0 0.0
        %3198 = vmatpush1.msra.mxu0 0.0
        %3199 = vmatprep.subr.mxu0 0.0
        %3200 = vmatpush1.msra.mxu0 0.0
        %3201 = vmatprep.subr.mxu0 0.0
        %3202 = vmatpush1.msra.mxu0 0.0
        %3203 = vmatprep.subr.mxu0 0.0
        %3204 = vmatpush1.msra.mxu0 0.0
        %3205 = vmatprep.subr.mxu0 0.0
        %3206 = vmatpush1.msra.mxu0 0.0
        %3207 = vmatprep.subr.mxu0 0.0
        %3208 = vmatpush1.msra.mxu0 0.0
        %3209 = vmatprep.subr.mxu0 0.0
        %3210 = vmatpush1.msra.mxu0 0.0
        %3211 = vmatprep.subr.mxu0 0.0
        %3212 = vmatpush1.msra.mxu0 0.0
        %3213 = vmatprep.subr.mxu0 0.0
        %3214 = vmatpush1.msra.mxu0 0.0
        %3215 = vmatprep.subr.mxu0 0.0
        %3216 = vmatpush1.msra.mxu0 0.0
        %3217 = vmatprep.subr.mxu0 0.0
        %3218 = vmatpush1.msra.mxu0 0.0
        %3219 = vmatprep.subr.mxu0 0.0
        %3220 = vmatpush1.msra.mxu0 0.0
        %3221 = vmatprep.subr.mxu0 0.0
        %3222 = vmatpush1.msra.mxu0 0.0
        %3223 = vmatprep.subr.mxu0 0.0
        %3224 = vmatpush1.msra.mxu0 0.0
        %3225 = vmatprep.subr.mxu0 0.0
        %3226 = vmatpush1.msra.mxu0 0.0
        %3227 = vmatprep.subr.mxu0 0.0
        %3228 = vmatpush1.msra.mxu0 0.0
        %3229 = vmatprep.subr.mxu0 0.0
        %3230 = vmatpush1.msra.mxu0 0.0
        %3231 = vmatprep.subr.mxu0 0.0
        %3232 = vmatpush1.msra.mxu0 0.0
        %3233 = vmatprep.subr.mxu0 0.0
        %3234 = vmatpush1.msra.mxu0 0.0
        %3235 = vmatprep.subr.mxu0 0.0
        %3236 = vmatpush1.msra.mxu0 0.0
        %3237 = vmatprep.subr.mxu0 0.0
        %3238 = vmatpush1.msra.mxu0 0.0
        %3239 = vmatprep.subr.mxu0 0.0
        %3240 = vmatpush1.msra.mxu0 0.0
        %3241 = vmatprep.subr.mxu0 0.0
        %3242 = vmatpush1.msra.mxu0 0.0
        %3243 = vmatprep.subr.mxu0 0.0
        %3244 = vmatpush1.msra.mxu0 0.0
        %3245 = vmatprep.mubr.f32.mxu0 0.0
        %3246 = vmatmul.mubr.f32.gmra.mrb[0].mxu0 %v3092
        %v3247 = vpop.f32.mrb[0].mxu0
        %v3248 = vadd.f32 %v3179, %v3247
        %v3249 = vpop.f32.mrb[0].mxu0
        %3250 = vdwg.mxu0
        %v3251 = vld [vmem:[%s9] sm:$0xff]
        %v3252 = vld [vmem:[%s9 + $0x8] sm:$0xff]
        %v3253 = vld [vmem:[%s9 + $0x10] sm:$0xff]
        %v3254 = vld [vmem:[%s9 + $0x18] sm:$0xff]
        %s3255 = scalar_lea.vmem %s9, 32
        %v3256 = vld [vmem:[%s3255] sm:$0xff]
        %v3257 = vld [vmem:[%s3255 + $0x8] sm:$0xff]
        %v3258 = vld [vmem:[%s3255 + $0x10] sm:$0xff]
        %v3259 = vld [vmem:[%s3255 + $0x18] sm:$0xff]
        %3260 = vmatprep.subr.mxu0 0.0
        %3261 = vmatpush1.msra.mxu0 %v3251
        %3262 = vmatprep.subr.mxu0 0.0
        %3263 = vmatpush1.msra.mxu0 %v3252
        %3264 = vmatprep.subr.mxu0 0.0
        %3265 = vmatpush1.msra.mxu0 %v3253
        %3266 = vmatprep.subr.mxu0 0.0
        %3267 = vmatpush1.msra.mxu0 %v3254
        %3268 = vmatprep.subr.mxu0 0.0
        %3269 = vmatpush1.msra.mxu0 0.0
        %3270 = vmatprep.subr.mxu0 0.0
        %3271 = vmatpush1.msra.mxu0 0.0
        %3272 = vmatprep.subr.mxu0 0.0
        %3273 = vmatpush1.msra.mxu0 0.0
        %3274 = vmatprep.subr.mxu0 0.0
        %3275 = vmatpush1.msra.mxu0 0.0
        %3276 = vmatprep.subr.mxu0 0.0
        %3277 = vmatpush1.msra.mxu0 0.0
        %3278 = vmatprep.subr.mxu0 0.0
        %3279 = vmatpush1.msra.mxu0 0.0
        %3280 = vmatprep.subr.mxu0 0.0
        %3281 = vmatpush1.msra.mxu0 0.0
        %3282 = vmatprep.subr.mxu0 0.0
        %3283 = vmatpush1.msra.mxu0 0.0
        %3284 = vmatprep.subr.mxu0 0.0
        %3285 = vmatpush1.msra.mxu0 0.0
        %3286 = vmatprep.subr.mxu0 0.0
        %3287 = vmatpush1.msra.mxu0 0.0
        %3288 = vmatprep.subr.mxu0 0.0
        %3289 = vmatpush1.msra.mxu0 0.0
        %3290 = vmatprep.subr.mxu0 0.0
        %3291 = vmatpush1.msra.mxu0 0.0
        %3292 = vmatprep.subr.mxu0 0.0
        %3293 = vmatpush1.msra.mxu0 0.0
        %3294 = vmatprep.subr.mxu0 0.0
        %3295 = vmatpush1.msra.mxu0 0.0
        %3296 = vmatprep.subr.mxu0 0.0
        %3297 = vmatpush1.msra.mxu0 0.0
        %3298 = vmatprep.subr.mxu0 0.0
        %3299 = vmatpush1.msra.mxu0 0.0
        %3300 = vmatprep.subr.mxu0 0.0
        %3301 = vmatpush1.msra.mxu0 0.0
        %3302 = vmatprep.subr.mxu0 0.0
        %3303 = vmatpush1.msra.mxu0 0.0
        %3304 = vmatprep.subr.mxu0 0.0
        %3305 = vmatpush1.msra.mxu0 0.0
        %3306 = vmatprep.subr.mxu0 0.0
        %3307 = vmatpush1.msra.mxu0 0.0
        %3308 = vmatprep.subr.mxu0 0.0
        %3309 = vmatpush1.msra.mxu0 0.0
        %3310 = vmatprep.subr.mxu0 0.0
        %3311 = vmatpush1.msra.mxu0 0.0
        %3312 = vmatprep.subr.mxu0 0.0
        %3313 = vmatpush1.msra.mxu0 0.0
        %3314 = vmatprep.subr.mxu0 0.0
        %3315 = vmatpush1.msra.mxu0 0.0
        %3316 = vmatprep.subr.mxu0 0.0
        %3317 = vmatpush1.msra.mxu0 0.0
        %3318 = vmatprep.subr.mxu0 0.0
        %3319 = vmatpush1.msra.mxu0 0.0
        %3320 = vmatprep.subr.mxu0 0.0
        %3321 = vmatpush1.msra.mxu0 0.0
        %3322 = vmatprep.subr.mxu0 0.0
        %3323 = vmatpush1.msra.mxu0 0.0
        %3324 = vmatprep.mubr.f32.mxu0 0.0
        %3325 = vmatmul.mubr.f32.gmra.mrb[0].mxu0 %v1390
        %v3326 = vpop.f32.mrb[0].mxu0
        %v3327 = vadd.f32 0.0, %v3326
        %v3328 = vpop.f32.mrb[0].mxu0
        %3329 = vdwg.mxu0
        %v3330 = vadd.f32 %v3161, %v3327
        %3331 = vmatprep.subr.mxu0 0.0
        %3332 = vmatpush1.msra.mxu0 %v3256
        %3333 = vmatprep.subr.mxu0 0.0
        %3334 = vmatpush1.msra.mxu0 %v3257
        %3335 = vmatprep.subr.mxu0 0.0
        %3336 = vmatpush1.msra.mxu0 %v3258
        %3337 = vmatprep.subr.mxu0 0.0
        %3338 = vmatpush1.msra.mxu0 %v3259
        %3339 = vmatprep.subr.mxu0 0.0
        %3340 = vmatpush1.msra.mxu0 0.0
        %3341 = vmatprep.subr.mxu0 0.0
        %3342 = vmatpush1.msra.mxu0 0.0
        %3343 = vmatprep.subr.mxu0 0.0
        %3344 = vmatpush1.msra.mxu0 0.0
        %3345 = vmatprep.subr.mxu0 0.0
        %3346 = vmatpush1.msra.mxu0 0.0
        %3347 = vmatprep.subr.mxu0 0.0
        %3348 = vmatpush1.msra.mxu0 0.0
        %3349 = vmatprep.subr.mxu0 0.0
        %3350 = vmatpush1.msra.mxu0 0.0
        %3351 = vmatprep.subr.mxu0 0.0
        %3352 = vmatpush1.msra.mxu0 0.0
        %3353 = vmatprep.subr.mxu0 0.0
        %3354 = vmatpush1.msra.mxu0 0.0
        %3355 = vmatprep.subr.mxu0 0.0
        %3356 = vmatpush1.msra.mxu0 0.0
        %3357 = vmatprep.subr.mxu0 0.0
        %3358 = vmatpush1.msra.mxu0 0.0
        %3359 = vmatprep.subr.mxu0 0.0
        %3360 = vmatpush1.msra.mxu0 0.0
        %3361 = vmatprep.subr.mxu0 0.0
        %3362 = vmatpush1.msra.mxu0 0.0
        %3363 = vmatprep.subr.mxu0 0.0
        %3364 = vmatpush1.msra.mxu0 0.0
        %3365 = vmatprep.subr.mxu0 0.0
        %3366 = vmatpush1.msra.mxu0 0.0
        %3367 = vmatprep.subr.mxu0 0.0
        %3368 = vmatpush1.msra.mxu0 0.0
        %3369 = vmatprep.subr.mxu0 0.0
        %3370 = vmatpush1.msra.mxu0 0.0
        %3371 = vmatprep.subr.mxu0 0.0
        %3372 = vmatpush1.msra.mxu0 0.0
        %3373 = vmatprep.subr.mxu0 0.0
        %3374 = vmatpush1.msra.mxu0 0.0
        %3375 = vmatprep.subr.mxu0 0.0
        %3376 = vmatpush1.msra.mxu0 0.0
        %3377 = vmatprep.subr.mxu0 0.0
        %3378 = vmatpush1.msra.mxu0 0.0
        %3379 = vmatprep.subr.mxu0 0.0
        %3380 = vmatpush1.msra.mxu0 0.0
        %3381 = vmatprep.subr.mxu0 0.0
        %3382 = vmatpush1.msra.mxu0 0.0
        %3383 = vmatprep.subr.mxu0 0.0
        %3384 = vmatpush1.msra.mxu0 0.0
        %3385 = vmatprep.subr.mxu0 0.0
        %3386 = vmatpush1.msra.mxu0 0.0
        %3387 = vmatprep.subr.mxu0 0.0
        %3388 = vmatpush1.msra.mxu0 0.0
        %3389 = vmatprep.subr.mxu0 0.0
        %3390 = vmatpush1.msra.mxu0 0.0
        %3391 = vmatprep.subr.mxu0 0.0
        %3392 = vmatpush1.msra.mxu0 0.0
        %3393 = vmatprep.subr.mxu0 0.0
        %3394 = vmatpush1.msra.mxu0 0.0
        %3395 = vmatprep.mubr.f32.mxu0 0.0
        %3396 = vmatmul.mubr.f32.gmra.mrb[0].mxu0 %v1390
        %v3397 = vpop.f32.mrb[0].mxu0
        %v3398 = vadd.f32 0.0, %v3397
        %v3399 = vpop.f32.mrb[0].mxu0
        %3400 = vdwg.mxu0
        %v3402 = vrot.slane %v3398, 1
        %v3404 = vadd.f32 %v3248, %v3402
        %v3405 = vmul.f32 %v3330, 0.5
        %v3406 = vtanh.pop %v3405
        %v3407 = vmul.f32 %v3406, 0.5
        %v3408 = vadd.f32 %v3407, 0.5
        %v3409 = vtanh.pop %v3330
        %v3410 = vmul.f32 %v3408, 0.0
        %3412 = vrot.lane.b32.xlu0 %v3409, 32
        %v3413 = vpop.permute.xlu0 %3412
        %v3415 = vmul.f32 %v3408, %v3413
        %3417 = vrot.lane.b32.xlu0 %v3415, 32
        %v3418 = vpop.permute.xlu0 %3417
        %v3420 = vadd.f32 %v3410, %v3418
        %v3421 = vtanh.pop %v3420
        %3423 = vrot.lane.b32.xlu0 %v3421, 32
        %v3424 = vpop.permute.xlu0 %3423
        %v3426 = vmul.f32 %v3408, %v3424
        %v3427 = vmul.f32 %v3404, 0.5
        %v3428 = vtanh.pop %v3427
        %v3429 = vmul.f32 %v3428, 0.5
        %v3430 = vadd.f32 %v3429, 0.5
        %v3431 = vtanh.pop %v3404
        %v3432 = vmul.f32 %v3430, 0.0
        %3434 = vrot.lane.b32.xlu0 %v3431, 32
        %v3435 = vpop.permute.xlu0 %3434
        %v3437 = vmul.f32 %v3430, %v3435
        %3439 = vrot.lane.b32.xlu0 %v3437, 32
        %v3440 = vpop.permute.xlu0 %3439
        %v3442 = vadd.f32 %v3432, %v3440
        %v3443 = vtanh.pop %v3442
        %3445 = vrot.lane.b32.xlu0 %v3443, 32
        %v3446 = vpop.permute.xlu0 %3445
        %v3448 = vmul.f32 %v3430, %v3446
        %3450 = vrot.lane.b32.xlu0 %v3426, 64
        %v3451 = vpop.permute.xlu0 %3450
        %v3452 = vsel %vm728, %v3451, 0
        %3454 = vmatprep.subr.mxu0 0.0
        %3455 = vmatpush1.msra.mxu0 %v3251
        %3456 = vmatprep.subr.mxu0 0.0
        %3457 = vmatpush1.msra.mxu0 %v3252
        %3458 = vmatprep.subr.mxu0 0.0
        %3459 = vmatpush1.msra.mxu0 %v3253
        %3460 = vmatprep.subr.mxu0 0.0
        %3461 = vmatpush1.msra.mxu0 %v3254
        %3462 = vmatprep.subr.mxu0 0.0
        %3463 = vmatpush1.msra.mxu0 0.0
        %3464 = vmatprep.subr.mxu0 0.0
        %3465 = vmatpush1.msra.mxu0 0.0
        %3466 = vmatprep.subr.mxu0 0.0
        %3467 = vmatpush1.msra.mxu0 0.0
        %3468 = vmatprep.subr.mxu0 0.0
        %3469 = vmatpush1.msra.mxu0 0.0
        %3470 = vmatprep.subr.mxu0 0.0
        %3471 = vmatpush1.msra.mxu0 0.0
        %3472 = vmatprep.subr.mxu0 0.0
        %3473 = vmatpush1.msra.mxu0 0.0
        %3474 = vmatprep.subr.mxu0 0.0
        %3475 = vmatpush1.msra.mxu0 0.0
        %3476 = vmatprep.subr.mxu0 0.0
        %3477 = vmatpush1.msra.mxu0 0.0
        %3478 = vmatprep.subr.mxu0 0.0
        %3479 = vmatpush1.msra.mxu0 0.0
        %3480 = vmatprep.subr.mxu0 0.0
        %3481 = vmatpush1.msra.mxu0 0.0
        %3482 = vmatprep.subr.mxu0 0.0
        %3483 = vmatpush1.msra.mxu0 0.0
        %3484 = vmatprep.subr.mxu0 0.0
        %3485 = vmatpush1.msra.mxu0 0.0
        %3486 = vmatprep.subr.mxu0 0.0
        %3487 = vmatpush1.msra.mxu0 0.0
        %3488 = vmatprep.subr.mxu0 0.0
        %3489 = vmatpush1.msra.mxu0 0.0
        %3490 = vmatprep.subr.mxu0 0.0
        %3491 = vmatpush1.msra.mxu0 0.0
        %3492 = vmatprep.subr.mxu0 0.0
        %3493 = vmatpush1.msra.mxu0 0.0
        %3494 = vmatprep.subr.mxu0 0.0
        %3495 = vmatpush1.msra.mxu0 0.0
        %3496 = vmatprep.subr.mxu0 0.0
        %3497 = vmatpush1.msra.mxu0 0.0
        %3498 = vmatprep.subr.mxu0 0.0
        %3499 = vmatpush1.msra.mxu0 0.0
        %3500 = vmatprep.subr.mxu0 0.0
        %3501 = vmatpush1.msra.mxu0 0.0
        %3502 = vmatprep.subr.mxu0 0.0
        %3503 = vmatpush1.msra.mxu0 0.0
        %3504 = vmatprep.subr.mxu0 0.0
        %3505 = vmatpush1.msra.mxu0 0.0
        %3506 = vmatprep.subr.mxu0 0.0
        %3507 = vmatpush1.msra.mxu0 0.0
        %3508 = vmatprep.subr.mxu0 0.0
        %3509 = vmatpush1.msra.mxu0 0.0
        %3510 = vmatprep.subr.mxu0 0.0
        %3511 = vmatpush1.msra.mxu0 0.0
        %3512 = vmatprep.subr.mxu0 0.0
        %3513 = vmatpush1.msra.mxu0 0.0
        %3514 = vmatprep.subr.mxu0 0.0
        %3515 = vmatpush1.msra.mxu0 0.0
        %3516 = vmatprep.subr.mxu0 0.0
        %3517 = vmatpush1.msra.mxu0 0.0
        %3518 = vmatprep.mubr.f32.mxu0 0.0
        %3519 = vmatmul.mubr.f32.gmra.mrb[0].mxu0 %v3452
        %v3520 = vpop.f32.mrb[0].mxu0
        %v3521 = vadd.f32 0.0, %v3520
        %v3522 = vpop.f32.mrb[0].mxu0
        %3523 = vdwg.mxu0
        %v3525 = vrot.slane %v3521, 7
        %v3527 = vadd.f32 %v3161, %v3525
        %v3529 = vrot.slane %v3448, 7
        %3530 = vrot.lane.b32.xlu0 %v3529, 64
        %v3531 = vpop.permute.xlu0 %3530
        %v3532 = vsel %vm728, %v3531, 0
        %3534 = vmatprep.subr.mxu0 0.0
        %3535 = vmatpush1.msra.mxu0 %v3256
        %3536 = vmatprep.subr.mxu0 0.0
        %3537 = vmatpush1.msra.mxu0 %v3257
        %3538 = vmatprep.subr.mxu0 0.0
        %3539 = vmatpush1.msra.mxu0 %v3258
        %3540 = vmatprep.subr.mxu0 0.0
        %3541 = vmatpush1.msra.mxu0 %v3259
        %3542 = vmatprep.subr.mxu0 0.0
        %3543 = vmatpush1.msra.mxu0 0.0
        %3544 = vmatprep.subr.mxu0 0.0
        %3545 = vmatpush1.msra.mxu0 0.0
        %3546 = vmatprep.subr.mxu0 0.0
        %3547 = vmatpush1.msra.mxu0 0.0
        %3548 = vmatprep.subr.mxu0 0.0
        %3549 = vmatpush1.msra.mxu0 0.0
        %3550 = vmatprep.subr.mxu0 0.0
        %3551 = vmatpush1.msra.mxu0 0.0
        %3552 = vmatprep.subr.mxu0 0.0
        %3553 = vmatpush1.msra.mxu0 0.0
        %3554 = vmatprep.subr.mxu0 0.0
        %3555 = vmatpush1.msra.mxu0 0.0
        %3556 = vmatprep.subr.mxu0 0.0
        %3557 = vmatpush1.msra.mxu0 0.0
        %3558 = vmatprep.subr.mxu0 0.0
        %3559 = vmatpush1.msra.mxu0 0.0
        %3560 = vmatprep.subr.mxu0 0.0
        %3561 = vmatpush1.msra.mxu0 0.0
        %3562 = vmatprep.subr.mxu0 0.0
        %3563 = vmatpush1.msra.mxu0 0.0
        %3564 = vmatprep.subr.mxu0 0.0
        %3565 = vmatpush1.msra.mxu0 0.0
        %3566 = vmatprep.subr.mxu0 0.0
        %3567 = vmatpush1.msra.mxu0 0.0
        %3568 = vmatprep.subr.mxu0 0.0
        %3569 = vmatpush1.msra.mxu0 0.0
        %3570 = vmatprep.subr.mxu0 0.0
        %3571 = vmatpush1.msra.mxu0 0.0
        %3572 = vmatprep.subr.mxu0 0.0
        %3573 = vmatpush1.msra.mxu0 0.0
        %3574 = vmatprep.subr.mxu0 0.0
        %3575 = vmatpush1.msra.mxu0 0.0
        %3576 = vmatprep.subr.mxu0 0.0
        %3577 = vmatpush1.msra.mxu0 0.0
        %3578 = vmatprep.subr.mxu0 0.0
        %3579 = vmatpush1.msra.mxu0 0.0
        %3580 = vmatprep.subr.mxu0 0.0
        %3581 = vmatpush1.msra.mxu0 0.0
        %3582 = vmatprep.subr.mxu0 0.0
        %3583 = vmatpush1.msra.mxu0 0.0
        %3584 = vmatprep.subr.mxu0 0.0
        %3585 = vmatpush1.msra.mxu0 0.0
        %3586 = vmatprep.subr.mxu0 0.0
        %3587 = vmatpush1.msra.mxu0 0.0
        %3588 = vmatprep.subr.mxu0 0.0
        %3589 = vmatpush1.msra.mxu0 0.0
        %3590 = vmatprep.subr.mxu0 0.0
        %3591 = vmatpush1.msra.mxu0 0.0
        %3592 = vmatprep.subr.mxu0 0.0
        %3593 = vmatpush1.msra.mxu0 0.0
        %3594 = vmatprep.subr.mxu0 0.0
        %3595 = vmatpush1.msra.mxu0 0.0
        %3596 = vmatprep.subr.mxu0 0.0
        %3597 = vmatpush1.msra.mxu0 0.0
        %3598 = vmatprep.mubr.f32.mxu0 0.0
        %3599 = vmatmul.mubr.f32.gmra.mrb[0].mxu0 %v3532
        %v3600 = vpop.f32.mrb[0].mxu0
        %v3601 = vadd.f32 0.0, %v3600
        %v3602 = vpop.f32.mrb[0].mxu0
        %3603 = vdwg.mxu0
        %v3605 = vrot.slane %v3601, 2
        %v3607 = vadd.f32 %v3248, %v3605
        %v3608 = vmul.f32 %v3527, 0.5
        %v3609 = vtanh.pop %v3608
        %v3610 = vmul.f32 %v3609, 0.5
        %v3611 = vadd.f32 %v3610, 0.5
        %v3612 = vtanh.pop %v3527
        %v3614 = vrot.slane %v3420, 7
        %v3616 = vmul.f32 %v3611, %v3614
        %3618 = vrot.lane.b32.xlu0 %v3612, 32
        %v3619 = vpop.permute.xlu0 %3618
        %v3621 = vmul.f32 %v3611, %v3619
        %3623 = vrot.lane.b32.xlu0 %v3621, 32
        %v3624 = vpop.permute.xlu0 %3623
        %v3626 = vadd.f32 %v3616, %v3624
        %v3627 = vtanh.pop %v3626
        %3629 = vrot.lane.b32.xlu0 %v3627, 32
        %v3630 = vpop.permute.xlu0 %3629
        %v3632 = vmul.f32 %v3611, %v3630
        %v3633 = vmul.f32 %v3607, 0.5
        %v3634 = vtanh.pop %v3633
        %v3635 = vmul.f32 %v3634, 0.5
        %v3636 = vadd.f32 %v3635, 0.5
        %v3637 = vtanh.pop %v3607
        %v3639 = vrot.slane %v3442, 1
        %v3641 = vmul.f32 %v3636, %v3639
        %3643 = vrot.lane.b32.xlu0 %v3637, 32
        %v3644 = vpop.permute.xlu0 %3643
        %v3646 = vmul.f32 %v3636, %v3644
        %3648 = vrot.lane.b32.xlu0 %v3646, 32
        %v3649 = vpop.permute.xlu0 %3648
        %v3651 = vadd.f32 %v3641, %v3649
        %v3652 = vtanh.pop %v3651
        %3654 = vrot.lane.b32.xlu0 %v3652, 32
        %v3655 = vpop.permute.xlu0 %3654
        %v3657 = vmul.f32 %v3636, %v3655
        %v3659 = vrot.slane %v3632, 1
        %3660 = vrot.lane.b32.xlu0 %v3659, 64
        %v3661 = vpop.permute.xlu0 %3660
        %v3662 = vsel %vm728, %v3661, 0
        %3664 = vmatprep.subr.mxu0 0.0
        %3665 = vmatpush1.msra.mxu0 %v3251
        %3666 = vmatprep.subr.mxu0 0.0
        %3667 = vmatpush1.msra.mxu0 %v3252
        %3668 = vmatprep.subr.mxu0 0.0
        %3669 = vmatpush1.msra.mxu0 %v3253
        %3670 = vmatprep.subr.mxu0 0.0
        %3671 = vmatpush1.msra.mxu0 %v3254
        %3672 = vmatprep.subr.mxu0 0.0
        %3673 = vmatpush1.msra.mxu0 0.0
        %3674 = vmatprep.subr.mxu0 0.0
        %3675 = vmatpush1.msra.mxu0 0.0
        %3676 = vmatprep.subr.mxu0 0.0
        %3677 = vmatpush1.msra.mxu0 0.0
        %3678 = vmatprep.subr.mxu0 0.0
        %3679 = vmatpush1.msra.mxu0 0.0
        %3680 = vmatprep.subr.mxu0 0.0
        %3681 = vmatpush1.msra.mxu0 0.0
        %3682 = vmatprep.subr.mxu0 0.0
        %3683 = vmatpush1.msra.mxu0 0.0
        %3684 = vmatprep.subr.mxu0 0.0
        %3685 = vmatpush1.msra.mxu0 0.0
        %3686 = vmatprep.subr.mxu0 0.0
        %3687 = vmatpush1.msra.mxu0 0.0
        %3688 = vmatprep.subr.mxu0 0.0
        %3689 = vmatpush1.msra.mxu0 0.0
        %3690 = vmatprep.subr.mxu0 0.0
        %3691 = vmatpush1.msra.mxu0 0.0
        %3692 = vmatprep.subr.mxu0 0.0
        %3693 = vmatpush1.msra.mxu0 0.0
        %3694 = vmatprep.subr.mxu0 0.0
        %3695 = vmatpush1.msra.mxu0 0.0
        %3696 = vmatprep.subr.mxu0 0.0
        %3697 = vmatpush1.msra.mxu0 0.0
        %3698 = vmatprep.subr.mxu0 0.0
        %3699 = vmatpush1.msra.mxu0 0.0
        %3700 = vmatprep.subr.mxu0 0.0
        %3701 = vmatpush1.msra.mxu0 0.0
        %3702 = vmatprep.subr.mxu0 0.0
        %3703 = vmatpush1.msra.mxu0 0.0
        %3704 = vmatprep.subr.mxu0 0.0
        %3705 = vmatpush1.msra.mxu0 0.0
        %3706 = vmatprep.subr.mxu0 0.0
        %3707 = vmatpush1.msra.mxu0 0.0
        %3708 = vmatprep.subr.mxu0 0.0
        %3709 = vmatpush1.msra.mxu0 0.0
        %3710 = vmatprep.subr.mxu0 0.0
        %3711 = vmatpush1.msra.mxu0 0.0
        %3712 = vmatprep.subr.mxu0 0.0
        %3713 = vmatpush1.msra.mxu0 0.0
        %3714 = vmatprep.subr.mxu0 0.0
        %3715 = vmatpush1.msra.mxu0 0.0
        %3716 = vmatprep.subr.mxu0 0.0
        %3717 = vmatpush1.msra.mxu0 0.0
        %3718 = vmatprep.subr.mxu0 0.0
        %3719 = vmatpush1.msra.mxu0 0.0
        %3720 = vmatprep.subr.mxu0 0.0
        %3721 = vmatpush1.msra.mxu0 0.0
        %3722 = vmatprep.subr.mxu0 0.0
        %3723 = vmatpush1.msra.mxu0 0.0
        %3724 = vmatprep.subr.mxu0 0.0
        %3725 = vmatpush1.msra.mxu0 0.0
        %3726 = vmatprep.subr.mxu0 0.0
        %3727 = vmatpush1.msra.mxu0 0.0
        %3728 = vmatprep.mubr.f32.mxu0 0.0
        %3729 = vmatmul.mubr.f32.gmra.mrb[0].mxu0 %v3662
        %v3730 = vpop.f32.mrb[0].mxu0
        %v3731 = vadd.f32 0.0, %v3730
        %v3732 = vpop.f32.mrb[0].mxu0
        %3733 = vdwg.mxu0
        %v3735 = vrot.slane %v3731, 6
        %v3737 = vadd.f32 %v3161, %v3735
        %v3739 = vrot.slane %v3657, 6
        %3740 = vrot.lane.b32.xlu0 %v3739, 64
        %v3741 = vpop.permute.xlu0 %3740
        %v3742 = vsel %vm728, %v3741, 0
        %3744 = vmatprep.subr.mxu0 0.0
        %3745 = vmatpush1.msra.mxu0 %v3256
        %3746 = vmatprep.subr.mxu0 0.0
        %3747 = vmatpush1.msra.mxu0 %v3257
        %3748 = vmatprep.subr.mxu0 0.0
        %3749 = vmatpush1.msra.mxu0 %v3258
        %3750 = vmatprep.subr.mxu0 0.0
        %3751 = vmatpush1.msra.mxu0 %v3259
        %3752 = vmatprep.subr.mxu0 0.0
        %3753 = vmatpush1.msra.mxu0 0.0
        %3754 = vmatprep.subr.mxu0 0.0
        %3755 = vmatpush1.msra.mxu0 0.0
        %3756 = vmatprep.subr.mxu0 0.0
        %3757 = vmatpush1.msra.mxu0 0.0
        %3758 = vmatprep.subr.mxu0 0.0
        %3759 = vmatpush1.msra.mxu0 0.0
        %3760 = vmatprep.subr.mxu0 0.0
        %3761 = vmatpush1.msra.mxu0 0.0
        %3762 = vmatprep.subr.mxu0 0.0
        %3763 = vmatpush1.msra.mxu0 0.0
        %3764 = vmatprep.subr.mxu0 0.0
        %3765 = vmatpush1.msra.mxu0 0.0
        %3766 = vmatprep.subr.mxu0 0.0
        %3767 = vmatpush1.msra.mxu0 0.0
        %3768 = vmatprep.subr.mxu0 0.0
        %3769 = vmatpush1.msra.mxu0 0.0
        %3770 = vmatprep.subr.mxu0 0.0
        %3771 = vmatpush1.msra.mxu0 0.0
        %3772 = vmatprep.subr.mxu0 0.0
        %3773 = vmatpush1.msra.mxu0 0.0
        %3774 = vmatprep.subr.mxu0 0.0
        %3775 = vmatpush1.msra.mxu0 0.0
        %3776 = vmatprep.subr.mxu0 0.0
        %3777 = vmatpush1.msra.mxu0 0.0
        %3778 = vmatprep.subr.mxu0 0.0
        %3779 = vmatpush1.msra.mxu0 0.0
        %3780 = vmatprep.subr.mxu0 0.0
        %3781 = vmatpush1.msra.mxu0 0.0
        %3782 = vmatprep.subr.mxu0 0.0
        %3783 = vmatpush1.msra.mxu0 0.0
        %3784 = vmatprep.subr.mxu0 0.0
        %3785 = vmatpush1.msra.mxu0 0.0
        %3786 = vmatprep.subr.mxu0 0.0
        %3787 = vmatpush1.msra.mxu0 0.0
        %3788 = vmatprep.subr.mxu0 0.0
        %3789 = vmatpush1.msra.mxu0 0.0
        %3790 = vmatprep.subr.mxu0 0.0
        %3791 = vmatpush1.msra.mxu0 0.0
        %3792 = vmatprep.subr.mxu0 0.0
        %3793 = vmatpush1.msra.mxu0 0.0
        %3794 = vmatprep.subr.mxu0 0.0
        %3795 = vmatpush1.msra.mxu0 0.0
        %3796 = vmatprep.subr.mxu0 0.0
        %3797 = vmatpush1.msra.mxu0 0.0
        %3798 = vmatprep.subr.mxu0 0.0
        %3799 = vmatpush1.msra.mxu0 0.0
        %3800 = vmatprep.subr.mxu0 0.0
        %3801 = vmatpush1.msra.mxu0 0.0
        %3802 = vmatprep.subr.mxu0 0.0
        %3803 = vmatpush1.msra.mxu0 0.0
        %3804 = vmatprep.subr.mxu0 0.0
        %3805 = vmatpush1.msra.mxu0 0.0
        %3806 = vmatprep.subr.mxu0 0.0
        %3807 = vmatpush1.msra.mxu0 0.0
        %3808 = vmatprep.mubr.f32.mxu0 0.0
        %3809 = vmatmul.mubr.f32.gmra.mrb[0].mxu0 %v3742
        %v3810 = vpop.f32.mrb[0].mxu0
        %v3811 = vadd.f32 0.0, %v3810
        %v3812 = vpop.f32.mrb[0].mxu0
        %3813 = vdwg.mxu0
        %v3815 = vrot.slane %v3811, 3
        %v3817 = vadd.f32 %v3248, %v3815
        %v3818 = vmul.f32 %v3737, 0.5
        %v3819 = vtanh.pop %v3818
        %v3820 = vmul.f32 %v3819, 0.5
        %v3821 = vadd.f32 %v3820, 0.5
        %v3822 = vtanh.pop %v3737
        %v3824 = vrot.slane %v3626, 7
        %v3826 = vmul.f32 %v3821, %v3824
        %3828 = vrot.lane.b32.xlu0 %v3822, 32
        %v3829 = vpop.permute.xlu0 %3828
        %v3831 = vmul.f32 %v3821, %v3829
        %3833 = vrot.lane.b32.xlu0 %v3831, 32
        %v3834 = vpop.permute.xlu0 %3833
        %v3836 = vadd.f32 %v3826, %v3834
        %v3837 = vtanh.pop %v3836
        %3839 = vrot.lane.b32.xlu0 %v3837, 32
        %v3840 = vpop.permute.xlu0 %3839
        %v3842 = vmul.f32 %v3821, %v3840
        %v3843 = vmul.f32 %v3817, 0.5
        %v3844 = vtanh.pop %v3843
        %v3845 = vmul.f32 %v3844, 0.5
        %v3846 = vadd.f32 %v3845, 0.5
        %v3847 = vtanh.pop %v3817
        %v3849 = vrot.slane %v3651, 1
        %v3851 = vmul.f32 %v3846, %v3849
        %3853 = vrot.lane.b32.xlu0 %v3847, 32
        %v3854 = vpop.permute.xlu0 %3853
        %v3856 = vmul.f32 %v3846, %v3854
        %3858 = vrot.lane.b32.xlu0 %v3856, 32
        %v3859 = vpop.permute.xlu0 %3858
        %v3861 = vadd.f32 %v3851, %v3859
        %v3862 = vtanh.pop %v3861
        %3864 = vrot.lane.b32.xlu0 %v3862, 32
        %v3865 = vpop.permute.xlu0 %3864
        %v3867 = vmul.f32 %v3846, %v3865
        %v3869 = vrot.slane %v3842, 2
        %3870 = vrot.lane.b32.xlu0 %v3869, 64
        %v3871 = vpop.permute.xlu0 %3870
        %v3872 = vsel %vm728, %v3871, 0
        %3874 = vmatprep.subr.mxu0 0.0
        %3875 = vmatpush1.msra.mxu0 %v3251
        %3876 = vmatprep.subr.mxu0 0.0
        %3877 = vmatpush1.msra.mxu0 %v3252
        %3878 = vmatprep.subr.mxu0 0.0
        %3879 = vmatpush1.msra.mxu0 %v3253
        %3880 = vmatprep.subr.mxu0 0.0
        %3881 = vmatpush1.msra.mxu0 %v3254
        %3882 = vmatprep.subr.mxu0 0.0
        %3883 = vmatpush1.msra.mxu0 0.0
        %3884 = vmatprep.subr.mxu0 0.0
        %3885 = vmatpush1.msra.mxu0 0.0
        %3886 = vmatprep.subr.mxu0 0.0
        %3887 = vmatpush1.msra.mxu0 0.0
        %3888 = vmatprep.subr.mxu0 0.0
        %3889 = vmatpush1.msra.mxu0 0.0
        %3890 = vmatprep.subr.mxu0 0.0
        %3891 = vmatpush1.msra.mxu0 0.0
        %3892 = vmatprep.subr.mxu0 0.0
        %3893 = vmatpush1.msra.mxu0 0.0
        %3894 = vmatprep.subr.mxu0 0.0
        %3895 = vmatpush1.msra.mxu0 0.0
        %3896 = vmatprep.subr.mxu0 0.0
        %3897 = vmatpush1.msra.mxu0 0.0
        %3898 = vmatprep.subr.mxu0 0.0
        %3899 = vmatpush1.msra.mxu0 0.0
        %3900 = vmatprep.subr.mxu0 0.0
        %3901 = vmatpush1.msra.mxu0 0.0
        %3902 = vmatprep.subr.mxu0 0.0
        %3903 = vmatpush1.msra.mxu0 0.0
        %3904 = vmatprep.subr.mxu0 0.0
        %3905 = vmatpush1.msra.mxu0 0.0
        %3906 = vmatprep.subr.mxu0 0.0
        %3907 = vmatpush1.msra.mxu0 0.0
        %3908 = vmatprep.subr.mxu0 0.0
        %3909 = vmatpush1.msra.mxu0 0.0
        %3910 = vmatprep.subr.mxu0 0.0
        %3911 = vmatpush1.msra.mxu0 0.0
        %3912 = vmatprep.subr.mxu0 0.0
        %3913 = vmatpush1.msra.mxu0 0.0
        %3914 = vmatprep.subr.mxu0 0.0
        %3915 = vmatpush1.msra.mxu0 0.0
        %3916 = vmatprep.subr.mxu0 0.0
        %3917 = vmatpush1.msra.mxu0 0.0
        %3918 = vmatprep.subr.mxu0 0.0
        %3919 = vmatpush1.msra.mxu0 0.0
        %3920 = vmatprep.subr.mxu0 0.0
        %3921 = vmatpush1.msra.mxu0 0.0
        %3922 = vmatprep.subr.mxu0 0.0
        %3923 = vmatpush1.msra.mxu0 0.0
        %3924 = vmatprep.subr.mxu0 0.0
        %3925 = vmatpush1.msra.mxu0 0.0
        %3926 = vmatprep.subr.mxu0 0.0
        %3927 = vmatpush1.msra.mxu0 0.0
        %3928 = vmatprep.subr.mxu0 0.0
        %3929 = vmatpush1.msra.mxu0 0.0
        %3930 = vmatprep.subr.mxu0 0.0
        %3931 = vmatpush1.msra.mxu0 0.0
        %3932 = vmatprep.subr.mxu0 0.0
        %3933 = vmatpush1.msra.mxu0 0.0
        %3934 = vmatprep.subr.mxu0 0.0
        %3935 = vmatpush1.msra.mxu0 0.0
        %3936 = vmatprep.subr.mxu0 0.0
        %3937 = vmatpush1.msra.mxu0 0.0
        %3938 = vmatprep.mubr.f32.mxu0 0.0
        %3939 = vmatmul.mubr.f32.gmra.mrb[0].mxu0 %v3872
        %v3940 = vpop.f32.mrb[0].mxu0
        %v3941 = vadd.f32 0.0, %v3940
        %v3942 = vpop.f32.mrb[0].mxu0
        %3943 = vdwg.mxu0
        %v3945 = vrot.slane %v3941, 5
        %v3947 = vadd.f32 %v3161, %v3945
        %v3949 = vrot.slane %v3867, 5
        %3950 = vrot.lane.b32.xlu0 %v3949, 64
        %v3951 = vpop.permute.xlu0 %3950
        %v3952 = vsel %vm728, %v3951, 0
        %3954 = vmatprep.subr.mxu0 0.0
        %3955 = vmatpush1.msra.mxu0 %v3256
        %3956 = vmatprep.subr.mxu0 0.0
        %3957 = vmatpush1.msra.mxu0 %v3257
        %3958 = vmatprep.subr.mxu0 0.0
        %3959 = vmatpush1.msra.mxu0 %v3258
        %3960 = vmatprep.subr.mxu0 0.0
        %3961 = vmatpush1.msra.mxu0 %v3259
        %3962 = vmatprep.subr.mxu0 0.0
        %3963 = vmatpush1.msra.mxu0 0.0
        %3964 = vmatprep.subr.mxu0 0.0
        %3965 = vmatpush1.msra.mxu0 0.0
        %3966 = vmatprep.subr.mxu0 0.0
        %3967 = vmatpush1.msra.mxu0 0.0
        %3968 = vmatprep.subr.mxu0 0.0
        %3969 = vmatpush1.msra.mxu0 0.0
        %3970 = vmatprep.subr.mxu0 0.0
        %3971 = vmatpush1.msra.mxu0 0.0
        %3972 = vmatprep.subr.mxu0 0.0
        %3973 = vmatpush1.msra.mxu0 0.0
        %3974 = vmatprep.subr.mxu0 0.0
        %3975 = vmatpush1.msra.mxu0 0.0
        %3976 = vmatprep.subr.mxu0 0.0
        %3977 = vmatpush1.msra.mxu0 0.0
        %3978 = vmatprep.subr.mxu0 0.0
        %3979 = vmatpush1.msra.mxu0 0.0
        %3980 = vmatprep.subr.mxu0 0.0
        %3981 = vmatpush1.msra.mxu0 0.0
        %3982 = vmatprep.subr.mxu0 0.0
        %3983 = vmatpush1.msra.mxu0 0.0
        %3984 = vmatprep.subr.mxu0 0.0
        %3985 = vmatpush1.msra.mxu0 0.0
        %3986 = vmatprep.subr.mxu0 0.0
        %3987 = vmatpush1.msra.mxu0 0.0
        %3988 = vmatprep.subr.mxu0 0.0
        %3989 = vmatpush1.msra.mxu0 0.0
        %3990 = vmatprep.subr.mxu0 0.0
        %3991 = vmatpush1.msra.mxu0 0.0
        %3992 = vmatprep.subr.mxu0 0.0
        %3993 = vmatpush1.msra.mxu0 0.0
        %3994 = vmatprep.subr.mxu0 0.0
        %3995 = vmatpush1.msra.mxu0 0.0
        %3996 = vmatprep.subr.mxu0 0.0
        %3997 = vmatpush1.msra.mxu0 0.0
        %3998 = vmatprep.subr.mxu0 0.0
        %3999 = vmatpush1.msra.mxu0 0.0
        %4000 = vmatprep.subr.mxu0 0.0
        %4001 = vmatpush1.msra.mxu0 0.0
        %4002 = vmatprep.subr.mxu0 0.0
        %4003 = vmatpush1.msra.mxu0 0.0
        %4004 = vmatprep.subr.mxu0 0.0
        %4005 = vmatpush1.msra.mxu0 0.0
        %4006 = vmatprep.subr.mxu0 0.0
        %4007 = vmatpush1.msra.mxu0 0.0
        %4008 = vmatprep.subr.mxu0 0.0
        %4009 = vmatpush1.msra.mxu0 0.0
        %4010 = vmatprep.subr.mxu0 0.0
        %4011 = vmatpush1.msra.mxu0 0.0
        %4012 = vmatprep.subr.mxu0 0.0
        %4013 = vmatpush1.msra.mxu0 0.0
        %4014 = vmatprep.subr.mxu0 0.0
        %4015 = vmatpush1.msra.mxu0 0.0
        %4016 = vmatprep.subr.mxu0 0.0
        %4017 = vmatpush1.msra.mxu0 0.0
        %4018 = vmatprep.mubr.f32.mxu0 0.0
        %4019 = vmatmul.mubr.f32.gmra.mrb[0].mxu0 %v3952
        %v4020 = vpop.f32.mrb[0].mxu0
        %v4021 = vadd.f32 0.0, %v4020
        %v4022 = vpop.f32.mrb[0].mxu0
        %4023 = vdwg.mxu0
        %v4025 = vrot.slane %v4021, 4
        %v4027 = vadd.f32 %v3248, %v4025
        %v4028 = vmul.f32 %v3947, 0.5
        %v4029 = vtanh.pop %v4028
        %v4030 = vmul.f32 %v4029, 0.5
        %v4031 = vadd.f32 %v4030, 0.5
        %v4032 = vtanh.pop %v3947
        %v4034 = vrot.slane %v3836, 7
        %v4036 = vmul.f32 %v4031, %v4034
        %4038 = vrot.lane.b32.xlu0 %v4032, 32
        %v4039 = vpop.permute.xlu0 %4038
        %v4041 = vmul.f32 %v4031, %v4039
        %4043 = vrot.lane.b32.xlu0 %v4041, 32
        %v4044 = vpop.permute.xlu0 %4043
        %v4046 = vadd.f32 %v4036, %v4044
        %v4047 = vtanh.pop %v4046
        %4049 = vrot.lane.b32.xlu0 %v4047, 32
        %v4050 = vpop.permute.xlu0 %4049
        %v4052 = vmul.f32 %v4031, %v4050
        %v4053 = vmul.f32 %v4027, 0.5
        %v4054 = vtanh.pop %v4053
        %v4055 = vmul.f32 %v4054, 0.5
        %v4056 = vadd.f32 %v4055, 0.5
        %v4057 = vtanh.pop %v4027
        %v4059 = vrot.slane %v3861, 1
        %v4061 = vmul.f32 %v4056, %v4059
        %4063 = vrot.lane.b32.xlu0 %v4057, 32
        %v4064 = vpop.permute.xlu0 %4063
        %v4066 = vmul.f32 %v4056, %v4064
        %4068 = vrot.lane.b32.xlu0 %v4066, 32
        %v4069 = vpop.permute.xlu0 %4068
        %v4071 = vadd.f32 %v4061, %v4069
        %v4072 = vtanh.pop %v4071
        %4074 = vrot.lane.b32.xlu0 %v4072, 32
        %v4075 = vpop.permute.xlu0 %4074
        %v4077 = vmul.f32 %v4056, %v4075
        %v4079 = vrot.slane %v4052, 3
        %4080 = vrot.lane.b32.xlu0 %v4079, 64
        %v4081 = vpop.permute.xlu0 %4080
        %v4082 = vsel %vm728, %v4081, 0
        %4084 = vmatprep.subr.mxu0 0.0
        %4085 = vmatpush1.msra.mxu0 %v3251
        %4086 = vmatprep.subr.mxu0 0.0
        %4087 = vmatpush1.msra.mxu0 %v3252
        %4088 = vmatprep.subr.mxu0 0.0
        %4089 = vmatpush1.msra.mxu0 %v3253
        %4090 = vmatprep.subr.mxu0 0.0
        %4091 = vmatpush1.msra.mxu0 %v3254
        %4092 = vmatprep.subr.mxu0 0.0
        %4093 = vmatpush1.msra.mxu0 0.0
        %4094 = vmatprep.subr.mxu0 0.0
        %4095 = vmatpush1.msra.mxu0 0.0
        %4096 = vmatprep.subr.mxu0 0.0
        %4097 = vmatpush1.msra.mxu0 0.0
        %4098 = vmatprep.subr.mxu0 0.0
        %4099 = vmatpush1.msra.mxu0 0.0
        %4100 = vmatprep.subr.mxu0 0.0
        %4101 = vmatpush1.msra.mxu0 0.0
        %4102 = vmatprep.subr.mxu0 0.0
        %4103 = vmatpush1.msra.mxu0 0.0
        %4104 = vmatprep.subr.mxu0 0.0
        %4105 = vmatpush1.msra.mxu0 0.0
        %4106 = vmatprep.subr.mxu0 0.0
        %4107 = vmatpush1.msra.mxu0 0.0
        %4108 = vmatprep.subr.mxu0 0.0
        %4109 = vmatpush1.msra.mxu0 0.0
        %4110 = vmatprep.subr.mxu0 0.0
        %4111 = vmatpush1.msra.mxu0 0.0
        %4112 = vmatprep.subr.mxu0 0.0
        %4113 = vmatpush1.msra.mxu0 0.0
        %4114 = vmatprep.subr.mxu0 0.0
        %4115 = vmatpush1.msra.mxu0 0.0
        %4116 = vmatprep.subr.mxu0 0.0
        %4117 = vmatpush1.msra.mxu0 0.0
        %4118 = vmatprep.subr.mxu0 0.0
        %4119 = vmatpush1.msra.mxu0 0.0
        %4120 = vmatprep.subr.mxu0 0.0
        %4121 = vmatpush1.msra.mxu0 0.0
        %4122 = vmatprep.subr.mxu0 0.0
        %4123 = vmatpush1.msra.mxu0 0.0
        %4124 = vmatprep.subr.mxu0 0.0
        %4125 = vmatpush1.msra.mxu0 0.0
        %4126 = vmatprep.subr.mxu0 0.0
        %4127 = vmatpush1.msra.mxu0 0.0
        %4128 = vmatprep.subr.mxu0 0.0
        %4129 = vmatpush1.msra.mxu0 0.0
        %4130 = vmatprep.subr.mxu0 0.0
        %4131 = vmatpush1.msra.mxu0 0.0
        %4132 = vmatprep.subr.mxu0 0.0
        %4133 = vmatpush1.msra.mxu0 0.0
        %4134 = vmatprep.subr.mxu0 0.0
        %4135 = vmatpush1.msra.mxu0 0.0
        %4136 = vmatprep.subr.mxu0 0.0
        %4137 = vmatpush1.msra.mxu0 0.0
        %4138 = vmatprep.subr.mxu0 0.0
        %4139 = vmatpush1.msra.mxu0 0.0
        %4140 = vmatprep.subr.mxu0 0.0
        %4141 = vmatpush1.msra.mxu0 0.0
        %4142 = vmatprep.subr.mxu0 0.0
        %4143 = vmatpush1.msra.mxu0 0.0
        %4144 = vmatprep.subr.mxu0 0.0
        %4145 = vmatpush1.msra.mxu0 0.0
        %4146 = vmatprep.subr.mxu0 0.0
        %4147 = vmatpush1.msra.mxu0 0.0
        %4148 = vmatprep.mubr.f32.mxu0 0.0
        %4149 = vmatmul.mubr.f32.gmra.mrb[0].mxu0 %v4082
        %v4150 = vpop.f32.mrb[0].mxu0
        %v4151 = vadd.f32 0.0, %v4150
        %v4152 = vpop.f32.mrb[0].mxu0
        %4153 = vdwg.mxu0
        %v4155 = vrot.slane %v4151, 4
        %v4157 = vadd.f32 %v3161, %v4155
        %v4159 = vrot.slane %v4077, 4
        %4160 = vrot.lane.b32.xlu0 %v4159, 64
        %v4161 = vpop.permute.xlu0 %4160
        %v4162 = vsel %vm728, %v4161, 0
        %4164 = vmatprep.subr.mxu0 0.0
        %4165 = vmatpush1.msra.mxu0 %v3256
        %4166 = vmatprep.subr.mxu0 0.0
        %4167 = vmatpush1.msra.mxu0 %v3257
        %4168 = vmatprep.subr.mxu0 0.0
        %4169 = vmatpush1.msra.mxu0 %v3258
        %4170 = vmatprep.subr.mxu0 0.0
        %4171 = vmatpush1.msra.mxu0 %v3259
        %4172 = vmatprep.subr.mxu0 0.0
        %4173 = vmatpush1.msra.mxu0 0.0
        %4174 = vmatprep.subr.mxu0 0.0
        %4175 = vmatpush1.msra.mxu0 0.0
        %4176 = vmatprep.subr.mxu0 0.0
        %4177 = vmatpush1.msra.mxu0 0.0
        %4178 = vmatprep.subr.mxu0 0.0
        %4179 = vmatpush1.msra.mxu0 0.0
        %4180 = vmatprep.subr.mxu0 0.0
        %4181 = vmatpush1.msra.mxu0 0.0
        %4182 = vmatprep.subr.mxu0 0.0
        %4183 = vmatpush1.msra.mxu0 0.0
        %4184 = vmatprep.subr.mxu0 0.0
        %4185 = vmatpush1.msra.mxu0 0.0
        %4186 = vmatprep.subr.mxu0 0.0
        %4187 = vmatpush1.msra.mxu0 0.0
        %4188 = vmatprep.subr.mxu0 0.0
        %4189 = vmatpush1.msra.mxu0 0.0
        %4190 = vmatprep.subr.mxu0 0.0
        %4191 = vmatpush1.msra.mxu0 0.0
        %4192 = vmatprep.subr.mxu0 0.0
        %4193 = vmatpush1.msra.mxu0 0.0
        %4194 = vmatprep.subr.mxu0 0.0
        %4195 = vmatpush1.msra.mxu0 0.0
        %4196 = vmatprep.subr.mxu0 0.0
        %4197 = vmatpush1.msra.mxu0 0.0
        %4198 = vmatprep.subr.mxu0 0.0
        %4199 = vmatpush1.msra.mxu0 0.0
        %4200 = vmatprep.subr.mxu0 0.0
        %4201 = vmatpush1.msra.mxu0 0.0
        %4202 = vmatprep.subr.mxu0 0.0
        %4203 = vmatpush1.msra.mxu0 0.0
        %4204 = vmatprep.subr.mxu0 0.0
        %4205 = vmatpush1.msra.mxu0 0.0
        %4206 = vmatprep.subr.mxu0 0.0
        %4207 = vmatpush1.msra.mxu0 0.0
        %4208 = vmatprep.subr.mxu0 0.0
        %4209 = vmatpush1.msra.mxu0 0.0
        %4210 = vmatprep.subr.mxu0 0.0
        %4211 = vmatpush1.msra.mxu0 0.0
        %4212 = vmatprep.subr.mxu0 0.0
        %4213 = vmatpush1.msra.mxu0 0.0
        %4214 = vmatprep.subr.mxu0 0.0
        %4215 = vmatpush1.msra.mxu0 0.0
        %4216 = vmatprep.subr.mxu0 0.0
        %4217 = vmatpush1.msra.mxu0 0.0
        %4218 = vmatprep.subr.mxu0 0.0
        %4219 = vmatpush1.msra.mxu0 0.0
        %4220 = vmatprep.subr.mxu0 0.0
        %4221 = vmatpush1.msra.mxu0 0.0
        %4222 = vmatprep.subr.mxu0 0.0
        %4223 = vmatpush1.msra.mxu0 0.0
        %4224 = vmatprep.subr.mxu0 0.0
        %4225 = vmatpush1.msra.mxu0 0.0
        %4226 = vmatprep.subr.mxu0 0.0
        %4227 = vmatpush1.msra.mxu0 0.0
        %4228 = vmatprep.mubr.f32.mxu0 0.0
        %4229 = vmatmul.mubr.f32.gmra.mrb[0].mxu0 %v4162
        %v4230 = vpop.f32.mrb[0].mxu0
        %v4231 = vadd.f32 0.0, %v4230
        %v4232 = vpop.f32.mrb[0].mxu0
        %4233 = vdwg.mxu0
        %v4235 = vrot.slane %v4231, 5
        %v4237 = vadd.f32 %v3248, %v4235
        %v4238 = vmul.f32 %v4157, 0.5
        %v4239 = vtanh.pop %v4238
        %v4240 = vmul.f32 %v4239, 0.5
        %v4241 = vadd.f32 %v4240, 0.5
        %v4242 = vtanh.pop %v4157
        %v4244 = vrot.slane %v4046, 7
        %v4246 = vmul.f32 %v4241, %v4244
        %4248 = vrot.lane.b32.xlu0 %v4242, 32
        %v4249 = vpop.permute.xlu0 %4248
        %v4251 = vmul.f32 %v4241, %v4249
        %4253 = vrot.lane.b32.xlu0 %v4251, 32
        %v4254 = vpop.permute.xlu0 %4253
        %v4256 = vadd.f32 %v4246, %v4254
        %v4257 = vtanh.pop %v4256
        %4259 = vrot.lane.b32.xlu0 %v4257, 32
        %v4260 = vpop.permute.xlu0 %4259
        %v4262 = vmul.f32 %v4241, %v4260
        %v4263 = vmul.f32 %v4237, 0.5
        %v4264 = vtanh.pop %v4263
        %v4265 = vmul.f32 %v4264, 0.5
        %v4266 = vadd.f32 %v4265, 0.5
        %v4267 = vtanh.pop %v4237
        %v4269 = vrot.slane %v4071, 1
        %v4271 = vmul.f32 %v4266, %v4269
        %4273 = vrot.lane.b32.xlu0 %v4267, 32
        %v4274 = vpop.permute.xlu0 %4273
        %v4276 = vmul.f32 %v4266, %v4274
        %4278 = vrot.lane.b32.xlu0 %v4276, 32
        %v4279 = vpop.permute.xlu0 %4278
        %v4281 = vadd.f32 %v4271, %v4279
        %v4282 = vtanh.pop %v4281
        %4284 = vrot.lane.b32.xlu0 %v4282, 32
        %v4285 = vpop.permute.xlu0 %4284
        %v4287 = vmul.f32 %v4266, %v4285
        %v4289 = vrot.slane %v4262, 4
        %4290 = vrot.lane.b32.xlu0 %v4289, 64
        %v4291 = vpop.permute.xlu0 %4290
        %v4292 = vsel %vm728, %v4291, 0
        %4294 = vmatprep.subr.mxu0 0.0
        %4295 = vmatpush1.msra.mxu0 %v3251
        %4296 = vmatprep.subr.mxu0 0.0
        %4297 = vmatpush1.msra.mxu0 %v3252
        %4298 = vmatprep.subr.mxu0 0.0
        %4299 = vmatpush1.msra.mxu0 %v3253
        %4300 = vmatprep.subr.mxu0 0.0
        %4301 = vmatpush1.msra.mxu0 %v3254
        %4302 = vmatprep.subr.mxu0 0.0
        %4303 = vmatpush1.msra.mxu0 0.0
        %4304 = vmatprep.subr.mxu0 0.0
        %4305 = vmatpush1.msra.mxu0 0.0
        %4306 = vmatprep.subr.mxu0 0.0
        %4307 = vmatpush1.msra.mxu0 0.0
        %4308 = vmatprep.subr.mxu0 0.0
        %4309 = vmatpush1.msra.mxu0 0.0
        %4310 = vmatprep.subr.mxu0 0.0
        %4311 = vmatpush1.msra.mxu0 0.0
        %4312 = vmatprep.subr.mxu0 0.0
        %4313 = vmatpush1.msra.mxu0 0.0
        %4314 = vmatprep.subr.mxu0 0.0
        %4315 = vmatpush1.msra.mxu0 0.0
        %4316 = vmatprep.subr.mxu0 0.0
        %4317 = vmatpush1.msra.mxu0 0.0
        %4318 = vmatprep.subr.mxu0 0.0
        %4319 = vmatpush1.msra.mxu0 0.0
        %4320 = vmatprep.subr.mxu0 0.0
        %4321 = vmatpush1.msra.mxu0 0.0
        %4322 = vmatprep.subr.mxu0 0.0
        %4323 = vmatpush1.msra.mxu0 0.0
        %4324 = vmatprep.subr.mxu0 0.0
        %4325 = vmatpush1.msra.mxu0 0.0
        %4326 = vmatprep.subr.mxu0 0.0
        %4327 = vmatpush1.msra.mxu0 0.0
        %4328 = vmatprep.subr.mxu0 0.0
        %4329 = vmatpush1.msra.mxu0 0.0
        %4330 = vmatprep.subr.mxu0 0.0
        %4331 = vmatpush1.msra.mxu0 0.0
        %4332 = vmatprep.subr.mxu0 0.0
        %4333 = vmatpush1.msra.mxu0 0.0
        %4334 = vmatprep.subr.mxu0 0.0
        %4335 = vmatpush1.msra.mxu0 0.0
        %4336 = vmatprep.subr.mxu0 0.0
        %4337 = vmatpush1.msra.mxu0 0.0
        %4338 = vmatprep.subr.mxu0 0.0
        %4339 = vmatpush1.msra.mxu0 0.0
        %4340 = vmatprep.subr.mxu0 0.0
        %4341 = vmatpush1.msra.mxu0 0.0
        %4342 = vmatprep.subr.mxu0 0.0
        %4343 = vmatpush1.msra.mxu0 0.0
        %4344 = vmatprep.subr.mxu0 0.0
        %4345 = vmatpush1.msra.mxu0 0.0
        %4346 = vmatprep.subr.mxu0 0.0
        %4347 = vmatpush1.msra.mxu0 0.0
        %4348 = vmatprep.subr.mxu0 0.0
        %4349 = vmatpush1.msra.mxu0 0.0
        %4350 = vmatprep.subr.mxu0 0.0
        %4351 = vmatpush1.msra.mxu0 0.0
        %4352 = vmatprep.subr.mxu0 0.0
        %4353 = vmatpush1.msra.mxu0 0.0
        %4354 = vmatprep.subr.mxu0 0.0
        %4355 = vmatpush1.msra.mxu0 0.0
        %4356 = vmatprep.subr.mxu0 0.0
        %4357 = vmatpush1.msra.mxu0 0.0
        %4358 = vmatprep.mubr.f32.mxu0 0.0
        %4359 = vmatmul.mubr.f32.gmra.mrb[0].mxu0 %v4292
        %v4360 = vpop.f32.mrb[0].mxu0
        %v4361 = vadd.f32 0.0, %v4360
        %v4362 = vpop.f32.mrb[0].mxu0
        %4363 = vdwg.mxu0
        %v4365 = vrot.slane %v4361, 3
        %v4367 = vadd.f32 %v3161, %v4365
        %v4369 = vrot.slane %v4287, 3
        %4370 = vrot.lane.b32.xlu0 %v4369, 64
        %v4371 = vpop.permute.xlu0 %4370
        %v4372 = vsel %vm728, %v4371, 0
        %4374 = vmatprep.subr.mxu0 0.0
        %4375 = vmatpush1.msra.mxu0 %v3256
        %4376 = vmatprep.subr.mxu0 0.0
        %4377 = vmatpush1.msra.mxu0 %v3257
        %4378 = vmatprep.subr.mxu0 0.0
        %4379 = vmatpush1.msra.mxu0 %v3258
        %4380 = vmatprep.subr.mxu0 0.0
        %4381 = vmatpush1.msra.mxu0 %v3259
        %4382 = vmatprep.subr.mxu0 0.0
        %4383 = vmatpush1.msra.mxu0 0.0
        %4384 = vmatprep.subr.mxu0 0.0
        %4385 = vmatpush1.msra.mxu0 0.0
        %4386 = vmatprep.subr.mxu0 0.0
        %4387 = vmatpush1.msra.mxu0 0.0
        %4388 = vmatprep.subr.mxu0 0.0
        %4389 = vmatpush1.msra.mxu0 0.0
        %4390 = vmatprep.subr.mxu0 0.0
        %4391 = vmatpush1.msra.mxu0 0.0
        %4392 = vmatprep.subr.mxu0 0.0
        %4393 = vmatpush1.msra.mxu0 0.0
        %4394 = vmatprep.subr.mxu0 0.0
        %4395 = vmatpush1.msra.mxu0 0.0
        %4396 = vmatprep.subr.mxu0 0.0
        %4397 = vmatpush1.msra.mxu0 0.0
        %4398 = vmatprep.subr.mxu0 0.0
        %4399 = vmatpush1.msra.mxu0 0.0
        %4400 = vmatprep.subr.mxu0 0.0
        %4401 = vmatpush1.msra.mxu0 0.0
        %4402 = vmatprep.subr.mxu0 0.0
        %4403 = vmatpush1.msra.mxu0 0.0
        %4404 = vmatprep.subr.mxu0 0.0
        %4405 = vmatpush1.msra.mxu0 0.0
        %4406 = vmatprep.subr.mxu0 0.0
        %4407 = vmatpush1.msra.mxu0 0.0
        %4408 = vmatprep.subr.mxu0 0.0
        %4409 = vmatpush1.msra.mxu0 0.0
        %4410 = vmatprep.subr.mxu0 0.0
        %4411 = vmatpush1.msra.mxu0 0.0
        %4412 = vmatprep.subr.mxu0 0.0
        %4413 = vmatpush1.msra.mxu0 0.0
        %4414 = vmatprep.subr.mxu0 0.0
        %4415 = vmatpush1.msra.mxu0 0.0
        %4416 = vmatprep.subr.mxu0 0.0
        %4417 = vmatpush1.msra.mxu0 0.0
        %4418 = vmatprep.subr.mxu0 0.0
        %4419 = vmatpush1.msra.mxu0 0.0
        %4420 = vmatprep.subr.mxu0 0.0
        %4421 = vmatpush1.msra.mxu0 0.0
        %4422 = vmatprep.subr.mxu0 0.0
        %4423 = vmatpush1.msra.mxu0 0.0
        %4424 = vmatprep.subr.mxu0 0.0
        %4425 = vmatpush1.msra.mxu0 0.0
        %4426 = vmatprep.subr.mxu0 0.0
        %4427 = vmatpush1.msra.mxu0 0.0
        %4428 = vmatprep.subr.mxu0 0.0
        %4429 = vmatpush1.msra.mxu0 0.0
        %4430 = vmatprep.subr.mxu0 0.0
        %4431 = vmatpush1.msra.mxu0 0.0
        %4432 = vmatprep.subr.mxu0 0.0
        %4433 = vmatpush1.msra.mxu0 0.0
        %4434 = vmatprep.subr.mxu0 0.0
        %4435 = vmatpush1.msra.mxu0 0.0
        %4436 = vmatprep.subr.mxu0 0.0
        %4437 = vmatpush1.msra.mxu0 0.0
        %4438 = vmatprep.mubr.f32.mxu0 0.0
        %4439 = vmatmul.mubr.f32.gmra.mrb[0].mxu0 %v4372
        %v4440 = vpop.f32.mrb[0].mxu0
        %v4441 = vadd.f32 0.0, %v4440
        %v4442 = vpop.f32.mrb[0].mxu0
        %4443 = vdwg.mxu0
        %v4445 = vrot.slane %v4441, 6
        %v4447 = vadd.f32 %v3248, %v4445
        %v4448 = vmul.f32 %v4367, 0.5
        %v4449 = vtanh.pop %v4448
        %v4450 = vmul.f32 %v4449, 0.5
        %v4451 = vadd.f32 %v4450, 0.5
        %v4452 = vtanh.pop %v4367
        %v4454 = vrot.slane %v4256, 7
        %v4456 = vmul.f32 %v4451, %v4454
        %4458 = vrot.lane.b32.xlu0 %v4452, 32
        %v4459 = vpop.permute.xlu0 %4458
        %v4461 = vmul.f32 %v4451, %v4459
        %4463 = vrot.lane.b32.xlu0 %v4461, 32
        %v4464 = vpop.permute.xlu0 %4463
        %v4466 = vadd.f32 %v4456, %v4464
        %v4467 = vtanh.pop %v4466
        %4469 = vrot.lane.b32.xlu0 %v4467, 32
        %v4470 = vpop.permute.xlu0 %4469
        %v4472 = vmul.f32 %v4451, %v4470
        %v4473 = vmul.f32 %v4447, 0.5
        %v4474 = vtanh.pop %v4473
        %v4475 = vmul.f32 %v4474, 0.5
        %v4476 = vadd.f32 %v4475, 0.5
        %v4477 = vtanh.pop %v4447
        %v4479 = vrot.slane %v4281, 1
        %v4481 = vmul.f32 %v4476, %v4479
        %4483 = vrot.lane.b32.xlu0 %v4477, 32
        %v4484 = vpop.permute.xlu0 %4483
        %v4486 = vmul.f32 %v4476, %v4484
        %4488 = vrot.lane.b32.xlu0 %v4486, 32
        %v4489 = vpop.permute.xlu0 %4488
        %v4491 = vadd.f32 %v4481, %v4489
        %v4492 = vtanh.pop %v4491
        %4494 = vrot.lane.b32.xlu0 %v4492, 32
        %v4495 = vpop.permute.xlu0 %4494
        %v4497 = vmul.f32 %v4476, %v4495
        %v4499 = vrot.slane %v4472, 5
        %4500 = vrot.lane.b32.xlu0 %v4499, 64
        %v4501 = vpop.permute.xlu0 %4500
        %v4502 = vsel %vm728, %v4501, 0
        %4504 = vmatprep.subr.mxu0 0.0
        %4505 = vmatpush1.msra.mxu0 %v3251
        %4506 = vmatprep.subr.mxu0 0.0
        %4507 = vmatpush1.msra.mxu0 %v3252
        %4508 = vmatprep.subr.mxu0 0.0
        %4509 = vmatpush1.msra.mxu0 %v3253
        %4510 = vmatprep.subr.mxu0 0.0
        %4511 = vmatpush1.msra.mxu0 %v3254
        %4512 = vmatprep.subr.mxu0 0.0
        %4513 = vmatpush1.msra.mxu0 0.0
        %4514 = vmatprep.subr.mxu0 0.0
        %4515 = vmatpush1.msra.mxu0 0.0
        %4516 = vmatprep.subr.mxu0 0.0
        %4517 = vmatpush1.msra.mxu0 0.0
        %4518 = vmatprep.subr.mxu0 0.0
        %4519 = vmatpush1.msra.mxu0 0.0
        %4520 = vmatprep.subr.mxu0 0.0
        %4521 = vmatpush1.msra.mxu0 0.0
        %4522 = vmatprep.subr.mxu0 0.0
        %4523 = vmatpush1.msra.mxu0 0.0
        %4524 = vmatprep.subr.mxu0 0.0
        %4525 = vmatpush1.msra.mxu0 0.0
        %4526 = vmatprep.subr.mxu0 0.0
        %4527 = vmatpush1.msra.mxu0 0.0
        %4528 = vmatprep.subr.mxu0 0.0
        %4529 = vmatpush1.msra.mxu0 0.0
        %4530 = vmatprep.subr.mxu0 0.0
        %4531 = vmatpush1.msra.mxu0 0.0
        %4532 = vmatprep.subr.mxu0 0.0
        %4533 = vmatpush1.msra.mxu0 0.0
        %4534 = vmatprep.subr.mxu0 0.0
        %4535 = vmatpush1.msra.mxu0 0.0
        %4536 = vmatprep.subr.mxu0 0.0
        %4537 = vmatpush1.msra.mxu0 0.0
        %4538 = vmatprep.subr.mxu0 0.0
        %4539 = vmatpush1.msra.mxu0 0.0
        %4540 = vmatprep.subr.mxu0 0.0
        %4541 = vmatpush1.msra.mxu0 0.0
        %4542 = vmatprep.subr.mxu0 0.0
        %4543 = vmatpush1.msra.mxu0 0.0
        %4544 = vmatprep.subr.mxu0 0.0
        %4545 = vmatpush1.msra.mxu0 0.0
        %4546 = vmatprep.subr.mxu0 0.0
        %4547 = vmatpush1.msra.mxu0 0.0
        %4548 = vmatprep.subr.mxu0 0.0
        %4549 = vmatpush1.msra.mxu0 0.0
        %4550 = vmatprep.subr.mxu0 0.0
        %4551 = vmatpush1.msra.mxu0 0.0
        %4552 = vmatprep.subr.mxu0 0.0
        %4553 = vmatpush1.msra.mxu0 0.0
        %4554 = vmatprep.subr.mxu0 0.0
        %4555 = vmatpush1.msra.mxu0 0.0
        %4556 = vmatprep.subr.mxu0 0.0
        %4557 = vmatpush1.msra.mxu0 0.0
        %4558 = vmatprep.subr.mxu0 0.0
        %4559 = vmatpush1.msra.mxu0 0.0
        %4560 = vmatprep.subr.mxu0 0.0
        %4561 = vmatpush1.msra.mxu0 0.0
        %4562 = vmatprep.subr.mxu0 0.0
        %4563 = vmatpush1.msra.mxu0 0.0
        %4564 = vmatprep.subr.mxu0 0.0
        %4565 = vmatpush1.msra.mxu0 0.0
        %4566 = vmatprep.subr.mxu0 0.0
        %4567 = vmatpush1.msra.mxu0 0.0
        %4568 = vmatprep.mubr.f32.mxu0 0.0
        %4569 = vmatmul.mubr.f32.gmra.mrb[0].mxu0 %v4502
        %v4570 = vpop.f32.mrb[0].mxu0
        %v4571 = vadd.f32 0.0, %v4570
        %v4572 = vpop.f32.mrb[0].mxu0
        %4573 = vdwg.mxu0
        %v4575 = vrot.slane %v4571, 2
        %v4577 = vadd.f32 %v3161, %v4575
        %v4579 = vrot.slane %v4497, 2
        %4580 = vrot.lane.b32.xlu0 %v4579, 64
        %v4581 = vpop.permute.xlu0 %4580
        %v4582 = vsel %vm728, %v4581, 0
        %4584 = vmatprep.subr.mxu0 0.0
        %4585 = vmatpush1.msra.mxu0 %v3256
        %4586 = vmatprep.subr.mxu0 0.0
        %4587 = vmatpush1.msra.mxu0 %v3257
        %4588 = vmatprep.subr.mxu0 0.0
        %4589 = vmatpush1.msra.mxu0 %v3258
        %4590 = vmatprep.subr.mxu0 0.0
        %4591 = vmatpush1.msra.mxu0 %v3259
        %4592 = vmatprep.subr.mxu0 0.0
        %4593 = vmatpush1.msra.mxu0 0.0
        %4594 = vmatprep.subr.mxu0 0.0
        %4595 = vmatpush1.msra.mxu0 0.0
        %4596 = vmatprep.subr.mxu0 0.0
        %4597 = vmatpush1.msra.mxu0 0.0
        %4598 = vmatprep.subr.mxu0 0.0
        %4599 = vmatpush1.msra.mxu0 0.0
        %4600 = vmatprep.subr.mxu0 0.0
        %4601 = vmatpush1.msra.mxu0 0.0
        %4602 = vmatprep.subr.mxu0 0.0
        %4603 = vmatpush1.msra.mxu0 0.0
        %4604 = vmatprep.subr.mxu0 0.0
        %4605 = vmatpush1.msra.mxu0 0.0
        %4606 = vmatprep.subr.mxu0 0.0
        %4607 = vmatpush1.msra.mxu0 0.0
        %4608 = vmatprep.subr.mxu0 0.0
        %4609 = vmatpush1.msra.mxu0 0.0
        %4610 = vmatprep.subr.mxu0 0.0
        %4611 = vmatpush1.msra.mxu0 0.0
        %4612 = vmatprep.subr.mxu0 0.0
        %4613 = vmatpush1.msra.mxu0 0.0
        %4614 = vmatprep.subr.mxu0 0.0
        %4615 = vmatpush1.msra.mxu0 0.0
        %4616 = vmatprep.subr.mxu0 0.0
        %4617 = vmatpush1.msra.mxu0 0.0
        %4618 = vmatprep.subr.mxu0 0.0
        %4619 = vmatpush1.msra.mxu0 0.0
        %4620 = vmatprep.subr.mxu0 0.0
        %4621 = vmatpush1.msra.mxu0 0.0
        %4622 = vmatprep.subr.mxu0 0.0
        %4623 = vmatpush1.msra.mxu0 0.0
        %4624 = vmatprep.subr.mxu0 0.0
        %4625 = vmatpush1.msra.mxu0 0.0
        %4626 = vmatprep.subr.mxu0 0.0
        %4627 = vmatpush1.msra.mxu0 0.0
        %4628 = vmatprep.subr.mxu0 0.0
        %4629 = vmatpush1.msra.mxu0 0.0
        %4630 = vmatprep.subr.mxu0 0.0
        %4631 = vmatpush1.msra.mxu0 0.0
        %4632 = vmatprep.subr.mxu0 0.0
        %4633 = vmatpush1.msra.mxu0 0.0
        %4634 = vmatprep.subr.mxu0 0.0
        %4635 = vmatpush1.msra.mxu0 0.0
        %4636 = vmatprep.subr.mxu0 0.0
        %4637 = vmatpush1.msra.mxu0 0.0
        %4638 = vmatprep.subr.mxu0 0.0
        %4639 = vmatpush1.msra.mxu0 0.0
        %4640 = vmatprep.subr.mxu0 0.0
        %4641 = vmatpush1.msra.mxu0 0.0
        %4642 = vmatprep.subr.mxu0 0.0
        %4643 = vmatpush1.msra.mxu0 0.0
        %4644 = vmatprep.subr.mxu0 0.0
        %4645 = vmatpush1.msra.mxu0 0.0
        %4646 = vmatprep.subr.mxu0 0.0
        %4647 = vmatpush1.msra.mxu0 0.0
        %4648 = vmatprep.mubr.f32.mxu0 0.0
        %4649 = vmatmul.mubr.f32.gmra.mrb[0].mxu0 %v4582
        %v4650 = vpop.f32.mrb[0].mxu0
        %v4651 = vadd.f32 0.0, %v4650
        %v4652 = vpop.f32.mrb[0].mxu0
        %4653 = vdwg.mxu0
        %v4655 = vrot.slane %v4651, 7
        %v4657 = vadd.f32 %v3248, %v4655
        %v4658 = vmul.f32 %v4577, 0.5
        %v4659 = vtanh.pop %v4658
        %v4660 = vmul.f32 %v4659, 0.5
        %v4661 = vadd.f32 %v4660, 0.5
        %v4662 = vtanh.pop %v4577
        %v4664 = vrot.slane %v4466, 7
        %v4666 = vmul.f32 %v4661, %v4664
        %4668 = vrot.lane.b32.xlu0 %v4662, 32
        %v4669 = vpop.permute.xlu0 %4668
        %v4671 = vmul.f32 %v4661, %v4669
        %4673 = vrot.lane.b32.xlu0 %v4671, 32
        %v4674 = vpop.permute.xlu0 %4673
        %v4676 = vadd.f32 %v4666, %v4674
        %v4677 = vtanh.pop %v4676
        %4679 = vrot.lane.b32.xlu0 %v4677, 32
        %v4680 = vpop.permute.xlu0 %4679
        %v4682 = vmul.f32 %v4661, %v4680
        %v4683 = vmul.f32 %v4657, 0.5
        %v4684 = vtanh.pop %v4683
        %v4685 = vmul.f32 %v4684, 0.5
        %v4686 = vadd.f32 %v4685, 0.5
        %v4687 = vtanh.pop %v4657
        %v4689 = vrot.slane %v4491, 1
        %v4691 = vmul.f32 %v4686, %v4689
        %4693 = vrot.lane.b32.xlu0 %v4687, 32
        %v4694 = vpop.permute.xlu0 %4693
        %v4696 = vmul.f32 %v4686, %v4694
        %4698 = vrot.lane.b32.xlu0 %v4696, 32
        %v4699 = vpop.permute.xlu0 %4698
        %v4701 = vadd.f32 %v4691, %v4699
        %v4702 = vtanh.pop %v4701
        %4704 = vrot.lane.b32.xlu0 %v4702, 32
        %v4705 = vpop.permute.xlu0 %4704
        %v4707 = vmul.f32 %v4686, %v4705
        %v4709 = vrot.slane %v4682, 6
        %4710 = vrot.lane.b32.xlu0 %v4709, 64
        %v4711 = vpop.permute.xlu0 %4710
        %v4712 = vsel %vm728, %v4711, 0
        %4714 = vmatprep.subr.mxu0 0.0
        %4715 = vmatpush1.msra.mxu0 %v3251
        %4716 = vmatprep.subr.mxu0 0.0
        %4717 = vmatpush1.msra.mxu0 %v3252
        %4718 = vmatprep.subr.mxu0 0.0
        %4719 = vmatpush1.msra.mxu0 %v3253
        %4720 = vmatprep.subr.mxu0 0.0
        %4721 = vmatpush1.msra.mxu0 %v3254
        %4722 = vmatprep.subr.mxu0 0.0
        %4723 = vmatpush1.msra.mxu0 0.0
        %4724 = vmatprep.subr.mxu0 0.0
        %4725 = vmatpush1.msra.mxu0 0.0
        %4726 = vmatprep.subr.mxu0 0.0
        %4727 = vmatpush1.msra.mxu0 0.0
        %4728 = vmatprep.subr.mxu0 0.0
        %4729 = vmatpush1.msra.mxu0 0.0
        %4730 = vmatprep.subr.mxu0 0.0
        %4731 = vmatpush1.msra.mxu0 0.0
        %4732 = vmatprep.subr.mxu0 0.0
        %4733 = vmatpush1.msra.mxu0 0.0
        %4734 = vmatprep.subr.mxu0 0.0
        %4735 = vmatpush1.msra.mxu0 0.0
        %4736 = vmatprep.subr.mxu0 0.0
        %4737 = vmatpush1.msra.mxu0 0.0
        %4738 = vmatprep.subr.mxu0 0.0
        %4739 = vmatpush1.msra.mxu0 0.0
        %4740 = vmatprep.subr.mxu0 0.0
        %4741 = vmatpush1.msra.mxu0 0.0
        %4742 = vmatprep.subr.mxu0 0.0
        %4743 = vmatpush1.msra.mxu0 0.0
        %4744 = vmatprep.subr.mxu0 0.0
        %4745 = vmatpush1.msra.mxu0 0.0
        %4746 = vmatprep.subr.mxu0 0.0
        %4747 = vmatpush1.msra.mxu0 0.0
        %4748 = vmatprep.subr.mxu0 0.0
        %4749 = vmatpush1.msra.mxu0 0.0
        %4750 = vmatprep.subr.mxu0 0.0
        %4751 = vmatpush1.msra.mxu0 0.0
        %4752 = vmatprep.subr.mxu0 0.0
        %4753 = vmatpush1.msra.mxu0 0.0
        %4754 = vmatprep.subr.mxu0 0.0
        %4755 = vmatpush1.msra.mxu0 0.0
        %4756 = vmatprep.subr.mxu0 0.0
        %4757 = vmatpush1.msra.mxu0 0.0
        %4758 = vmatprep.subr.mxu0 0.0
        %4759 = vmatpush1.msra.mxu0 0.0
        %4760 = vmatprep.subr.mxu0 0.0
        %4761 = vmatpush1.msra.mxu0 0.0
        %4762 = vmatprep.subr.mxu0 0.0
        %4763 = vmatpush1.msra.mxu0 0.0
        %4764 = vmatprep.subr.mxu0 0.0
        %4765 = vmatpush1.msra.mxu0 0.0
        %4766 = vmatprep.subr.mxu0 0.0
        %4767 = vmatpush1.msra.mxu0 0.0
        %4768 = vmatprep.subr.mxu0 0.0
        %4769 = vmatpush1.msra.mxu0 0.0
        %4770 = vmatprep.subr.mxu0 0.0
        %4771 = vmatpush1.msra.mxu0 0.0
        %4772 = vmatprep.subr.mxu0 0.0
        %4773 = vmatpush1.msra.mxu0 0.0
        %4774 = vmatprep.subr.mxu0 0.0
        %4775 = vmatpush1.msra.mxu0 0.0
        %4776 = vmatprep.subr.mxu0 0.0
        %4777 = vmatpush1.msra.mxu0 0.0
        %4778 = vmatprep.mubr.f32.mxu0 0.0
        %4779 = vmatmul.mubr.f32.gmra.mrb[0].mxu0 %v4712
        %v4780 = vpop.f32.mrb[0].mxu0
        %v4781 = vadd.f32 0.0, %v4780
        %v4782 = vpop.f32.mrb[0].mxu0
        %4783 = vdwg.mxu0
        %v4785 = vrot.slane %v4781, 1
        %v4787 = vadd.f32 %v3161, %v4785
        %v4789 = vrot.slane %v4707, 1
        %4790 = vrot.lane.b32.xlu0 %v4789, 64
        %v4791 = vpop.permute.xlu0 %4790
        %v4792 = vsel %vm728, %v4791, 0
        %4794 = vmatprep.subr.mxu0 0.0
        %4795 = vmatpush1.msra.mxu0 %v3256
        %4796 = vmatprep.subr.mxu0 0.0
        %4797 = vmatpush1.msra.mxu0 %v3257
        %4798 = vmatprep.subr.mxu0 0.0
        %4799 = vmatpush1.msra.mxu0 %v3258
        %4800 = vmatprep.subr.mxu0 0.0
        %4801 = vmatpush1.msra.mxu0 %v3259
        %4802 = vmatprep.subr.mxu0 0.0
        %4803 = vmatpush1.msra.mxu0 0.0
        %4804 = vmatprep.subr.mxu0 0.0
        %4805 = vmatpush1.msra.mxu0 0.0
        %4806 = vmatprep.subr.mxu0 0.0
        %4807 = vmatpush1.msra.mxu0 0.0
        %4808 = vmatprep.subr.mxu0 0.0
        %4809 = vmatpush1.msra.mxu0 0.0
        %4810 = vmatprep.subr.mxu0 0.0
        %4811 = vmatpush1.msra.mxu0 0.0
        %4812 = vmatprep.subr.mxu0 0.0
        %4813 = vmatpush1.msra.mxu0 0.0
        %4814 = vmatprep.subr.mxu0 0.0
        %4815 = vmatpush1.msra.mxu0 0.0
        %4816 = vmatprep.subr.mxu0 0.0
        %4817 = vmatpush1.msra.mxu0 0.0
        %4818 = vmatprep.subr.mxu0 0.0
        %4819 = vmatpush1.msra.mxu0 0.0
        %4820 = vmatprep.subr.mxu0 0.0
        %4821 = vmatpush1.msra.mxu0 0.0
        %4822 = vmatprep.subr.mxu0 0.0
        %4823 = vmatpush1.msra.mxu0 0.0
        %4824 = vmatprep.subr.mxu0 0.0
        %4825 = vmatpush1.msra.mxu0 0.0
        %4826 = vmatprep.subr.mxu0 0.0
        %4827 = vmatpush1.msra.mxu0 0.0
        %4828 = vmatprep.subr.mxu0 0.0
        %4829 = vmatpush1.msra.mxu0 0.0
        %4830 = vmatprep.subr.mxu0 0.0
        %4831 = vmatpush1.msra.mxu0 0.0
        %4832 = vmatprep.subr.mxu0 0.0
        %4833 = vmatpush1.msra.mxu0 0.0
        %4834 = vmatprep.subr.mxu0 0.0
        %4835 = vmatpush1.msra.mxu0 0.0
        %4836 = vmatprep.subr.mxu0 0.0
        %4837 = vmatpush1.msra.mxu0 0.0
        %4838 = vmatprep.subr.mxu0 0.0
        %4839 = vmatpush1.msra.mxu0 0.0
        %4840 = vmatprep.subr.mxu0 0.0
        %4841 = vmatpush1.msra.mxu0 0.0
        %4842 = vmatprep.subr.mxu0 0.0
        %4843 = vmatpush1.msra.mxu0 0.0
        %4844 = vmatprep.subr.mxu0 0.0
        %4845 = vmatpush1.msra.mxu0 0.0
        %4846 = vmatprep.subr.mxu0 0.0
        %4847 = vmatpush1.msra.mxu0 0.0
        %4848 = vmatprep.subr.mxu0 0.0
        %4849 = vmatpush1.msra.mxu0 0.0
        %4850 = vmatprep.subr.mxu0 0.0
        %4851 = vmatpush1.msra.mxu0 0.0
        %4852 = vmatprep.subr.mxu0 0.0
        %4853 = vmatpush1.msra.mxu0 0.0
        %4854 = vmatprep.subr.mxu0 0.0
        %4855 = vmatpush1.msra.mxu0 0.0
        %4856 = vmatprep.subr.mxu0 0.0
        %4857 = vmatpush1.msra.mxu0 0.0
        %4858 = vmatprep.mubr.f32.mxu0 0.0
        %4859 = vmatmul.mubr.f32.gmra.mrb[0].mxu0 %v4792
        %v4860 = vpop.f32.mrb[0].mxu0
        %v4861 = vadd.f32 0.0, %v4860
        %v4862 = vpop.f32.mrb[0].mxu0
        %4863 = vdwg.mxu0
        %v4864 = vadd.f32 %v3248, %v4861
        %v4865 = vmul.f32 %v4787, 0.5
        %v4866 = vtanh.pop %v4865
        %v4867 = vmul.f32 %v4866, 0.5
        %v4868 = vadd.f32 %v4867, 0.5
        %v4869 = vtanh.pop %v4787
        %v4871 = vrot.slane %v4676, 7
        %v4873 = vmul.f32 %v4868, %v4871
        %4875 = vrot.lane.b32.xlu0 %v4869, 32
        %v4876 = vpop.permute.xlu0 %4875
        %v4878 = vmul.f32 %v4868, %v4876
        %4880 = vrot.lane.b32.xlu0 %v4878, 32
        %v4881 = vpop.permute.xlu0 %4880
        %v4883 = vadd.f32 %v4873, %v4881
        %v4884 = vtanh.pop %v4883
        %4886 = vrot.lane.b32.xlu0 %v4884, 32
        %v4887 = vpop.permute.xlu0 %4886
        %v4889 = vmul.f32 %v4868, %v4887
        %v4890 = vmul.f32 %v4864, 0.5
        %v4891 = vtanh.pop %v4890
        %v4892 = vmul.f32 %v4891, 0.5
        %v4893 = vadd.f32 %v4892, 0.5
        %v4894 = vtanh.pop %v4864
        %v4896 = vrot.slane %v4701, 1
        %v4898 = vmul.f32 %v4893, %v4896
        %4900 = vrot.lane.b32.xlu0 %v4894, 32
        %v4901 = vpop.permute.xlu0 %4900
        %v4903 = vmul.f32 %v4893, %v4901
        %4905 = vrot.lane.b32.xlu0 %v4903, 32
        %v4906 = vpop.permute.xlu0 %4905
        %v4908 = vadd.f32 %v4898, %v4906
        %v4909 = vtanh.pop %v4908
        %4911 = vrot.lane.b32.xlu0 %v4909, 32
        %v4912 = vpop.permute.xlu0 %4911
        %v4914 = vmul.f32 %v4893, %v4912
        %v4915 = vsel %vm713, %v3426, %v3632
        %v4916 = vsel %vm3048, %v4915, %v3842
        %v4917 = vsel %vm3050, %v4916, %v4052
        %v4918 = vsel %vm3052, %v4917, %v4262
        %v4919 = vsel %vm3054, %v4918, %v4472
        %v4920 = vsel %vm3056, %v4919, %v4682
        %v4921 = vsel %vm717, %v4920, %v4889
        %v4922 = vsel %vm713, %v4914, %v4707
        %v4923 = vsel %vm3048, %v4922, %v4497
        %v4924 = vsel %vm3050, %v4923, %v4287
        %v4925 = vsel %vm3052, %v4924, %v4077
        %v4926 = vsel %vm3054, %v4925, %v3867
        %v4927 = vsel %vm3056, %v4926, %v3657
        %v4928 = vsel %vm717, %v4927, %v3448
        %4930 = vrot.lane.b32.xlu0 %v4921, 64
        %v4931 = vpop.permute.xlu0 %4930
        %4934 = vrot.lane.b32.xlu0 %v4928, 96
        %v4935 = vpop.permute.xlu0 %4934
        %v4937 = vsel %vm728, %v4931, %v4935
        %v4938 = vld [vmem:[%s11] sm:$0xff]
        %v4939 = vld [vmem:[%s11 + $0x8] sm:$0xff]
        %v4940 = vld [vmem:[%s11 + $0x10] sm:$0xff]
        %v4941 = vld [vmem:[%s11 + $0x18] sm:$0xff]
        %v4942 = vld [vmem:[%s11 + $0x20] sm:$0xff]
        %v4943 = vld [vmem:[%s11 + $0x28] sm:$0xff]
        %v4944 = vld [vmem:[%s11 + $0x30] sm:$0xff]
        %v4945 = vld [vmem:[%s11 + $0x38] sm:$0xff]
        %v4946 = vld [vmem:[%s12] sm:$0x1]
        %v4948 = vlaneseq
        %v4949 = vshrl.u32 %v4948, 7
        %v4950 = vsub.s32 0, %v4949
        %v4951 = vrot.slane %v4946, %v4950
        %v4954 = vsel %vm3090, %v4937, 0
        %4956 = vmatprep.subr.mxu0 0.0
        %4957 = vmatpush1.msra.mxu0 %v4938
        %4958 = vmatprep.subr.mxu0 0.0
        %4959 = vmatpush1.msra.mxu0 %v4939
        %4960 = vmatprep.subr.mxu0 0.0
        %4961 = vmatpush1.msra.mxu0 %v4940
        %4962 = vmatprep.subr.mxu0 0.0
        %4963 = vmatpush1.msra.mxu0 %v4941
        %4964 = vmatprep.subr.mxu0 0.0
        %4965 = vmatpush1.msra.mxu0 %v4942
        %4966 = vmatprep.subr.mxu0 0.0
        %4967 = vmatpush1.msra.mxu0 %v4943
        %4968 = vmatprep.subr.mxu0 0.0
        %4969 = vmatpush1.msra.mxu0 %v4944
        %4970 = vmatprep.subr.mxu0 0.0
        %4971 = vmatpush1.msra.mxu0 %v4945
        %4972 = vmatprep.subr.mxu0 0.0
        %4973 = vmatpush1.msra.mxu0 0.0
        %4974 = vmatprep.subr.mxu0 0.0
        %4975 = vmatpush1.msra.mxu0 0.0
        %4976 = vmatprep.subr.mxu0 0.0
        %4977 = vmatpush1.msra.mxu0 0.0
        %4978 = vmatprep.subr.mxu0 0.0
        %4979 = vmatpush1.msra.mxu0 0.0
        %4980 = vmatprep.subr.mxu0 0.0
        %4981 = vmatpush1.msra.mxu0 0.0
        %4982 = vmatprep.subr.mxu0 0.0
        %4983 = vmatpush1.msra.mxu0 0.0
        %4984 = vmatprep.subr.mxu0 0.0
        %4985 = vmatpush1.msra.mxu0 0.0
        %4986 = vmatprep.subr.mxu0 0.0
        %4987 = vmatpush1.msra.mxu0 0.0
        %4988 = vmatprep.subr.mxu0 0.0
        %4989 = vmatpush1.msra.mxu0 0.0
        %4990 = vmatprep.subr.mxu0 0.0
        %4991 = vmatpush1.msra.mxu0 0.0
        %4992 = vmatprep.subr.mxu0 0.0
        %4993 = vmatpush1.msra.mxu0 0.0
        %4994 = vmatprep.subr.mxu0 0.0
        %4995 = vmatpush1.msra.mxu0 0.0
        %4996 = vmatprep.subr.mxu0 0.0
        %4997 = vmatpush1.msra.mxu0 0.0
        %4998 = vmatprep.subr.mxu0 0.0
        %4999 = vmatpush1.msra.mxu0 0.0
        %5000 = vmatprep.subr.mxu0 0.0
        %5001 = vmatpush1.msra.mxu0 0.0
        %5002 = vmatprep.subr.mxu0 0.0
        %5003 = vmatpush1.msra.mxu0 0.0
        %5004 = vmatprep.subr.mxu0 0.0
        %5005 = vmatpush1.msra.mxu0 0.0
        %5006 = vmatprep.subr.mxu0 0.0
        %5007 = vmatpush1.msra.mxu0 0.0
        %5008 = vmatprep.subr.mxu0 0.0
        %5009 = vmatpush1.msra.mxu0 0.0
        %5010 = vmatprep.subr.mxu0 0.0
        %5011 = vmatpush1.msra.mxu0 0.0
        %5012 = vmatprep.subr.mxu0 0.0
        %5013 = vmatpush1.msra.mxu0 0.0
        %5014 = vmatprep.subr.mxu0 0.0
        %5015 = vmatpush1.msra.mxu0 0.0
        %5016 = vmatprep.subr.mxu0 0.0
        %5017 = vmatpush1.msra.mxu0 0.0
        %5018 = vmatprep.subr.mxu0 0.0
        %5019 = vmatpush1.msra.mxu0 0.0
        %5020 = vmatprep.mubr.f32.mxu0 0.0
        %5021 = vmatmul.mubr.f32.gmra.mrb[0].mxu0 %v4954
        %v5022 = vpop.f32.mrb[0].mxu0
        %v5023 = vadd.f32 %v4951, %v5022
        %v5024 = vpop.f32.mrb[0].mxu0
        %5025 = vdwg.mxu0
        %v5026 = vld [vmem:[%s13] sm:$0x1]
        %v5028 = vlaneseq
        %v5029 = vshrl.u32 %v5028, 7
        %v5030 = vsub.s32 0, %v5029
        %v5031 = vrot.slane %v5026, %v5030
        %v5033 = vmul.f32 %v5023, %v5031
        %v5034 = vsel %vm728, %v5033, 0.0
        %5035 = vadd.xlane.f32.xlu0 %v5034
        %v5036 = vpop.xlane.xlu0 %5035
        %v5037 = vld [vmem:[#allocation2] sm:$0x1]
        %v5039 = vlaneseq
        %v5040 = vshrl.u32 %v5039, 7
        %v5041 = vsub.s32 0, %v5040
        %v5042 = vrot.slane %v5037, %v5041
        %v5044 = vadd.f32 %v5036, %v5042
        %vm5045 = vcmask 7168
        %v5046 = vsel %vm5045, %v5044, -inf
        %v5047 = vrot.slane %v5046, 4
        %v5048 = vmax.f32 %v5046, %v5047
        %v5049 = vrot.slane %v5048, 2
        %v5050 = vmax.f32 %v5048, %v5049
        %v5051 = vrot.slane %v5050, 1
        %v5052 = vmax.f32 %v5050, %v5051
        %v5053 = vsub.f32 %v5044, %v5052
        %v5054 = vmul.f32 %v5053, 1.442695
        %v5055 = vpow.pop %v5054
        %v5056 = vsel %vm5045, %v5055, 0.0
        %v5057 = vrot.slane %v5056, 4
        %v5058 = vadd.f32 %v5056, %v5057
        %v5059 = vrot.slane %v5058, 2
        %v5060 = vadd.f32 %v5058, %v5059
        %v5061 = vrot.slane %v5060, 1
        %v5062 = vadd.f32 %v5060, %v5061
        %v5063 = vrcp.pop %v5062
        %v5064 = vmul.f32 %v5055, %v5063
        %5066 = vset.pattern.permute.xlu0 0
        %5067 = vperm.xlu0 %5066, %v5064
        %v5068 = vpop.permute.xlu0 %5067
        %v5070 = vmul.f32 %v5068, %v5023
        %v5071 = vsel %vm728, %v5070, 0.0
        %v5072 = vrot.slane %v5071, 4
        %v5073 = vadd.f32 %v5071, %v5072
        %v5074 = vrot.slane %v5073, 2
        %v5075 = vadd.f32 %v5073, %v5074
        %v5076 = vrot.slane %v5075, 1
        %v5077 = vadd.f32 %v5075, %v5076
        %vm5078 = vcmask 253952
        %5079 = vst.msk [vmem:[%s488] sm:$0x1] %vm5078, %v5077
        %s5080 = sand.u32 %s359, 1
        %s5081 = scalar_lea.sflag [#allocation4], %s5080
        %s5082 = sand.u32 %s359, 1
        %s5083 = scalar_lea.vmem [#allocation3], %s5082
        // Predicated region
        $region81: #{clip_vid_encoder_forward.1} parent=79 // pred_check
          %p5084 = pneg %p369
        $region82: #{clip_vid_encoder_forward.1} parent=79 // pred_check_branch
          %5086 = sbr.rel (%p5084) target = $region84
        $region83: #{clip_vid_encoder_forward.1} parent=79 // pred_region
          %s5088 = ssub.s32 16, 16
          %5089 = vsyncadd %s5081, %s5088
          %s5090 = smul.addr %s31, 16
          %s5091 = scalar_lea.hbm %s15, %s5090
          %s5093 = sshll.u32 %s5083, 4
          %s5094 = int_to_ptr.vmem [resolvable:$true] %s5093
          %5096 = dma.vmem_to_hbm [thread:$0]  %s5094, 16, %s5091, %s5081
        $region84: #{clip_vid_encoder_forward.1} parent=79 // pred_fallthru
          _
      $region80: #{clip_vid_encoder_forward.1} parent=5 // pred_fallthru
        _
      %p5097 = scmp.le.s32.totalorder 2, %s26
      // Predicated region
      $region85: #{clip_vid_encoder_forward.1} parent=5 // pred_check
        %p5098 = pneg %p5097
      $region86: #{clip_vid_encoder_forward.1} parent=5 // pred_check_branch
        %5100 = sbr.rel (%p5098) target = $region88
      $region87: #{clip_vid_encoder_forward.1} parent=5 // pred_region
        %s5101 = ssub.s32 %s26, 2
        // Predicated region
        $region89: #{clip_vid_encoder_forward.1} parent=87 // pred_check
          %p5102 = pneg %p375
        $region90: #{clip_vid_encoder_forward.1} parent=87 // pred_check_branch
          %5104 = sbr.rel (%p5102) target = $region92
        $region91: #{clip_vid_encoder_forward.1} parent=87 // pred_region
          %s5105 = sand.u32 %s360, 1
          %s5106 = scalar_lea.sflag [#allocation4], %s5105
          %s5107 = sand.u32 %s360, 1
          %s5108 = scalar_lea.vmem [#allocation3], %s5107
          %5109 = dma.done %s5106, 16
        $region92: #{clip_vid_encoder_forward.1} parent=87 // pred_fallthru
          _
      $region88: #{clip_vid_encoder_forward.1} parent=5 // pred_fallthru
        _
    $region6: #{clip_vid_encoder_forward.1} parent=1 // loop_footer
      %s30 = sadd.s32 1, %s26
    $region7: #{clip_vid_encoder_forward.1} parent=1 // loop_footer_branch
      %25 = sbr.rel target = $region3
    $region8: #{clip_vid_encoder_forward.1} parent=1 // loop_exit
      _
    %5110 = vsyncpa [#allocation4], 1
    %s5111 = scalar_lea.sflag [#allocation4], 1
    %5112 = vsyncpa %s5111, 1

</llo_original>
